<compile_context>
chip_gen: v7x
topology: tpu7x:2x2x1
jax: 0.10.0
libtpu: 0.0.40
codegen_flags: <defaults>
</compile_context>

<pallas_src>
import functools

import jax
import jax.numpy as jnp
from jax.experimental import pallas as pl
from jax.experimental.pallas import tpu as pltpu


# ----------------------- static network geometry ---------------------------
H0 = W0 = 32             # input spatial (3x32x32, as 16*5*5 in fc1 implies)
CIN = 3
C1 = 6                   # conv1 out channels
H1 = W1 = 28             # conv1 output spatial (VALID 5x5)
P1 = 14                  # pooled1 spatial
C2 = 16                  # conv2 out channels
H2 = W2 = 10             # conv2 output spatial
P2 = 5                   # pooled2 spatial
K = 5                    # conv kernel size
LANES = 128

NPATCH1 = H1 * W1        # 784 conv1 output positions per image
PATCH1_K = K * K * CIN   # 75 im2col features per conv1 patch
CHUNK1 = 112             # conv1 matmul row chunk (784 = 7 * 112)
PITCH1 = 16              # pool1 row pitch  (row = ph*16 + pw)
POOL1_ROWS = P1 * PITCH1 + 8   # 232 (conv2 overhang taps read up to row 227)
CONV2_ROWS = H2 * PITCH1       # 160 (row = oh*16 + ow)
FC1_IN = C2 * P2 * P2    # 400
FCIN_LANES = 512         # fc1 input row, lane-padded

MATMUL_DTYPE = jnp.bfloat16    # MXU operand dtype; accumulation stays f32


# ------------------------------ fused kernel -------------------------------

def _lenet_kernel(patches_ref, w1_ref, b1_ref, w2_ref, b2_ref,
                  wf1_ref, bf1_ref, wf2_ref, bf2_ref, wf3_ref, bf3_ref,
                  out_ref,
                  conv1_ref, pool1_ref, conv2_ref, fcin_ref):
    f32 = jnp.float32
    mm = MATMUL_DTYPE

    # ---------- conv1: single im2col matmul, issued in 7 M=112 chunks ------
    w1 = w1_ref[...]                                           # (128,128) bf16
    for ck in range(NPATCH1 // CHUNK1):                        # 7 chunks
        lhs = patches_ref[pl.ds(ck * CHUNK1, CHUNK1), :]       # (112,128) bf16
        conv1_ref[pl.ds(ck * CHUNK1, CHUNK1), :] = jnp.dot(
            lhs, w1, preferred_element_type=f32)

    # ---------- pool1 = 2x2/2 max + bias + ReLU (strided sublane reads) ----
    b1 = b1_ref[...]                                           # (1,128) f32
    for ph in range(P1):                                       # 14 pooled rows
        r00 = conv1_ref[pl.ds((2 * ph) * W1, P1, stride=2), :]
        r01 = conv1_ref[pl.ds((2 * ph) * W1 + 1, P1, stride=2), :]
        r10 = conv1_ref[pl.ds((2 * ph + 1) * W1, P1, stride=2), :]
        r11 = conv1_ref[pl.ds((2 * ph + 1) * W1 + 1, P1, stride=2), :]
        m = jnp.maximum(jnp.maximum(r00, r01), jnp.maximum(r10, r11))
        pool1_ref[pl.ds(ph * PITCH1, P1), :] = jnp.maximum(m + b1, 0.0)

    # ---------- conv2: 25 tap matmuls, register accumulation, 2 blocks -----
    for blk in range(2):
        base = blk * 80
        acc = None
        for t in range(K * K):
            i, j = t // K, t % K
            lhs = pool1_ref[pl.ds(base + i * PITCH1 + j, 80),
                            pl.ds(0, 8)].astype(mm)            # (80,8) bf16
            part = jnp.dot(lhs, w2_ref[t], preferred_element_type=f32)
            acc = part if acc is None else acc + part
        conv2_ref[pl.ds(base, 80), :] = acc                    # single store

    # ---------- pool2 + bias + ReLU, packed lane-dense for fc1 -------------
    fcin_ref[...] = jnp.zeros_like(fcin_ref)                   # tiny (8,512)
    b2 = b2_ref[...]
    for ph in range(P2):                                       # 5 pooled rows
        r00 = conv2_ref[pl.ds((2 * ph) * PITCH1, P2, stride=2), :]
        r01 = conv2_ref[pl.ds((2 * ph) * PITCH1 + 1, P2, stride=2), :]
        r10 = conv2_ref[pl.ds((2 * ph + 1) * PITCH1, P2, stride=2), :]
        r11 = conv2_ref[pl.ds((2 * ph + 1) * PITCH1 + 1, P2, stride=2), :]
        m = jnp.maximum(jnp.maximum(r00, r01), jnp.maximum(r10, r11))
        m = jnp.maximum(m + b2, 0.0)                           # (5,128), lanes>=16 are 0
        for pw in range(P2):
            t = ph * P2 + pw
            # place the 16 channels of pooled position t at lanes [16t,16t+16)
            fcin_ref[0:1, pl.ds(t * C2, C2)] = m[pw:pw + 1, 0:C2]

    # ---------------------------- fc1 / fc2 / fc3 --------------------------
    h = fcin_ref[0:1, :].astype(mm)                            # (1,512)
    h = jnp.dot(h, wf1_ref[...], preferred_element_type=f32) + bf1_ref[...]
    h = jnp.maximum(h, 0.0)
    h = jnp.dot(h.astype(mm), wf2_ref[...],
                preferred_element_type=f32) + bf2_ref[...]
    h = jnp.maximum(h, 0.0)
    y = jnp.dot(h.astype(mm), wf3_ref[...],
                preferred_element_type=f32) + bf3_ref[...]     # (1,128)
    out_ref[0] = jnp.broadcast_to(y, (8, LANES))


# ------------------------------ JAX wrapper ---------------------------------

def _zero_map(ndim, b):
    return (0,) * ndim


def _im2col_conv1(x_nchw):
    """(B,3,32,32) -> (B*784, 128) bf16 im2col patches, feature = (i*5+j)*3+c."""
    B = x_nchw.shape[0]
    x = jnp.transpose(x_nchw, (0, 2, 3, 1))                    # (B,32,32,3)
    taps = [x[:, i:i + H1, j:j + W1, :] for i in range(K) for j in range(K)]
    p = jnp.concatenate(taps, axis=-1)                         # (B,28,28,75)
    p = p.reshape(B * NPATCH1, PATCH1_K)
    p = jnp.pad(p, ((0, 0), (0, LANES - PATCH1_K)))
    return p.astype(MATMUL_DTYPE)


def net_forward(params, x_nchw):
    B = x_nchw.shape[0]
    patches = _im2col_conv1(x_nchw)                            # (B*784,128) bf16

    args = (patches, params["w1"], params["b1"], params["w2"], params["b2"],
            params["wf1"], params["bf1"], params["wf2"], params["bf2"],
            params["wf3"], params["bf3"])

    in_specs = [pl.BlockSpec((NPATCH1, LANES), lambda b: (b, 0))]
    for a in args[1:]:    # parameters: full-array blocks, same for every step
        in_specs.append(pl.BlockSpec(a.shape, functools.partial(_zero_map, a.ndim)))

    out = pl.pallas_call(
        _lenet_kernel,
        out_shape=jax.ShapeDtypeStruct((B, 8, LANES), jnp.float32),
        grid=(B,),
        in_specs=in_specs,
        out_specs=pl.BlockSpec((1, 8, LANES), lambda b: (b, 0, 0)),
        scratch_shapes=[
            pltpu.VMEM((NPATCH1, LANES), jnp.float32),     # conv1 output (784,128)
            pltpu.VMEM((POOL1_ROWS, LANES), jnp.float32),  # pooled1, pitch 16
            pltpu.VMEM((CONV2_ROWS, LANES), jnp.float32),  # conv2 output (160,128)
            pltpu.VMEM((8, FCIN_LANES), jnp.float32),      # lane-dense fc1 input
        ],
        compiler_params=pltpu.CompilerParams(
            dimension_semantics=("parallel",),             # v7x: one image per TC
            vmem_limit_bytes=32 * 1024 * 1024),
    )(*args)
    return out[:, 0, :10]


# ------------------------ parameter init / packing --------------------------

def prep_params(raw):
    """PyTorch-layout params -> kernel layout (bf16 matmul operands, f32 bias)."""
    mm = MATMUL_DTYPE
    # conv1: (cout,cin,kh,kw) -> ((kh*kw)*cin, cout), zero-padded to (128,128).
    w1 = jnp.transpose(raw["conv1_w"], (2, 3, 1, 0)).reshape(PATCH1_K, C1)
    w1 = jnp.pad(w1, ((0, LANES - PATCH1_K), (0, LANES - C1))).astype(mm)
    # conv2: one (cin->8, cout->128) matrix per 5x5 tap.
    w2 = jnp.transpose(raw["conv2_w"], (2, 3, 1, 0)).reshape(K * K, C1, C2)
    w2 = jnp.pad(w2, ((0, 0), (0, 8 - C1), (0, LANES - C2))).astype(mm)
    # fc1: torch flatten order (c*25 + ph*5 + pw) regrouped to the lane-dense
    # order ((ph*5+pw)*16 + c) used by the kernel's fcin packing.
    wf1 = raw["fc1_w"].reshape(120, C2, P2, P2)                # (o,c,ph,pw)
    wf1 = jnp.transpose(wf1, (2, 3, 1, 0)).reshape(FC1_IN, 120)
    wf1 = jnp.pad(wf1, ((0, FCIN_LANES - FC1_IN), (0, LANES - 120))).astype(mm)
    wf2 = jnp.pad(raw["fc2_w"].T, ((0, LANES - 120), (0, LANES - 84))).astype(mm)
    wf3 = jnp.pad(raw["fc3_w"].T, ((0, LANES - 84), (0, LANES - 10))).astype(mm)

    def b_(v):
        return jnp.pad(v.reshape(1, -1), ((0, 0), (0, LANES - v.shape[0])))

    return {"w1": w1, "b1": b_(raw["conv1_b"]),
            "w2": w2, "b2": b_(raw["conv2_b"]),
            "wf1": wf1, "bf1": b_(raw["fc1_b"]),
            "wf2": wf2, "bf2": b_(raw["fc2_b"]),
            "wf3": wf3, "bf3": b_(raw["fc3_b"])}


def init_params(key):
    ks = jax.random.split(key, 10)

    def u(k, shape, fan_in):
        bound = 1.0 / (fan_in ** 0.5)
        return jax.random.uniform(k, shape, jnp.float32, -bound, bound)

    raw = {
        "conv1_w": u(ks[0], (6, 3, 5, 5), 3 * 25),
        "conv1_b": u(ks[1], (6,), 3 * 25),
        "conv2_w": u(ks[2], (16, 6, 5, 5), 6 * 25),
        "conv2_b": u(ks[3], (16,), 6 * 25),
        "fc1_w": u(ks[4], (120, 400), 400),
        "fc1_b": u(ks[5], (120,), 400),
        "fc2_w": u(ks[6], (84, 120), 120),
        "fc2_b": u(ks[7], (84,), 120),
        "fc3_w": u(ks[8], (10, 84), 84),
        "fc3_b": u(ks[9], (10,), 84),
    }
    return raw, prep_params(raw)


# ------------------------------ f32 reference -------------------------------

def _pool_ref(y):  # NCHW 2x2/2 max pool
    B, C, H, W = y.shape
    return y.reshape(B, C, H // 2, 2, W // 2, 2).max(axis=(3, 5))


def net_forward_ref(raw, x):
    dn = ("NCHW", "OIHW", "NCHW")
    y = jax.lax.conv_general_dilated(x, raw["conv1_w"], (1, 1), "VALID",
                                     dimension_numbers=dn)
    y = jnp.maximum(y + raw["conv1_b"][None, :, None, None], 0.0)
    y = _pool_ref(y)
    y = jax.lax.conv_general_dilated(y, raw["conv2_w"], (1, 1), "VALID",
                                     dimension_numbers=dn)
    y = jnp.maximum(y + raw["conv2_b"][None, :, None, None], 0.0)
    y = _pool_ref(y)
    y = y.reshape(y.shape[0], -1)
    y = jnp.maximum(y @ raw["fc1_w"].T + raw["fc1_b"], 0.0)
    y = jnp.maximum(y @ raw["fc2_w"].T + raw["fc2_b"], 0.0)
    return y @ raw["fc3_w"].T + raw["fc3_b"]


# --------------------------------- main --------------------------------------

if __name__ == "__main__":
    key = jax.random.PRNGKey(0)
    pkey, xkey = jax.random.split(key)
    raw, params = init_params(pkey)

    x = jax.random.normal(xkey, (2, 3, 32, 32), jnp.float32)   # NCHW, like PyTorch

    out = jax.block_until_ready(jax.jit(net_forward)(params, x))
    assert out.shape == (2, 10) and out.dtype == jnp.float32

    ref = net_forward_ref(raw, x)
    max_err = float(jnp.max(jnp.abs(out - ref)))
    # bf16 MXU operands vs. the f32 reference: tolerance loose enough for the
    # ~0.2% per-operand rounding, tight enough to catch any layout bug (O(1)).
    assert bool(jnp.allclose(out, ref, atol=2e-2, rtol=2e-2)), (
        f"mismatch: max abs diff {max_err}")

    print("KERNEL_OK")
</pallas_src>

<mosaic_0001>
module attributes {stable_mosaic.version = 11 : i64} {
  func.func @_lenet_kernel(%arg0: i32, %arg1: memref<784x128xbf16, #tpu.memory_space<vmem>>, %arg2: memref<128x128xbf16, #tpu.memory_space<vmem>>, %arg3: memref<1x128xf32, #tpu.memory_space<vmem>>, %arg4: memref<25x8x128xbf16, #tpu.memory_space<vmem>>, %arg5: memref<1x128xf32, #tpu.memory_space<vmem>>, %arg6: memref<512x128xbf16, #tpu.memory_space<vmem>>, %arg7: memref<1x128xf32, #tpu.memory_space<vmem>>, %arg8: memref<128x128xbf16, #tpu.memory_space<vmem>>, %arg9: memref<1x128xf32, #tpu.memory_space<vmem>>, %arg10: memref<128x128xbf16, #tpu.memory_space<vmem>>, %arg11: memref<1x128xf32, #tpu.memory_space<vmem>>, %arg12: memref<1x8x128xf32, #tpu.memory_space<vmem>>, %arg13: memref<784x128xf32, #tpu.memory_space<vmem>>, %arg14: memref<232x128xf32, #tpu.memory_space<vmem>>, %arg15: memref<160x128xf32, #tpu.memory_space<vmem>>, %arg16: memref<8x512xf32, #tpu.memory_space<vmem>>) attributes {dimension_semantics = [#tpu.dimension_semantics<parallel>], iteration_bounds = array<i64: 2>, scalar_prefetch = 0 : i64, scratch_operands = 4 : i64, tpu.core_type = #tpu.core_type<tc>, window_params = [{transform_indices = @transform_0, window_bounds = array<i64: 784, 128>}, {pipeline_mode = #tpu.pipeline_mode<synchronous>, transform_indices = @transform_1, window_bounds = array<i64: 128, 128>}, {pipeline_mode = #tpu.pipeline_mode<synchronous>, transform_indices = @transform_2, window_bounds = array<i64: 1, 128>}, {pipeline_mode = #tpu.pipeline_mode<synchronous>, transform_indices = @transform_3, window_bounds = array<i64: 25, 8, 128>}, {pipeline_mode = #tpu.pipeline_mode<synchronous>, transform_indices = @transform_4, window_bounds = array<i64: 1, 128>}, {pipeline_mode = #tpu.pipeline_mode<synchronous>, transform_indices = @transform_5, window_bounds = array<i64: 512, 128>}, {pipeline_mode = #tpu.pipeline_mode<synchronous>, transform_indices = @transform_6, window_bounds = array<i64: 1, 128>}, {pipeline_mode = #tpu.pipeline_mode<synchronous>, transform_indices = @transform_7, window_bounds = array<i64: 128, 128>}, {pipeline_mode = #tpu.pipeline_mode<synchronous>, transform_indices = @transform_8, window_bounds = array<i64: 1, 128>}, {pipeline_mode = #tpu.pipeline_mode<synchronous>, transform_indices = @transform_9, window_bounds = array<i64: 128, 128>}, {pipeline_mode = #tpu.pipeline_mode<synchronous>, transform_indices = @transform_10, window_bounds = array<i64: 1, 128>}, {transform_indices = @transform_11, window_bounds = array<i64: 1, 8, 128>}]} {
    %c0 = arith.constant 0 : index
    %c0_0 = arith.constant 0 : index
    %0 = vector.load %arg2[%c0, %c0_0] : memref<128x128xbf16, #tpu.memory_space<vmem>>, vector<128x128xbf16>
    %c0_1 = arith.constant 0 : index
    %c0_2 = arith.constant 0 : index
    %1 = vector.load %arg1[%c0_1, %c0_2] : memref<784x128xbf16, #tpu.memory_space<vmem>>, vector<112x128xbf16>
    %cst = arith.constant dense<0.000000e+00> : vector<112x128xf32>
    %2 = tpu.matmul %1, %0, %cst {dimension_numbers = #tpu.dot_dimension_numbers<[1], [0], [0], [1], [0, 0, 1, 1], [], []>} : vector<112x128xbf16>, vector<128x128xbf16>, vector<112x128xf32> -> vector<112x128xf32>
    %c0_3 = arith.constant 0 : index
    %c0_4 = arith.constant 0 : index
    %3 = vector.load %arg13[%c0_3, %c0_4] : memref<784x128xf32, #tpu.memory_space<vmem>>, vector<112x128xf32>
    tpu.vector_store %arg13[%c0_3, %c0_4], %2 {strides = array<i32>} : memref<784x128xf32, #tpu.memory_space<vmem>>, vector<112x128xf32>,
    %c112 = arith.constant 112 : index
    %c0_5 = arith.constant 0 : index
    %4 = vector.load %arg1[%c112, %c0_5] : memref<784x128xbf16, #tpu.memory_space<vmem>>, vector<112x128xbf16>
    %cst_6 = arith.constant dense<0.000000e+00> : vector<112x128xf32>
    %5 = tpu.matmul %4, %0, %cst_6 {dimension_numbers = #tpu.dot_dimension_numbers<[1], [0], [0], [1], [0, 0, 1, 1], [], []>} : vector<112x128xbf16>, vector<128x128xbf16>, vector<112x128xf32> -> vector<112x128xf32>
    %c112_7 = arith.constant 112 : index
    %c0_8 = arith.constant 0 : index
    %6 = vector.load %arg13[%c112_7, %c0_8] : memref<784x128xf32, #tpu.memory_space<vmem>>, vector<112x128xf32>
    tpu.vector_store %arg13[%c112_7, %c0_8], %5 {strides = array<i32>} : memref<784x128xf32, #tpu.memory_space<vmem>>, vector<112x128xf32>,
    %c224 = arith.constant 224 : index
    %c0_9 = arith.constant 0 : index
    %7 = vector.load %arg1[%c224, %c0_9] : memref<784x128xbf16, #tpu.memory_space<vmem>>, vector<112x128xbf16>
    %cst_10 = arith.constant dense<0.000000e+00> : vector<112x128xf32>
    %8 = tpu.matmul %7, %0, %cst_10 {dimension_numbers = #tpu.dot_dimension_numbers<[1], [0], [0], [1], [0, 0, 1, 1], [], []>} : vector<112x128xbf16>, vector<128x128xbf16>, vector<112x128xf32> -> vector<112x128xf32>
    %c224_11 = arith.constant 224 : index
    %c0_12 = arith.constant 0 : index
    %9 = vector.load %arg13[%c224_11, %c0_12] : memref<784x128xf32, #tpu.memory_space<vmem>>, vector<112x128xf32>
    tpu.vector_store %arg13[%c224_11, %c0_12], %8 {strides = array<i32>} : memref<784x128xf32, #tpu.memory_space<vmem>>, vector<112x128xf32>,
    %c336 = arith.constant 336 : index
    %c0_13 = arith.constant 0 : index
    %10 = vector.load %arg1[%c336, %c0_13] : memref<784x128xbf16, #tpu.memory_space<vmem>>, vector<112x128xbf16>
    %cst_14 = arith.constant dense<0.000000e+00> : vector<112x128xf32>
    %11 = tpu.matmul %10, %0, %cst_14 {dimension_numbers = #tpu.dot_dimension_numbers<[1], [0], [0], [1], [0, 0, 1, 1], [], []>} : vector<112x128xbf16>, vector<128x128xbf16>, vector<112x128xf32> -> vector<112x128xf32>
    %c336_15 = arith.constant 336 : index
    %c0_16 = arith.constant 0 : index
    %12 = vector.load %arg13[%c336_15, %c0_16] : memref<784x128xf32, #tpu.memory_space<vmem>>, vector<112x128xf32>
    tpu.vector_store %arg13[%c336_15, %c0_16], %11 {strides = array<i32>} : memref<784x128xf32, #tpu.memory_space<vmem>>, vector<112x128xf32>,
    %c448 = arith.constant 448 : index
    %c0_17 = arith.constant 0 : index
    %13 = vector.load %arg1[%c448, %c0_17] : memref<784x128xbf16, #tpu.memory_space<vmem>>, vector<112x128xbf16>
    %cst_18 = arith.constant dense<0.000000e+00> : vector<112x128xf32>
    %14 = tpu.matmul %13, %0, %cst_18 {dimension_numbers = #tpu.dot_dimension_numbers<[1], [0], [0], [1], [0, 0, 1, 1], [], []>} : vector<112x128xbf16>, vector<128x128xbf16>, vector<112x128xf32> -> vector<112x128xf32>
    %c448_19 = arith.constant 448 : index
    %c0_20 = arith.constant 0 : index
    %15 = vector.load %arg13[%c448_19, %c0_20] : memref<784x128xf32, #tpu.memory_space<vmem>>, vector<112x128xf32>
    tpu.vector_store %arg13[%c448_19, %c0_20], %14 {strides = array<i32>} : memref<784x128xf32, #tpu.memory_space<vmem>>, vector<112x128xf32>,
    %c560 = arith.constant 560 : index
    %c0_21 = arith.constant 0 : index
    %16 = vector.load %arg1[%c560, %c0_21] : memref<784x128xbf16, #tpu.memory_space<vmem>>, vector<112x128xbf16>
    %cst_22 = arith.constant dense<0.000000e+00> : vector<112x128xf32>
    %17 = tpu.matmul %16, %0, %cst_22 {dimension_numbers = #tpu.dot_dimension_numbers<[1], [0], [0], [1], [0, 0, 1, 1], [], []>} : vector<112x128xbf16>, vector<128x128xbf16>, vector<112x128xf32> -> vector<112x128xf32>
    %c560_23 = arith.constant 560 : index
    %c0_24 = arith.constant 0 : index
    %18 = vector.load %arg13[%c560_23, %c0_24] : memref<784x128xf32, #tpu.memory_space<vmem>>, vector<112x128xf32>
    tpu.vector_store %arg13[%c560_23, %c0_24], %17 {strides = array<i32>} : memref<784x128xf32, #tpu.memory_space<vmem>>, vector<112x128xf32>,
    %c672 = arith.constant 672 : index
    %c0_25 = arith.constant 0 : index
    %19 = vector.load %arg1[%c672, %c0_25] : memref<784x128xbf16, #tpu.memory_space<vmem>>, vector<112x128xbf16>
    %cst_26 = arith.constant dense<0.000000e+00> : vector<112x128xf32>
    %20 = tpu.matmul %19, %0, %cst_26 {dimension_numbers = #tpu.dot_dimension_numbers<[1], [0], [0], [1], [0, 0, 1, 1], [], []>} : vector<112x128xbf16>, vector<128x128xbf16>, vector<112x128xf32> -> vector<112x128xf32>
    %c672_27 = arith.constant 672 : index
    %c0_28 = arith.constant 0 : index
    %21 = vector.load %arg13[%c672_27, %c0_28] : memref<784x128xf32, #tpu.memory_space<vmem>>, vector<112x128xf32>
    tpu.vector_store %arg13[%c672_27, %c0_28], %20 {strides = array<i32>} : memref<784x128xf32, #tpu.memory_space<vmem>>, vector<112x128xf32>,
    %c0_29 = arith.constant 0 : index
    %c0_30 = arith.constant 0 : index
    %22 = vector.load %arg3[%c0_29, %c0_30] : memref<1x128xf32, #tpu.memory_space<vmem>>, vector<1x128xf32>
    %c0_31 = arith.constant 0 : index
    %c0_32 = arith.constant 0 : index
    %23 = tpu.strided_load %arg13[%c0_31, %c0_32] {strides = array<i32: 2, 1>} : memref<784x128xf32, #tpu.memory_space<vmem>>, vector<14x128xf32>
    %c1 = arith.constant 1 : index
    %c0_33 = arith.constant 0 : index
    %24 = tpu.strided_load %arg13[%c1, %c0_33] {strides = array<i32: 2, 1>} : memref<784x128xf32, #tpu.memory_space<vmem>>, vector<14x128xf32>
    %c28 = arith.constant 28 : index
    %c0_34 = arith.constant 0 : index
    %25 = tpu.strided_load %arg13[%c28, %c0_34] {strides = array<i32: 2, 1>} : memref<784x128xf32, #tpu.memory_space<vmem>>, vector<14x128xf32>
    %c29 = arith.constant 29 : index
    %c0_35 = arith.constant 0 : index
    %26 = tpu.strided_load %arg13[%c29, %c0_35] {strides = array<i32: 2, 1>} : memref<784x128xf32, #tpu.memory_space<vmem>>, vector<14x128xf32>
    %27 = arith.maximumf %23, %24 : vector<14x128xf32>
    %28 = arith.maximumf %25, %26 : vector<14x128xf32>
    %29 = arith.maximumf %27, %28 : vector<14x128xf32>
    %30 = vector.broadcast %22 : vector<1x128xf32> to vector<14x128xf32>
    %31 = arith.addf %29, %30 : vector<14x128xf32>
    %cst_36 = arith.constant 0.000000e+00 : f32
    %32 = vector.broadcast %cst_36 : f32 to vector<14x128xf32>
    %33 = arith.maximumf %31, %32 : vector<14x128xf32>
    %c0_37 = arith.constant 0 : index
    %c0_38 = arith.constant 0 : index
    %34 = vector.load %arg14[%c0_37, %c0_38] : memref<232x128xf32, #tpu.memory_space<vmem>>, vector<14x128xf32>
    tpu.vector_store %arg14[%c0_37, %c0_38], %33 {strides = array<i32>} : memref<232x128xf32, #tpu.memory_space<vmem>>, vector<14x128xf32>,
    %c56 = arith.constant 56 : index
    %c0_39 = arith.constant 0 : index
    %35 = tpu.strided_load %arg13[%c56, %c0_39] {strides = array<i32: 2, 1>} : memref<784x128xf32, #tpu.memory_space<vmem>>, vector<14x128xf32>
    %c57 = arith.constant 57 : index
    %c0_40 = arith.constant 0 : index
    %36 = tpu.strided_load %arg13[%c57, %c0_40] {strides = array<i32: 2, 1>} : memref<784x128xf32, #tpu.memory_space<vmem>>, vector<14x128xf32>
    %c84 = arith.constant 84 : index
    %c0_41 = arith.constant 0 : index
    %37 = tpu.strided_load %arg13[%c84, %c0_41] {strides = array<i32: 2, 1>} : memref<784x128xf32, #tpu.memory_space<vmem>>, vector<14x128xf32>
    %c85 = arith.constant 85 : index
    %c0_42 = arith.constant 0 : index
    %38 = tpu.strided_load %arg13[%c85, %c0_42] {strides = array<i32: 2, 1>} : memref<784x128xf32, #tpu.memory_space<vmem>>, vector<14x128xf32>
    %39 = arith.maximumf %35, %36 : vector<14x128xf32>
    %40 = arith.maximumf %37, %38 : vector<14x128xf32>
    %41 = arith.maximumf %39, %40 : vector<14x128xf32>
    %42 = vector.broadcast %22 : vector<1x128xf32> to vector<14x128xf32>
    %43 = arith.addf %41, %42 : vector<14x128xf32>
    %cst_43 = arith.constant 0.000000e+00 : f32
    %44 = vector.broadcast %cst_43 : f32 to vector<14x128xf32>
    %45 = arith.maximumf %43, %44 : vector<14x128xf32>
    %c16 = arith.constant 16 : index
    %c0_44 = arith.constant 0 : index
    %46 = vector.load %arg14[%c16, %c0_44] : memref<232x128xf32, #tpu.memory_space<vmem>>, vector<14x128xf32>
    tpu.vector_store %arg14[%c16, %c0_44], %45 {strides = array<i32>} : memref<232x128xf32, #tpu.memory_space<vmem>>, vector<14x128xf32>,
    %c112_45 = arith.constant 112 : index
    %c0_46 = arith.constant 0 : index
    %47 = tpu.strided_load %arg13[%c112_45, %c0_46] {strides = array<i32: 2, 1>} : memref<784x128xf32, #tpu.memory_space<vmem>>, vector<14x128xf32>
    %c113 = arith.constant 113 : index
    %c0_47 = arith.constant 0 : index
    %48 = tpu.strided_load %arg13[%c113, %c0_47] {strides = array<i32: 2, 1>} : memref<784x128xf32, #tpu.memory_space<vmem>>, vector<14x128xf32>
    %c140 = arith.constant 140 : index
    %c0_48 = arith.constant 0 : index
    %49 = tpu.strided_load %arg13[%c140, %c0_48] {strides = array<i32: 2, 1>} : memref<784x128xf32, #tpu.memory_space<vmem>>, vector<14x128xf32>
    %c141 = arith.constant 141 : index
    %c0_49 = arith.constant 0 : index
    %50 = tpu.strided_load %arg13[%c141, %c0_49] {strides = array<i32: 2, 1>} : memref<784x128xf32, #tpu.memory_space<vmem>>, vector<14x128xf32>
    %51 = arith.maximumf %47, %48 : vector<14x128xf32>
    %52 = arith.maximumf %49, %50 : vector<14x128xf32>
    %53 = arith.maximumf %51, %52 : vector<14x128xf32>
    %54 = vector.broadcast %22 : vector<1x128xf32> to vector<14x128xf32>
    %55 = arith.addf %53, %54 : vector<14x128xf32>
    %cst_50 = arith.constant 0.000000e+00 : f32
    %56 = vector.broadcast %cst_50 : f32 to vector<14x128xf32>
    %57 = arith.maximumf %55, %56 : vector<14x128xf32>
    %c32 = arith.constant 32 : index
    %c0_51 = arith.constant 0 : index
    %58 = vector.load %arg14[%c32, %c0_51] : memref<232x128xf32, #tpu.memory_space<vmem>>, vector<14x128xf32>
    tpu.vector_store %arg14[%c32, %c0_51], %57 {strides = array<i32>} : memref<232x128xf32, #tpu.memory_space<vmem>>, vector<14x128xf32>,
    %c168 = arith.constant 168 : index
    %c0_52 = arith.constant 0 : index
    %59 = tpu.strided_load %arg13[%c168, %c0_52] {strides = array<i32: 2, 1>} : memref<784x128xf32, #tpu.memory_space<vmem>>, vector<14x128xf32>
    %c169 = arith.constant 169 : index
    %c0_53 = arith.constant 0 : index
    %60 = tpu.strided_load %arg13[%c169, %c0_53] {strides = array<i32: 2, 1>} : memref<784x128xf32, #tpu.memory_space<vmem>>, vector<14x128xf32>
    %c196 = arith.constant 196 : index
    %c0_54 = arith.constant 0 : index
    %61 = tpu.strided_load %arg13[%c196, %c0_54] {strides = array<i32: 2, 1>} : memref<784x128xf32, #tpu.memory_space<vmem>>, vector<14x128xf32>
    %c197 = arith.constant 197 : index
    %c0_55 = arith.constant 0 : index
    %62 = tpu.strided_load %arg13[%c197, %c0_55] {strides = array<i32: 2, 1>} : memref<784x128xf32, #tpu.memory_space<vmem>>, vector<14x128xf32>
    %63 = arith.maximumf %59, %60 : vector<14x128xf32>
    %64 = arith.maximumf %61, %62 : vector<14x128xf32>
    %65 = arith.maximumf %63, %64 : vector<14x128xf32>
    %66 = vector.broadcast %22 : vector<1x128xf32> to vector<14x128xf32>
    %67 = arith.addf %65, %66 : vector<14x128xf32>
    %cst_56 = arith.constant 0.000000e+00 : f32
    %68 = vector.broadcast %cst_56 : f32 to vector<14x128xf32>
    %69 = arith.maximumf %67, %68 : vector<14x128xf32>
    %c48 = arith.constant 48 : index
    %c0_57 = arith.constant 0 : index
    %70 = vector.load %arg14[%c48, %c0_57] : memref<232x128xf32, #tpu.memory_space<vmem>>, vector<14x128xf32>
    tpu.vector_store %arg14[%c48, %c0_57], %69 {strides = array<i32>} : memref<232x128xf32, #tpu.memory_space<vmem>>, vector<14x128xf32>,
    %c224_58 = arith.constant 224 : index
    %c0_59 = arith.constant 0 : index
    %71 = tpu.strided_load %arg13[%c224_58, %c0_59] {strides = array<i32: 2, 1>} : memref<784x128xf32, #tpu.memory_space<vmem>>, vector<14x128xf32>
    %c225 = arith.constant 225 : index
    %c0_60 = arith.constant 0 : index
    %72 = tpu.strided_load %arg13[%c225, %c0_60] {strides = array<i32: 2, 1>} : memref<784x128xf32, #tpu.memory_space<vmem>>, vector<14x128xf32>
    %c252 = arith.constant 252 : index
    %c0_61 = arith.constant 0 : index
    %73 = tpu.strided_load %arg13[%c252, %c0_61] {strides = array<i32: 2, 1>} : memref<784x128xf32, #tpu.memory_space<vmem>>, vector<14x128xf32>
    %c253 = arith.constant 253 : index
    %c0_62 = arith.constant 0 : index
    %74 = tpu.strided_load %arg13[%c253, %c0_62] {strides = array<i32: 2, 1>} : memref<784x128xf32, #tpu.memory_space<vmem>>, vector<14x128xf32>
    %75 = arith.maximumf %71, %72 : vector<14x128xf32>
    %76 = arith.maximumf %73, %74 : vector<14x128xf32>
    %77 = arith.maximumf %75, %76 : vector<14x128xf32>
    %78 = vector.broadcast %22 : vector<1x128xf32> to vector<14x128xf32>
    %79 = arith.addf %77, %78 : vector<14x128xf32>
    %cst_63 = arith.constant 0.000000e+00 : f32
    %80 = vector.broadcast %cst_63 : f32 to vector<14x128xf32>
    %81 = arith.maximumf %79, %80 : vector<14x128xf32>
    %c64 = arith.constant 64 : index
    %c0_64 = arith.constant 0 : index
    %82 = vector.load %arg14[%c64, %c0_64] : memref<232x128xf32, #tpu.memory_space<vmem>>, vector<14x128xf32>
    tpu.vector_store %arg14[%c64, %c0_64], %81 {strides = array<i32>} : memref<232x128xf32, #tpu.memory_space<vmem>>, vector<14x128xf32>,
    %c280 = arith.constant 280 : index
    %c0_65 = arith.constant 0 : index
    %83 = tpu.strided_load %arg13[%c280, %c0_65] {strides = array<i32: 2, 1>} : memref<784x128xf32, #tpu.memory_space<vmem>>, vector<14x128xf32>
    %c281 = arith.constant 281 : index
    %c0_66 = arith.constant 0 : index
    %84 = tpu.strided_load %arg13[%c281, %c0_66] {strides = array<i32: 2, 1>} : memref<784x128xf32, #tpu.memory_space<vmem>>, vector<14x128xf32>
    %c308 = arith.constant 308 : index
    %c0_67 = arith.constant 0 : index
    %85 = tpu.strided_load %arg13[%c308, %c0_67] {strides = array<i32: 2, 1>} : memref<784x128xf32, #tpu.memory_space<vmem>>, vector<14x128xf32>
    %c309 = arith.constant 309 : index
    %c0_68 = arith.constant 0 : index
    %86 = tpu.strided_load %arg13[%c309, %c0_68] {strides = array<i32: 2, 1>} : memref<784x128xf32, #tpu.memory_space<vmem>>, vector<14x128xf32>
    %87 = arith.maximumf %83, %84 : vector<14x128xf32>
    %88 = arith.maximumf %85, %86 : vector<14x128xf32>
    %89 = arith.maximumf %87, %88 : vector<14x128xf32>
    %90 = vector.broadcast %22 : vector<1x128xf32> to vector<14x128xf32>
    %91 = arith.addf %89, %90 : vector<14x128xf32>
    %cst_69 = arith.constant 0.000000e+00 : f32
    %92 = vector.broadcast %cst_69 : f32 to vector<14x128xf32>
    %93 = arith.maximumf %91, %92 : vector<14x128xf32>
    %c80 = arith.constant 80 : index
    %c0_70 = arith.constant 0 : index
    %94 = vector.load %arg14[%c80, %c0_70] : memref<232x128xf32, #tpu.memory_space<vmem>>, vector<14x128xf32>
    tpu.vector_store %arg14[%c80, %c0_70], %93 {strides = array<i32>} : memref<232x128xf32, #tpu.memory_space<vmem>>, vector<14x128xf32>,
    %c336_71 = arith.constant 336 : index
    %c0_72 = arith.constant 0 : index
    %95 = tpu.strided_load %arg13[%c336_71, %c0_72] {strides = array<i32: 2, 1>} : memref<784x128xf32, #tpu.memory_space<vmem>>, vector<14x128xf32>
    %c337 = arith.constant 337 : index
    %c0_73 = arith.constant 0 : index
    %96 = tpu.strided_load %arg13[%c337, %c0_73] {strides = array<i32: 2, 1>} : memref<784x128xf32, #tpu.memory_space<vmem>>, vector<14x128xf32>
    %c364 = arith.constant 364 : index
    %c0_74 = arith.constant 0 : index
    %97 = tpu.strided_load %arg13[%c364, %c0_74] {strides = array<i32: 2, 1>} : memref<784x128xf32, #tpu.memory_space<vmem>>, vector<14x128xf32>
    %c365 = arith.constant 365 : index
    %c0_75 = arith.constant 0 : index
    %98 = tpu.strided_load %arg13[%c365, %c0_75] {strides = array<i32: 2, 1>} : memref<784x128xf32, #tpu.memory_space<vmem>>, vector<14x128xf32>
    %99 = arith.maximumf %95, %96 : vector<14x128xf32>
    %100 = arith.maximumf %97, %98 : vector<14x128xf32>
    %101 = arith.maximumf %99, %100 : vector<14x128xf32>
    %102 = vector.broadcast %22 : vector<1x128xf32> to vector<14x128xf32>
    %103 = arith.addf %101, %102 : vector<14x128xf32>
    %cst_76 = arith.constant 0.000000e+00 : f32
    %104 = vector.broadcast %cst_76 : f32 to vector<14x128xf32>
    %105 = arith.maximumf %103, %104 : vector<14x128xf32>
    %c96 = arith.constant 96 : index
    %c0_77 = arith.constant 0 : index
    %106 = vector.load %arg14[%c96, %c0_77] : memref<232x128xf32, #tpu.memory_space<vmem>>, vector<14x128xf32>
    tpu.vector_store %arg14[%c96, %c0_77], %105 {strides = array<i32>} : memref<232x128xf32, #tpu.memory_space<vmem>>, vector<14x128xf32>,
    %c392 = arith.constant 392 : index
    %c0_78 = arith.constant 0 : index
    %107 = tpu.strided_load %arg13[%c392, %c0_78] {strides = array<i32: 2, 1>} : memref<784x128xf32, #tpu.memory_space<vmem>>, vector<14x128xf32>
    %c393 = arith.constant 393 : index
    %c0_79 = arith.constant 0 : index
    %108 = tpu.strided_load %arg13[%c393, %c0_79] {strides = array<i32: 2, 1>} : memref<784x128xf32, #tpu.memory_space<vmem>>, vector<14x128xf32>
    %c420 = arith.constant 420 : index
    %c0_80 = arith.constant 0 : index
    %109 = tpu.strided_load %arg13[%c420, %c0_80] {strides = array<i32: 2, 1>} : memref<784x128xf32, #tpu.memory_space<vmem>>, vector<14x128xf32>
    %c421 = arith.constant 421 : index
    %c0_81 = arith.constant 0 : index
    %110 = tpu.strided_load %arg13[%c421, %c0_81] {strides = array<i32: 2, 1>} : memref<784x128xf32, #tpu.memory_space<vmem>>, vector<14x128xf32>
    %111 = arith.maximumf %107, %108 : vector<14x128xf32>
    %112 = arith.maximumf %109, %110 : vector<14x128xf32>
    %113 = arith.maximumf %111, %112 : vector<14x128xf32>
    %114 = vector.broadcast %22 : vector<1x128xf32> to vector<14x128xf32>
    %115 = arith.addf %113, %114 : vector<14x128xf32>
    %cst_82 = arith.constant 0.000000e+00 : f32
    %116 = vector.broadcast %cst_82 : f32 to vector<14x128xf32>
    %117 = arith.maximumf %115, %116 : vector<14x128xf32>
    %c112_83 = arith.constant 112 : index
    %c0_84 = arith.constant 0 : index
    %118 = vector.load %arg14[%c112_83, %c0_84] : memref<232x128xf32, #tpu.memory_space<vmem>>, vector<14x128xf32>
    tpu.vector_store %arg14[%c112_83, %c0_84], %117 {strides = array<i32>} : memref<232x128xf32, #tpu.memory_space<vmem>>, vector<14x128xf32>,
    %c448_85 = arith.constant 448 : index
    %c0_86 = arith.constant 0 : index
    %119 = tpu.strided_load %arg13[%c448_85, %c0_86] {strides = array<i32: 2, 1>} : memref<784x128xf32, #tpu.memory_space<vmem>>, vector<14x128xf32>
    %c449 = arith.constant 449 : index
    %c0_87 = arith.constant 0 : index
    %120 = tpu.strided_load %arg13[%c449, %c0_87] {strides = array<i32: 2, 1>} : memref<784x128xf32, #tpu.memory_space<vmem>>, vector<14x128xf32>
    %c476 = arith.constant 476 : index
    %c0_88 = arith.constant 0 : index
    %121 = tpu.strided_load %arg13[%c476, %c0_88] {strides = array<i32: 2, 1>} : memref<784x128xf32, #tpu.memory_space<vmem>>, vector<14x128xf32>
    %c477 = arith.constant 477 : index
    %c0_89 = arith.constant 0 : index
    %122 = tpu.strided_load %arg13[%c477, %c0_89] {strides = array<i32: 2, 1>} : memref<784x128xf32, #tpu.memory_space<vmem>>, vector<14x128xf32>
    %123 = arith.maximumf %119, %120 : vector<14x128xf32>
    %124 = arith.maximumf %121, %122 : vector<14x128xf32>
    %125 = arith.maximumf %123, %124 : vector<14x128xf32>
    %126 = vector.broadcast %22 : vector<1x128xf32> to vector<14x128xf32>
    %127 = arith.addf %125, %126 : vector<14x128xf32>
    %cst_90 = arith.constant 0.000000e+00 : f32
    %128 = vector.broadcast %cst_90 : f32 to vector<14x128xf32>
    %129 = arith.maximumf %127, %128 : vector<14x128xf32>
    %c128 = arith.constant 128 : index
    %c0_91 = arith.constant 0 : index
    %130 = vector.load %arg14[%c128, %c0_91] : memref<232x128xf32, #tpu.memory_space<vmem>>, vector<14x128xf32>
    tpu.vector_store %arg14[%c128, %c0_91], %129 {strides = array<i32>} : memref<232x128xf32, #tpu.memory_space<vmem>>, vector<14x128xf32>,
    %c504 = arith.constant 504 : index
    %c0_92 = arith.constant 0 : index
    %131 = tpu.strided_load %arg13[%c504, %c0_92] {strides = array<i32: 2, 1>} : memref<784x128xf32, #tpu.memory_space<vmem>>, vector<14x128xf32>
    %c505 = arith.constant 505 : index
    %c0_93 = arith.constant 0 : index
    %132 = tpu.strided_load %arg13[%c505, %c0_93] {strides = array<i32: 2, 1>} : memref<784x128xf32, #tpu.memory_space<vmem>>, vector<14x128xf32>
    %c532 = arith.constant 532 : index
    %c0_94 = arith.constant 0 : index
    %133 = tpu.strided_load %arg13[%c532, %c0_94] {strides = array<i32: 2, 1>} : memref<784x128xf32, #tpu.memory_space<vmem>>, vector<14x128xf32>
    %c533 = arith.constant 533 : index
    %c0_95 = arith.constant 0 : index
    %134 = tpu.strided_load %arg13[%c533, %c0_95] {strides = array<i32: 2, 1>} : memref<784x128xf32, #tpu.memory_space<vmem>>, vector<14x128xf32>
    %135 = arith.maximumf %131, %132 : vector<14x128xf32>
    %136 = arith.maximumf %133, %134 : vector<14x128xf32>
    %137 = arith.maximumf %135, %136 : vector<14x128xf32>
    %138 = vector.broadcast %22 : vector<1x128xf32> to vector<14x128xf32>
    %139 = arith.addf %137, %138 : vector<14x128xf32>
    %cst_96 = arith.constant 0.000000e+00 : f32
    %140 = vector.broadcast %cst_96 : f32 to vector<14x128xf32>
    %141 = arith.maximumf %139, %140 : vector<14x128xf32>
    %c144 = arith.constant 144 : index
    %c0_97 = arith.constant 0 : index
    %142 = vector.load %arg14[%c144, %c0_97] : memref<232x128xf32, #tpu.memory_space<vmem>>, vector<14x128xf32>
    tpu.vector_store %arg14[%c144, %c0_97], %141 {strides = array<i32>} : memref<232x128xf32, #tpu.memory_space<vmem>>, vector<14x128xf32>,
    %c560_98 = arith.constant 560 : index
    %c0_99 = arith.constant 0 : index
    %143 = tpu.strided_load %arg13[%c560_98, %c0_99] {strides = array<i32: 2, 1>} : memref<784x128xf32, #tpu.memory_space<vmem>>, vector<14x128xf32>
    %c561 = arith.constant 561 : index
    %c0_100 = arith.constant 0 : index
    %144 = tpu.strided_load %arg13[%c561, %c0_100] {strides = array<i32: 2, 1>} : memref<784x128xf32, #tpu.memory_space<vmem>>, vector<14x128xf32>
    %c588 = arith.constant 588 : index
    %c0_101 = arith.constant 0 : index
    %145 = tpu.strided_load %arg13[%c588, %c0_101] {strides = array<i32: 2, 1>} : memref<784x128xf32, #tpu.memory_space<vmem>>, vector<14x128xf32>
    %c589 = arith.constant 589 : index
    %c0_102 = arith.constant 0 : index
    %146 = tpu.strided_load %arg13[%c589, %c0_102] {strides = array<i32: 2, 1>} : memref<784x128xf32, #tpu.memory_space<vmem>>, vector<14x128xf32>
    %147 = arith.maximumf %143, %144 : vector<14x128xf32>
    %148 = arith.maximumf %145, %146 : vector<14x128xf32>
    %149 = arith.maximumf %147, %148 : vector<14x128xf32>
    %150 = vector.broadcast %22 : vector<1x128xf32> to vector<14x128xf32>
    %151 = arith.addf %149, %150 : vector<14x128xf32>
    %cst_103 = arith.constant 0.000000e+00 : f32
    %152 = vector.broadcast %cst_103 : f32 to vector<14x128xf32>
    %153 = arith.maximumf %151, %152 : vector<14x128xf32>
    %c160 = arith.constant 160 : index
    %c0_104 = arith.constant 0 : index
    %154 = vector.load %arg14[%c160, %c0_104] : memref<232x128xf32, #tpu.memory_space<vmem>>, vector<14x128xf32>
    tpu.vector_store %arg14[%c160, %c0_104], %153 {strides = array<i32>} : memref<232x128xf32, #tpu.memory_space<vmem>>, vector<14x128xf32>,
    %c616 = arith.constant 616 : index
    %c0_105 = arith.constant 0 : index
    %155 = tpu.strided_load %arg13[%c616, %c0_105] {strides = array<i32: 2, 1>} : memref<784x128xf32, #tpu.memory_space<vmem>>, vector<14x128xf32>
    %c617 = arith.constant 617 : index
    %c0_106 = arith.constant 0 : index
    %156 = tpu.strided_load %arg13[%c617, %c0_106] {strides = array<i32: 2, 1>} : memref<784x128xf32, #tpu.memory_space<vmem>>, vector<14x128xf32>
    %c644 = arith.constant 644 : index
    %c0_107 = arith.constant 0 : index
    %157 = tpu.strided_load %arg13[%c644, %c0_107] {strides = array<i32: 2, 1>} : memref<784x128xf32, #tpu.memory_space<vmem>>, vector<14x128xf32>
    %c645 = arith.constant 645 : index
    %c0_108 = arith.constant 0 : index
    %158 = tpu.strided_load %arg13[%c645, %c0_108] {strides = array<i32: 2, 1>} : memref<784x128xf32, #tpu.memory_space<vmem>>, vector<14x128xf32>
    %159 = arith.maximumf %155, %156 : vector<14x128xf32>
    %160 = arith.maximumf %157, %158 : vector<14x128xf32>
    %161 = arith.maximumf %159, %160 : vector<14x128xf32>
    %162 = vector.broadcast %22 : vector<1x128xf32> to vector<14x128xf32>
    %163 = arith.addf %161, %162 : vector<14x128xf32>
    %cst_109 = arith.constant 0.000000e+00 : f32
    %164 = vector.broadcast %cst_109 : f32 to vector<14x128xf32>
    %165 = arith.maximumf %163, %164 : vector<14x128xf32>
    %c176 = arith.constant 176 : index
    %c0_110 = arith.constant 0 : index
    %166 = vector.load %arg14[%c176, %c0_110] : memref<232x128xf32, #tpu.memory_space<vmem>>, vector<14x128xf32>
    tpu.vector_store %arg14[%c176, %c0_110], %165 {strides = array<i32>} : memref<232x128xf32, #tpu.memory_space<vmem>>, vector<14x128xf32>,
    %c672_111 = arith.constant 672 : index
    %c0_112 = arith.constant 0 : index
    %167 = tpu.strided_load %arg13[%c672_111, %c0_112] {strides = array<i32: 2, 1>} : memref<784x128xf32, #tpu.memory_space<vmem>>, vector<14x128xf32>
    %c673 = arith.constant 673 : index
    %c0_113 = arith.constant 0 : index
    %168 = tpu.strided_load %arg13[%c673, %c0_113] {strides = array<i32: 2, 1>} : memref<784x128xf32, #tpu.memory_space<vmem>>, vector<14x128xf32>
    %c700 = arith.constant 700 : index
    %c0_114 = arith.constant 0 : index
    %169 = tpu.strided_load %arg13[%c700, %c0_114] {strides = array<i32: 2, 1>} : memref<784x128xf32, #tpu.memory_space<vmem>>, vector<14x128xf32>
    %c701 = arith.constant 701 : index
    %c0_115 = arith.constant 0 : index
    %170 = tpu.strided_load %arg13[%c701, %c0_115] {strides = array<i32: 2, 1>} : memref<784x128xf32, #tpu.memory_space<vmem>>, vector<14x128xf32>
    %171 = arith.maximumf %167, %168 : vector<14x128xf32>
    %172 = arith.maximumf %169, %170 : vector<14x128xf32>
    %173 = arith.maximumf %171, %172 : vector<14x128xf32>
    %174 = vector.broadcast %22 : vector<1x128xf32> to vector<14x128xf32>
    %175 = arith.addf %173, %174 : vector<14x128xf32>
    %cst_116 = arith.constant 0.000000e+00 : f32
    %176 = vector.broadcast %cst_116 : f32 to vector<14x128xf32>
    %177 = arith.maximumf %175, %176 : vector<14x128xf32>
    %c192 = arith.constant 192 : index
    %c0_117 = arith.constant 0 : index
    %178 = vector.load %arg14[%c192, %c0_117] : memref<232x128xf32, #tpu.memory_space<vmem>>, vector<14x128xf32>
    tpu.vector_store %arg14[%c192, %c0_117], %177 {strides = array<i32>} : memref<232x128xf32, #tpu.memory_space<vmem>>, vector<14x128xf32>,
    %c728 = arith.constant 728 : index
    %c0_118 = arith.constant 0 : index
    %179 = tpu.strided_load %arg13[%c728, %c0_118] {strides = array<i32: 2, 1>} : memref<784x128xf32, #tpu.memory_space<vmem>>, vector<14x128xf32>
    %c729 = arith.constant 729 : index
    %c0_119 = arith.constant 0 : index
    %180 = tpu.strided_load %arg13[%c729, %c0_119] {strides = array<i32: 2, 1>} : memref<784x128xf32, #tpu.memory_space<vmem>>, vector<14x128xf32>
    %c756 = arith.constant 756 : index
    %c0_120 = arith.constant 0 : index
    %181 = tpu.strided_load %arg13[%c756, %c0_120] {strides = array<i32: 2, 1>} : memref<784x128xf32, #tpu.memory_space<vmem>>, vector<14x128xf32>
    %c757 = arith.constant 757 : index
    %c0_121 = arith.constant 0 : index
    %182 = tpu.strided_load %arg13[%c757, %c0_121] {strides = array<i32: 2, 1>} : memref<784x128xf32, #tpu.memory_space<vmem>>, vector<14x128xf32>
    %183 = arith.maximumf %179, %180 : vector<14x128xf32>
    %184 = arith.maximumf %181, %182 : vector<14x128xf32>
    %185 = arith.maximumf %183, %184 : vector<14x128xf32>
    %186 = vector.broadcast %22 : vector<1x128xf32> to vector<14x128xf32>
    %187 = arith.addf %185, %186 : vector<14x128xf32>
    %cst_122 = arith.constant 0.000000e+00 : f32
    %188 = vector.broadcast %cst_122 : f32 to vector<14x128xf32>
    %189 = arith.maximumf %187, %188 : vector<14x128xf32>
    %c208 = arith.constant 208 : index
    %c0_123 = arith.constant 0 : index
    %190 = vector.load %arg14[%c208, %c0_123] : memref<232x128xf32, #tpu.memory_space<vmem>>, vector<14x128xf32>
    tpu.vector_store %arg14[%c208, %c0_123], %189 {strides = array<i32>} : memref<232x128xf32, #tpu.memory_space<vmem>>, vector<14x128xf32>,
    %c0_124 = arith.constant 0 : index
    %c0_125 = arith.constant 0 : index
    %191 = vector.load %arg14[%c0_124, %c0_125] : memref<232x128xf32, #tpu.memory_space<vmem>>, vector<80x8xf32>
    %192 = arith.truncf %191 : vector<80x8xf32> to vector<80x8xbf16>
    %c0_126 = arith.constant 0 : index
    %c0_127 = arith.constant 0 : index
    %c0_128 = arith.constant 0 : index
    %193 = vector.load %arg4[%c0_126, %c0_127, %c0_128] : memref<25x8x128xbf16, #tpu.memory_space<vmem>>, vector<1x8x128xbf16>
    %194 = vector.shape_cast %193 : vector<1x8x128xbf16> to vector<8x128xbf16>
    %cst_129 = arith.constant dense<0.000000e+00> : vector<80x128xf32>
    %195 = tpu.matmul %192, %194, %cst_129 {dimension_numbers = #tpu.dot_dimension_numbers<[1], [0], [0], [1], [0, 0, 1, 1], [], []>} : vector<80x8xbf16>, vector<8x128xbf16>, vector<80x128xf32> -> vector<80x128xf32>
    %c1_130 = arith.constant 1 : index
    %c0_131 = arith.constant 0 : index
    %196 = vector.load %arg14[%c1_130, %c0_131] : memref<232x128xf32, #tpu.memory_space<vmem>>, vector<80x8xf32>
    %197 = arith.truncf %196 : vector<80x8xf32> to vector<80x8xbf16>
    %c1_132 = arith.constant 1 : index
    %c0_133 = arith.constant 0 : index
    %c0_134 = arith.constant 0 : index
    %198 = vector.load %arg4[%c1_132, %c0_133, %c0_134] : memref<25x8x128xbf16, #tpu.memory_space<vmem>>, vector<1x8x128xbf16>
    %199 = vector.shape_cast %198 : vector<1x8x128xbf16> to vector<8x128xbf16>
    %cst_135 = arith.constant dense<0.000000e+00> : vector<80x128xf32>
    %200 = tpu.matmul %197, %199, %cst_135 {dimension_numbers = #tpu.dot_dimension_numbers<[1], [0], [0], [1], [0, 0, 1, 1], [], []>} : vector<80x8xbf16>, vector<8x128xbf16>, vector<80x128xf32> -> vector<80x128xf32>
    %201 = arith.addf %195, %200 : vector<80x128xf32>
    %c2 = arith.constant 2 : index
    %c0_136 = arith.constant 0 : index
    %202 = vector.load %arg14[%c2, %c0_136] : memref<232x128xf32, #tpu.memory_space<vmem>>, vector<80x8xf32>
    %203 = arith.truncf %202 : vector<80x8xf32> to vector<80x8xbf16>
    %c2_137 = arith.constant 2 : index
    %c0_138 = arith.constant 0 : index
    %c0_139 = arith.constant 0 : index
    %204 = vector.load %arg4[%c2_137, %c0_138, %c0_139] : memref<25x8x128xbf16, #tpu.memory_space<vmem>>, vector<1x8x128xbf16>
    %205 = vector.shape_cast %204 : vector<1x8x128xbf16> to vector<8x128xbf16>
    %cst_140 = arith.constant dense<0.000000e+00> : vector<80x128xf32>
    %206 = tpu.matmul %203, %205, %cst_140 {dimension_numbers = #tpu.dot_dimension_numbers<[1], [0], [0], [1], [0, 0, 1, 1], [], []>} : vector<80x8xbf16>, vector<8x128xbf16>, vector<80x128xf32> -> vector<80x128xf32>
    %207 = arith.addf %201, %206 : vector<80x128xf32>
    %c3 = arith.constant 3 : index
    %c0_141 = arith.constant 0 : index
    %208 = vector.load %arg14[%c3, %c0_141] : memref<232x128xf32, #tpu.memory_space<vmem>>, vector<80x8xf32>
    %209 = arith.truncf %208 : vector<80x8xf32> to vector<80x8xbf16>
    %c3_142 = arith.constant 3 : index
    %c0_143 = arith.constant 0 : index
    %c0_144 = arith.constant 0 : index
    %210 = vector.load %arg4[%c3_142, %c0_143, %c0_144] : memref<25x8x128xbf16, #tpu.memory_space<vmem>>, vector<1x8x128xbf16>
    %211 = vector.shape_cast %210 : vector<1x8x128xbf16> to vector<8x128xbf16>
    %cst_145 = arith.constant dense<0.000000e+00> : vector<80x128xf32>
    %212 = tpu.matmul %209, %211, %cst_145 {dimension_numbers = #tpu.dot_dimension_numbers<[1], [0], [0], [1], [0, 0, 1, 1], [], []>} : vector<80x8xbf16>, vector<8x128xbf16>, vector<80x128xf32> -> vector<80x128xf32>
    %213 = arith.addf %207, %212 : vector<80x128xf32>
    %c4 = arith.constant 4 : index
    %c0_146 = arith.constant 0 : index
    %214 = vector.load %arg14[%c4, %c0_146] : memref<232x128xf32, #tpu.memory_space<vmem>>, vector<80x8xf32>
    %215 = arith.truncf %214 : vector<80x8xf32> to vector<80x8xbf16>
    %c4_147 = arith.constant 4 : index
    %c0_148 = arith.constant 0 : index
    %c0_149 = arith.constant 0 : index
    %216 = vector.load %arg4[%c4_147, %c0_148, %c0_149] : memref<25x8x128xbf16, #tpu.memory_space<vmem>>, vector<1x8x128xbf16>
    %217 = vector.shape_cast %216 : vector<1x8x128xbf16> to vector<8x128xbf16>
    %cst_150 = arith.constant dense<0.000000e+00> : vector<80x128xf32>
    %218 = tpu.matmul %215, %217, %cst_150 {dimension_numbers = #tpu.dot_dimension_numbers<[1], [0], [0], [1], [0, 0, 1, 1], [], []>} : vector<80x8xbf16>, vector<8x128xbf16>, vector<80x128xf32> -> vector<80x128xf32>
    %219 = arith.addf %213, %218 : vector<80x128xf32>
    %c16_151 = arith.constant 16 : index
    %c0_152 = arith.constant 0 : index
    %220 = vector.load %arg14[%c16_151, %c0_152] : memref<232x128xf32, #tpu.memory_space<vmem>>, vector<80x8xf32>
    %221 = arith.truncf %220 : vector<80x8xf32> to vector<80x8xbf16>
    %c5 = arith.constant 5 : index
    %c0_153 = arith.constant 0 : index
    %c0_154 = arith.constant 0 : index
    %222 = vector.load %arg4[%c5, %c0_153, %c0_154] : memref<25x8x128xbf16, #tpu.memory_space<vmem>>, vector<1x8x128xbf16>
    %223 = vector.shape_cast %222 : vector<1x8x128xbf16> to vector<8x128xbf16>
    %cst_155 = arith.constant dense<0.000000e+00> : vector<80x128xf32>
    %224 = tpu.matmul %221, %223, %cst_155 {dimension_numbers = #tpu.dot_dimension_numbers<[1], [0], [0], [1], [0, 0, 1, 1], [], []>} : vector<80x8xbf16>, vector<8x128xbf16>, vector<80x128xf32> -> vector<80x128xf32>
    %225 = arith.addf %219, %224 : vector<80x128xf32>
    %c17 = arith.constant 17 : index
    %c0_156 = arith.constant 0 : index
    %226 = vector.load %arg14[%c17, %c0_156] : memref<232x128xf32, #tpu.memory_space<vmem>>, vector<80x8xf32>
    %227 = arith.truncf %226 : vector<80x8xf32> to vector<80x8xbf16>
    %c6 = arith.constant 6 : index
    %c0_157 = arith.constant 0 : index
    %c0_158 = arith.constant 0 : index
    %228 = vector.load %arg4[%c6, %c0_157, %c0_158] : memref<25x8x128xbf16, #tpu.memory_space<vmem>>, vector<1x8x128xbf16>
    %229 = vector.shape_cast %228 : vector<1x8x128xbf16> to vector<8x128xbf16>
    %cst_159 = arith.constant dense<0.000000e+00> : vector<80x128xf32>
    %230 = tpu.matmul %227, %229, %cst_159 {dimension_numbers = #tpu.dot_dimension_numbers<[1], [0], [0], [1], [0, 0, 1, 1], [], []>} : vector<80x8xbf16>, vector<8x128xbf16>, vector<80x128xf32> -> vector<80x128xf32>
    %231 = arith.addf %225, %230 : vector<80x128xf32>
    %c18 = arith.constant 18 : index
    %c0_160 = arith.constant 0 : index
    %232 = vector.load %arg14[%c18, %c0_160] : memref<232x128xf32, #tpu.memory_space<vmem>>, vector<80x8xf32>
    %233 = arith.truncf %232 : vector<80x8xf32> to vector<80x8xbf16>
    %c7 = arith.constant 7 : index
    %c0_161 = arith.constant 0 : index
    %c0_162 = arith.constant 0 : index
    %234 = vector.load %arg4[%c7, %c0_161, %c0_162] : memref<25x8x128xbf16, #tpu.memory_space<vmem>>, vector<1x8x128xbf16>
    %235 = vector.shape_cast %234 : vector<1x8x128xbf16> to vector<8x128xbf16>
    %cst_163 = arith.constant dense<0.000000e+00> : vector<80x128xf32>
    %236 = tpu.matmul %233, %235, %cst_163 {dimension_numbers = #tpu.dot_dimension_numbers<[1], [0], [0], [1], [0, 0, 1, 1], [], []>} : vector<80x8xbf16>, vector<8x128xbf16>, vector<80x128xf32> -> vector<80x128xf32>
    %237 = arith.addf %231, %236 : vector<80x128xf32>
    %c19 = arith.constant 19 : index
    %c0_164 = arith.constant 0 : index
    %238 = vector.load %arg14[%c19, %c0_164] : memref<232x128xf32, #tpu.memory_space<vmem>>, vector<80x8xf32>
    %239 = arith.truncf %238 : vector<80x8xf32> to vector<80x8xbf16>
    %c8 = arith.constant 8 : index
    %c0_165 = arith.constant 0 : index
    %c0_166 = arith.constant 0 : index
    %240 = vector.load %arg4[%c8, %c0_165, %c0_166] : memref<25x8x128xbf16, #tpu.memory_space<vmem>>, vector<1x8x128xbf16>
    %241 = vector.shape_cast %240 : vector<1x8x128xbf16> to vector<8x128xbf16>
    %cst_167 = arith.constant dense<0.000000e+00> : vector<80x128xf32>
    %242 = tpu.matmul %239, %241, %cst_167 {dimension_numbers = #tpu.dot_dimension_numbers<[1], [0], [0], [1], [0, 0, 1, 1], [], []>} : vector<80x8xbf16>, vector<8x128xbf16>, vector<80x128xf32> -> vector<80x128xf32>
    %243 = arith.addf %237, %242 : vector<80x128xf32>
    %c20 = arith.constant 20 : index
    %c0_168 = arith.constant 0 : index
    %244 = vector.load %arg14[%c20, %c0_168] : memref<232x128xf32, #tpu.memory_space<vmem>>, vector<80x8xf32>
    %245 = arith.truncf %244 : vector<80x8xf32> to vector<80x8xbf16>
    %c9 = arith.constant 9 : index
    %c0_169 = arith.constant 0 : index
    %c0_170 = arith.constant 0 : index
    %246 = vector.load %arg4[%c9, %c0_169, %c0_170] : memref<25x8x128xbf16, #tpu.memory_space<vmem>>, vector<1x8x128xbf16>
    %247 = vector.shape_cast %246 : vector<1x8x128xbf16> to vector<8x128xbf16>
    %cst_171 = arith.constant dense<0.000000e+00> : vector<80x128xf32>
    %248 = tpu.matmul %245, %247, %cst_171 {dimension_numbers = #tpu.dot_dimension_numbers<[1], [0], [0], [1], [0, 0, 1, 1], [], []>} : vector<80x8xbf16>, vector<8x128xbf16>, vector<80x128xf32> -> vector<80x128xf32>
    %249 = arith.addf %243, %248 : vector<80x128xf32>
    %c32_172 = arith.constant 32 : index
    %c0_173 = arith.constant 0 : index
    %250 = vector.load %arg14[%c32_172, %c0_173] : memref<232x128xf32, #tpu.memory_space<vmem>>, vector<80x8xf32>
    %251 = arith.truncf %250 : vector<80x8xf32> to vector<80x8xbf16>
    %c10 = arith.constant 10 : index
    %c0_174 = arith.constant 0 : index
    %c0_175 = arith.constant 0 : index
    %252 = vector.load %arg4[%c10, %c0_174, %c0_175] : memref<25x8x128xbf16, #tpu.memory_space<vmem>>, vector<1x8x128xbf16>
    %253 = vector.shape_cast %252 : vector<1x8x128xbf16> to vector<8x128xbf16>
    %cst_176 = arith.constant dense<0.000000e+00> : vector<80x128xf32>
    %254 = tpu.matmul %251, %253, %cst_176 {dimension_numbers = #tpu.dot_dimension_numbers<[1], [0], [0], [1], [0, 0, 1, 1], [], []>} : vector<80x8xbf16>, vector<8x128xbf16>, vector<80x128xf32> -> vector<80x128xf32>
    %255 = arith.addf %249, %254 : vector<80x128xf32>
    %c33 = arith.constant 33 : index
    %c0_177 = arith.constant 0 : index
    %256 = vector.load %arg14[%c33, %c0_177] : memref<232x128xf32, #tpu.memory_space<vmem>>, vector<80x8xf32>
    %257 = arith.truncf %256 : vector<80x8xf32> to vector<80x8xbf16>
    %c11 = arith.constant 11 : index
    %c0_178 = arith.constant 0 : index
    %c0_179 = arith.constant 0 : index
    %258 = vector.load %arg4[%c11, %c0_178, %c0_179] : memref<25x8x128xbf16, #tpu.memory_space<vmem>>, vector<1x8x128xbf16>
    %259 = vector.shape_cast %258 : vector<1x8x128xbf16> to vector<8x128xbf16>
    %cst_180 = arith.constant dense<0.000000e+00> : vector<80x128xf32>
    %260 = tpu.matmul %257, %259, %cst_180 {dimension_numbers = #tpu.dot_dimension_numbers<[1], [0], [0], [1], [0, 0, 1, 1], [], []>} : vector<80x8xbf16>, vector<8x128xbf16>, vector<80x128xf32> -> vector<80x128xf32>
    %261 = arith.addf %255, %260 : vector<80x128xf32>
    %c34 = arith.constant 34 : index
    %c0_181 = arith.constant 0 : index
    %262 = vector.load %arg14[%c34, %c0_181] : memref<232x128xf32, #tpu.memory_space<vmem>>, vector<80x8xf32>
    %263 = arith.truncf %262 : vector<80x8xf32> to vector<80x8xbf16>
    %c12 = arith.constant 12 : index
    %c0_182 = arith.constant 0 : index
    %c0_183 = arith.constant 0 : index
    %264 = vector.load %arg4[%c12, %c0_182, %c0_183] : memref<25x8x128xbf16, #tpu.memory_space<vmem>>, vector<1x8x128xbf16>
    %265 = vector.shape_cast %264 : vector<1x8x128xbf16> to vector<8x128xbf16>
    %cst_184 = arith.constant dense<0.000000e+00> : vector<80x128xf32>
    %266 = tpu.matmul %263, %265, %cst_184 {dimension_numbers = #tpu.dot_dimension_numbers<[1], [0], [0], [1], [0, 0, 1, 1], [], []>} : vector<80x8xbf16>, vector<8x128xbf16>, vector<80x128xf32> -> vector<80x128xf32>
    %267 = arith.addf %261, %266 : vector<80x128xf32>
    %c35 = arith.constant 35 : index
    %c0_185 = arith.constant 0 : index
    %268 = vector.load %arg14[%c35, %c0_185] : memref<232x128xf32, #tpu.memory_space<vmem>>, vector<80x8xf32>
    %269 = arith.truncf %268 : vector<80x8xf32> to vector<80x8xbf16>
    %c13 = arith.constant 13 : index
    %c0_186 = arith.constant 0 : index
    %c0_187 = arith.constant 0 : index
    %270 = vector.load %arg4[%c13, %c0_186, %c0_187] : memref<25x8x128xbf16, #tpu.memory_space<vmem>>, vector<1x8x128xbf16>
    %271 = vector.shape_cast %270 : vector<1x8x128xbf16> to vector<8x128xbf16>
    %cst_188 = arith.constant dense<0.000000e+00> : vector<80x128xf32>
    %272 = tpu.matmul %269, %271, %cst_188 {dimension_numbers = #tpu.dot_dimension_numbers<[1], [0], [0], [1], [0, 0, 1, 1], [], []>} : vector<80x8xbf16>, vector<8x128xbf16>, vector<80x128xf32> -> vector<80x128xf32>
    %273 = arith.addf %267, %272 : vector<80x128xf32>
    %c36 = arith.constant 36 : index
    %c0_189 = arith.constant 0 : index
    %274 = vector.load %arg14[%c36, %c0_189] : memref<232x128xf32, #tpu.memory_space<vmem>>, vector<80x8xf32>
    %275 = arith.truncf %274 : vector<80x8xf32> to vector<80x8xbf16>
    %c14 = arith.constant 14 : index
    %c0_190 = arith.constant 0 : index
    %c0_191 = arith.constant 0 : index
    %276 = vector.load %arg4[%c14, %c0_190, %c0_191] : memref<25x8x128xbf16, #tpu.memory_space<vmem>>, vector<1x8x128xbf16>
    %277 = vector.shape_cast %276 : vector<1x8x128xbf16> to vector<8x128xbf16>
    %cst_192 = arith.constant dense<0.000000e+00> : vector<80x128xf32>
    %278 = tpu.matmul %275, %277, %cst_192 {dimension_numbers = #tpu.dot_dimension_numbers<[1], [0], [0], [1], [0, 0, 1, 1], [], []>} : vector<80x8xbf16>, vector<8x128xbf16>, vector<80x128xf32> -> vector<80x128xf32>
    %279 = arith.addf %273, %278 : vector<80x128xf32>
    %c48_193 = arith.constant 48 : index
    %c0_194 = arith.constant 0 : index
    %280 = vector.load %arg14[%c48_193, %c0_194] : memref<232x128xf32, #tpu.memory_space<vmem>>, vector<80x8xf32>
    %281 = arith.truncf %280 : vector<80x8xf32> to vector<80x8xbf16>
    %c15 = arith.constant 15 : index
    %c0_195 = arith.constant 0 : index
    %c0_196 = arith.constant 0 : index
    %282 = vector.load %arg4[%c15, %c0_195, %c0_196] : memref<25x8x128xbf16, #tpu.memory_space<vmem>>, vector<1x8x128xbf16>
    %283 = vector.shape_cast %282 : vector<1x8x128xbf16> to vector<8x128xbf16>
    %cst_197 = arith.constant dense<0.000000e+00> : vector<80x128xf32>
    %284 = tpu.matmul %281, %283, %cst_197 {dimension_numbers = #tpu.dot_dimension_numbers<[1], [0], [0], [1], [0, 0, 1, 1], [], []>} : vector<80x8xbf16>, vector<8x128xbf16>, vector<80x128xf32> -> vector<80x128xf32>
    %285 = arith.addf %279, %284 : vector<80x128xf32>
    %c49 = arith.constant 49 : index
    %c0_198 = arith.constant 0 : index
    %286 = vector.load %arg14[%c49, %c0_198] : memref<232x128xf32, #tpu.memory_space<vmem>>, vector<80x8xf32>
    %287 = arith.truncf %286 : vector<80x8xf32> to vector<80x8xbf16>
    %c16_199 = arith.constant 16 : index
    %c0_200 = arith.constant 0 : index
    %c0_201 = arith.constant 0 : index
    %288 = vector.load %arg4[%c16_199, %c0_200, %c0_201] : memref<25x8x128xbf16, #tpu.memory_space<vmem>>, vector<1x8x128xbf16>
    %289 = vector.shape_cast %288 : vector<1x8x128xbf16> to vector<8x128xbf16>
    %cst_202 = arith.constant dense<0.000000e+00> : vector<80x128xf32>
    %290 = tpu.matmul %287, %289, %cst_202 {dimension_numbers = #tpu.dot_dimension_numbers<[1], [0], [0], [1], [0, 0, 1, 1], [], []>} : vector<80x8xbf16>, vector<8x128xbf16>, vector<80x128xf32> -> vector<80x128xf32>
    %291 = arith.addf %285, %290 : vector<80x128xf32>
    %c50 = arith.constant 50 : index
    %c0_203 = arith.constant 0 : index
    %292 = vector.load %arg14[%c50, %c0_203] : memref<232x128xf32, #tpu.memory_space<vmem>>, vector<80x8xf32>
    %293 = arith.truncf %292 : vector<80x8xf32> to vector<80x8xbf16>
    %c17_204 = arith.constant 17 : index
    %c0_205 = arith.constant 0 : index
    %c0_206 = arith.constant 0 : index
    %294 = vector.load %arg4[%c17_204, %c0_205, %c0_206] : memref<25x8x128xbf16, #tpu.memory_space<vmem>>, vector<1x8x128xbf16>
    %295 = vector.shape_cast %294 : vector<1x8x128xbf16> to vector<8x128xbf16>
    %cst_207 = arith.constant dense<0.000000e+00> : vector<80x128xf32>
    %296 = tpu.matmul %293, %295, %cst_207 {dimension_numbers = #tpu.dot_dimension_numbers<[1], [0], [0], [1], [0, 0, 1, 1], [], []>} : vector<80x8xbf16>, vector<8x128xbf16>, vector<80x128xf32> -> vector<80x128xf32>
    %297 = arith.addf %291, %296 : vector<80x128xf32>
    %c51 = arith.constant 51 : index
    %c0_208 = arith.constant 0 : index
    %298 = vector.load %arg14[%c51, %c0_208] : memref<232x128xf32, #tpu.memory_space<vmem>>, vector<80x8xf32>
    %299 = arith.truncf %298 : vector<80x8xf32> to vector<80x8xbf16>
    %c18_209 = arith.constant 18 : index
    %c0_210 = arith.constant 0 : index
    %c0_211 = arith.constant 0 : index
    %300 = vector.load %arg4[%c18_209, %c0_210, %c0_211] : memref<25x8x128xbf16, #tpu.memory_space<vmem>>, vector<1x8x128xbf16>
    %301 = vector.shape_cast %300 : vector<1x8x128xbf16> to vector<8x128xbf16>
    %cst_212 = arith.constant dense<0.000000e+00> : vector<80x128xf32>
    %302 = tpu.matmul %299, %301, %cst_212 {dimension_numbers = #tpu.dot_dimension_numbers<[1], [0], [0], [1], [0, 0, 1, 1], [], []>} : vector<80x8xbf16>, vector<8x128xbf16>, vector<80x128xf32> -> vector<80x128xf32>
    %303 = arith.addf %297, %302 : vector<80x128xf32>
    %c52 = arith.constant 52 : index
    %c0_213 = arith.constant 0 : index
    %304 = vector.load %arg14[%c52, %c0_213] : memref<232x128xf32, #tpu.memory_space<vmem>>, vector<80x8xf32>
    %305 = arith.truncf %304 : vector<80x8xf32> to vector<80x8xbf16>
    %c19_214 = arith.constant 19 : index
    %c0_215 = arith.constant 0 : index
    %c0_216 = arith.constant 0 : index
    %306 = vector.load %arg4[%c19_214, %c0_215, %c0_216] : memref<25x8x128xbf16, #tpu.memory_space<vmem>>, vector<1x8x128xbf16>
    %307 = vector.shape_cast %306 : vector<1x8x128xbf16> to vector<8x128xbf16>
    %cst_217 = arith.constant dense<0.000000e+00> : vector<80x128xf32>
    %308 = tpu.matmul %305, %307, %cst_217 {dimension_numbers = #tpu.dot_dimension_numbers<[1], [0], [0], [1], [0, 0, 1, 1], [], []>} : vector<80x8xbf16>, vector<8x128xbf16>, vector<80x128xf32> -> vector<80x128xf32>
    %309 = arith.addf %303, %308 : vector<80x128xf32>
    %c64_218 = arith.constant 64 : index
    %c0_219 = arith.constant 0 : index
    %310 = vector.load %arg14[%c64_218, %c0_219] : memref<232x128xf32, #tpu.memory_space<vmem>>, vector<80x8xf32>
    %311 = arith.truncf %310 : vector<80x8xf32> to vector<80x8xbf16>
    %c20_220 = arith.constant 20 : index
    %c0_221 = arith.constant 0 : index
    %c0_222 = arith.constant 0 : index
    %312 = vector.load %arg4[%c20_220, %c0_221, %c0_222] : memref<25x8x128xbf16, #tpu.memory_space<vmem>>, vector<1x8x128xbf16>
    %313 = vector.shape_cast %312 : vector<1x8x128xbf16> to vector<8x128xbf16>
    %cst_223 = arith.constant dense<0.000000e+00> : vector<80x128xf32>
    %314 = tpu.matmul %311, %313, %cst_223 {dimension_numbers = #tpu.dot_dimension_numbers<[1], [0], [0], [1], [0, 0, 1, 1], [], []>} : vector<80x8xbf16>, vector<8x128xbf16>, vector<80x128xf32> -> vector<80x128xf32>
    %315 = arith.addf %309, %314 : vector<80x128xf32>
    %c65 = arith.constant 65 : index
    %c0_224 = arith.constant 0 : index
    %316 = vector.load %arg14[%c65, %c0_224] : memref<232x128xf32, #tpu.memory_space<vmem>>, vector<80x8xf32>
    %317 = arith.truncf %316 : vector<80x8xf32> to vector<80x8xbf16>
    %c21 = arith.constant 21 : index
    %c0_225 = arith.constant 0 : index
    %c0_226 = arith.constant 0 : index
    %318 = vector.load %arg4[%c21, %c0_225, %c0_226] : memref<25x8x128xbf16, #tpu.memory_space<vmem>>, vector<1x8x128xbf16>
    %319 = vector.shape_cast %318 : vector<1x8x128xbf16> to vector<8x128xbf16>
    %cst_227 = arith.constant dense<0.000000e+00> : vector<80x128xf32>
    %320 = tpu.matmul %317, %319, %cst_227 {dimension_numbers = #tpu.dot_dimension_numbers<[1], [0], [0], [1], [0, 0, 1, 1], [], []>} : vector<80x8xbf16>, vector<8x128xbf16>, vector<80x128xf32> -> vector<80x128xf32>
    %321 = arith.addf %315, %320 : vector<80x128xf32>
    %c66 = arith.constant 66 : index
    %c0_228 = arith.constant 0 : index
    %322 = vector.load %arg14[%c66, %c0_228] : memref<232x128xf32, #tpu.memory_space<vmem>>, vector<80x8xf32>
    %323 = arith.truncf %322 : vector<80x8xf32> to vector<80x8xbf16>
    %c22 = arith.constant 22 : index
    %c0_229 = arith.constant 0 : index
    %c0_230 = arith.constant 0 : index
    %324 = vector.load %arg4[%c22, %c0_229, %c0_230] : memref<25x8x128xbf16, #tpu.memory_space<vmem>>, vector<1x8x128xbf16>
    %325 = vector.shape_cast %324 : vector<1x8x128xbf16> to vector<8x128xbf16>
    %cst_231 = arith.constant dense<0.000000e+00> : vector<80x128xf32>
    %326 = tpu.matmul %323, %325, %cst_231 {dimension_numbers = #tpu.dot_dimension_numbers<[1], [0], [0], [1], [0, 0, 1, 1], [], []>} : vector<80x8xbf16>, vector<8x128xbf16>, vector<80x128xf32> -> vector<80x128xf32>
    %327 = arith.addf %321, %326 : vector<80x128xf32>
    %c67 = arith.constant 67 : index
    %c0_232 = arith.constant 0 : index
    %328 = vector.load %arg14[%c67, %c0_232] : memref<232x128xf32, #tpu.memory_space<vmem>>, vector<80x8xf32>
    %329 = arith.truncf %328 : vector<80x8xf32> to vector<80x8xbf16>
    %c23 = arith.constant 23 : index
    %c0_233 = arith.constant 0 : index
    %c0_234 = arith.constant 0 : index
    %330 = vector.load %arg4[%c23, %c0_233, %c0_234] : memref<25x8x128xbf16, #tpu.memory_space<vmem>>, vector<1x8x128xbf16>
    %331 = vector.shape_cast %330 : vector<1x8x128xbf16> to vector<8x128xbf16>
    %cst_235 = arith.constant dense<0.000000e+00> : vector<80x128xf32>
    %332 = tpu.matmul %329, %331, %cst_235 {dimension_numbers = #tpu.dot_dimension_numbers<[1], [0], [0], [1], [0, 0, 1, 1], [], []>} : vector<80x8xbf16>, vector<8x128xbf16>, vector<80x128xf32> -> vector<80x128xf32>
    %333 = arith.addf %327, %332 : vector<80x128xf32>
    %c68 = arith.constant 68 : index
    %c0_236 = arith.constant 0 : index
    %334 = vector.load %arg14[%c68, %c0_236] : memref<232x128xf32, #tpu.memory_space<vmem>>, vector<80x8xf32>
    %335 = arith.truncf %334 : vector<80x8xf32> to vector<80x8xbf16>
    %c24 = arith.constant 24 : index
    %c0_237 = arith.constant 0 : index
    %c0_238 = arith.constant 0 : index
    %336 = vector.load %arg4[%c24, %c0_237, %c0_238] : memref<25x8x128xbf16, #tpu.memory_space<vmem>>, vector<1x8x128xbf16>
    %337 = vector.shape_cast %336 : vector<1x8x128xbf16> to vector<8x128xbf16>
    %cst_239 = arith.constant dense<0.000000e+00> : vector<80x128xf32>
    %338 = tpu.matmul %335, %337, %cst_239 {dimension_numbers = #tpu.dot_dimension_numbers<[1], [0], [0], [1], [0, 0, 1, 1], [], []>} : vector<80x8xbf16>, vector<8x128xbf16>, vector<80x128xf32> -> vector<80x128xf32>
    %339 = arith.addf %333, %338 : vector<80x128xf32>
    %c0_240 = arith.constant 0 : index
    %c0_241 = arith.constant 0 : index
    %340 = vector.load %arg15[%c0_240, %c0_241] : memref<160x128xf32, #tpu.memory_space<vmem>>, vector<80x128xf32>
    tpu.vector_store %arg15[%c0_240, %c0_241], %339 {strides = array<i32>} : memref<160x128xf32, #tpu.memory_space<vmem>>, vector<80x128xf32>,
    %c80_242 = arith.constant 80 : index
    %c0_243 = arith.constant 0 : index
    %341 = vector.load %arg14[%c80_242, %c0_243] : memref<232x128xf32, #tpu.memory_space<vmem>>, vector<80x8xf32>
    %342 = arith.truncf %341 : vector<80x8xf32> to vector<80x8xbf16>
    %c0_244 = arith.constant 0 : index
    %c0_245 = arith.constant 0 : index
    %c0_246 = arith.constant 0 : index
    %343 = vector.load %arg4[%c0_244, %c0_245, %c0_246] : memref<25x8x128xbf16, #tpu.memory_space<vmem>>, vector<1x8x128xbf16>
    %344 = vector.shape_cast %343 : vector<1x8x128xbf16> to vector<8x128xbf16>
    %cst_247 = arith.constant dense<0.000000e+00> : vector<80x128xf32>
    %345 = tpu.matmul %342, %344, %cst_247 {dimension_numbers = #tpu.dot_dimension_numbers<[1], [0], [0], [1], [0, 0, 1, 1], [], []>} : vector<80x8xbf16>, vector<8x128xbf16>, vector<80x128xf32> -> vector<80x128xf32>
    %c81 = arith.constant 81 : index
    %c0_248 = arith.constant 0 : index
    %346 = vector.load %arg14[%c81, %c0_248] : memref<232x128xf32, #tpu.memory_space<vmem>>, vector<80x8xf32>
    %347 = arith.truncf %346 : vector<80x8xf32> to vector<80x8xbf16>
    %c1_249 = arith.constant 1 : index
    %c0_250 = arith.constant 0 : index
    %c0_251 = arith.constant 0 : index
    %348 = vector.load %arg4[%c1_249, %c0_250, %c0_251] : memref<25x8x128xbf16, #tpu.memory_space<vmem>>, vector<1x8x128xbf16>
    %349 = vector.shape_cast %348 : vector<1x8x128xbf16> to vector<8x128xbf16>
    %cst_252 = arith.constant dense<0.000000e+00> : vector<80x128xf32>
    %350 = tpu.matmul %347, %349, %cst_252 {dimension_numbers = #tpu.dot_dimension_numbers<[1], [0], [0], [1], [0, 0, 1, 1], [], []>} : vector<80x8xbf16>, vector<8x128xbf16>, vector<80x128xf32> -> vector<80x128xf32>
    %351 = arith.addf %345, %350 : vector<80x128xf32>
    %c82 = arith.constant 82 : index
    %c0_253 = arith.constant 0 : index
    %352 = vector.load %arg14[%c82, %c0_253] : memref<232x128xf32, #tpu.memory_space<vmem>>, vector<80x8xf32>
    %353 = arith.truncf %352 : vector<80x8xf32> to vector<80x8xbf16>
    %c2_254 = arith.constant 2 : index
    %c0_255 = arith.constant 0 : index
    %c0_256 = arith.constant 0 : index
    %354 = vector.load %arg4[%c2_254, %c0_255, %c0_256] : memref<25x8x128xbf16, #tpu.memory_space<vmem>>, vector<1x8x128xbf16>
    %355 = vector.shape_cast %354 : vector<1x8x128xbf16> to vector<8x128xbf16>
    %cst_257 = arith.constant dense<0.000000e+00> : vector<80x128xf32>
    %356 = tpu.matmul %353, %355, %cst_257 {dimension_numbers = #tpu.dot_dimension_numbers<[1], [0], [0], [1], [0, 0, 1, 1], [], []>} : vector<80x8xbf16>, vector<8x128xbf16>, vector<80x128xf32> -> vector<80x128xf32>
    %357 = arith.addf %351, %356 : vector<80x128xf32>
    %c83 = arith.constant 83 : index
    %c0_258 = arith.constant 0 : index
    %358 = vector.load %arg14[%c83, %c0_258] : memref<232x128xf32, #tpu.memory_space<vmem>>, vector<80x8xf32>
    %359 = arith.truncf %358 : vector<80x8xf32> to vector<80x8xbf16>
    %c3_259 = arith.constant 3 : index
    %c0_260 = arith.constant 0 : index
    %c0_261 = arith.constant 0 : index
    %360 = vector.load %arg4[%c3_259, %c0_260, %c0_261] : memref<25x8x128xbf16, #tpu.memory_space<vmem>>, vector<1x8x128xbf16>
    %361 = vector.shape_cast %360 : vector<1x8x128xbf16> to vector<8x128xbf16>
    %cst_262 = arith.constant dense<0.000000e+00> : vector<80x128xf32>
    %362 = tpu.matmul %359, %361, %cst_262 {dimension_numbers = #tpu.dot_dimension_numbers<[1], [0], [0], [1], [0, 0, 1, 1], [], []>} : vector<80x8xbf16>, vector<8x128xbf16>, vector<80x128xf32> -> vector<80x128xf32>
    %363 = arith.addf %357, %362 : vector<80x128xf32>
    %c84_263 = arith.constant 84 : index
    %c0_264 = arith.constant 0 : index
    %364 = vector.load %arg14[%c84_263, %c0_264] : memref<232x128xf32, #tpu.memory_space<vmem>>, vector<80x8xf32>
    %365 = arith.truncf %364 : vector<80x8xf32> to vector<80x8xbf16>
    %c4_265 = arith.constant 4 : index
    %c0_266 = arith.constant 0 : index
    %c0_267 = arith.constant 0 : index
    %366 = vector.load %arg4[%c4_265, %c0_266, %c0_267] : memref<25x8x128xbf16, #tpu.memory_space<vmem>>, vector<1x8x128xbf16>
    %367 = vector.shape_cast %366 : vector<1x8x128xbf16> to vector<8x128xbf16>
    %cst_268 = arith.constant dense<0.000000e+00> : vector<80x128xf32>
    %368 = tpu.matmul %365, %367, %cst_268 {dimension_numbers = #tpu.dot_dimension_numbers<[1], [0], [0], [1], [0, 0, 1, 1], [], []>} : vector<80x8xbf16>, vector<8x128xbf16>, vector<80x128xf32> -> vector<80x128xf32>
    %369 = arith.addf %363, %368 : vector<80x128xf32>
    %c96_269 = arith.constant 96 : index
    %c0_270 = arith.constant 0 : index
    %370 = vector.load %arg14[%c96_269, %c0_270] : memref<232x128xf32, #tpu.memory_space<vmem>>, vector<80x8xf32>
    %371 = arith.truncf %370 : vector<80x8xf32> to vector<80x8xbf16>
    %c5_271 = arith.constant 5 : index
    %c0_272 = arith.constant 0 : index
    %c0_273 = arith.constant 0 : index
    %372 = vector.load %arg4[%c5_271, %c0_272, %c0_273] : memref<25x8x128xbf16, #tpu.memory_space<vmem>>, vector<1x8x128xbf16>
    %373 = vector.shape_cast %372 : vector<1x8x128xbf16> to vector<8x128xbf16>
    %cst_274 = arith.constant dense<0.000000e+00> : vector<80x128xf32>
    %374 = tpu.matmul %371, %373, %cst_274 {dimension_numbers = #tpu.dot_dimension_numbers<[1], [0], [0], [1], [0, 0, 1, 1], [], []>} : vector<80x8xbf16>, vector<8x128xbf16>, vector<80x128xf32> -> vector<80x128xf32>
    %375 = arith.addf %369, %374 : vector<80x128xf32>
    %c97 = arith.constant 97 : index
    %c0_275 = arith.constant 0 : index
    %376 = vector.load %arg14[%c97, %c0_275] : memref<232x128xf32, #tpu.memory_space<vmem>>, vector<80x8xf32>
    %377 = arith.truncf %376 : vector<80x8xf32> to vector<80x8xbf16>
    %c6_276 = arith.constant 6 : index
    %c0_277 = arith.constant 0 : index
    %c0_278 = arith.constant 0 : index
    %378 = vector.load %arg4[%c6_276, %c0_277, %c0_278] : memref<25x8x128xbf16, #tpu.memory_space<vmem>>, vector<1x8x128xbf16>
    %379 = vector.shape_cast %378 : vector<1x8x128xbf16> to vector<8x128xbf16>
    %cst_279 = arith.constant dense<0.000000e+00> : vector<80x128xf32>
    %380 = tpu.matmul %377, %379, %cst_279 {dimension_numbers = #tpu.dot_dimension_numbers<[1], [0], [0], [1], [0, 0, 1, 1], [], []>} : vector<80x8xbf16>, vector<8x128xbf16>, vector<80x128xf32> -> vector<80x128xf32>
    %381 = arith.addf %375, %380 : vector<80x128xf32>
    %c98 = arith.constant 98 : index
    %c0_280 = arith.constant 0 : index
    %382 = vector.load %arg14[%c98, %c0_280] : memref<232x128xf32, #tpu.memory_space<vmem>>, vector<80x8xf32>
    %383 = arith.truncf %382 : vector<80x8xf32> to vector<80x8xbf16>
    %c7_281 = arith.constant 7 : index
    %c0_282 = arith.constant 0 : index
    %c0_283 = arith.constant 0 : index
    %384 = vector.load %arg4[%c7_281, %c0_282, %c0_283] : memref<25x8x128xbf16, #tpu.memory_space<vmem>>, vector<1x8x128xbf16>
    %385 = vector.shape_cast %384 : vector<1x8x128xbf16> to vector<8x128xbf16>
    %cst_284 = arith.constant dense<0.000000e+00> : vector<80x128xf32>
    %386 = tpu.matmul %383, %385, %cst_284 {dimension_numbers = #tpu.dot_dimension_numbers<[1], [0], [0], [1], [0, 0, 1, 1], [], []>} : vector<80x8xbf16>, vector<8x128xbf16>, vector<80x128xf32> -> vector<80x128xf32>
    %387 = arith.addf %381, %386 : vector<80x128xf32>
    %c99 = arith.constant 99 : index
    %c0_285 = arith.constant 0 : index
    %388 = vector.load %arg14[%c99, %c0_285] : memref<232x128xf32, #tpu.memory_space<vmem>>, vector<80x8xf32>
    %389 = arith.truncf %388 : vector<80x8xf32> to vector<80x8xbf16>
    %c8_286 = arith.constant 8 : index
    %c0_287 = arith.constant 0 : index
    %c0_288 = arith.constant 0 : index
    %390 = vector.load %arg4[%c8_286, %c0_287, %c0_288] : memref<25x8x128xbf16, #tpu.memory_space<vmem>>, vector<1x8x128xbf16>
    %391 = vector.shape_cast %390 : vector<1x8x128xbf16> to vector<8x128xbf16>
    %cst_289 = arith.constant dense<0.000000e+00> : vector<80x128xf32>
    %392 = tpu.matmul %389, %391, %cst_289 {dimension_numbers = #tpu.dot_dimension_numbers<[1], [0], [0], [1], [0, 0, 1, 1], [], []>} : vector<80x8xbf16>, vector<8x128xbf16>, vector<80x128xf32> -> vector<80x128xf32>
    %393 = arith.addf %387, %392 : vector<80x128xf32>
    %c100 = arith.constant 100 : index
    %c0_290 = arith.constant 0 : index
    %394 = vector.load %arg14[%c100, %c0_290] : memref<232x128xf32, #tpu.memory_space<vmem>>, vector<80x8xf32>
    %395 = arith.truncf %394 : vector<80x8xf32> to vector<80x8xbf16>
    %c9_291 = arith.constant 9 : index
    %c0_292 = arith.constant 0 : index
    %c0_293 = arith.constant 0 : index
    %396 = vector.load %arg4[%c9_291, %c0_292, %c0_293] : memref<25x8x128xbf16, #tpu.memory_space<vmem>>, vector<1x8x128xbf16>
    %397 = vector.shape_cast %396 : vector<1x8x128xbf16> to vector<8x128xbf16>
    %cst_294 = arith.constant dense<0.000000e+00> : vector<80x128xf32>
    %398 = tpu.matmul %395, %397, %cst_294 {dimension_numbers = #tpu.dot_dimension_numbers<[1], [0], [0], [1], [0, 0, 1, 1], [], []>} : vector<80x8xbf16>, vector<8x128xbf16>, vector<80x128xf32> -> vector<80x128xf32>
    %399 = arith.addf %393, %398 : vector<80x128xf32>
    %c112_295 = arith.constant 112 : index
    %c0_296 = arith.constant 0 : index
    %400 = vector.load %arg14[%c112_295, %c0_296] : memref<232x128xf32, #tpu.memory_space<vmem>>, vector<80x8xf32>
    %401 = arith.truncf %400 : vector<80x8xf32> to vector<80x8xbf16>
    %c10_297 = arith.constant 10 : index
    %c0_298 = arith.constant 0 : index
    %c0_299 = arith.constant 0 : index
    %402 = vector.load %arg4[%c10_297, %c0_298, %c0_299] : memref<25x8x128xbf16, #tpu.memory_space<vmem>>, vector<1x8x128xbf16>
    %403 = vector.shape_cast %402 : vector<1x8x128xbf16> to vector<8x128xbf16>
    %cst_300 = arith.constant dense<0.000000e+00> : vector<80x128xf32>
    %404 = tpu.matmul %401, %403, %cst_300 {dimension_numbers = #tpu.dot_dimension_numbers<[1], [0], [0], [1], [0, 0, 1, 1], [], []>} : vector<80x8xbf16>, vector<8x128xbf16>, vector<80x128xf32> -> vector<80x128xf32>
    %405 = arith.addf %399, %404 : vector<80x128xf32>
    %c113_301 = arith.constant 113 : index
    %c0_302 = arith.constant 0 : index
    %406 = vector.load %arg14[%c113_301, %c0_302] : memref<232x128xf32, #tpu.memory_space<vmem>>, vector<80x8xf32>
    %407 = arith.truncf %406 : vector<80x8xf32> to vector<80x8xbf16>
    %c11_303 = arith.constant 11 : index
    %c0_304 = arith.constant 0 : index
    %c0_305 = arith.constant 0 : index
    %408 = vector.load %arg4[%c11_303, %c0_304, %c0_305] : memref<25x8x128xbf16, #tpu.memory_space<vmem>>, vector<1x8x128xbf16>
    %409 = vector.shape_cast %408 : vector<1x8x128xbf16> to vector<8x128xbf16>
    %cst_306 = arith.constant dense<0.000000e+00> : vector<80x128xf32>
    %410 = tpu.matmul %407, %409, %cst_306 {dimension_numbers = #tpu.dot_dimension_numbers<[1], [0], [0], [1], [0, 0, 1, 1], [], []>} : vector<80x8xbf16>, vector<8x128xbf16>, vector<80x128xf32> -> vector<80x128xf32>
    %411 = arith.addf %405, %410 : vector<80x128xf32>
    %c114 = arith.constant 114 : index
    %c0_307 = arith.constant 0 : index
    %412 = vector.load %arg14[%c114, %c0_307] : memref<232x128xf32, #tpu.memory_space<vmem>>, vector<80x8xf32>
    %413 = arith.truncf %412 : vector<80x8xf32> to vector<80x8xbf16>
    %c12_308 = arith.constant 12 : index
    %c0_309 = arith.constant 0 : index
    %c0_310 = arith.constant 0 : index
    %414 = vector.load %arg4[%c12_308, %c0_309, %c0_310] : memref<25x8x128xbf16, #tpu.memory_space<vmem>>, vector<1x8x128xbf16>
    %415 = vector.shape_cast %414 : vector<1x8x128xbf16> to vector<8x128xbf16>
    %cst_311 = arith.constant dense<0.000000e+00> : vector<80x128xf32>
    %416 = tpu.matmul %413, %415, %cst_311 {dimension_numbers = #tpu.dot_dimension_numbers<[1], [0], [0], [1], [0, 0, 1, 1], [], []>} : vector<80x8xbf16>, vector<8x128xbf16>, vector<80x128xf32> -> vector<80x128xf32>
    %417 = arith.addf %411, %416 : vector<80x128xf32>
    %c115 = arith.constant 115 : index
    %c0_312 = arith.constant 0 : index
    %418 = vector.load %arg14[%c115, %c0_312] : memref<232x128xf32, #tpu.memory_space<vmem>>, vector<80x8xf32>
    %419 = arith.truncf %418 : vector<80x8xf32> to vector<80x8xbf16>
    %c13_313 = arith.constant 13 : index
    %c0_314 = arith.constant 0 : index
    %c0_315 = arith.constant 0 : index
    %420 = vector.load %arg4[%c13_313, %c0_314, %c0_315] : memref<25x8x128xbf16, #tpu.memory_space<vmem>>, vector<1x8x128xbf16>
    %421 = vector.shape_cast %420 : vector<1x8x128xbf16> to vector<8x128xbf16>
    %cst_316 = arith.constant dense<0.000000e+00> : vector<80x128xf32>
    %422 = tpu.matmul %419, %421, %cst_316 {dimension_numbers = #tpu.dot_dimension_numbers<[1], [0], [0], [1], [0, 0, 1, 1], [], []>} : vector<80x8xbf16>, vector<8x128xbf16>, vector<80x128xf32> -> vector<80x128xf32>
    %423 = arith.addf %417, %422 : vector<80x128xf32>
    %c116 = arith.constant 116 : index
    %c0_317 = arith.constant 0 : index
    %424 = vector.load %arg14[%c116, %c0_317] : memref<232x128xf32, #tpu.memory_space<vmem>>, vector<80x8xf32>
    %425 = arith.truncf %424 : vector<80x8xf32> to vector<80x8xbf16>
    %c14_318 = arith.constant 14 : index
    %c0_319 = arith.constant 0 : index
    %c0_320 = arith.constant 0 : index
    %426 = vector.load %arg4[%c14_318, %c0_319, %c0_320] : memref<25x8x128xbf16, #tpu.memory_space<vmem>>, vector<1x8x128xbf16>
    %427 = vector.shape_cast %426 : vector<1x8x128xbf16> to vector<8x128xbf16>
    %cst_321 = arith.constant dense<0.000000e+00> : vector<80x128xf32>
    %428 = tpu.matmul %425, %427, %cst_321 {dimension_numbers = #tpu.dot_dimension_numbers<[1], [0], [0], [1], [0, 0, 1, 1], [], []>} : vector<80x8xbf16>, vector<8x128xbf16>, vector<80x128xf32> -> vector<80x128xf32>
    %429 = arith.addf %423, %428 : vector<80x128xf32>
    %c128_322 = arith.constant 128 : index
    %c0_323 = arith.constant 0 : index
    %430 = vector.load %arg14[%c128_322, %c0_323] : memref<232x128xf32, #tpu.memory_space<vmem>>, vector<80x8xf32>
    %431 = arith.truncf %430 : vector<80x8xf32> to vector<80x8xbf16>
    %c15_324 = arith.constant 15 : index
    %c0_325 = arith.constant 0 : index
    %c0_326 = arith.constant 0 : index
    %432 = vector.load %arg4[%c15_324, %c0_325, %c0_326] : memref<25x8x128xbf16, #tpu.memory_space<vmem>>, vector<1x8x128xbf16>
    %433 = vector.shape_cast %432 : vector<1x8x128xbf16> to vector<8x128xbf16>
    %cst_327 = arith.constant dense<0.000000e+00> : vector<80x128xf32>
    %434 = tpu.matmul %431, %433, %cst_327 {dimension_numbers = #tpu.dot_dimension_numbers<[1], [0], [0], [1], [0, 0, 1, 1], [], []>} : vector<80x8xbf16>, vector<8x128xbf16>, vector<80x128xf32> -> vector<80x128xf32>
    %435 = arith.addf %429, %434 : vector<80x128xf32>
    %c129 = arith.constant 129 : index
    %c0_328 = arith.constant 0 : index
    %436 = vector.load %arg14[%c129, %c0_328] : memref<232x128xf32, #tpu.memory_space<vmem>>, vector<80x8xf32>
    %437 = arith.truncf %436 : vector<80x8xf32> to vector<80x8xbf16>
    %c16_329 = arith.constant 16 : index
    %c0_330 = arith.constant 0 : index
    %c0_331 = arith.constant 0 : index
    %438 = vector.load %arg4[%c16_329, %c0_330, %c0_331] : memref<25x8x128xbf16, #tpu.memory_space<vmem>>, vector<1x8x128xbf16>
    %439 = vector.shape_cast %438 : vector<1x8x128xbf16> to vector<8x128xbf16>
    %cst_332 = arith.constant dense<0.000000e+00> : vector<80x128xf32>
    %440 = tpu.matmul %437, %439, %cst_332 {dimension_numbers = #tpu.dot_dimension_numbers<[1], [0], [0], [1], [0, 0, 1, 1], [], []>} : vector<80x8xbf16>, vector<8x128xbf16>, vector<80x128xf32> -> vector<80x128xf32>
    %441 = arith.addf %435, %440 : vector<80x128xf32>
    %c130 = arith.constant 130 : index
    %c0_333 = arith.constant 0 : index
    %442 = vector.load %arg14[%c130, %c0_333] : memref<232x128xf32, #tpu.memory_space<vmem>>, vector<80x8xf32>
    %443 = arith.truncf %442 : vector<80x8xf32> to vector<80x8xbf16>
    %c17_334 = arith.constant 17 : index
    %c0_335 = arith.constant 0 : index
    %c0_336 = arith.constant 0 : index
    %444 = vector.load %arg4[%c17_334, %c0_335, %c0_336] : memref<25x8x128xbf16, #tpu.memory_space<vmem>>, vector<1x8x128xbf16>
    %445 = vector.shape_cast %444 : vector<1x8x128xbf16> to vector<8x128xbf16>
    %cst_337 = arith.constant dense<0.000000e+00> : vector<80x128xf32>
    %446 = tpu.matmul %443, %445, %cst_337 {dimension_numbers = #tpu.dot_dimension_numbers<[1], [0], [0], [1], [0, 0, 1, 1], [], []>} : vector<80x8xbf16>, vector<8x128xbf16>, vector<80x128xf32> -> vector<80x128xf32>
    %447 = arith.addf %441, %446 : vector<80x128xf32>
    %c131 = arith.constant 131 : index
    %c0_338 = arith.constant 0 : index
    %448 = vector.load %arg14[%c131, %c0_338] : memref<232x128xf32, #tpu.memory_space<vmem>>, vector<80x8xf32>
    %449 = arith.truncf %448 : vector<80x8xf32> to vector<80x8xbf16>
    %c18_339 = arith.constant 18 : index
    %c0_340 = arith.constant 0 : index
    %c0_341 = arith.constant 0 : index
    %450 = vector.load %arg4[%c18_339, %c0_340, %c0_341] : memref<25x8x128xbf16, #tpu.memory_space<vmem>>, vector<1x8x128xbf16>
    %451 = vector.shape_cast %450 : vector<1x8x128xbf16> to vector<8x128xbf16>
    %cst_342 = arith.constant dense<0.000000e+00> : vector<80x128xf32>
    %452 = tpu.matmul %449, %451, %cst_342 {dimension_numbers = #tpu.dot_dimension_numbers<[1], [0], [0], [1], [0, 0, 1, 1], [], []>} : vector<80x8xbf16>, vector<8x128xbf16>, vector<80x128xf32> -> vector<80x128xf32>
    %453 = arith.addf %447, %452 : vector<80x128xf32>
    %c132 = arith.constant 132 : index
    %c0_343 = arith.constant 0 : index
    %454 = vector.load %arg14[%c132, %c0_343] : memref<232x128xf32, #tpu.memory_space<vmem>>, vector<80x8xf32>
    %455 = arith.truncf %454 : vector<80x8xf32> to vector<80x8xbf16>
    %c19_344 = arith.constant 19 : index
    %c0_345 = arith.constant 0 : index
    %c0_346 = arith.constant 0 : index
    %456 = vector.load %arg4[%c19_344, %c0_345, %c0_346] : memref<25x8x128xbf16, #tpu.memory_space<vmem>>, vector<1x8x128xbf16>
    %457 = vector.shape_cast %456 : vector<1x8x128xbf16> to vector<8x128xbf16>
    %cst_347 = arith.constant dense<0.000000e+00> : vector<80x128xf32>
    %458 = tpu.matmul %455, %457, %cst_347 {dimension_numbers = #tpu.dot_dimension_numbers<[1], [0], [0], [1], [0, 0, 1, 1], [], []>} : vector<80x8xbf16>, vector<8x128xbf16>, vector<80x128xf32> -> vector<80x128xf32>
    %459 = arith.addf %453, %458 : vector<80x128xf32>
    %c144_348 = arith.constant 144 : index
    %c0_349 = arith.constant 0 : index
    %460 = vector.load %arg14[%c144_348, %c0_349] : memref<232x128xf32, #tpu.memory_space<vmem>>, vector<80x8xf32>
    %461 = arith.truncf %460 : vector<80x8xf32> to vector<80x8xbf16>
    %c20_350 = arith.constant 20 : index
    %c0_351 = arith.constant 0 : index
    %c0_352 = arith.constant 0 : index
    %462 = vector.load %arg4[%c20_350, %c0_351, %c0_352] : memref<25x8x128xbf16, #tpu.memory_space<vmem>>, vector<1x8x128xbf16>
    %463 = vector.shape_cast %462 : vector<1x8x128xbf16> to vector<8x128xbf16>
    %cst_353 = arith.constant dense<0.000000e+00> : vector<80x128xf32>
    %464 = tpu.matmul %461, %463, %cst_353 {dimension_numbers = #tpu.dot_dimension_numbers<[1], [0], [0], [1], [0, 0, 1, 1], [], []>} : vector<80x8xbf16>, vector<8x128xbf16>, vector<80x128xf32> -> vector<80x128xf32>
    %465 = arith.addf %459, %464 : vector<80x128xf32>
    %c145 = arith.constant 145 : index
    %c0_354 = arith.constant 0 : index
    %466 = vector.load %arg14[%c145, %c0_354] : memref<232x128xf32, #tpu.memory_space<vmem>>, vector<80x8xf32>
    %467 = arith.truncf %466 : vector<80x8xf32> to vector<80x8xbf16>
    %c21_355 = arith.constant 21 : index
    %c0_356 = arith.constant 0 : index
    %c0_357 = arith.constant 0 : index
    %468 = vector.load %arg4[%c21_355, %c0_356, %c0_357] : memref<25x8x128xbf16, #tpu.memory_space<vmem>>, vector<1x8x128xbf16>
    %469 = vector.shape_cast %468 : vector<1x8x128xbf16> to vector<8x128xbf16>
    %cst_358 = arith.constant dense<0.000000e+00> : vector<80x128xf32>
    %470 = tpu.matmul %467, %469, %cst_358 {dimension_numbers = #tpu.dot_dimension_numbers<[1], [0], [0], [1], [0, 0, 1, 1], [], []>} : vector<80x8xbf16>, vector<8x128xbf16>, vector<80x128xf32> -> vector<80x128xf32>
    %471 = arith.addf %465, %470 : vector<80x128xf32>
    %c146 = arith.constant 146 : index
    %c0_359 = arith.constant 0 : index
    %472 = vector.load %arg14[%c146, %c0_359] : memref<232x128xf32, #tpu.memory_space<vmem>>, vector<80x8xf32>
    %473 = arith.truncf %472 : vector<80x8xf32> to vector<80x8xbf16>
    %c22_360 = arith.constant 22 : index
    %c0_361 = arith.constant 0 : index
    %c0_362 = arith.constant 0 : index
    %474 = vector.load %arg4[%c22_360, %c0_361, %c0_362] : memref<25x8x128xbf16, #tpu.memory_space<vmem>>, vector<1x8x128xbf16>
    %475 = vector.shape_cast %474 : vector<1x8x128xbf16> to vector<8x128xbf16>
    %cst_363 = arith.constant dense<0.000000e+00> : vector<80x128xf32>
    %476 = tpu.matmul %473, %475, %cst_363 {dimension_numbers = #tpu.dot_dimension_numbers<[1], [0], [0], [1], [0, 0, 1, 1], [], []>} : vector<80x8xbf16>, vector<8x128xbf16>, vector<80x128xf32> -> vector<80x128xf32>
    %477 = arith.addf %471, %476 : vector<80x128xf32>
    %c147 = arith.constant 147 : index
    %c0_364 = arith.constant 0 : index
    %478 = vector.load %arg14[%c147, %c0_364] : memref<232x128xf32, #tpu.memory_space<vmem>>, vector<80x8xf32>
    %479 = arith.truncf %478 : vector<80x8xf32> to vector<80x8xbf16>
    %c23_365 = arith.constant 23 : index
    %c0_366 = arith.constant 0 : index
    %c0_367 = arith.constant 0 : index
    %480 = vector.load %arg4[%c23_365, %c0_366, %c0_367] : memref<25x8x128xbf16, #tpu.memory_space<vmem>>, vector<1x8x128xbf16>
    %481 = vector.shape_cast %480 : vector<1x8x128xbf16> to vector<8x128xbf16>
    %cst_368 = arith.constant dense<0.000000e+00> : vector<80x128xf32>
    %482 = tpu.matmul %479, %481, %cst_368 {dimension_numbers = #tpu.dot_dimension_numbers<[1], [0], [0], [1], [0, 0, 1, 1], [], []>} : vector<80x8xbf16>, vector<8x128xbf16>, vector<80x128xf32> -> vector<80x128xf32>
    %483 = arith.addf %477, %482 : vector<80x128xf32>
    %c148 = arith.constant 148 : index
    %c0_369 = arith.constant 0 : index
    %484 = vector.load %arg14[%c148, %c0_369] : memref<232x128xf32, #tpu.memory_space<vmem>>, vector<80x8xf32>
    %485 = arith.truncf %484 : vector<80x8xf32> to vector<80x8xbf16>
    %c24_370 = arith.constant 24 : index
    %c0_371 = arith.constant 0 : index
    %c0_372 = arith.constant 0 : index
    %486 = vector.load %arg4[%c24_370, %c0_371, %c0_372] : memref<25x8x128xbf16, #tpu.memory_space<vmem>>, vector<1x8x128xbf16>
    %487 = vector.shape_cast %486 : vector<1x8x128xbf16> to vector<8x128xbf16>
    %cst_373 = arith.constant dense<0.000000e+00> : vector<80x128xf32>
    %488 = tpu.matmul %485, %487, %cst_373 {dimension_numbers = #tpu.dot_dimension_numbers<[1], [0], [0], [1], [0, 0, 1, 1], [], []>} : vector<80x8xbf16>, vector<8x128xbf16>, vector<80x128xf32> -> vector<80x128xf32>
    %489 = arith.addf %483, %488 : vector<80x128xf32>
    %c80_374 = arith.constant 80 : index
    %c0_375 = arith.constant 0 : index
    %490 = vector.load %arg15[%c80_374, %c0_375] : memref<160x128xf32, #tpu.memory_space<vmem>>, vector<80x128xf32>
    tpu.vector_store %arg15[%c80_374, %c0_375], %489 {strides = array<i32>} : memref<160x128xf32, #tpu.memory_space<vmem>>, vector<80x128xf32>,
    %cst_376 = arith.constant 0.000000e+00 : f32
    %491 = vector.broadcast %cst_376 : f32 to vector<8x512xf32>
    %c0_377 = arith.constant 0 : index
    %c0_378 = arith.constant 0 : index
    %492 = vector.load %arg16[%c0_377, %c0_378] : memref<8x512xf32, #tpu.memory_space<vmem>>, vector<8x512xf32>
    tpu.vector_store %arg16[%c0_377, %c0_378], %491 {strides = array<i32>} : memref<8x512xf32, #tpu.memory_space<vmem>>, vector<8x512xf32>,
    %c0_379 = arith.constant 0 : index
    %c0_380 = arith.constant 0 : index
    %493 = vector.load %arg5[%c0_379, %c0_380] : memref<1x128xf32, #tpu.memory_space<vmem>>, vector<1x128xf32>
    %c0_381 = arith.constant 0 : index
    %c0_382 = arith.constant 0 : index
    %494 = tpu.strided_load %arg15[%c0_381, %c0_382] {strides = array<i32: 2, 1>} : memref<160x128xf32, #tpu.memory_space<vmem>>, vector<5x128xf32>
    %c1_383 = arith.constant 1 : index
    %c0_384 = arith.constant 0 : index
    %495 = tpu.strided_load %arg15[%c1_383, %c0_384] {strides = array<i32: 2, 1>} : memref<160x128xf32, #tpu.memory_space<vmem>>, vector<5x128xf32>
    %c16_385 = arith.constant 16 : index
    %c0_386 = arith.constant 0 : index
    %496 = tpu.strided_load %arg15[%c16_385, %c0_386] {strides = array<i32: 2, 1>} : memref<160x128xf32, #tpu.memory_space<vmem>>, vector<5x128xf32>
    %c17_387 = arith.constant 17 : index
    %c0_388 = arith.constant 0 : index
    %497 = tpu.strided_load %arg15[%c17_387, %c0_388] {strides = array<i32: 2, 1>} : memref<160x128xf32, #tpu.memory_space<vmem>>, vector<5x128xf32>
    %498 = arith.maximumf %494, %495 : vector<5x128xf32>
    %499 = arith.maximumf %496, %497 : vector<5x128xf32>
    %500 = arith.maximumf %498, %499 : vector<5x128xf32>
    %501 = vector.broadcast %493 : vector<1x128xf32> to vector<5x128xf32>
    %502 = arith.addf %500, %501 : vector<5x128xf32>
    %cst_389 = arith.constant 0.000000e+00 : f32
    %503 = vector.broadcast %cst_389 : f32 to vector<5x128xf32>
    %504 = arith.maximumf %502, %503 : vector<5x128xf32>
    %505 = vector.extract_strided_slice %504 {offsets = [0, 0], sizes = [1, 16], strides = [1, 1]} : vector<5x128xf32> to vector<1x16xf32>
    %c0_390 = arith.constant 0 : index
    %c0_391 = arith.constant 0 : index
    %506 = vector.load %arg16[%c0_390, %c0_391] : memref<8x512xf32, #tpu.memory_space<vmem>>, vector<1x16xf32>
    tpu.vector_store %arg16[%c0_390, %c0_391], %505 {strides = array<i32>} : memref<8x512xf32, #tpu.memory_space<vmem>>, vector<1x16xf32>,
    %507 = vector.extract_strided_slice %504 {offsets = [1, 0], sizes = [1, 16], strides = [1, 1]} : vector<5x128xf32> to vector<1x16xf32>
    %c0_392 = arith.constant 0 : index
    %c16_393 = arith.constant 16 : index
    %508 = vector.load %arg16[%c0_392, %c16_393] : memref<8x512xf32, #tpu.memory_space<vmem>>, vector<1x16xf32>
    tpu.vector_store %arg16[%c0_392, %c16_393], %507 {strides = array<i32>} : memref<8x512xf32, #tpu.memory_space<vmem>>, vector<1x16xf32>,
    %509 = vector.extract_strided_slice %504 {offsets = [2, 0], sizes = [1, 16], strides = [1, 1]} : vector<5x128xf32> to vector<1x16xf32>
    %c0_394 = arith.constant 0 : index
    %c32_395 = arith.constant 32 : index
    %510 = vector.load %arg16[%c0_394, %c32_395] : memref<8x512xf32, #tpu.memory_space<vmem>>, vector<1x16xf32>
    tpu.vector_store %arg16[%c0_394, %c32_395], %509 {strides = array<i32>} : memref<8x512xf32, #tpu.memory_space<vmem>>, vector<1x16xf32>,
    %511 = vector.extract_strided_slice %504 {offsets = [3, 0], sizes = [1, 16], strides = [1, 1]} : vector<5x128xf32> to vector<1x16xf32>
    %c0_396 = arith.constant 0 : index
    %c48_397 = arith.constant 48 : index
    %512 = vector.load %arg16[%c0_396, %c48_397] : memref<8x512xf32, #tpu.memory_space<vmem>>, vector<1x16xf32>
    tpu.vector_store %arg16[%c0_396, %c48_397], %511 {strides = array<i32>} : memref<8x512xf32, #tpu.memory_space<vmem>>, vector<1x16xf32>,
    %513 = vector.extract_strided_slice %504 {offsets = [4, 0], sizes = [1, 16], strides = [1, 1]} : vector<5x128xf32> to vector<1x16xf32>
    %c0_398 = arith.constant 0 : index
    %c64_399 = arith.constant 64 : index
    %514 = vector.load %arg16[%c0_398, %c64_399] : memref<8x512xf32, #tpu.memory_space<vmem>>, vector<1x16xf32>
    tpu.vector_store %arg16[%c0_398, %c64_399], %513 {strides = array<i32>} : memref<8x512xf32, #tpu.memory_space<vmem>>, vector<1x16xf32>,
    %c32_400 = arith.constant 32 : index
    %c0_401 = arith.constant 0 : index
    %515 = tpu.strided_load %arg15[%c32_400, %c0_401] {strides = array<i32: 2, 1>} : memref<160x128xf32, #tpu.memory_space<vmem>>, vector<5x128xf32>
    %c33_402 = arith.constant 33 : index
    %c0_403 = arith.constant 0 : index
    %516 = tpu.strided_load %arg15[%c33_402, %c0_403] {strides = array<i32: 2, 1>} : memref<160x128xf32, #tpu.memory_space<vmem>>, vector<5x128xf32>
    %c48_404 = arith.constant 48 : index
    %c0_405 = arith.constant 0 : index
    %517 = tpu.strided_load %arg15[%c48_404, %c0_405] {strides = array<i32: 2, 1>} : memref<160x128xf32, #tpu.memory_space<vmem>>, vector<5x128xf32>
    %c49_406 = arith.constant 49 : index
    %c0_407 = arith.constant 0 : index
    %518 = tpu.strided_load %arg15[%c49_406, %c0_407] {strides = array<i32: 2, 1>} : memref<160x128xf32, #tpu.memory_space<vmem>>, vector<5x128xf32>
    %519 = arith.maximumf %515, %516 : vector<5x128xf32>
    %520 = arith.maximumf %517, %518 : vector<5x128xf32>
    %521 = arith.maximumf %519, %520 : vector<5x128xf32>
    %522 = vector.broadcast %493 : vector<1x128xf32> to vector<5x128xf32>
    %523 = arith.addf %521, %522 : vector<5x128xf32>
    %cst_408 = arith.constant 0.000000e+00 : f32
    %524 = vector.broadcast %cst_408 : f32 to vector<5x128xf32>
    %525 = arith.maximumf %523, %524 : vector<5x128xf32>
    %526 = vector.extract_strided_slice %525 {offsets = [0, 0], sizes = [1, 16], strides = [1, 1]} : vector<5x128xf32> to vector<1x16xf32>
    %c0_409 = arith.constant 0 : index
    %c80_410 = arith.constant 80 : index
    %527 = vector.load %arg16[%c0_409, %c80_410] : memref<8x512xf32, #tpu.memory_space<vmem>>, vector<1x16xf32>
    tpu.vector_store %arg16[%c0_409, %c80_410], %526 {strides = array<i32>} : memref<8x512xf32, #tpu.memory_space<vmem>>, vector<1x16xf32>,
    %528 = vector.extract_strided_slice %525 {offsets = [1, 0], sizes = [1, 16], strides = [1, 1]} : vector<5x128xf32> to vector<1x16xf32>
    %c0_411 = arith.constant 0 : index
    %c96_412 = arith.constant 96 : index
    %529 = vector.load %arg16[%c0_411, %c96_412] : memref<8x512xf32, #tpu.memory_space<vmem>>, vector<1x16xf32>
    tpu.vector_store %arg16[%c0_411, %c96_412], %528 {strides = array<i32>} : memref<8x512xf32, #tpu.memory_space<vmem>>, vector<1x16xf32>,
    %530 = vector.extract_strided_slice %525 {offsets = [2, 0], sizes = [1, 16], strides = [1, 1]} : vector<5x128xf32> to vector<1x16xf32>
    %c0_413 = arith.constant 0 : index
    %c112_414 = arith.constant 112 : index
    %531 = vector.load %arg16[%c0_413, %c112_414] : memref<8x512xf32, #tpu.memory_space<vmem>>, vector<1x16xf32>
    tpu.vector_store %arg16[%c0_413, %c112_414], %530 {strides = array<i32>} : memref<8x512xf32, #tpu.memory_space<vmem>>, vector<1x16xf32>,
    %532 = vector.extract_strided_slice %525 {offsets = [3, 0], sizes = [1, 16], strides = [1, 1]} : vector<5x128xf32> to vector<1x16xf32>
    %c0_415 = arith.constant 0 : index
    %c128_416 = arith.constant 128 : index
    %533 = vector.load %arg16[%c0_415, %c128_416] : memref<8x512xf32, #tpu.memory_space<vmem>>, vector<1x16xf32>
    tpu.vector_store %arg16[%c0_415, %c128_416], %532 {strides = array<i32>} : memref<8x512xf32, #tpu.memory_space<vmem>>, vector<1x16xf32>,
    %534 = vector.extract_strided_slice %525 {offsets = [4, 0], sizes = [1, 16], strides = [1, 1]} : vector<5x128xf32> to vector<1x16xf32>
    %c0_417 = arith.constant 0 : index
    %c144_418 = arith.constant 144 : index
    %535 = vector.load %arg16[%c0_417, %c144_418] : memref<8x512xf32, #tpu.memory_space<vmem>>, vector<1x16xf32>
    tpu.vector_store %arg16[%c0_417, %c144_418], %534 {strides = array<i32>} : memref<8x512xf32, #tpu.memory_space<vmem>>, vector<1x16xf32>,
    %c64_419 = arith.constant 64 : index
    %c0_420 = arith.constant 0 : index
    %536 = tpu.strided_load %arg15[%c64_419, %c0_420] {strides = array<i32: 2, 1>} : memref<160x128xf32, #tpu.memory_space<vmem>>, vector<5x128xf32>
    %c65_421 = arith.constant 65 : index
    %c0_422 = arith.constant 0 : index
    %537 = tpu.strided_load %arg15[%c65_421, %c0_422] {strides = array<i32: 2, 1>} : memref<160x128xf32, #tpu.memory_space<vmem>>, vector<5x128xf32>
    %c80_423 = arith.constant 80 : index
    %c0_424 = arith.constant 0 : index
    %538 = tpu.strided_load %arg15[%c80_423, %c0_424] {strides = array<i32: 2, 1>} : memref<160x128xf32, #tpu.memory_space<vmem>>, vector<5x128xf32>
    %c81_425 = arith.constant 81 : index
    %c0_426 = arith.constant 0 : index
    %539 = tpu.strided_load %arg15[%c81_425, %c0_426] {strides = array<i32: 2, 1>} : memref<160x128xf32, #tpu.memory_space<vmem>>, vector<5x128xf32>
    %540 = arith.maximumf %536, %537 : vector<5x128xf32>
    %541 = arith.maximumf %538, %539 : vector<5x128xf32>
    %542 = arith.maximumf %540, %541 : vector<5x128xf32>
    %543 = vector.broadcast %493 : vector<1x128xf32> to vector<5x128xf32>
    %544 = arith.addf %542, %543 : vector<5x128xf32>
    %cst_427 = arith.constant 0.000000e+00 : f32
    %545 = vector.broadcast %cst_427 : f32 to vector<5x128xf32>
    %546 = arith.maximumf %544, %545 : vector<5x128xf32>
    %547 = vector.extract_strided_slice %546 {offsets = [0, 0], sizes = [1, 16], strides = [1, 1]} : vector<5x128xf32> to vector<1x16xf32>
    %c0_428 = arith.constant 0 : index
    %c160_429 = arith.constant 160 : index
    %548 = vector.load %arg16[%c0_428, %c160_429] : memref<8x512xf32, #tpu.memory_space<vmem>>, vector<1x16xf32>
    tpu.vector_store %arg16[%c0_428, %c160_429], %547 {strides = array<i32>} : memref<8x512xf32, #tpu.memory_space<vmem>>, vector<1x16xf32>,
    %549 = vector.extract_strided_slice %546 {offsets = [1, 0], sizes = [1, 16], strides = [1, 1]} : vector<5x128xf32> to vector<1x16xf32>
    %c0_430 = arith.constant 0 : index
    %c176_431 = arith.constant 176 : index
    %550 = vector.load %arg16[%c0_430, %c176_431] : memref<8x512xf32, #tpu.memory_space<vmem>>, vector<1x16xf32>
    tpu.vector_store %arg16[%c0_430, %c176_431], %549 {strides = array<i32>} : memref<8x512xf32, #tpu.memory_space<vmem>>, vector<1x16xf32>,
    %551 = vector.extract_strided_slice %546 {offsets = [2, 0], sizes = [1, 16], strides = [1, 1]} : vector<5x128xf32> to vector<1x16xf32>
    %c0_432 = arith.constant 0 : index
    %c192_433 = arith.constant 192 : index
    %552 = vector.load %arg16[%c0_432, %c192_433] : memref<8x512xf32, #tpu.memory_space<vmem>>, vector<1x16xf32>
    tpu.vector_store %arg16[%c0_432, %c192_433], %551 {strides = array<i32>} : memref<8x512xf32, #tpu.memory_space<vmem>>, vector<1x16xf32>,
    %553 = vector.extract_strided_slice %546 {offsets = [3, 0], sizes = [1, 16], strides = [1, 1]} : vector<5x128xf32> to vector<1x16xf32>
    %c0_434 = arith.constant 0 : index
    %c208_435 = arith.constant 208 : index
    %554 = vector.load %arg16[%c0_434, %c208_435] : memref<8x512xf32, #tpu.memory_space<vmem>>, vector<1x16xf32>
    tpu.vector_store %arg16[%c0_434, %c208_435], %553 {strides = array<i32>} : memref<8x512xf32, #tpu.memory_space<vmem>>, vector<1x16xf32>,
    %555 = vector.extract_strided_slice %546 {offsets = [4, 0], sizes = [1, 16], strides = [1, 1]} : vector<5x128xf32> to vector<1x16xf32>
    %c0_436 = arith.constant 0 : index
    %c224_437 = arith.constant 224 : index
    %556 = vector.load %arg16[%c0_436, %c224_437] : memref<8x512xf32, #tpu.memory_space<vmem>>, vector<1x16xf32>
    tpu.vector_store %arg16[%c0_436, %c224_437], %555 {strides = array<i32>} : memref<8x512xf32, #tpu.memory_space<vmem>>, vector<1x16xf32>,
    %c96_438 = arith.constant 96 : index
    %c0_439 = arith.constant 0 : index
    %557 = tpu.strided_load %arg15[%c96_438, %c0_439] {strides = array<i32: 2, 1>} : memref<160x128xf32, #tpu.memory_space<vmem>>, vector<5x128xf32>
    %c97_440 = arith.constant 97 : index
    %c0_441 = arith.constant 0 : index
    %558 = tpu.strided_load %arg15[%c97_440, %c0_441] {strides = array<i32: 2, 1>} : memref<160x128xf32, #tpu.memory_space<vmem>>, vector<5x128xf32>
    %c112_442 = arith.constant 112 : index
    %c0_443 = arith.constant 0 : index
    %559 = tpu.strided_load %arg15[%c112_442, %c0_443] {strides = array<i32: 2, 1>} : memref<160x128xf32, #tpu.memory_space<vmem>>, vector<5x128xf32>
    %c113_444 = arith.constant 113 : index
    %c0_445 = arith.constant 0 : index
    %560 = tpu.strided_load %arg15[%c113_444, %c0_445] {strides = array<i32: 2, 1>} : memref<160x128xf32, #tpu.memory_space<vmem>>, vector<5x128xf32>
    %561 = arith.maximumf %557, %558 : vector<5x128xf32>
    %562 = arith.maximumf %559, %560 : vector<5x128xf32>
    %563 = arith.maximumf %561, %562 : vector<5x128xf32>
    %564 = vector.broadcast %493 : vector<1x128xf32> to vector<5x128xf32>
    %565 = arith.addf %563, %564 : vector<5x128xf32>
    %cst_446 = arith.constant 0.000000e+00 : f32
    %566 = vector.broadcast %cst_446 : f32 to vector<5x128xf32>
    %567 = arith.maximumf %565, %566 : vector<5x128xf32>
    %568 = vector.extract_strided_slice %567 {offsets = [0, 0], sizes = [1, 16], strides = [1, 1]} : vector<5x128xf32> to vector<1x16xf32>
    %c0_447 = arith.constant 0 : index
    %c240 = arith.constant 240 : index
    %569 = vector.load %arg16[%c0_447, %c240] : memref<8x512xf32, #tpu.memory_space<vmem>>, vector<1x16xf32>
    tpu.vector_store %arg16[%c0_447, %c240], %568 {strides = array<i32>} : memref<8x512xf32, #tpu.memory_space<vmem>>, vector<1x16xf32>,
    %570 = vector.extract_strided_slice %567 {offsets = [1, 0], sizes = [1, 16], strides = [1, 1]} : vector<5x128xf32> to vector<1x16xf32>
    %c0_448 = arith.constant 0 : index
    %c256 = arith.constant 256 : index
    %571 = vector.load %arg16[%c0_448, %c256] : memref<8x512xf32, #tpu.memory_space<vmem>>, vector<1x16xf32>
    tpu.vector_store %arg16[%c0_448, %c256], %570 {strides = array<i32>} : memref<8x512xf32, #tpu.memory_space<vmem>>, vector<1x16xf32>,
    %572 = vector.extract_strided_slice %567 {offsets = [2, 0], sizes = [1, 16], strides = [1, 1]} : vector<5x128xf32> to vector<1x16xf32>
    %c0_449 = arith.constant 0 : index
    %c272 = arith.constant 272 : index
    %573 = vector.load %arg16[%c0_449, %c272] : memref<8x512xf32, #tpu.memory_space<vmem>>, vector<1x16xf32>
    tpu.vector_store %arg16[%c0_449, %c272], %572 {strides = array<i32>} : memref<8x512xf32, #tpu.memory_space<vmem>>, vector<1x16xf32>,
    %574 = vector.extract_strided_slice %567 {offsets = [3, 0], sizes = [1, 16], strides = [1, 1]} : vector<5x128xf32> to vector<1x16xf32>
    %c0_450 = arith.constant 0 : index
    %c288 = arith.constant 288 : index
    %575 = vector.load %arg16[%c0_450, %c288] : memref<8x512xf32, #tpu.memory_space<vmem>>, vector<1x16xf32>
    tpu.vector_store %arg16[%c0_450, %c288], %574 {strides = array<i32>} : memref<8x512xf32, #tpu.memory_space<vmem>>, vector<1x16xf32>,
    %576 = vector.extract_strided_slice %567 {offsets = [4, 0], sizes = [1, 16], strides = [1, 1]} : vector<5x128xf32> to vector<1x16xf32>
    %c0_451 = arith.constant 0 : index
    %c304 = arith.constant 304 : index
    %577 = vector.load %arg16[%c0_451, %c304] : memref<8x512xf32, #tpu.memory_space<vmem>>, vector<1x16xf32>
    tpu.vector_store %arg16[%c0_451, %c304], %576 {strides = array<i32>} : memref<8x512xf32, #tpu.memory_space<vmem>>, vector<1x16xf32>,
    %c128_452 = arith.constant 128 : index
    %c0_453 = arith.constant 0 : index
    %578 = tpu.strided_load %arg15[%c128_452, %c0_453] {strides = array<i32: 2, 1>} : memref<160x128xf32, #tpu.memory_space<vmem>>, vector<5x128xf32>
    %c129_454 = arith.constant 129 : index
    %c0_455 = arith.constant 0 : index
    %579 = tpu.strided_load %arg15[%c129_454, %c0_455] {strides = array<i32: 2, 1>} : memref<160x128xf32, #tpu.memory_space<vmem>>, vector<5x128xf32>
    %c144_456 = arith.constant 144 : index
    %c0_457 = arith.constant 0 : index
    %580 = tpu.strided_load %arg15[%c144_456, %c0_457] {strides = array<i32: 2, 1>} : memref<160x128xf32, #tpu.memory_space<vmem>>, vector<5x128xf32>
    %c145_458 = arith.constant 145 : index
    %c0_459 = arith.constant 0 : index
    %581 = tpu.strided_load %arg15[%c145_458, %c0_459] {strides = array<i32: 2, 1>} : memref<160x128xf32, #tpu.memory_space<vmem>>, vector<5x128xf32>
    %582 = arith.maximumf %578, %579 : vector<5x128xf32>
    %583 = arith.maximumf %580, %581 : vector<5x128xf32>
    %584 = arith.maximumf %582, %583 : vector<5x128xf32>
    %585 = vector.broadcast %493 : vector<1x128xf32> to vector<5x128xf32>
    %586 = arith.addf %584, %585 : vector<5x128xf32>
    %cst_460 = arith.constant 0.000000e+00 : f32
    %587 = vector.broadcast %cst_460 : f32 to vector<5x128xf32>
    %588 = arith.maximumf %586, %587 : vector<5x128xf32>
    %589 = vector.extract_strided_slice %588 {offsets = [0, 0], sizes = [1, 16], strides = [1, 1]} : vector<5x128xf32> to vector<1x16xf32>
    %c0_461 = arith.constant 0 : index
    %c320 = arith.constant 320 : index
    %590 = vector.load %arg16[%c0_461, %c320] : memref<8x512xf32, #tpu.memory_space<vmem>>, vector<1x16xf32>
    tpu.vector_store %arg16[%c0_461, %c320], %589 {strides = array<i32>} : memref<8x512xf32, #tpu.memory_space<vmem>>, vector<1x16xf32>,
    %591 = vector.extract_strided_slice %588 {offsets = [1, 0], sizes = [1, 16], strides = [1, 1]} : vector<5x128xf32> to vector<1x16xf32>
    %c0_462 = arith.constant 0 : index
    %c336_463 = arith.constant 336 : index
    %592 = vector.load %arg16[%c0_462, %c336_463] : memref<8x512xf32, #tpu.memory_space<vmem>>, vector<1x16xf32>
    tpu.vector_store %arg16[%c0_462, %c336_463], %591 {strides = array<i32>} : memref<8x512xf32, #tpu.memory_space<vmem>>, vector<1x16xf32>,
    %593 = vector.extract_strided_slice %588 {offsets = [2, 0], sizes = [1, 16], strides = [1, 1]} : vector<5x128xf32> to vector<1x16xf32>
    %c0_464 = arith.constant 0 : index
    %c352 = arith.constant 352 : index
    %594 = vector.load %arg16[%c0_464, %c352] : memref<8x512xf32, #tpu.memory_space<vmem>>, vector<1x16xf32>
    tpu.vector_store %arg16[%c0_464, %c352], %593 {strides = array<i32>} : memref<8x512xf32, #tpu.memory_space<vmem>>, vector<1x16xf32>,
    %595 = vector.extract_strided_slice %588 {offsets = [3, 0], sizes = [1, 16], strides = [1, 1]} : vector<5x128xf32> to vector<1x16xf32>
    %c0_465 = arith.constant 0 : index
    %c368 = arith.constant 368 : index
    %596 = vector.load %arg16[%c0_465, %c368] : memref<8x512xf32, #tpu.memory_space<vmem>>, vector<1x16xf32>
    tpu.vector_store %arg16[%c0_465, %c368], %595 {strides = array<i32>} : memref<8x512xf32, #tpu.memory_space<vmem>>, vector<1x16xf32>,
    %597 = vector.extract_strided_slice %588 {offsets = [4, 0], sizes = [1, 16], strides = [1, 1]} : vector<5x128xf32> to vector<1x16xf32>
    %c0_466 = arith.constant 0 : index
    %c384 = arith.constant 384 : index
    %598 = vector.load %arg16[%c0_466, %c384] : memref<8x512xf32, #tpu.memory_space<vmem>>, vector<1x16xf32>
    tpu.vector_store %arg16[%c0_466, %c384], %597 {strides = array<i32>} : memref<8x512xf32, #tpu.memory_space<vmem>>, vector<1x16xf32>,
    %c0_467 = arith.constant 0 : index
    %c0_468 = arith.constant 0 : index
    %599 = vector.load %arg16[%c0_467, %c0_468] : memref<8x512xf32, #tpu.memory_space<vmem>>, vector<1x512xf32>
    %600 = arith.truncf %599 : vector<1x512xf32> to vector<1x512xbf16>
    %c0_469 = arith.constant 0 : index
    %c0_470 = arith.constant 0 : index
    %601 = vector.load %arg6[%c0_469, %c0_470] : memref<512x128xbf16, #tpu.memory_space<vmem>>, vector<512x128xbf16>
    %cst_471 = arith.constant dense<0.000000e+00> : vector<1x128xf32>
    %602 = tpu.matmul %600, %601, %cst_471 {dimension_numbers = #tpu.dot_dimension_numbers<[1], [0], [0], [1], [0, 0, 1, 1], [], []>} : vector<1x512xbf16>, vector<512x128xbf16>, vector<1x128xf32> -> vector<1x128xf32>
    %c0_472 = arith.constant 0 : index
    %c0_473 = arith.constant 0 : index
    %603 = vector.load %arg7[%c0_472, %c0_473] : memref<1x128xf32, #tpu.memory_space<vmem>>, vector<1x128xf32>
    %604 = arith.addf %602, %603 : vector<1x128xf32>
    %cst_474 = arith.constant 0.000000e+00 : f32
    %605 = vector.broadcast %cst_474 : f32 to vector<1x128xf32>
    %606 = arith.maximumf %604, %605 : vector<1x128xf32>
    %607 = arith.truncf %606 : vector<1x128xf32> to vector<1x128xbf16>
    %c0_475 = arith.constant 0 : index
    %c0_476 = arith.constant 0 : index
    %608 = vector.load %arg8[%c0_475, %c0_476] : memref<128x128xbf16, #tpu.memory_space<vmem>>, vector<128x128xbf16>
    %cst_477 = arith.constant dense<0.000000e+00> : vector<1x128xf32>
    %609 = tpu.matmul %607, %608, %cst_477 {dimension_numbers = #tpu.dot_dimension_numbers<[1], [0], [0], [1], [0, 0, 1, 1], [], []>} : vector<1x128xbf16>, vector<128x128xbf16>, vector<1x128xf32> -> vector<1x128xf32>
    %c0_478 = arith.constant 0 : index
    %c0_479 = arith.constant 0 : index
    %610 = vector.load %arg9[%c0_478, %c0_479] : memref<1x128xf32, #tpu.memory_space<vmem>>, vector<1x128xf32>
    %611 = arith.addf %609, %610 : vector<1x128xf32>
    %cst_480 = arith.constant 0.000000e+00 : f32
    %612 = vector.broadcast %cst_480 : f32 to vector<1x128xf32>
    %613 = arith.maximumf %611, %612 : vector<1x128xf32>
    %614 = arith.truncf %613 : vector<1x128xf32> to vector<1x128xbf16>
    %c0_481 = arith.constant 0 : index
    %c0_482 = arith.constant 0 : index
    %615 = vector.load %arg10[%c0_481, %c0_482] : memref<128x128xbf16, #tpu.memory_space<vmem>>, vector<128x128xbf16>
    %cst_483 = arith.constant dense<0.000000e+00> : vector<1x128xf32>
    %616 = tpu.matmul %614, %615, %cst_483 {dimension_numbers = #tpu.dot_dimension_numbers<[1], [0], [0], [1], [0, 0, 1, 1], [], []>} : vector<1x128xbf16>, vector<128x128xbf16>, vector<1x128xf32> -> vector<1x128xf32>
    %c0_484 = arith.constant 0 : index
    %c0_485 = arith.constant 0 : index
    %617 = vector.load %arg11[%c0_484, %c0_485] : memref<1x128xf32, #tpu.memory_space<vmem>>, vector<1x128xf32>
    %618 = arith.addf %616, %617 : vector<1x128xf32>
    %619 = vector.shape_cast %618 : vector<1x128xf32> to vector<1x128xf32>
    %620 = vector.broadcast %619 : vector<1x128xf32> to vector<8x128xf32>
    %c0_486 = arith.constant 0 : index
    %c0_487 = arith.constant 0 : index
    %c0_488 = arith.constant 0 : index
    %621 = vector.load %arg12[%c0_486, %c0_487, %c0_488] : memref<1x8x128xf32, #tpu.memory_space<vmem>>, vector<1x8x128xf32>
    %622 = vector.shape_cast %621 : vector<1x8x128xf32> to vector<8x128xf32>
    %623 = vector.shape_cast %620 : vector<8x128xf32> to vector<1x8x128xf32>
    tpu.vector_store %arg12[%c0_486, %c0_487, %c0_488], %623 {strides = array<i32>} : memref<1x8x128xf32, #tpu.memory_space<vmem>>, vector<1x8x128xf32>,
    return
  }
  func.func @transform_0(%arg0: i32) -> (i32, i32) {
    %c0_i32 = arith.constant 0 : i32
    %c0_i32_0 = arith.constant 0 : i32
    return %arg0, %c0_i32 : i32, i32
  }
  func.func @transform_1(%arg0: i32) -> (i32, i32) {
    %c0_i32 = arith.constant 0 : i32
    %c0_i32_0 = arith.constant 0 : i32
    %c0_i32_1 = arith.constant 0 : i32
    return %c0_i32, %c0_i32_0 : i32, i32
  }
  func.func @transform_2(%arg0: i32) -> (i32, i32) {
    %c0_i32 = arith.constant 0 : i32
    %c0_i32_0 = arith.constant 0 : i32
    %c0_i32_1 = arith.constant 0 : i32
    return %c0_i32, %c0_i32_0 : i32, i32
  }
  func.func @transform_3(%arg0: i32) -> (i32, i32, i32) {
    %c0_i32 = arith.constant 0 : i32
    %c0_i32_0 = arith.constant 0 : i32
    %c0_i32_1 = arith.constant 0 : i32
    %c0_i32_2 = arith.constant 0 : i32
    return %c0_i32, %c0_i32_0, %c0_i32_1 : i32, i32, i32
  }
  func.func @transform_4(%arg0: i32) -> (i32, i32) {
    %c0_i32 = arith.constant 0 : i32
    %c0_i32_0 = arith.constant 0 : i32
    %c0_i32_1 = arith.constant 0 : i32
    return %c0_i32, %c0_i32_0 : i32, i32
  }
  func.func @transform_5(%arg0: i32) -> (i32, i32) {
    %c0_i32 = arith.constant 0 : i32
    %c0_i32_0 = arith.constant 0 : i32
    %c0_i32_1 = arith.constant 0 : i32
    return %c0_i32, %c0_i32_0 : i32, i32
  }
  func.func @transform_6(%arg0: i32) -> (i32, i32) {
    %c0_i32 = arith.constant 0 : i32
    %c0_i32_0 = arith.constant 0 : i32
    %c0_i32_1 = arith.constant 0 : i32
    return %c0_i32, %c0_i32_0 : i32, i32
  }
  func.func @transform_7(%arg0: i32) -> (i32, i32) {
    %c0_i32 = arith.constant 0 : i32
    %c0_i32_0 = arith.constant 0 : i32
    %c0_i32_1 = arith.constant 0 : i32
    return %c0_i32, %c0_i32_0 : i32, i32
  }
  func.func @transform_8(%arg0: i32) -> (i32, i32) {
    %c0_i32 = arith.constant 0 : i32
    %c0_i32_0 = arith.constant 0 : i32
    %c0_i32_1 = arith.constant 0 : i32
    return %c0_i32, %c0_i32_0 : i32, i32
  }
  func.func @transform_9(%arg0: i32) -> (i32, i32) {
    %c0_i32 = arith.constant 0 : i32
    %c0_i32_0 = arith.constant 0 : i32
    %c0_i32_1 = arith.constant 0 : i32
    return %c0_i32, %c0_i32_0 : i32, i32
  }
  func.func @transform_10(%arg0: i32) -> (i32, i32) {
    %c0_i32 = arith.constant 0 : i32
    %c0_i32_0 = arith.constant 0 : i32
    %c0_i32_1 = arith.constant 0 : i32
    return %c0_i32, %c0_i32_0 : i32, i32
  }
  func.func @transform_11(%arg0: i32) -> (i32, i32, i32) {
    %c0_i32 = arith.constant 0 : i32
    %c0_i32_0 = arith.constant 0 : i32
    %c0_i32_1 = arith.constant 0 : i32
    return %arg0, %c0_i32, %c0_i32_0 : i32, i32, i32
  }
}

</mosaic_0001>

<llo_original>
// kernel: net_forward.1
$region0: #{net_forward.1}
  #allocation0 [shape = 'u32[]', space=smem, size = 0x4, offset = 0x4, fixed_abs, tag = 'smem constant byte address 0x4 - core index']
  #allocation1 [shape = 'u32[144,128]{1,0:T(1,128)}', space=vmem, size = 0x12000, scoped, tag = 'internal scratch']
  #allocation2 [shape = 'f32[784,128]{1,0:T(8,128)}', space=vmem, size = 0x62000, scoped, tag = 'scratch operand']
  #allocation3 [shape = 'f32[232,128]{1,0:T(8,128)}', space=vmem, size = 0x1d000, scoped, tag = 'scratch operand']
  #allocation4 [shape = 'f32[160,128]{1,0:T(8,128)}', space=vmem, size = 0x14000, scoped, tag = 'scratch operand']
  #allocation5 [shape = 'f32[8,512]{1,0:T(8,128)}', space=vmem, size = 0x4000, scoped, tag = 'scratch operand']
  %s0 = inlined_call_operand.vmem [shape: bf16[1568,128], index: 0, kind: input, shape index: {}]
  %s1 = inlined_call_operand.vmem [shape: bf16[128,128], index: 1, kind: input, shape index: {}]
  %s2 = inlined_call_operand.vmem [shape: f32[1,128], index: 2, kind: input, shape index: {}]
  %s3 = inlined_call_operand.vmem [shape: bf16[25,8,128], index: 3, kind: input, shape index: {}]
  %s4 = inlined_call_operand.vmem [shape: f32[1,128], index: 4, kind: input, shape index: {}]
  %s5 = inlined_call_operand.vmem [shape: bf16[512,128], index: 5, kind: input, shape index: {}]
  %s6 = inlined_call_operand.vmem [shape: f32[1,128], index: 6, kind: input, shape index: {}]
  %s7 = inlined_call_operand.vmem [shape: bf16[128,128], index: 7, kind: input, shape index: {}]
  %s8 = inlined_call_operand.vmem [shape: f32[1,128], index: 8, kind: input, shape index: {}]
  %s9 = inlined_call_operand.vmem [shape: bf16[128,128], index: 9, kind: input, shape index: {}]
  %s10 = inlined_call_operand.vmem [shape: f32[1,128], index: 10, kind: input, shape index: {}]
  %s11 = inlined_call_operand.vmem [shape: f32[2,8,128], index: 11, kind: output, shape index: {}]
  %s12 = sld [smem:[#allocation0]]
  $region77: #{net_forward.1} parent=0
    _
  %s14 = ssub.s32 1, %s12
  %s15 = scalar_select 0, %s14, %s12
  loop: start=0, step=1, limit=4
  $region2: #{net_forward.1} parent=0 // loop_pre_header
    _
  $region3: #{net_forward.1} parent=0 // loop_header
    %s17 = sphi 0, %s21
    %p18 = scmp.ge.s32.totalorder %s17, 4
    %s27 = sphi 0, %s29
    %s30 = sphi 0, %s27
    %s31 = sphi 0, %s30
    %s47 = sphi 0, %s31
    %s51 = sphi 0, %s51
    %s53 = sphi 0, %s51
    %s54 = sphi 0, %s53
    %s68 = sphi 0, %s54
    %s72 = sphi 0, %s72
    %s74 = sphi 0, %s72
    %s75 = sphi 0, %s74
    %s89 = sphi 0, %s75
    %s93 = sphi 0, %s93
    %s95 = sphi 0, %s93
    %s96 = sphi 0, %s95
    %s110 = sphi 0, %s96
    %s114 = sphi 0, %s114
    %s116 = sphi 0, %s114
    %s117 = sphi 0, %s116
    %s131 = sphi 0, %s117
    %s135 = sphi 0, %s135
    %s137 = sphi 0, %s135
    %s138 = sphi 0, %s137
    %s152 = sphi 0, %s138
    %s156 = sphi 0, %s156
    %s158 = sphi 0, %s156
    %s159 = sphi 0, %s158
    %s173 = sphi 0, %s159
    %s177 = sphi 0, %s177
    %s179 = sphi 0, %s177
    %s180 = sphi 0, %s179
    %s194 = sphi 0, %s180
    %s198 = sphi 0, %s198
    %s200 = sphi 0, %s198
    %s201 = sphi 0, %s200
    %s215 = sphi 0, %s201
    %s219 = sphi 0, %s219
    %s221 = sphi 0, %s219
    %s222 = sphi 0, %s221
    %s236 = sphi 0, %s222
    %s240 = sphi 0, %s240
    %s242 = sphi 0, %s240
    %s243 = sphi 0, %s242
    %s257 = sphi 0, %s243
    %s263 = sphi 0, %s265
    %s266 = sphi 0, %s263
    %s267 = sphi 0, %s266
    %s283 = sphi 0, %s267
  $region4: #{net_forward.1} parent=0 // loop_header_branch
    %20 = sbr.rel (%p18) target = $region8
  $region5: #{net_forward.1} parent=0 // loop_body
    %s22 = ssub.s32 %s17, 1
    %s23 = ssub.s32 %s17, 2
    %s24 = sadd.s32 %s17, 1
    %s25 = ssub.s32 %s17, %s24
    %p26 = scmp.eq.s32.totalorder %s25, 0
    %s28 = sadd.s32 %s27, 1
    %s29 = scalar_select %p26, %s27, %s28
    %p32 = pneg %p26
    %p33 = scmp.eq.s32.totalorder %s17, 1
    %p34 = por %p32, %p33
    %p35 = scmp.ne.s32.totalorder %s27, %s30
    %p36 = scmp.eq.s32.totalorder %s17, 0
    %p37 = por %p35, %p36
    %p38 = scmp.ne.s32.totalorder %s27, %s30
    %p39 = scmp.eq.s32.totalorder %s22, 1
    %p40 = por %p38, %p39
    %p41 = scmp.ne.s32.totalorder %s30, %s31
    %p42 = scmp.eq.s32.totalorder %s22, 0
    %p43 = por %p41, %p42
    %p44 = scmp.ne.s32.totalorder %s30, %s31
    %p45 = scmp.eq.s32.totalorder %s23, 1
    %p46 = por %p44, %p45
    %p48 = scmp.ne.s32.totalorder %s31, %s47
    %p49 = scmp.eq.s32.totalorder %s23, 0
    %p50 = por %p48, %p49
    %s52 = sadd.s32 %s51, 1
    %p55 = scmp.eq.s32.totalorder %s17, 1
    %p56 = scmp.ne.s32.totalorder %s51, %s53
    %p57 = scmp.eq.s32.totalorder %s17, 0
    %p58 = por %p56, %p57
    %p59 = scmp.ne.s32.totalorder %s51, %s53
    %p60 = scmp.eq.s32.totalorder %s22, 1
    %p61 = por %p59, %p60
    %p62 = scmp.ne.s32.totalorder %s53, %s54
    %p63 = scmp.eq.s32.totalorder %s22, 0
    %p64 = por %p62, %p63
    %p65 = scmp.ne.s32.totalorder %s53, %s54
    %p66 = scmp.eq.s32.totalorder %s23, 1
    %p67 = por %p65, %p66
    %p69 = scmp.ne.s32.totalorder %s54, %s68
    %p70 = scmp.eq.s32.totalorder %s23, 0
    %p71 = por %p69, %p70
    %s73 = sadd.s32 %s72, 1
    %p76 = scmp.eq.s32.totalorder %s17, 1
    %p77 = scmp.ne.s32.totalorder %s72, %s74
    %p78 = scmp.eq.s32.totalorder %s17, 0
    %p79 = por %p77, %p78
    %p80 = scmp.ne.s32.totalorder %s72, %s74
    %p81 = scmp.eq.s32.totalorder %s22, 1
    %p82 = por %p80, %p81
    %p83 = scmp.ne.s32.totalorder %s74, %s75
    %p84 = scmp.eq.s32.totalorder %s22, 0
    %p85 = por %p83, %p84
    %p86 = scmp.ne.s32.totalorder %s74, %s75
    %p87 = scmp.eq.s32.totalorder %s23, 1
    %p88 = por %p86, %p87
    %p90 = scmp.ne.s32.totalorder %s75, %s89
    %p91 = scmp.eq.s32.totalorder %s23, 0
    %p92 = por %p90, %p91
    %s94 = sadd.s32 %s93, 1
    %p97 = scmp.eq.s32.totalorder %s17, 1
    %p98 = scmp.ne.s32.totalorder %s93, %s95
    %p99 = scmp.eq.s32.totalorder %s17, 0
    %p100 = por %p98, %p99
    %p101 = scmp.ne.s32.totalorder %s93, %s95
    %p102 = scmp.eq.s32.totalorder %s22, 1
    %p103 = por %p101, %p102
    %p104 = scmp.ne.s32.totalorder %s95, %s96
    %p105 = scmp.eq.s32.totalorder %s22, 0
    %p106 = por %p104, %p105
    %p107 = scmp.ne.s32.totalorder %s95, %s96
    %p108 = scmp.eq.s32.totalorder %s23, 1
    %p109 = por %p107, %p108
    %p111 = scmp.ne.s32.totalorder %s96, %s110
    %p112 = scmp.eq.s32.totalorder %s23, 0
    %p113 = por %p111, %p112
    %s115 = sadd.s32 %s114, 1
    %p118 = scmp.eq.s32.totalorder %s17, 1
    %p119 = scmp.ne.s32.totalorder %s114, %s116
    %p120 = scmp.eq.s32.totalorder %s17, 0
    %p121 = por %p119, %p120
    %p122 = scmp.ne.s32.totalorder %s114, %s116
    %p123 = scmp.eq.s32.totalorder %s22, 1
    %p124 = por %p122, %p123
    %p125 = scmp.ne.s32.totalorder %s116, %s117
    %p126 = scmp.eq.s32.totalorder %s22, 0
    %p127 = por %p125, %p126
    %p128 = scmp.ne.s32.totalorder %s116, %s117
    %p129 = scmp.eq.s32.totalorder %s23, 1
    %p130 = por %p128, %p129
    %p132 = scmp.ne.s32.totalorder %s117, %s131
    %p133 = scmp.eq.s32.totalorder %s23, 0
    %p134 = por %p132, %p133
    %s136 = sadd.s32 %s135, 1
    %p139 = scmp.eq.s32.totalorder %s17, 1
    %p140 = scmp.ne.s32.totalorder %s135, %s137
    %p141 = scmp.eq.s32.totalorder %s17, 0
    %p142 = por %p140, %p141
    %p143 = scmp.ne.s32.totalorder %s135, %s137
    %p144 = scmp.eq.s32.totalorder %s22, 1
    %p145 = por %p143, %p144
    %p146 = scmp.ne.s32.totalorder %s137, %s138
    %p147 = scmp.eq.s32.totalorder %s22, 0
    %p148 = por %p146, %p147
    %p149 = scmp.ne.s32.totalorder %s137, %s138
    %p150 = scmp.eq.s32.totalorder %s23, 1
    %p151 = por %p149, %p150
    %p153 = scmp.ne.s32.totalorder %s138, %s152
    %p154 = scmp.eq.s32.totalorder %s23, 0
    %p155 = por %p153, %p154
    %s157 = sadd.s32 %s156, 1
    %p160 = scmp.eq.s32.totalorder %s17, 1
    %p161 = scmp.ne.s32.totalorder %s156, %s158
    %p162 = scmp.eq.s32.totalorder %s17, 0
    %p163 = por %p161, %p162
    %p164 = scmp.ne.s32.totalorder %s156, %s158
    %p165 = scmp.eq.s32.totalorder %s22, 1
    %p166 = por %p164, %p165
    %p167 = scmp.ne.s32.totalorder %s158, %s159
    %p168 = scmp.eq.s32.totalorder %s22, 0
    %p169 = por %p167, %p168
    %p170 = scmp.ne.s32.totalorder %s158, %s159
    %p171 = scmp.eq.s32.totalorder %s23, 1
    %p172 = por %p170, %p171
    %p174 = scmp.ne.s32.totalorder %s159, %s173
    %p175 = scmp.eq.s32.totalorder %s23, 0
    %p176 = por %p174, %p175
    %s178 = sadd.s32 %s177, 1
    %p181 = scmp.eq.s32.totalorder %s17, 1
    %p182 = scmp.ne.s32.totalorder %s177, %s179
    %p183 = scmp.eq.s32.totalorder %s17, 0
    %p184 = por %p182, %p183
    %p185 = scmp.ne.s32.totalorder %s177, %s179
    %p186 = scmp.eq.s32.totalorder %s22, 1
    %p187 = por %p185, %p186
    %p188 = scmp.ne.s32.totalorder %s179, %s180
    %p189 = scmp.eq.s32.totalorder %s22, 0
    %p190 = por %p188, %p189
    %p191 = scmp.ne.s32.totalorder %s179, %s180
    %p192 = scmp.eq.s32.totalorder %s23, 1
    %p193 = por %p191, %p192
    %p195 = scmp.ne.s32.totalorder %s180, %s194
    %p196 = scmp.eq.s32.totalorder %s23, 0
    %p197 = por %p195, %p196
    %s199 = sadd.s32 %s198, 1
    %p202 = scmp.eq.s32.totalorder %s17, 1
    %p203 = scmp.ne.s32.totalorder %s198, %s200
    %p204 = scmp.eq.s32.totalorder %s17, 0
    %p205 = por %p203, %p204
    %p206 = scmp.ne.s32.totalorder %s198, %s200
    %p207 = scmp.eq.s32.totalorder %s22, 1
    %p208 = por %p206, %p207
    %p209 = scmp.ne.s32.totalorder %s200, %s201
    %p210 = scmp.eq.s32.totalorder %s22, 0
    %p211 = por %p209, %p210
    %p212 = scmp.ne.s32.totalorder %s200, %s201
    %p213 = scmp.eq.s32.totalorder %s23, 1
    %p214 = por %p212, %p213
    %p216 = scmp.ne.s32.totalorder %s201, %s215
    %p217 = scmp.eq.s32.totalorder %s23, 0
    %p218 = por %p216, %p217
    %s220 = sadd.s32 %s219, 1
    %p223 = scmp.eq.s32.totalorder %s17, 1
    %p224 = scmp.ne.s32.totalorder %s219, %s221
    %p225 = scmp.eq.s32.totalorder %s17, 0
    %p226 = por %p224, %p225
    %p227 = scmp.ne.s32.totalorder %s219, %s221
    %p228 = scmp.eq.s32.totalorder %s22, 1
    %p229 = por %p227, %p228
    %p230 = scmp.ne.s32.totalorder %s221, %s222
    %p231 = scmp.eq.s32.totalorder %s22, 0
    %p232 = por %p230, %p231
    %p233 = scmp.ne.s32.totalorder %s221, %s222
    %p234 = scmp.eq.s32.totalorder %s23, 1
    %p235 = por %p233, %p234
    %p237 = scmp.ne.s32.totalorder %s222, %s236
    %p238 = scmp.eq.s32.totalorder %s23, 0
    %p239 = por %p237, %p238
    %s241 = sadd.s32 %s240, 1
    %p244 = scmp.eq.s32.totalorder %s17, 1
    %p245 = scmp.ne.s32.totalorder %s240, %s242
    %p246 = scmp.eq.s32.totalorder %s17, 0
    %p247 = por %p245, %p246
    %p248 = scmp.ne.s32.totalorder %s240, %s242
    %p249 = scmp.eq.s32.totalorder %s22, 1
    %p250 = por %p248, %p249
    %p251 = scmp.ne.s32.totalorder %s242, %s243
    %p252 = scmp.eq.s32.totalorder %s22, 0
    %p253 = por %p251, %p252
    %p254 = scmp.ne.s32.totalorder %s242, %s243
    %p255 = scmp.eq.s32.totalorder %s23, 1
    %p256 = por %p254, %p255
    %p258 = scmp.ne.s32.totalorder %s243, %s257
    %p259 = scmp.eq.s32.totalorder %s23, 0
    %p260 = por %p258, %p259
    %s261 = ssub.s32 %s17, %s24
    %p262 = scmp.eq.s32.totalorder %s261, 0
    %s264 = sadd.s32 %s263, 1
    %s265 = scalar_select %p262, %s263, %s264
    %p268 = pneg %p262
    %p269 = scmp.eq.s32.totalorder %s17, 1
    %p270 = por %p268, %p269
    %p271 = scmp.ne.s32.totalorder %s263, %s266
    %p272 = scmp.eq.s32.totalorder %s17, 0
    %p273 = por %p271, %p272
    %p274 = scmp.ne.s32.totalorder %s263, %s266
    %p275 = scmp.eq.s32.totalorder %s22, 1
    %p276 = por %p274, %p275
    %p277 = scmp.ne.s32.totalorder %s266, %s267
    %p278 = scmp.eq.s32.totalorder %s22, 0
    %p279 = por %p277, %p278
    %p280 = scmp.ne.s32.totalorder %s266, %s267
    %p281 = scmp.eq.s32.totalorder %s23, 1
    %p282 = por %p280, %p281
    %p284 = scmp.ne.s32.totalorder %s267, %s283
    %p285 = scmp.eq.s32.totalorder %s23, 0
    %p286 = por %p284, %p285
    %p287 = scmp.le.s32.totalorder 1, %s17
    %p288 = scmp.lt.s32.totalorder %s17, 3
    %p289 = pnand %p287, %p288
    %p290 = pneg %p289
    // Predicated region
    $region9: #{net_forward.1} parent=5 // pred_check
      _
    $region10: #{net_forward.1} parent=5 // pred_check_branch
      %292 = sbr.rel (%p289) target = $region12
    $region11: #{net_forward.1} parent=5 // pred_region
      %s293 = ssub.s32 %s17, 1
      // Predicated region
      $region13: #{net_forward.1} parent=11 // pred_check
        %p294 = pneg %p64
      $region14: #{net_forward.1} parent=11 // pred_check_branch
        %296 = sbr.rel (%p294) target = $region16
      $region15: #{net_forward.1} parent=11 // pred_region
        _
      $region16: #{net_forward.1} parent=11 // pred_fallthru
        _
      // Predicated region
      $region17: #{net_forward.1} parent=11 // pred_check
        %p297 = pneg %p85
      $region18: #{net_forward.1} parent=11 // pred_check_branch
        %299 = sbr.rel (%p297) target = $region20
      $region19: #{net_forward.1} parent=11 // pred_region
        _
      $region20: #{net_forward.1} parent=11 // pred_fallthru
        _
      // Predicated region
      $region21: #{net_forward.1} parent=11 // pred_check
        %p300 = pneg %p106
      $region22: #{net_forward.1} parent=11 // pred_check_branch
        %302 = sbr.rel (%p300) target = $region24
      $region23: #{net_forward.1} parent=11 // pred_region
        _
      $region24: #{net_forward.1} parent=11 // pred_fallthru
        _
      // Predicated region
      $region25: #{net_forward.1} parent=11 // pred_check
        %p303 = pneg %p127
      $region26: #{net_forward.1} parent=11 // pred_check_branch
        %305 = sbr.rel (%p303) target = $region28
      $region27: #{net_forward.1} parent=11 // pred_region
        _
      $region28: #{net_forward.1} parent=11 // pred_fallthru
        _
      // Predicated region
      $region29: #{net_forward.1} parent=11 // pred_check
        %p306 = pneg %p148
      $region30: #{net_forward.1} parent=11 // pred_check_branch
        %308 = sbr.rel (%p306) target = $region32
      $region31: #{net_forward.1} parent=11 // pred_region
        _
      $region32: #{net_forward.1} parent=11 // pred_fallthru
        _
      // Predicated region
      $region33: #{net_forward.1} parent=11 // pred_check
        %p309 = pneg %p169
      $region34: #{net_forward.1} parent=11 // pred_check_branch
        %311 = sbr.rel (%p309) target = $region36
      $region35: #{net_forward.1} parent=11 // pred_region
        _
      $region36: #{net_forward.1} parent=11 // pred_fallthru
        _
      // Predicated region
      $region37: #{net_forward.1} parent=11 // pred_check
        %p312 = pneg %p190
      $region38: #{net_forward.1} parent=11 // pred_check_branch
        %314 = sbr.rel (%p312) target = $region40
      $region39: #{net_forward.1} parent=11 // pred_region
        _
      $region40: #{net_forward.1} parent=11 // pred_fallthru
        _
      // Predicated region
      $region41: #{net_forward.1} parent=11 // pred_check
        %p315 = pneg %p211
      $region42: #{net_forward.1} parent=11 // pred_check_branch
        %317 = sbr.rel (%p315) target = $region44
      $region43: #{net_forward.1} parent=11 // pred_region
        _
      $region44: #{net_forward.1} parent=11 // pred_fallthru
        _
      // Predicated region
      $region45: #{net_forward.1} parent=11 // pred_check
        %p318 = pneg %p232
      $region46: #{net_forward.1} parent=11 // pred_check_branch
        %320 = sbr.rel (%p318) target = $region48
      $region47: #{net_forward.1} parent=11 // pred_region
        _
      $region48: #{net_forward.1} parent=11 // pred_fallthru
        _
      // Predicated region
      $region49: #{net_forward.1} parent=11 // pred_check
        %p321 = pneg %p253
      $region50: #{net_forward.1} parent=11 // pred_check_branch
        %323 = sbr.rel (%p321) target = $region52
      $region51: #{net_forward.1} parent=11 // pred_region
        _
      $region52: #{net_forward.1} parent=11 // pred_fallthru
        _
    $region12: #{net_forward.1} parent=5 // pred_fallthru
      _
    %p324 = scmp.lt.s32.totalorder %s17, 2
    // Predicated region
    $region53: #{net_forward.1} parent=5 // pred_check
      %p325 = pneg %p324
    $region54: #{net_forward.1} parent=5 // pred_check_branch
      %327 = sbr.rel (%p325) target = $region56
    $region55: #{net_forward.1} parent=5 // pred_region
      // Predicated region
      $region57: #{net_forward.1} parent=55 // pred_check
        %p328 = pneg %p37
      $region58: #{net_forward.1} parent=55 // pred_check_branch
        %330 = sbr.rel (%p328) target = $region60
      $region59: #{net_forward.1} parent=55 // pred_region
        %s331 = smul.u32 98, %s17
        %p332 = scmp.lt.s32.totalorder %s331, 195
        %s333 = scalar_select %p332, %s331, 195
        %s334 = smul.addr %s333, 4
        %s335 = scalar_lea.vmem %s0, %s334
        %s336 = smul.u32 98, %s17
      $region60: #{net_forward.1} parent=55 // pred_fallthru
        _
    $region56: #{net_forward.1} parent=5 // pred_fallthru
      _
    %p337 = scmp.le.s32.totalorder 1, %s17
    %p338 = scmp.lt.s32.totalorder %s17, 3
    %p339 = pnand %p337, %p338
    %p340 = pneg %p339
    // Predicated region
    $region61: #{net_forward.1} parent=5 // pred_check
      _
    $region62: #{net_forward.1} parent=5 // pred_check_branch
      %342 = sbr.rel (%p339) target = $region64
    $region63: #{net_forward.1} parent=5 // pred_region
      %s343 = ssub.s32 %s17, 1
      %s344 = smul.u32 98, %s22
      %p345 = scmp.lt.s32.totalorder %s344, 195
      %s346 = scalar_select %p345, %s344, 195
      %s347 = smul.addr %s346, 4
      %s348 = scalar_lea.vmem %s0, %s347
      %p349 = pneg %p43
      %p350 = pneg %p40
      %p351 = pneg %p64
      %p352 = pneg %p61
      %p353 = pneg %p85
      %p354 = pneg %p82
      %p355 = pneg %p106
      %p356 = pneg %p103
      %p357 = pneg %p127
      %p358 = pneg %p124
      %p359 = pneg %p148
      %p360 = pneg %p145
      %p361 = pneg %p169
      %p362 = pneg %p166
      %p363 = pneg %p190
      %p364 = pneg %p187
      %p365 = pneg %p211
      %p366 = pneg %p208
      %p367 = pneg %p232
      %p368 = pneg %p229
      %p369 = pneg %p253
      %p370 = pneg %p250
      %p371 = pneg %p279
      %p372 = pneg %p276
      %p373 = scmp.lt.s32.totalorder %s22, 1
      %s374 = scalar_select %p373, %s22, 1
      %s375 = smul.addr %s374, 8
      %s376 = scalar_lea.vmem %s11, %s375
      %s377 = smul.u32 98, %s22
      %p378 = scmp.lt.s32.totalorder %s377, 195
      %s379 = scalar_select %p378, %s377, 195
      %s380 = smul.addr %s379, 4
      %s381 = scalar_lea.vmem %s0, %s380
      %s382 = smul.u32 98, %s22
      %p383 = scmp.lt.s32.totalorder %s22, 1
      %s384 = scalar_select %p383, %s22, 1
      %s385 = smul.addr %s384, 8
      %s386 = scalar_lea.vmem %s11, %s385
      %v388 = vld [vmem:[%s1] sm:$0xf]
      %v389 = vld [vmem:[%s1 + $0x4] sm:$0xf]
      %v390 = vld [vmem:[%s1 + $0x8] sm:$0xf]
      %v391 = vld [vmem:[%s1 + $0xc] sm:$0xf]
      %v392 = vld [vmem:[%s1 + $0x10] sm:$0xf]
      %v393 = vld [vmem:[%s1 + $0x14] sm:$0xf]
      %v394 = vld [vmem:[%s1 + $0x18] sm:$0xf]
      %v395 = vld [vmem:[%s1 + $0x1c] sm:$0xf]
      %v396 = vld [vmem:[%s1 + $0x20] sm:$0xf]
      %v397 = vld [vmem:[%s1 + $0x24] sm:$0xf]
      %v398 = vld [vmem:[%s1 + $0x28] sm:$0xf]
      %v399 = vld [vmem:[%s1 + $0x2c] sm:$0xf]
      %v400 = vld [vmem:[%s1 + $0x30] sm:$0xf]
      %v401 = vld [vmem:[%s1 + $0x34] sm:$0xf]
      %v402 = vld [vmem:[%s1 + $0x38] sm:$0xf]
      %v403 = vld [vmem:[%s1 + $0x3c] sm:$0xf]
      %v404 = vld [vmem:[%s381] sm:$0xf]
      %v405 = vld [vmem:[%s381 + $0x4] sm:$0xf]
      %v406 = vld [vmem:[%s381 + $0x8] sm:$0xf]
      %v407 = vld [vmem:[%s381 + $0xc] sm:$0xf]
      %v408 = vld [vmem:[%s381 + $0x10] sm:$0xf]
      %v409 = vld [vmem:[%s381 + $0x14] sm:$0xf]
      %v410 = vld [vmem:[%s381 + $0x18] sm:$0xf]
      %v411 = vld [vmem:[%s381 + $0x1c] sm:$0xf]
      %v412 = vld [vmem:[%s381 + $0x20] sm:$0xf]
      %v413 = vld [vmem:[%s381 + $0x24] sm:$0xf]
      %v414 = vld [vmem:[%s381 + $0x28] sm:$0xf]
      %v415 = vld [vmem:[%s381 + $0x2c] sm:$0xf]
      %v416 = vld [vmem:[%s381 + $0x30] sm:$0xf]
      %v417 = vld [vmem:[%s381 + $0x34] sm:$0xf]
      %v432 = vunpack.c.l.b16 %v404
      %v433 = vunpack.c.l.b16 %v405
      %v434 = vunpack.c.l.b16 %v406
      %v435 = vunpack.c.l.b16 %v407
      %v436 = vunpack.c.l.b16 %v408
      %v437 = vunpack.c.l.b16 %v409
      %v438 = vunpack.c.l.b16 %v410
      %v439 = vunpack.c.l.b16 %v411
      %v440 = vunpack.c.l.b16 %v412
      %v441 = vunpack.c.l.b16 %v413
      %v442 = vunpack.c.l.b16 %v414
      %v443 = vunpack.c.l.b16 %v415
      %v444 = vunpack.c.l.b16 %v416
      %v445 = vunpack.c.l.b16 %v417
      %v446 = vpack.c.b16 %v433, %v432
      %v447 = vpack.c.b16 %v435, %v434
      %v448 = vpack.c.b16 %v437, %v436
      %v449 = vpack.c.b16 %v439, %v438
      %v450 = vpack.c.b16 %v441, %v440
      %v451 = vpack.c.b16 %v443, %v442
      %v452 = vpack.c.b16 %v445, %v444
      %v476 = vunpack.c.l.b16 %v388
      %v477 = vunpack.c.l.b16 %v389
      %v478 = vunpack.c.l.b16 %v390
      %v479 = vunpack.c.l.b16 %v391
      %v480 = vunpack.c.l.b16 %v392
      %v481 = vunpack.c.l.b16 %v393
      %v482 = vunpack.c.l.b16 %v394
      %v483 = vunpack.c.l.b16 %v395
      %v484 = vunpack.c.l.b16 %v396
      %v485 = vunpack.c.l.b16 %v397
      %v486 = vunpack.c.l.b16 %v398
      %v487 = vunpack.c.l.b16 %v399
      %v488 = vunpack.c.l.b16 %v400
      %v489 = vunpack.c.l.b16 %v401
      %v490 = vunpack.c.l.b16 %v402
      %v491 = vunpack.c.l.b16 %v403
      %v492 = vpack.c.b16 %v477, %v476
      %v493 = vpack.c.b16 %v479, %v478
      %v494 = vpack.c.b16 %v481, %v480
      %v495 = vpack.c.b16 %v483, %v482
      %v496 = vpack.c.b16 %v485, %v484
      %v497 = vpack.c.b16 %v487, %v486
      %v498 = vpack.c.b16 %v489, %v488
      %v499 = vpack.c.b16 %v491, %v490
      %508 = vmatprep.subr.bf16.mxu0 0
      %509 = vmatpush1.bf16.msra.mxu0 %v492
      %510 = vmatprep.subr.bf16.mxu0 0
      %511 = vmatpush1.bf16.msra.mxu0 %v493
      %512 = vmatprep.subr.bf16.mxu0 0
      %513 = vmatpush1.bf16.msra.mxu0 %v494
      %514 = vmatprep.subr.bf16.mxu0 0
      %515 = vmatpush1.bf16.msra.mxu0 %v495
      %516 = vmatprep.subr.bf16.mxu0 0
      %517 = vmatpush1.bf16.msra.mxu0 %v496
      %518 = vmatprep.subr.bf16.mxu0 0
      %519 = vmatpush1.bf16.msra.mxu0 %v497
      %520 = vmatprep.subr.bf16.mxu0 0
      %521 = vmatpush1.bf16.msra.mxu0 %v498
      %522 = vmatprep.subr.bf16.mxu0 0
      %523 = vmatpush1.bf16.msra.mxu0 %v499
      %524 = vmatprep.subr.bf16.mxu0 0
      %525 = vmatpush1.bf16.msra.mxu0 0
      %526 = vmatprep.subr.bf16.mxu0 0
      %527 = vmatpush1.bf16.msra.mxu0 0
      %528 = vmatprep.subr.bf16.mxu0 0
      %529 = vmatpush1.bf16.msra.mxu0 0
      %530 = vmatprep.subr.bf16.mxu0 0
      %531 = vmatpush1.bf16.msra.mxu0 0
      %532 = vmatprep.subr.bf16.mxu0 0
      %533 = vmatpush1.bf16.msra.mxu0 0
      %534 = vmatprep.subr.bf16.mxu0 0
      %535 = vmatpush1.bf16.msra.mxu0 0
      %536 = vmatprep.subr.bf16.mxu0 0
      %537 = vmatpush1.bf16.msra.mxu0 0
      %538 = vmatprep.subr.bf16.mxu0 0
      %539 = vmatpush1.bf16.msra.mxu0 0
      %540 = vmatprep.mubr.bf16.mxu0 0
      %541 = vmatmul.mubr.bf16.gmra.mrb[0].mxu0 %v446
      %v542 = vpop.f32.mrb[0].mxu0
      %v543 = vadd.f32 0.0, %v542
      %v544 = vpop.f32.mrb[0].mxu0
      %v545 = vpop.f32.mrb[0].mxu0
      %v546 = vadd.f32 0.0, %v545
      %v547 = vpop.f32.mrb[0].mxu0
      %548 = vmatprep.mubr.bf16.mxu0 0
      %549 = vmatmul.mubr.bf16.gmra.mrb[0].mxu0 %v447
      %v550 = vpop.f32.mrb[0].mxu0
      %v551 = vadd.f32 0.0, %v550
      %v552 = vpop.f32.mrb[0].mxu0
      %v553 = vpop.f32.mrb[0].mxu0
      %v554 = vadd.f32 0.0, %v553
      %v555 = vpop.f32.mrb[0].mxu0
      %556 = vmatprep.mubr.bf16.mxu0 0
      %557 = vmatmul.mubr.bf16.gmra.mrb[0].mxu0 %v448
      %v558 = vpop.f32.mrb[0].mxu0
      %v559 = vadd.f32 0.0, %v558
      %v560 = vpop.f32.mrb[0].mxu0
      %v561 = vpop.f32.mrb[0].mxu0
      %v562 = vadd.f32 0.0, %v561
      %v563 = vpop.f32.mrb[0].mxu0
      %564 = vmatprep.mubr.bf16.mxu0 0
      %565 = vmatmul.mubr.bf16.gmra.mrb[0].mxu0 %v449
      %v566 = vpop.f32.mrb[0].mxu0
      %v567 = vadd.f32 0.0, %v566
      %v568 = vpop.f32.mrb[0].mxu0
      %v569 = vpop.f32.mrb[0].mxu0
      %v570 = vadd.f32 0.0, %v569
      %v571 = vpop.f32.mrb[0].mxu0
      %572 = vmatprep.mubr.bf16.mxu0 0
      %573 = vmatmul.mubr.bf16.gmra.mrb[0].mxu0 %v450
      %v574 = vpop.f32.mrb[0].mxu0
      %v575 = vadd.f32 0.0, %v574
      %v576 = vpop.f32.mrb[0].mxu0
      %v577 = vpop.f32.mrb[0].mxu0
      %v578 = vadd.f32 0.0, %v577
      %v579 = vpop.f32.mrb[0].mxu0
      %580 = vmatprep.mubr.bf16.mxu0 0
      %581 = vmatmul.mubr.bf16.gmra.mrb[0].mxu0 %v451
      %v582 = vpop.f32.mrb[0].mxu0
      %v583 = vadd.f32 0.0, %v582
      %v584 = vpop.f32.mrb[0].mxu0
      %v585 = vpop.f32.mrb[0].mxu0
      %v586 = vadd.f32 0.0, %v585
      %v587 = vpop.f32.mrb[0].mxu0
      %588 = vmatprep.mubr.bf16.mxu0 0
      %589 = vmatmul.mubr.bf16.gmra.mrb[0].mxu0 %v452
      %v590 = vpop.f32.mrb[0].mxu0
      %v591 = vadd.f32 0.0, %v590
      %v592 = vpop.f32.mrb[0].mxu0
      %v593 = vpop.f32.mrb[0].mxu0
      %v594 = vadd.f32 0.0, %v593
      %v595 = vpop.f32.mrb[0].mxu0
      %596 = vdwg.mxu0
      %597 = vst [vmem:[#allocation2] sm:$0xff] %v543
      %598 = vst [vmem:[#allocation2 + $0x8] sm:$0xff] %v546
      %599 = vst [vmem:[#allocation2 + $0x10] sm:$0xff] %v551
      %600 = vst [vmem:[#allocation2 + $0x18] sm:$0xff] %v554
      %601 = vst [vmem:[#allocation2 + $0x20] sm:$0xff] %v559
      %602 = vst [vmem:[#allocation2 + $0x28] sm:$0xff] %v562
      %603 = vst [vmem:[#allocation2 + $0x30] sm:$0xff] %v567
      %604 = vst [vmem:[#allocation2 + $0x38] sm:$0xff] %v570
      %605 = vst [vmem:[#allocation2 + $0x40] sm:$0xff] %v575
      %606 = vst [vmem:[#allocation2 + $0x48] sm:$0xff] %v578
      %607 = vst [vmem:[#allocation2 + $0x50] sm:$0xff] %v583
      %608 = vst [vmem:[#allocation2 + $0x58] sm:$0xff] %v586
      %609 = vst [vmem:[#allocation2 + $0x60] sm:$0xff] %v591
      %610 = vst [vmem:[#allocation2 + $0x68] sm:$0xff] %v594
      %v611 = vld [vmem:[%s381 + $0x38] sm:$0xf]
      %v612 = vld [vmem:[%s381 + $0x3c] sm:$0xf]
      %v613 = vld [vmem:[%s381 + $0x40] sm:$0xf]
      %v614 = vld [vmem:[%s381 + $0x44] sm:$0xf]
      %v615 = vld [vmem:[%s381 + $0x48] sm:$0xf]
      %v616 = vld [vmem:[%s381 + $0x4c] sm:$0xf]
      %v617 = vld [vmem:[%s381 + $0x50] sm:$0xf]
      %v618 = vld [vmem:[%s381 + $0x54] sm:$0xf]
      %v619 = vld [vmem:[%s381 + $0x58] sm:$0xf]
      %v620 = vld [vmem:[%s381 + $0x5c] sm:$0xf]
      %v621 = vld [vmem:[%s381 + $0x60] sm:$0xf]
      %v622 = vld [vmem:[%s381 + $0x64] sm:$0xf]
      %v623 = vld [vmem:[%s381 + $0x68] sm:$0xf]
      %v624 = vld [vmem:[%s381 + $0x6c] sm:$0xf]
      %v639 = vunpack.c.l.b16 %v611
      %v640 = vunpack.c.l.b16 %v612
      %v641 = vunpack.c.l.b16 %v613
      %v642 = vunpack.c.l.b16 %v614
      %v643 = vunpack.c.l.b16 %v615
      %v644 = vunpack.c.l.b16 %v616
      %v645 = vunpack.c.l.b16 %v617
      %v646 = vunpack.c.l.b16 %v618
      %v647 = vunpack.c.l.b16 %v619
      %v648 = vunpack.c.l.b16 %v620
      %v649 = vunpack.c.l.b16 %v621
      %v650 = vunpack.c.l.b16 %v622
      %v651 = vunpack.c.l.b16 %v623
      %v652 = vunpack.c.l.b16 %v624
      %v653 = vpack.c.b16 %v640, %v639
      %v654 = vpack.c.b16 %v642, %v641
      %v655 = vpack.c.b16 %v644, %v643
      %v656 = vpack.c.b16 %v646, %v645
      %v657 = vpack.c.b16 %v648, %v647
      %v658 = vpack.c.b16 %v650, %v649
      %v659 = vpack.c.b16 %v652, %v651
      %667 = vmatprep.subr.bf16.mxu0 0
      %668 = vmatpush1.bf16.msra.mxu0 %v492
      %669 = vmatprep.subr.bf16.mxu0 0
      %670 = vmatpush1.bf16.msra.mxu0 %v493
      %671 = vmatprep.subr.bf16.mxu0 0
      %672 = vmatpush1.bf16.msra.mxu0 %v494
      %673 = vmatprep.subr.bf16.mxu0 0
      %674 = vmatpush1.bf16.msra.mxu0 %v495
      %675 = vmatprep.subr.bf16.mxu0 0
      %676 = vmatpush1.bf16.msra.mxu0 %v496
      %677 = vmatprep.subr.bf16.mxu0 0
      %678 = vmatpush1.bf16.msra.mxu0 %v497
      %679 = vmatprep.subr.bf16.mxu0 0
      %680 = vmatpush1.bf16.msra.mxu0 %v498
      %681 = vmatprep.subr.bf16.mxu0 0
      %682 = vmatpush1.bf16.msra.mxu0 %v499
      %683 = vmatprep.subr.bf16.mxu0 0
      %684 = vmatpush1.bf16.msra.mxu0 0
      %685 = vmatprep.subr.bf16.mxu0 0
      %686 = vmatpush1.bf16.msra.mxu0 0
      %687 = vmatprep.subr.bf16.mxu0 0
      %688 = vmatpush1.bf16.msra.mxu0 0
      %689 = vmatprep.subr.bf16.mxu0 0
      %690 = vmatpush1.bf16.msra.mxu0 0
      %691 = vmatprep.subr.bf16.mxu0 0
      %692 = vmatpush1.bf16.msra.mxu0 0
      %693 = vmatprep.subr.bf16.mxu0 0
      %694 = vmatpush1.bf16.msra.mxu0 0
      %695 = vmatprep.subr.bf16.mxu0 0
      %696 = vmatpush1.bf16.msra.mxu0 0
      %697 = vmatprep.subr.bf16.mxu0 0
      %698 = vmatpush1.bf16.msra.mxu0 0
      %699 = vmatprep.mubr.bf16.mxu0 0
      %700 = vmatmul.mubr.bf16.gmra.mrb[0].mxu0 %v653
      %v701 = vpop.f32.mrb[0].mxu0
      %v702 = vadd.f32 0.0, %v701
      %v703 = vpop.f32.mrb[0].mxu0
      %v704 = vpop.f32.mrb[0].mxu0
      %v705 = vadd.f32 0.0, %v704
      %v706 = vpop.f32.mrb[0].mxu0
      %707 = vmatprep.mubr.bf16.mxu0 0
      %708 = vmatmul.mubr.bf16.gmra.mrb[0].mxu0 %v654
      %v709 = vpop.f32.mrb[0].mxu0
      %v710 = vadd.f32 0.0, %v709
      %v711 = vpop.f32.mrb[0].mxu0
      %v712 = vpop.f32.mrb[0].mxu0
      %v713 = vadd.f32 0.0, %v712
      %v714 = vpop.f32.mrb[0].mxu0
      %715 = vmatprep.mubr.bf16.mxu0 0
      %716 = vmatmul.mubr.bf16.gmra.mrb[0].mxu0 %v655
      %v717 = vpop.f32.mrb[0].mxu0
      %v718 = vadd.f32 0.0, %v717
      %v719 = vpop.f32.mrb[0].mxu0
      %v720 = vpop.f32.mrb[0].mxu0
      %v721 = vadd.f32 0.0, %v720
      %v722 = vpop.f32.mrb[0].mxu0
      %723 = vmatprep.mubr.bf16.mxu0 0
      %724 = vmatmul.mubr.bf16.gmra.mrb[0].mxu0 %v656
      %v725 = vpop.f32.mrb[0].mxu0
      %v726 = vadd.f32 0.0, %v725
      %v727 = vpop.f32.mrb[0].mxu0
      %v728 = vpop.f32.mrb[0].mxu0
      %v729 = vadd.f32 0.0, %v728
      %v730 = vpop.f32.mrb[0].mxu0
      %731 = vmatprep.mubr.bf16.mxu0 0
      %732 = vmatmul.mubr.bf16.gmra.mrb[0].mxu0 %v657
      %v733 = vpop.f32.mrb[0].mxu0
      %v734 = vadd.f32 0.0, %v733
      %v735 = vpop.f32.mrb[0].mxu0
      %v736 = vpop.f32.mrb[0].mxu0
      %v737 = vadd.f32 0.0, %v736
      %v738 = vpop.f32.mrb[0].mxu0
      %739 = vmatprep.mubr.bf16.mxu0 0
      %740 = vmatmul.mubr.bf16.gmra.mrb[0].mxu0 %v658
      %v741 = vpop.f32.mrb[0].mxu0
      %v742 = vadd.f32 0.0, %v741
      %v743 = vpop.f32.mrb[0].mxu0
      %v744 = vpop.f32.mrb[0].mxu0
      %v745 = vadd.f32 0.0, %v744
      %v746 = vpop.f32.mrb[0].mxu0
      %747 = vmatprep.mubr.bf16.mxu0 0
      %748 = vmatmul.mubr.bf16.gmra.mrb[0].mxu0 %v659
      %v749 = vpop.f32.mrb[0].mxu0
      %v750 = vadd.f32 0.0, %v749
      %v751 = vpop.f32.mrb[0].mxu0
      %v752 = vpop.f32.mrb[0].mxu0
      %v753 = vadd.f32 0.0, %v752
      %v754 = vpop.f32.mrb[0].mxu0
      %755 = vdwg.mxu0
      %756 = vst [vmem:[#allocation2 + $0x70] sm:$0xff] %v702
      %757 = vst [vmem:[#allocation2 + $0x78] sm:$0xff] %v705
      %758 = vst [vmem:[#allocation2 + $0x80] sm:$0xff] %v710
      %759 = vst [vmem:[#allocation2 + $0x88] sm:$0xff] %v713
      %760 = vst [vmem:[#allocation2 + $0x90] sm:$0xff] %v718
      %761 = vst [vmem:[#allocation2 + $0x98] sm:$0xff] %v721
      %762 = vst [vmem:[#allocation2 + $0xa0] sm:$0xff] %v726
      %763 = vst [vmem:[#allocation2 + $0xa8] sm:$0xff] %v729
      %764 = vst [vmem:[#allocation2 + $0xb0] sm:$0xff] %v734
      %765 = vst [vmem:[#allocation2 + $0xb8] sm:$0xff] %v737
      %766 = vst [vmem:[#allocation2 + $0xc0] sm:$0xff] %v742
      %767 = vst [vmem:[#allocation2 + $0xc8] sm:$0xff] %v745
      %768 = vst [vmem:[#allocation2 + $0xd0] sm:$0xff] %v750
      %769 = vst [vmem:[#allocation2 + $0xd8] sm:$0xff] %v753
      %v770 = vld [vmem:[%s381 + $0x70] sm:$0xf]
      %v771 = vld [vmem:[%s381 + $0x74] sm:$0xf]
      %v772 = vld [vmem:[%s381 + $0x78] sm:$0xf]
      %v773 = vld [vmem:[%s381 + $0x7c] sm:$0xf]
      %v774 = vld [vmem:[%s381 + $0x80] sm:$0xf]
      %v775 = vld [vmem:[%s381 + $0x84] sm:$0xf]
      %v776 = vld [vmem:[%s381 + $0x88] sm:$0xf]
      %v777 = vld [vmem:[%s381 + $0x8c] sm:$0xf]
      %v778 = vld [vmem:[%s381 + $0x90] sm:$0xf]
      %v779 = vld [vmem:[%s381 + $0x94] sm:$0xf]
      %v780 = vld [vmem:[%s381 + $0x98] sm:$0xf]
      %v781 = vld [vmem:[%s381 + $0x9c] sm:$0xf]
      %v782 = vld [vmem:[%s381 + $0xa0] sm:$0xf]
      %v783 = vld [vmem:[%s381 + $0xa4] sm:$0xf]
      %v798 = vunpack.c.l.b16 %v770
      %v799 = vunpack.c.l.b16 %v771
      %v800 = vunpack.c.l.b16 %v772
      %v801 = vunpack.c.l.b16 %v773
      %v802 = vunpack.c.l.b16 %v774
      %v803 = vunpack.c.l.b16 %v775
      %v804 = vunpack.c.l.b16 %v776
      %v805 = vunpack.c.l.b16 %v777
      %v806 = vunpack.c.l.b16 %v778
      %v807 = vunpack.c.l.b16 %v779
      %v808 = vunpack.c.l.b16 %v780
      %v809 = vunpack.c.l.b16 %v781
      %v810 = vunpack.c.l.b16 %v782
      %v811 = vunpack.c.l.b16 %v783
      %v812 = vpack.c.b16 %v799, %v798
      %v813 = vpack.c.b16 %v801, %v800
      %v814 = vpack.c.b16 %v803, %v802
      %v815 = vpack.c.b16 %v805, %v804
      %v816 = vpack.c.b16 %v807, %v806
      %v817 = vpack.c.b16 %v809, %v808
      %v818 = vpack.c.b16 %v811, %v810
      %826 = vmatprep.subr.bf16.mxu0 0
      %827 = vmatpush1.bf16.msra.mxu0 %v492
      %828 = vmatprep.subr.bf16.mxu0 0
      %829 = vmatpush1.bf16.msra.mxu0 %v493
      %830 = vmatprep.subr.bf16.mxu0 0
      %831 = vmatpush1.bf16.msra.mxu0 %v494
      %832 = vmatprep.subr.bf16.mxu0 0
      %833 = vmatpush1.bf16.msra.mxu0 %v495
      %834 = vmatprep.subr.bf16.mxu0 0
      %835 = vmatpush1.bf16.msra.mxu0 %v496
      %836 = vmatprep.subr.bf16.mxu0 0
      %837 = vmatpush1.bf16.msra.mxu0 %v497
      %838 = vmatprep.subr.bf16.mxu0 0
      %839 = vmatpush1.bf16.msra.mxu0 %v498
      %840 = vmatprep.subr.bf16.mxu0 0
      %841 = vmatpush1.bf16.msra.mxu0 %v499
      %842 = vmatprep.subr.bf16.mxu0 0
      %843 = vmatpush1.bf16.msra.mxu0 0
      %844 = vmatprep.subr.bf16.mxu0 0
      %845 = vmatpush1.bf16.msra.mxu0 0
      %846 = vmatprep.subr.bf16.mxu0 0
      %847 = vmatpush1.bf16.msra.mxu0 0
      %848 = vmatprep.subr.bf16.mxu0 0
      %849 = vmatpush1.bf16.msra.mxu0 0
      %850 = vmatprep.subr.bf16.mxu0 0
      %851 = vmatpush1.bf16.msra.mxu0 0
      %852 = vmatprep.subr.bf16.mxu0 0
      %853 = vmatpush1.bf16.msra.mxu0 0
      %854 = vmatprep.subr.bf16.mxu0 0
      %855 = vmatpush1.bf16.msra.mxu0 0
      %856 = vmatprep.subr.bf16.mxu0 0
      %857 = vmatpush1.bf16.msra.mxu0 0
      %858 = vmatprep.mubr.bf16.mxu0 0
      %859 = vmatmul.mubr.bf16.gmra.mrb[0].mxu0 %v812
      %v860 = vpop.f32.mrb[0].mxu0
      %v861 = vadd.f32 0.0, %v860
      %v862 = vpop.f32.mrb[0].mxu0
      %v863 = vpop.f32.mrb[0].mxu0
      %v864 = vadd.f32 0.0, %v863
      %v865 = vpop.f32.mrb[0].mxu0
      %866 = vmatprep.mubr.bf16.mxu0 0
      %867 = vmatmul.mubr.bf16.gmra.mrb[0].mxu0 %v813
      %v868 = vpop.f32.mrb[0].mxu0
      %v869 = vadd.f32 0.0, %v868
      %v870 = vpop.f32.mrb[0].mxu0
      %v871 = vpop.f32.mrb[0].mxu0
      %v872 = vadd.f32 0.0, %v871
      %v873 = vpop.f32.mrb[0].mxu0
      %874 = vmatprep.mubr.bf16.mxu0 0
      %875 = vmatmul.mubr.bf16.gmra.mrb[0].mxu0 %v814
      %v876 = vpop.f32.mrb[0].mxu0
      %v877 = vadd.f32 0.0, %v876
      %v878 = vpop.f32.mrb[0].mxu0
      %v879 = vpop.f32.mrb[0].mxu0
      %v880 = vadd.f32 0.0, %v879
      %v881 = vpop.f32.mrb[0].mxu0
      %882 = vmatprep.mubr.bf16.mxu0 0
      %883 = vmatmul.mubr.bf16.gmra.mrb[0].mxu0 %v815
      %v884 = vpop.f32.mrb[0].mxu0
      %v885 = vadd.f32 0.0, %v884
      %v886 = vpop.f32.mrb[0].mxu0
      %v887 = vpop.f32.mrb[0].mxu0
      %v888 = vadd.f32 0.0, %v887
      %v889 = vpop.f32.mrb[0].mxu0
      %890 = vmatprep.mubr.bf16.mxu0 0
      %891 = vmatmul.mubr.bf16.gmra.mrb[0].mxu0 %v816
      %v892 = vpop.f32.mrb[0].mxu0
      %v893 = vadd.f32 0.0, %v892
      %v894 = vpop.f32.mrb[0].mxu0
      %v895 = vpop.f32.mrb[0].mxu0
      %v896 = vadd.f32 0.0, %v895
      %v897 = vpop.f32.mrb[0].mxu0
      %898 = vmatprep.mubr.bf16.mxu0 0
      %899 = vmatmul.mubr.bf16.gmra.mrb[0].mxu0 %v817
      %v900 = vpop.f32.mrb[0].mxu0
      %v901 = vadd.f32 0.0, %v900
      %v902 = vpop.f32.mrb[0].mxu0
      %v903 = vpop.f32.mrb[0].mxu0
      %v904 = vadd.f32 0.0, %v903
      %v905 = vpop.f32.mrb[0].mxu0
      %906 = vmatprep.mubr.bf16.mxu0 0
      %907 = vmatmul.mubr.bf16.gmra.mrb[0].mxu0 %v818
      %v908 = vpop.f32.mrb[0].mxu0
      %v909 = vadd.f32 0.0, %v908
      %v910 = vpop.f32.mrb[0].mxu0
      %v911 = vpop.f32.mrb[0].mxu0
      %v912 = vadd.f32 0.0, %v911
      %v913 = vpop.f32.mrb[0].mxu0
      %914 = vdwg.mxu0
      %915 = vst [vmem:[#allocation2 + $0xe0] sm:$0xff] %v861
      %916 = vst [vmem:[#allocation2 + $0xe8] sm:$0xff] %v864
      %917 = vst [vmem:[#allocation2 + $0xf0] sm:$0xff] %v869
      %918 = vst [vmem:[#allocation2 + $0xf8] sm:$0xff] %v872
      %919 = vst [vmem:[#allocation2 + $0x100] sm:$0xff] %v877
      %920 = vst [vmem:[#allocation2 + $0x108] sm:$0xff] %v880
      %921 = vst [vmem:[#allocation2 + $0x110] sm:$0xff] %v885
      %922 = vst [vmem:[#allocation2 + $0x118] sm:$0xff] %v888
      %923 = vst [vmem:[#allocation2 + $0x120] sm:$0xff] %v893
      %924 = vst [vmem:[#allocation2 + $0x128] sm:$0xff] %v896
      %925 = vst [vmem:[#allocation2 + $0x130] sm:$0xff] %v901
      %926 = vst [vmem:[#allocation2 + $0x138] sm:$0xff] %v904
      %927 = vst [vmem:[#allocation2 + $0x140] sm:$0xff] %v909
      %928 = vst [vmem:[#allocation2 + $0x148] sm:$0xff] %v912
      %v929 = vld [vmem:[%s381 + $0xa8] sm:$0xf]
      %v930 = vld [vmem:[%s381 + $0xac] sm:$0xf]
      %v931 = vld [vmem:[%s381 + $0xb0] sm:$0xf]
      %v932 = vld [vmem:[%s381 + $0xb4] sm:$0xf]
      %v933 = vld [vmem:[%s381 + $0xb8] sm:$0xf]
      %v934 = vld [vmem:[%s381 + $0xbc] sm:$0xf]
      %v935 = vld [vmem:[%s381 + $0xc0] sm:$0xf]
      %v936 = vld [vmem:[%s381 + $0xc4] sm:$0xf]
      %v937 = vld [vmem:[%s381 + $0xc8] sm:$0xf]
      %v938 = vld [vmem:[%s381 + $0xcc] sm:$0xf]
      %v939 = vld [vmem:[%s381 + $0xd0] sm:$0xf]
      %v940 = vld [vmem:[%s381 + $0xd4] sm:$0xf]
      %v941 = vld [vmem:[%s381 + $0xd8] sm:$0xf]
      %v942 = vld [vmem:[%s381 + $0xdc] sm:$0xf]
      %v957 = vunpack.c.l.b16 %v929
      %v958 = vunpack.c.l.b16 %v930
      %v959 = vunpack.c.l.b16 %v931
      %v960 = vunpack.c.l.b16 %v932
      %v961 = vunpack.c.l.b16 %v933
      %v962 = vunpack.c.l.b16 %v934
      %v963 = vunpack.c.l.b16 %v935
      %v964 = vunpack.c.l.b16 %v936
      %v965 = vunpack.c.l.b16 %v937
      %v966 = vunpack.c.l.b16 %v938
      %v967 = vunpack.c.l.b16 %v939
      %v968 = vunpack.c.l.b16 %v940
      %v969 = vunpack.c.l.b16 %v941
      %v970 = vunpack.c.l.b16 %v942
      %v971 = vpack.c.b16 %v958, %v957
      %v972 = vpack.c.b16 %v960, %v959
      %v973 = vpack.c.b16 %v962, %v961
      %v974 = vpack.c.b16 %v964, %v963
      %v975 = vpack.c.b16 %v966, %v965
      %v976 = vpack.c.b16 %v968, %v967
      %v977 = vpack.c.b16 %v970, %v969
      %985 = vmatprep.subr.bf16.mxu0 0
      %986 = vmatpush1.bf16.msra.mxu0 %v492
      %987 = vmatprep.subr.bf16.mxu0 0
      %988 = vmatpush1.bf16.msra.mxu0 %v493
      %989 = vmatprep.subr.bf16.mxu0 0
      %990 = vmatpush1.bf16.msra.mxu0 %v494
      %991 = vmatprep.subr.bf16.mxu0 0
      %992 = vmatpush1.bf16.msra.mxu0 %v495
      %993 = vmatprep.subr.bf16.mxu0 0
      %994 = vmatpush1.bf16.msra.mxu0 %v496
      %995 = vmatprep.subr.bf16.mxu0 0
      %996 = vmatpush1.bf16.msra.mxu0 %v497
      %997 = vmatprep.subr.bf16.mxu0 0
      %998 = vmatpush1.bf16.msra.mxu0 %v498
      %999 = vmatprep.subr.bf16.mxu0 0
      %1000 = vmatpush1.bf16.msra.mxu0 %v499
      %1001 = vmatprep.subr.bf16.mxu0 0
      %1002 = vmatpush1.bf16.msra.mxu0 0
      %1003 = vmatprep.subr.bf16.mxu0 0
      %1004 = vmatpush1.bf16.msra.mxu0 0
      %1005 = vmatprep.subr.bf16.mxu0 0
      %1006 = vmatpush1.bf16.msra.mxu0 0
      %1007 = vmatprep.subr.bf16.mxu0 0
      %1008 = vmatpush1.bf16.msra.mxu0 0
      %1009 = vmatprep.subr.bf16.mxu0 0
      %1010 = vmatpush1.bf16.msra.mxu0 0
      %1011 = vmatprep.subr.bf16.mxu0 0
      %1012 = vmatpush1.bf16.msra.mxu0 0
      %1013 = vmatprep.subr.bf16.mxu0 0
      %1014 = vmatpush1.bf16.msra.mxu0 0
      %1015 = vmatprep.subr.bf16.mxu0 0
      %1016 = vmatpush1.bf16.msra.mxu0 0
      %1017 = vmatprep.mubr.bf16.mxu0 0
      %1018 = vmatmul.mubr.bf16.gmra.mrb[0].mxu0 %v971
      %v1019 = vpop.f32.mrb[0].mxu0
      %v1020 = vadd.f32 0.0, %v1019
      %v1021 = vpop.f32.mrb[0].mxu0
      %v1022 = vpop.f32.mrb[0].mxu0
      %v1023 = vadd.f32 0.0, %v1022
      %v1024 = vpop.f32.mrb[0].mxu0
      %1025 = vmatprep.mubr.bf16.mxu0 0
      %1026 = vmatmul.mubr.bf16.gmra.mrb[0].mxu0 %v972
      %v1027 = vpop.f32.mrb[0].mxu0
      %v1028 = vadd.f32 0.0, %v1027
      %v1029 = vpop.f32.mrb[0].mxu0
      %v1030 = vpop.f32.mrb[0].mxu0
      %v1031 = vadd.f32 0.0, %v1030
      %v1032 = vpop.f32.mrb[0].mxu0
      %1033 = vmatprep.mubr.bf16.mxu0 0
      %1034 = vmatmul.mubr.bf16.gmra.mrb[0].mxu0 %v973
      %v1035 = vpop.f32.mrb[0].mxu0
      %v1036 = vadd.f32 0.0, %v1035
      %v1037 = vpop.f32.mrb[0].mxu0
      %v1038 = vpop.f32.mrb[0].mxu0
      %v1039 = vadd.f32 0.0, %v1038
      %v1040 = vpop.f32.mrb[0].mxu0
      %1041 = vmatprep.mubr.bf16.mxu0 0
      %1042 = vmatmul.mubr.bf16.gmra.mrb[0].mxu0 %v974
      %v1043 = vpop.f32.mrb[0].mxu0
      %v1044 = vadd.f32 0.0, %v1043
      %v1045 = vpop.f32.mrb[0].mxu0
      %v1046 = vpop.f32.mrb[0].mxu0
      %v1047 = vadd.f32 0.0, %v1046
      %v1048 = vpop.f32.mrb[0].mxu0
      %1049 = vmatprep.mubr.bf16.mxu0 0
      %1050 = vmatmul.mubr.bf16.gmra.mrb[0].mxu0 %v975
      %v1051 = vpop.f32.mrb[0].mxu0
      %v1052 = vadd.f32 0.0, %v1051
      %v1053 = vpop.f32.mrb[0].mxu0
      %v1054 = vpop.f32.mrb[0].mxu0
      %v1055 = vadd.f32 0.0, %v1054
      %v1056 = vpop.f32.mrb[0].mxu0
      %1057 = vmatprep.mubr.bf16.mxu0 0
      %1058 = vmatmul.mubr.bf16.gmra.mrb[0].mxu0 %v976
      %v1059 = vpop.f32.mrb[0].mxu0
      %v1060 = vadd.f32 0.0, %v1059
      %v1061 = vpop.f32.mrb[0].mxu0
      %v1062 = vpop.f32.mrb[0].mxu0
      %v1063 = vadd.f32 0.0, %v1062
      %v1064 = vpop.f32.mrb[0].mxu0
      %1065 = vmatprep.mubr.bf16.mxu0 0
      %1066 = vmatmul.mubr.bf16.gmra.mrb[0].mxu0 %v977
      %v1067 = vpop.f32.mrb[0].mxu0
      %v1068 = vadd.f32 0.0, %v1067
      %v1069 = vpop.f32.mrb[0].mxu0
      %v1070 = vpop.f32.mrb[0].mxu0
      %v1071 = vadd.f32 0.0, %v1070
      %v1072 = vpop.f32.mrb[0].mxu0
      %1073 = vdwg.mxu0
      %1074 = vst [vmem:[#allocation2 + $0x150] sm:$0xff] %v1020
      %1075 = vst [vmem:[#allocation2 + $0x158] sm:$0xff] %v1023
      %1076 = vst [vmem:[#allocation2 + $0x160] sm:$0xff] %v1028
      %1077 = vst [vmem:[#allocation2 + $0x168] sm:$0xff] %v1031
      %1078 = vst [vmem:[#allocation2 + $0x170] sm:$0xff] %v1036
      %1079 = vst [vmem:[#allocation2 + $0x178] sm:$0xff] %v1039
      %1080 = vst [vmem:[#allocation2 + $0x180] sm:$0xff] %v1044
      %1081 = vst [vmem:[#allocation2 + $0x188] sm:$0xff] %v1047
      %1082 = vst [vmem:[#allocation2 + $0x190] sm:$0xff] %v1052
      %1083 = vst [vmem:[#allocation2 + $0x198] sm:$0xff] %v1055
      %1084 = vst [vmem:[#allocation2 + $0x1a0] sm:$0xff] %v1060
      %1085 = vst [vmem:[#allocation2 + $0x1a8] sm:$0xff] %v1063
      %1086 = vst [vmem:[#allocation2 + $0x1b0] sm:$0xff] %v1068
      %1087 = vst [vmem:[#allocation2 + $0x1b8] sm:$0xff] %v1071
      %v1088 = vld [vmem:[%s381 + $0xe0] sm:$0xf]
      %v1089 = vld [vmem:[%s381 + $0xe4] sm:$0xf]
      %v1090 = vld [vmem:[%s381 + $0xe8] sm:$0xf]
      %v1091 = vld [vmem:[%s381 + $0xec] sm:$0xf]
      %v1092 = vld [vmem:[%s381 + $0xf0] sm:$0xf]
      %v1093 = vld [vmem:[%s381 + $0xf4] sm:$0xf]
      %v1094 = vld [vmem:[%s381 + $0xf8] sm:$0xf]
      %v1095 = vld [vmem:[%s381 + $0xfc] sm:$0xf]
      %v1096 = vld [vmem:[%s381 + $0x100] sm:$0xf]
      %v1097 = vld [vmem:[%s381 + $0x104] sm:$0xf]
      %v1098 = vld [vmem:[%s381 + $0x108] sm:$0xf]
      %v1099 = vld [vmem:[%s381 + $0x10c] sm:$0xf]
      %v1100 = vld [vmem:[%s381 + $0x110] sm:$0xf]
      %v1101 = vld [vmem:[%s381 + $0x114] sm:$0xf]
      %v1116 = vunpack.c.l.b16 %v1088
      %v1117 = vunpack.c.l.b16 %v1089
      %v1118 = vunpack.c.l.b16 %v1090
      %v1119 = vunpack.c.l.b16 %v1091
      %v1120 = vunpack.c.l.b16 %v1092
      %v1121 = vunpack.c.l.b16 %v1093
      %v1122 = vunpack.c.l.b16 %v1094
      %v1123 = vunpack.c.l.b16 %v1095
      %v1124 = vunpack.c.l.b16 %v1096
      %v1125 = vunpack.c.l.b16 %v1097
      %v1126 = vunpack.c.l.b16 %v1098
      %v1127 = vunpack.c.l.b16 %v1099
      %v1128 = vunpack.c.l.b16 %v1100
      %v1129 = vunpack.c.l.b16 %v1101
      %v1130 = vpack.c.b16 %v1117, %v1116
      %v1131 = vpack.c.b16 %v1119, %v1118
      %v1132 = vpack.c.b16 %v1121, %v1120
      %v1133 = vpack.c.b16 %v1123, %v1122
      %v1134 = vpack.c.b16 %v1125, %v1124
      %v1135 = vpack.c.b16 %v1127, %v1126
      %v1136 = vpack.c.b16 %v1129, %v1128
      %1144 = vmatprep.subr.bf16.mxu0 0
      %1145 = vmatpush1.bf16.msra.mxu0 %v492
      %1146 = vmatprep.subr.bf16.mxu0 0
      %1147 = vmatpush1.bf16.msra.mxu0 %v493
      %1148 = vmatprep.subr.bf16.mxu0 0
      %1149 = vmatpush1.bf16.msra.mxu0 %v494
      %1150 = vmatprep.subr.bf16.mxu0 0
      %1151 = vmatpush1.bf16.msra.mxu0 %v495
      %1152 = vmatprep.subr.bf16.mxu0 0
      %1153 = vmatpush1.bf16.msra.mxu0 %v496
      %1154 = vmatprep.subr.bf16.mxu0 0
      %1155 = vmatpush1.bf16.msra.mxu0 %v497
      %1156 = vmatprep.subr.bf16.mxu0 0
      %1157 = vmatpush1.bf16.msra.mxu0 %v498
      %1158 = vmatprep.subr.bf16.mxu0 0
      %1159 = vmatpush1.bf16.msra.mxu0 %v499
      %1160 = vmatprep.subr.bf16.mxu0 0
      %1161 = vmatpush1.bf16.msra.mxu0 0
      %1162 = vmatprep.subr.bf16.mxu0 0
      %1163 = vmatpush1.bf16.msra.mxu0 0
      %1164 = vmatprep.subr.bf16.mxu0 0
      %1165 = vmatpush1.bf16.msra.mxu0 0
      %1166 = vmatprep.subr.bf16.mxu0 0
      %1167 = vmatpush1.bf16.msra.mxu0 0
      %1168 = vmatprep.subr.bf16.mxu0 0
      %1169 = vmatpush1.bf16.msra.mxu0 0
      %1170 = vmatprep.subr.bf16.mxu0 0
      %1171 = vmatpush1.bf16.msra.mxu0 0
      %1172 = vmatprep.subr.bf16.mxu0 0
      %1173 = vmatpush1.bf16.msra.mxu0 0
      %1174 = vmatprep.subr.bf16.mxu0 0
      %1175 = vmatpush1.bf16.msra.mxu0 0
      %1176 = vmatprep.mubr.bf16.mxu0 0
      %1177 = vmatmul.mubr.bf16.gmra.mrb[0].mxu0 %v1130
      %v1178 = vpop.f32.mrb[0].mxu0
      %v1179 = vadd.f32 0.0, %v1178
      %v1180 = vpop.f32.mrb[0].mxu0
      %v1181 = vpop.f32.mrb[0].mxu0
      %v1182 = vadd.f32 0.0, %v1181
      %v1183 = vpop.f32.mrb[0].mxu0
      %1184 = vmatprep.mubr.bf16.mxu0 0
      %1185 = vmatmul.mubr.bf16.gmra.mrb[0].mxu0 %v1131
      %v1186 = vpop.f32.mrb[0].mxu0
      %v1187 = vadd.f32 0.0, %v1186
      %v1188 = vpop.f32.mrb[0].mxu0
      %v1189 = vpop.f32.mrb[0].mxu0
      %v1190 = vadd.f32 0.0, %v1189
      %v1191 = vpop.f32.mrb[0].mxu0
      %1192 = vmatprep.mubr.bf16.mxu0 0
      %1193 = vmatmul.mubr.bf16.gmra.mrb[0].mxu0 %v1132
      %v1194 = vpop.f32.mrb[0].mxu0
      %v1195 = vadd.f32 0.0, %v1194
      %v1196 = vpop.f32.mrb[0].mxu0
      %v1197 = vpop.f32.mrb[0].mxu0
      %v1198 = vadd.f32 0.0, %v1197
      %v1199 = vpop.f32.mrb[0].mxu0
      %1200 = vmatprep.mubr.bf16.mxu0 0
      %1201 = vmatmul.mubr.bf16.gmra.mrb[0].mxu0 %v1133
      %v1202 = vpop.f32.mrb[0].mxu0
      %v1203 = vadd.f32 0.0, %v1202
      %v1204 = vpop.f32.mrb[0].mxu0
      %v1205 = vpop.f32.mrb[0].mxu0
      %v1206 = vadd.f32 0.0, %v1205
      %v1207 = vpop.f32.mrb[0].mxu0
      %1208 = vmatprep.mubr.bf16.mxu0 0
      %1209 = vmatmul.mubr.bf16.gmra.mrb[0].mxu0 %v1134
      %v1210 = vpop.f32.mrb[0].mxu0
      %v1211 = vadd.f32 0.0, %v1210
      %v1212 = vpop.f32.mrb[0].mxu0
      %v1213 = vpop.f32.mrb[0].mxu0
      %v1214 = vadd.f32 0.0, %v1213
      %v1215 = vpop.f32.mrb[0].mxu0
      %1216 = vmatprep.mubr.bf16.mxu0 0
      %1217 = vmatmul.mubr.bf16.gmra.mrb[0].mxu0 %v1135
      %v1218 = vpop.f32.mrb[0].mxu0
      %v1219 = vadd.f32 0.0, %v1218
      %v1220 = vpop.f32.mrb[0].mxu0
      %v1221 = vpop.f32.mrb[0].mxu0
      %v1222 = vadd.f32 0.0, %v1221
      %v1223 = vpop.f32.mrb[0].mxu0
      %1224 = vmatprep.mubr.bf16.mxu0 0
      %1225 = vmatmul.mubr.bf16.gmra.mrb[0].mxu0 %v1136
      %v1226 = vpop.f32.mrb[0].mxu0
      %v1227 = vadd.f32 0.0, %v1226
      %v1228 = vpop.f32.mrb[0].mxu0
      %v1229 = vpop.f32.mrb[0].mxu0
      %v1230 = vadd.f32 0.0, %v1229
      %v1231 = vpop.f32.mrb[0].mxu0
      %1232 = vdwg.mxu0
      %1233 = vst [vmem:[#allocation2 + $0x1c0] sm:$0xff] %v1179
      %1234 = vst [vmem:[#allocation2 + $0x1c8] sm:$0xff] %v1182
      %1235 = vst [vmem:[#allocation2 + $0x1d0] sm:$0xff] %v1187
      %1236 = vst [vmem:[#allocation2 + $0x1d8] sm:$0xff] %v1190
      %1237 = vst [vmem:[#allocation2 + $0x1e0] sm:$0xff] %v1195
      %1238 = vst [vmem:[#allocation2 + $0x1e8] sm:$0xff] %v1198
      %1239 = vst [vmem:[#allocation2 + $0x1f0] sm:$0xff] %v1203
      %1240 = vst [vmem:[#allocation2 + $0x1f8] sm:$0xff] %v1206
      %1241 = vst [vmem:[#allocation2 + $0x200] sm:$0xff] %v1211
      %1242 = vst [vmem:[#allocation2 + $0x208] sm:$0xff] %v1214
      %1243 = vst [vmem:[#allocation2 + $0x210] sm:$0xff] %v1219
      %1244 = vst [vmem:[#allocation2 + $0x218] sm:$0xff] %v1222
      %1245 = vst [vmem:[#allocation2 + $0x220] sm:$0xff] %v1227
      %1246 = vst [vmem:[#allocation2 + $0x228] sm:$0xff] %v1230
      %v1247 = vld [vmem:[%s381 + $0x118] sm:$0xf]
      %v1248 = vld [vmem:[%s381 + $0x11c] sm:$0xf]
      %v1249 = vld [vmem:[%s381 + $0x120] sm:$0xf]
      %v1250 = vld [vmem:[%s381 + $0x124] sm:$0xf]
      %v1251 = vld [vmem:[%s381 + $0x128] sm:$0xf]
      %v1252 = vld [vmem:[%s381 + $0x12c] sm:$0xf]
      %v1253 = vld [vmem:[%s381 + $0x130] sm:$0xf]
      %v1254 = vld [vmem:[%s381 + $0x134] sm:$0xf]
      %v1255 = vld [vmem:[%s381 + $0x138] sm:$0xf]
      %v1256 = vld [vmem:[%s381 + $0x13c] sm:$0xf]
      %v1257 = vld [vmem:[%s381 + $0x140] sm:$0xf]
      %v1258 = vld [vmem:[%s381 + $0x144] sm:$0xf]
      %v1259 = vld [vmem:[%s381 + $0x148] sm:$0xf]
      %v1260 = vld [vmem:[%s381 + $0x14c] sm:$0xf]
      %v1275 = vunpack.c.l.b16 %v1247
      %v1276 = vunpack.c.l.b16 %v1248
      %v1277 = vunpack.c.l.b16 %v1249
      %v1278 = vunpack.c.l.b16 %v1250
      %v1279 = vunpack.c.l.b16 %v1251
      %v1280 = vunpack.c.l.b16 %v1252
      %v1281 = vunpack.c.l.b16 %v1253
      %v1282 = vunpack.c.l.b16 %v1254
      %v1283 = vunpack.c.l.b16 %v1255
      %v1284 = vunpack.c.l.b16 %v1256
      %v1285 = vunpack.c.l.b16 %v1257
      %v1286 = vunpack.c.l.b16 %v1258
      %v1287 = vunpack.c.l.b16 %v1259
      %v1288 = vunpack.c.l.b16 %v1260
      %v1289 = vpack.c.b16 %v1276, %v1275
      %v1290 = vpack.c.b16 %v1278, %v1277
      %v1291 = vpack.c.b16 %v1280, %v1279
      %v1292 = vpack.c.b16 %v1282, %v1281
      %v1293 = vpack.c.b16 %v1284, %v1283
      %v1294 = vpack.c.b16 %v1286, %v1285
      %v1295 = vpack.c.b16 %v1288, %v1287
      %1303 = vmatprep.subr.bf16.mxu0 0
      %1304 = vmatpush1.bf16.msra.mxu0 %v492
      %1305 = vmatprep.subr.bf16.mxu0 0
      %1306 = vmatpush1.bf16.msra.mxu0 %v493
      %1307 = vmatprep.subr.bf16.mxu0 0
      %1308 = vmatpush1.bf16.msra.mxu0 %v494
      %1309 = vmatprep.subr.bf16.mxu0 0
      %1310 = vmatpush1.bf16.msra.mxu0 %v495
      %1311 = vmatprep.subr.bf16.mxu0 0
      %1312 = vmatpush1.bf16.msra.mxu0 %v496
      %1313 = vmatprep.subr.bf16.mxu0 0
      %1314 = vmatpush1.bf16.msra.mxu0 %v497
      %1315 = vmatprep.subr.bf16.mxu0 0
      %1316 = vmatpush1.bf16.msra.mxu0 %v498
      %1317 = vmatprep.subr.bf16.mxu0 0
      %1318 = vmatpush1.bf16.msra.mxu0 %v499
      %1319 = vmatprep.subr.bf16.mxu0 0
      %1320 = vmatpush1.bf16.msra.mxu0 0
      %1321 = vmatprep.subr.bf16.mxu0 0
      %1322 = vmatpush1.bf16.msra.mxu0 0
      %1323 = vmatprep.subr.bf16.mxu0 0
      %1324 = vmatpush1.bf16.msra.mxu0 0
      %1325 = vmatprep.subr.bf16.mxu0 0
      %1326 = vmatpush1.bf16.msra.mxu0 0
      %1327 = vmatprep.subr.bf16.mxu0 0
      %1328 = vmatpush1.bf16.msra.mxu0 0
      %1329 = vmatprep.subr.bf16.mxu0 0
      %1330 = vmatpush1.bf16.msra.mxu0 0
      %1331 = vmatprep.subr.bf16.mxu0 0
      %1332 = vmatpush1.bf16.msra.mxu0 0
      %1333 = vmatprep.subr.bf16.mxu0 0
      %1334 = vmatpush1.bf16.msra.mxu0 0
      %1335 = vmatprep.mubr.bf16.mxu0 0
      %1336 = vmatmul.mubr.bf16.gmra.mrb[0].mxu0 %v1289
      %v1337 = vpop.f32.mrb[0].mxu0
      %v1338 = vadd.f32 0.0, %v1337
      %v1339 = vpop.f32.mrb[0].mxu0
      %v1340 = vpop.f32.mrb[0].mxu0
      %v1341 = vadd.f32 0.0, %v1340
      %v1342 = vpop.f32.mrb[0].mxu0
      %1343 = vmatprep.mubr.bf16.mxu0 0
      %1344 = vmatmul.mubr.bf16.gmra.mrb[0].mxu0 %v1290
      %v1345 = vpop.f32.mrb[0].mxu0
      %v1346 = vadd.f32 0.0, %v1345
      %v1347 = vpop.f32.mrb[0].mxu0
      %v1348 = vpop.f32.mrb[0].mxu0
      %v1349 = vadd.f32 0.0, %v1348
      %v1350 = vpop.f32.mrb[0].mxu0
      %1351 = vmatprep.mubr.bf16.mxu0 0
      %1352 = vmatmul.mubr.bf16.gmra.mrb[0].mxu0 %v1291
      %v1353 = vpop.f32.mrb[0].mxu0
      %v1354 = vadd.f32 0.0, %v1353
      %v1355 = vpop.f32.mrb[0].mxu0
      %v1356 = vpop.f32.mrb[0].mxu0
      %v1357 = vadd.f32 0.0, %v1356
      %v1358 = vpop.f32.mrb[0].mxu0
      %1359 = vmatprep.mubr.bf16.mxu0 0
      %1360 = vmatmul.mubr.bf16.gmra.mrb[0].mxu0 %v1292
      %v1361 = vpop.f32.mrb[0].mxu0
      %v1362 = vadd.f32 0.0, %v1361
      %v1363 = vpop.f32.mrb[0].mxu0
      %v1364 = vpop.f32.mrb[0].mxu0
      %v1365 = vadd.f32 0.0, %v1364
      %v1366 = vpop.f32.mrb[0].mxu0
      %1367 = vmatprep.mubr.bf16.mxu0 0
      %1368 = vmatmul.mubr.bf16.gmra.mrb[0].mxu0 %v1293
      %v1369 = vpop.f32.mrb[0].mxu0
      %v1370 = vadd.f32 0.0, %v1369
      %v1371 = vpop.f32.mrb[0].mxu0
      %v1372 = vpop.f32.mrb[0].mxu0
      %v1373 = vadd.f32 0.0, %v1372
      %v1374 = vpop.f32.mrb[0].mxu0
      %1375 = vmatprep.mubr.bf16.mxu0 0
      %1376 = vmatmul.mubr.bf16.gmra.mrb[0].mxu0 %v1294
      %v1377 = vpop.f32.mrb[0].mxu0
      %v1378 = vadd.f32 0.0, %v1377
      %v1379 = vpop.f32.mrb[0].mxu0
      %v1380 = vpop.f32.mrb[0].mxu0
      %v1381 = vadd.f32 0.0, %v1380
      %v1382 = vpop.f32.mrb[0].mxu0
      %1383 = vmatprep.mubr.bf16.mxu0 0
      %1384 = vmatmul.mubr.bf16.gmra.mrb[0].mxu0 %v1295
      %v1385 = vpop.f32.mrb[0].mxu0
      %v1386 = vadd.f32 0.0, %v1385
      %v1387 = vpop.f32.mrb[0].mxu0
      %v1388 = vpop.f32.mrb[0].mxu0
      %v1389 = vadd.f32 0.0, %v1388
      %v1390 = vpop.f32.mrb[0].mxu0
      %1391 = vdwg.mxu0
      %1392 = vst [vmem:[#allocation2 + $0x230] sm:$0xff] %v1338
      %1393 = vst [vmem:[#allocation2 + $0x238] sm:$0xff] %v1341
      %1394 = vst [vmem:[#allocation2 + $0x240] sm:$0xff] %v1346
      %1395 = vst [vmem:[#allocation2 + $0x248] sm:$0xff] %v1349
      %1396 = vst [vmem:[#allocation2 + $0x250] sm:$0xff] %v1354
      %1397 = vst [vmem:[#allocation2 + $0x258] sm:$0xff] %v1357
      %1398 = vst [vmem:[#allocation2 + $0x260] sm:$0xff] %v1362
      %1399 = vst [vmem:[#allocation2 + $0x268] sm:$0xff] %v1365
      %1400 = vst [vmem:[#allocation2 + $0x270] sm:$0xff] %v1370
      %1401 = vst [vmem:[#allocation2 + $0x278] sm:$0xff] %v1373
      %1402 = vst [vmem:[#allocation2 + $0x280] sm:$0xff] %v1378
      %1403 = vst [vmem:[#allocation2 + $0x288] sm:$0xff] %v1381
      %1404 = vst [vmem:[#allocation2 + $0x290] sm:$0xff] %v1386
      %1405 = vst [vmem:[#allocation2 + $0x298] sm:$0xff] %v1389
      %v1406 = vld [vmem:[%s381 + $0x150] sm:$0xf]
      %v1407 = vld [vmem:[%s381 + $0x154] sm:$0xf]
      %v1408 = vld [vmem:[%s381 + $0x158] sm:$0xf]
      %v1409 = vld [vmem:[%s381 + $0x15c] sm:$0xf]
      %v1410 = vld [vmem:[%s381 + $0x160] sm:$0xf]
      %v1411 = vld [vmem:[%s381 + $0x164] sm:$0xf]
      %v1412 = vld [vmem:[%s381 + $0x168] sm:$0xf]
      %v1413 = vld [vmem:[%s381 + $0x16c] sm:$0xf]
      %v1414 = vld [vmem:[%s381 + $0x170] sm:$0xf]
      %v1415 = vld [vmem:[%s381 + $0x174] sm:$0xf]
      %v1416 = vld [vmem:[%s381 + $0x178] sm:$0xf]
      %v1417 = vld [vmem:[%s381 + $0x17c] sm:$0xf]
      %v1418 = vld [vmem:[%s381 + $0x180] sm:$0xf]
      %v1419 = vld [vmem:[%s381 + $0x184] sm:$0xf]
      %v1434 = vunpack.c.l.b16 %v1406
      %v1435 = vunpack.c.l.b16 %v1407
      %v1436 = vunpack.c.l.b16 %v1408
      %v1437 = vunpack.c.l.b16 %v1409
      %v1438 = vunpack.c.l.b16 %v1410
      %v1439 = vunpack.c.l.b16 %v1411
      %v1440 = vunpack.c.l.b16 %v1412
      %v1441 = vunpack.c.l.b16 %v1413
      %v1442 = vunpack.c.l.b16 %v1414
      %v1443 = vunpack.c.l.b16 %v1415
      %v1444 = vunpack.c.l.b16 %v1416
      %v1445 = vunpack.c.l.b16 %v1417
      %v1446 = vunpack.c.l.b16 %v1418
      %v1447 = vunpack.c.l.b16 %v1419
      %v1448 = vpack.c.b16 %v1435, %v1434
      %v1449 = vpack.c.b16 %v1437, %v1436
      %v1450 = vpack.c.b16 %v1439, %v1438
      %v1451 = vpack.c.b16 %v1441, %v1440
      %v1452 = vpack.c.b16 %v1443, %v1442
      %v1453 = vpack.c.b16 %v1445, %v1444
      %v1454 = vpack.c.b16 %v1447, %v1446
      %1462 = vmatprep.subr.bf16.mxu0 0
      %1463 = vmatpush1.bf16.msra.mxu0 %v492
      %1464 = vmatprep.subr.bf16.mxu0 0
      %1465 = vmatpush1.bf16.msra.mxu0 %v493
      %1466 = vmatprep.subr.bf16.mxu0 0
      %1467 = vmatpush1.bf16.msra.mxu0 %v494
      %1468 = vmatprep.subr.bf16.mxu0 0
      %1469 = vmatpush1.bf16.msra.mxu0 %v495
      %1470 = vmatprep.subr.bf16.mxu0 0
      %1471 = vmatpush1.bf16.msra.mxu0 %v496
      %1472 = vmatprep.subr.bf16.mxu0 0
      %1473 = vmatpush1.bf16.msra.mxu0 %v497
      %1474 = vmatprep.subr.bf16.mxu0 0
      %1475 = vmatpush1.bf16.msra.mxu0 %v498
      %1476 = vmatprep.subr.bf16.mxu0 0
      %1477 = vmatpush1.bf16.msra.mxu0 %v499
      %1478 = vmatprep.subr.bf16.mxu0 0
      %1479 = vmatpush1.bf16.msra.mxu0 0
      %1480 = vmatprep.subr.bf16.mxu0 0
      %1481 = vmatpush1.bf16.msra.mxu0 0
      %1482 = vmatprep.subr.bf16.mxu0 0
      %1483 = vmatpush1.bf16.msra.mxu0 0
      %1484 = vmatprep.subr.bf16.mxu0 0
      %1485 = vmatpush1.bf16.msra.mxu0 0
      %1486 = vmatprep.subr.bf16.mxu0 0
      %1487 = vmatpush1.bf16.msra.mxu0 0
      %1488 = vmatprep.subr.bf16.mxu0 0
      %1489 = vmatpush1.bf16.msra.mxu0 0
      %1490 = vmatprep.subr.bf16.mxu0 0
      %1491 = vmatpush1.bf16.msra.mxu0 0
      %1492 = vmatprep.subr.bf16.mxu0 0
      %1493 = vmatpush1.bf16.msra.mxu0 0
      %1494 = vmatprep.mubr.bf16.mxu0 0
      %1495 = vmatmul.mubr.bf16.gmra.mrb[0].mxu0 %v1448
      %v1496 = vpop.f32.mrb[0].mxu0
      %v1497 = vadd.f32 0.0, %v1496
      %v1498 = vpop.f32.mrb[0].mxu0
      %v1499 = vpop.f32.mrb[0].mxu0
      %v1500 = vadd.f32 0.0, %v1499
      %v1501 = vpop.f32.mrb[0].mxu0
      %1502 = vmatprep.mubr.bf16.mxu0 0
      %1503 = vmatmul.mubr.bf16.gmra.mrb[0].mxu0 %v1449
      %v1504 = vpop.f32.mrb[0].mxu0
      %v1505 = vadd.f32 0.0, %v1504
      %v1506 = vpop.f32.mrb[0].mxu0
      %v1507 = vpop.f32.mrb[0].mxu0
      %v1508 = vadd.f32 0.0, %v1507
      %v1509 = vpop.f32.mrb[0].mxu0
      %1510 = vmatprep.mubr.bf16.mxu0 0
      %1511 = vmatmul.mubr.bf16.gmra.mrb[0].mxu0 %v1450
      %v1512 = vpop.f32.mrb[0].mxu0
      %v1513 = vadd.f32 0.0, %v1512
      %v1514 = vpop.f32.mrb[0].mxu0
      %v1515 = vpop.f32.mrb[0].mxu0
      %v1516 = vadd.f32 0.0, %v1515
      %v1517 = vpop.f32.mrb[0].mxu0
      %1518 = vmatprep.mubr.bf16.mxu0 0
      %1519 = vmatmul.mubr.bf16.gmra.mrb[0].mxu0 %v1451
      %v1520 = vpop.f32.mrb[0].mxu0
      %v1521 = vadd.f32 0.0, %v1520
      %v1522 = vpop.f32.mrb[0].mxu0
      %v1523 = vpop.f32.mrb[0].mxu0
      %v1524 = vadd.f32 0.0, %v1523
      %v1525 = vpop.f32.mrb[0].mxu0
      %1526 = vmatprep.mubr.bf16.mxu0 0
      %1527 = vmatmul.mubr.bf16.gmra.mrb[0].mxu0 %v1452
      %v1528 = vpop.f32.mrb[0].mxu0
      %v1529 = vadd.f32 0.0, %v1528
      %v1530 = vpop.f32.mrb[0].mxu0
      %v1531 = vpop.f32.mrb[0].mxu0
      %v1532 = vadd.f32 0.0, %v1531
      %v1533 = vpop.f32.mrb[0].mxu0
      %1534 = vmatprep.mubr.bf16.mxu0 0
      %1535 = vmatmul.mubr.bf16.gmra.mrb[0].mxu0 %v1453
      %v1536 = vpop.f32.mrb[0].mxu0
      %v1537 = vadd.f32 0.0, %v1536
      %v1538 = vpop.f32.mrb[0].mxu0
      %v1539 = vpop.f32.mrb[0].mxu0
      %v1540 = vadd.f32 0.0, %v1539
      %v1541 = vpop.f32.mrb[0].mxu0
      %1542 = vmatprep.mubr.bf16.mxu0 0
      %1543 = vmatmul.mubr.bf16.gmra.mrb[0].mxu0 %v1454
      %v1544 = vpop.f32.mrb[0].mxu0
      %v1545 = vadd.f32 0.0, %v1544
      %v1546 = vpop.f32.mrb[0].mxu0
      %v1547 = vpop.f32.mrb[0].mxu0
      %v1548 = vadd.f32 0.0, %v1547
      %v1549 = vpop.f32.mrb[0].mxu0
      %1550 = vdwg.mxu0
      %1551 = vst [vmem:[#allocation2 + $0x2a0] sm:$0xff] %v1497
      %1552 = vst [vmem:[#allocation2 + $0x2a8] sm:$0xff] %v1500
      %1553 = vst [vmem:[#allocation2 + $0x2b0] sm:$0xff] %v1505
      %1554 = vst [vmem:[#allocation2 + $0x2b8] sm:$0xff] %v1508
      %1555 = vst [vmem:[#allocation2 + $0x2c0] sm:$0xff] %v1513
      %1556 = vst [vmem:[#allocation2 + $0x2c8] sm:$0xff] %v1516
      %1557 = vst [vmem:[#allocation2 + $0x2d0] sm:$0xff] %v1521
      %1558 = vst [vmem:[#allocation2 + $0x2d8] sm:$0xff] %v1524
      %1559 = vst [vmem:[#allocation2 + $0x2e0] sm:$0xff] %v1529
      %1560 = vst [vmem:[#allocation2 + $0x2e8] sm:$0xff] %v1532
      %1561 = vst [vmem:[#allocation2 + $0x2f0] sm:$0xff] %v1537
      %1562 = vst [vmem:[#allocation2 + $0x2f8] sm:$0xff] %v1540
      %1563 = vst [vmem:[#allocation2 + $0x300] sm:$0xff] %v1545
      %1564 = vst [vmem:[#allocation2 + $0x308] sm:$0xff] %v1548
      %v1565 = vld [vmem:[%s2] sm:$0x1]
      %v1566 = vld [vmem:[#allocation2] ss:$2 sm:$0xff]
      %s1567 = scalar_lea.vmem [#allocation2], 16
      %v1568 = vld [vmem:[%s1567] ss:$2 sm:$0x3f]
      %s1569 = scalar_lea.vmem [#allocation2], 1
      %v1570 = vld [vmem:[%s1569] ss:$2 sm:$0xff]
      %s1571 = scalar_lea.vmem [#allocation2], 17
      %v1572 = vld [vmem:[%s1571] ss:$2 sm:$0x3f]
      %s1573 = scalar_lea.vmem [#allocation2], 28
      %v1574 = vld [vmem:[%s1573] ss:$2 sm:$0xff]
      %s1575 = scalar_lea.vmem [#allocation2], 44
      %v1576 = vld [vmem:[%s1575] ss:$2 sm:$0x3f]
      %s1577 = scalar_lea.vmem [#allocation2], 29
      %v1578 = vld [vmem:[%s1577] ss:$2 sm:$0xff]
      %s1579 = scalar_lea.vmem [#allocation2], 45
      %v1580 = vld [vmem:[%s1579] ss:$2 sm:$0x3f]
      %v1581 = vmax.f32 %v1566, %v1570
      %v1582 = vmax.f32 %v1568, %v1572
      %v1583 = vmax.f32 %v1574, %v1578
      %v1584 = vmax.f32 %v1576, %v1580
      %v1585 = vmax.f32 %v1581, %v1583
      %v1586 = vmax.f32 %v1582, %v1584
      %v1588 = vlaneseq
      %v1589 = vshrl.u32 %v1588, 7
      %v1590 = vsub.s32 0, %v1589
      %v1591 = vrot.slane %v1565, %v1590
      %v1593 = vadd.f32 %v1585, %v1591
      %v1594 = vadd.f32 %v1586, %v1591
      %v1595 = vmax.f32 %v1593, 0.0
      %v1596 = vmax.f32 %v1594, 0.0
      %1597 = vst [vmem:[#allocation3] sm:$0xff] %v1595
      %1598 = vst [vmem:[#allocation3 + $0x8] sm:$0x3f] %v1596
      %s1599 = scalar_lea.vmem [#allocation2], 56
      %v1600 = vld [vmem:[%s1599] ss:$2 sm:$0xff]
      %s1601 = scalar_lea.vmem [#allocation2], 72
      %v1602 = vld [vmem:[%s1601] ss:$2 sm:$0x3f]
      %s1603 = scalar_lea.vmem [#allocation2], 57
      %v1604 = vld [vmem:[%s1603] ss:$2 sm:$0xff]
      %s1605 = scalar_lea.vmem [#allocation2], 73
      %v1606 = vld [vmem:[%s1605] ss:$2 sm:$0x3f]
      %s1607 = scalar_lea.vmem [#allocation2], 84
      %v1608 = vld [vmem:[%s1607] ss:$2 sm:$0xff]
      %s1609 = scalar_lea.vmem [#allocation2], 100
      %v1610 = vld [vmem:[%s1609] ss:$2 sm:$0x3f]
      %s1611 = scalar_lea.vmem [#allocation2], 85
      %v1612 = vld [vmem:[%s1611] ss:$2 sm:$0xff]
      %s1613 = scalar_lea.vmem [#allocation2], 101
      %v1614 = vld [vmem:[%s1613] ss:$2 sm:$0x3f]
      %v1615 = vmax.f32 %v1600, %v1604
      %v1616 = vmax.f32 %v1602, %v1606
      %v1617 = vmax.f32 %v1608, %v1612
      %v1618 = vmax.f32 %v1610, %v1614
      %v1619 = vmax.f32 %v1615, %v1617
      %v1620 = vmax.f32 %v1616, %v1618
      %v1621 = vadd.f32 %v1619, %v1591
      %v1622 = vadd.f32 %v1620, %v1591
      %v1623 = vmax.f32 %v1621, 0.0
      %v1624 = vmax.f32 %v1622, 0.0
      %1625 = vst [vmem:[#allocation3 + $0x10] sm:$0xff] %v1623
      %1626 = vst [vmem:[#allocation3 + $0x18] sm:$0x3f] %v1624
      %s1627 = scalar_lea.vmem [#allocation2], 112
      %v1628 = vld [vmem:[%s1627] ss:$2 sm:$0xff]
      %s1629 = scalar_lea.vmem [#allocation2], 128
      %v1630 = vld [vmem:[%s1629] ss:$2 sm:$0x3f]
      %s1631 = scalar_lea.vmem [#allocation2], 113
      %v1632 = vld [vmem:[%s1631] ss:$2 sm:$0xff]
      %s1633 = scalar_lea.vmem [#allocation2], 129
      %v1634 = vld [vmem:[%s1633] ss:$2 sm:$0x3f]
      %s1635 = scalar_lea.vmem [#allocation2], 140
      %v1636 = vld [vmem:[%s1635] ss:$2 sm:$0xff]
      %s1637 = scalar_lea.vmem [#allocation2], 156
      %v1638 = vld [vmem:[%s1637] ss:$2 sm:$0x3f]
      %s1639 = scalar_lea.vmem [#allocation2], 141
      %v1640 = vld [vmem:[%s1639] ss:$2 sm:$0xff]
      %s1641 = scalar_lea.vmem [#allocation2], 157
      %v1642 = vld [vmem:[%s1641] ss:$2 sm:$0x3f]
      %v1643 = vmax.f32 %v1628, %v1632
      %v1644 = vmax.f32 %v1630, %v1634
      %v1645 = vmax.f32 %v1636, %v1640
      %v1646 = vmax.f32 %v1638, %v1642
      %v1647 = vmax.f32 %v1643, %v1645
      %v1648 = vmax.f32 %v1644, %v1646
      %v1649 = vadd.f32 %v1647, %v1591
      %v1650 = vadd.f32 %v1648, %v1591
      %v1651 = vmax.f32 %v1649, 0.0
      %v1652 = vmax.f32 %v1650, 0.0
      %1653 = vst [vmem:[#allocation3 + $0x20] sm:$0xff] %v1651
      %1654 = vst [vmem:[#allocation3 + $0x28] sm:$0x3f] %v1652
      %s1655 = scalar_lea.vmem [#allocation2], 168
      %v1656 = vld [vmem:[%s1655] ss:$2 sm:$0xff]
      %s1657 = scalar_lea.vmem [#allocation2], 184
      %v1658 = vld [vmem:[%s1657] ss:$2 sm:$0x3f]
      %s1659 = scalar_lea.vmem [#allocation2], 169
      %v1660 = vld [vmem:[%s1659] ss:$2 sm:$0xff]
      %s1661 = scalar_lea.vmem [#allocation2], 185
      %v1662 = vld [vmem:[%s1661] ss:$2 sm:$0x3f]
      %s1663 = scalar_lea.vmem [#allocation2], 196
      %v1664 = vld [vmem:[%s1663] ss:$2 sm:$0xff]
      %s1665 = scalar_lea.vmem [#allocation2], 212
      %v1666 = vld [vmem:[%s1665] ss:$2 sm:$0x3f]
      %s1667 = scalar_lea.vmem [#allocation2], 197
      %v1668 = vld [vmem:[%s1667] ss:$2 sm:$0xff]
      %s1669 = scalar_lea.vmem [#allocation2], 213
      %v1670 = vld [vmem:[%s1669] ss:$2 sm:$0x3f]
      %v1671 = vmax.f32 %v1656, %v1660
      %v1672 = vmax.f32 %v1658, %v1662
      %v1673 = vmax.f32 %v1664, %v1668
      %v1674 = vmax.f32 %v1666, %v1670
      %v1675 = vmax.f32 %v1671, %v1673
      %v1676 = vmax.f32 %v1672, %v1674
      %v1677 = vadd.f32 %v1675, %v1591
      %v1678 = vadd.f32 %v1676, %v1591
      %v1679 = vmax.f32 %v1677, 0.0
      %v1680 = vmax.f32 %v1678, 0.0
      %1681 = vst [vmem:[#allocation3 + $0x30] sm:$0xff] %v1679
      %1682 = vst [vmem:[#allocation3 + $0x38] sm:$0x3f] %v1680
      %s1683 = scalar_lea.vmem [#allocation2], 224
      %v1684 = vld [vmem:[%s1683] ss:$2 sm:$0xff]
      %s1685 = scalar_lea.vmem [#allocation2], 240
      %v1686 = vld [vmem:[%s1685] ss:$2 sm:$0x3f]
      %s1687 = scalar_lea.vmem [#allocation2], 225
      %v1688 = vld [vmem:[%s1687] ss:$2 sm:$0xff]
      %s1689 = scalar_lea.vmem [#allocation2], 241
      %v1690 = vld [vmem:[%s1689] ss:$2 sm:$0x3f]
      %s1691 = scalar_lea.vmem [#allocation2], 252
      %v1692 = vld [vmem:[%s1691] ss:$2 sm:$0xff]
      %s1693 = scalar_lea.vmem [#allocation2], 268
      %v1694 = vld [vmem:[%s1693] ss:$2 sm:$0x3f]
      %s1695 = scalar_lea.vmem [#allocation2], 253
      %v1696 = vld [vmem:[%s1695] ss:$2 sm:$0xff]
      %s1697 = scalar_lea.vmem [#allocation2], 269
      %v1698 = vld [vmem:[%s1697] ss:$2 sm:$0x3f]
      %v1699 = vmax.f32 %v1684, %v1688
      %v1700 = vmax.f32 %v1686, %v1690
      %v1701 = vmax.f32 %v1692, %v1696
      %v1702 = vmax.f32 %v1694, %v1698
      %v1703 = vmax.f32 %v1699, %v1701
      %v1704 = vmax.f32 %v1700, %v1702
      %v1705 = vadd.f32 %v1703, %v1591
      %v1706 = vadd.f32 %v1704, %v1591
      %v1707 = vmax.f32 %v1705, 0.0
      %v1708 = vmax.f32 %v1706, 0.0
      %1709 = vst [vmem:[#allocation3 + $0x40] sm:$0xff] %v1707
      %1710 = vst [vmem:[#allocation3 + $0x48] sm:$0x3f] %v1708
      %s1711 = scalar_lea.vmem [#allocation2], 280
      %v1712 = vld [vmem:[%s1711] ss:$2 sm:$0xff]
      %s1713 = scalar_lea.vmem [#allocation2], 296
      %v1714 = vld [vmem:[%s1713] ss:$2 sm:$0x3f]
      %s1715 = scalar_lea.vmem [#allocation2], 281
      %v1716 = vld [vmem:[%s1715] ss:$2 sm:$0xff]
      %s1717 = scalar_lea.vmem [#allocation2], 297
      %v1718 = vld [vmem:[%s1717] ss:$2 sm:$0x3f]
      %s1719 = scalar_lea.vmem [#allocation2], 308
      %v1720 = vld [vmem:[%s1719] ss:$2 sm:$0xff]
      %s1721 = scalar_lea.vmem [#allocation2], 324
      %v1722 = vld [vmem:[%s1721] ss:$2 sm:$0x3f]
      %s1723 = scalar_lea.vmem [#allocation2], 309
      %v1724 = vld [vmem:[%s1723] ss:$2 sm:$0xff]
      %s1725 = scalar_lea.vmem [#allocation2], 325
      %v1726 = vld [vmem:[%s1725] ss:$2 sm:$0x3f]
      %v1727 = vmax.f32 %v1712, %v1716
      %v1728 = vmax.f32 %v1714, %v1718
      %v1729 = vmax.f32 %v1720, %v1724
      %v1730 = vmax.f32 %v1722, %v1726
      %v1731 = vmax.f32 %v1727, %v1729
      %v1732 = vmax.f32 %v1728, %v1730
      %v1733 = vadd.f32 %v1731, %v1591
      %v1734 = vadd.f32 %v1732, %v1591
      %v1735 = vmax.f32 %v1733, 0.0
      %v1736 = vmax.f32 %v1734, 0.0
      %1737 = vst [vmem:[#allocation3 + $0x50] sm:$0xff] %v1735
      %1738 = vst [vmem:[#allocation3 + $0x58] sm:$0x3f] %v1736
      %s1739 = scalar_lea.vmem [#allocation2], 336
      %v1740 = vld [vmem:[%s1739] ss:$2 sm:$0xff]
      %s1741 = scalar_lea.vmem [#allocation2], 352
      %v1742 = vld [vmem:[%s1741] ss:$2 sm:$0x3f]
      %s1743 = scalar_lea.vmem [#allocation2], 337
      %v1744 = vld [vmem:[%s1743] ss:$2 sm:$0xff]
      %s1745 = scalar_lea.vmem [#allocation2], 353
      %v1746 = vld [vmem:[%s1745] ss:$2 sm:$0x3f]
      %s1747 = scalar_lea.vmem [#allocation2], 364
      %v1748 = vld [vmem:[%s1747] ss:$2 sm:$0xff]
      %s1749 = scalar_lea.vmem [#allocation2], 380
      %v1750 = vld [vmem:[%s1749] ss:$2 sm:$0x3f]
      %s1751 = scalar_lea.vmem [#allocation2], 365
      %v1752 = vld [vmem:[%s1751] ss:$2 sm:$0xff]
      %s1753 = scalar_lea.vmem [#allocation2], 381
      %v1754 = vld [vmem:[%s1753] ss:$2 sm:$0x3f]
      %v1755 = vmax.f32 %v1740, %v1744
      %v1756 = vmax.f32 %v1742, %v1746
      %v1757 = vmax.f32 %v1748, %v1752
      %v1758 = vmax.f32 %v1750, %v1754
      %v1759 = vmax.f32 %v1755, %v1757
      %v1760 = vmax.f32 %v1756, %v1758
      %v1761 = vadd.f32 %v1759, %v1591
      %v1762 = vadd.f32 %v1760, %v1591
      %v1763 = vmax.f32 %v1761, 0.0
      %v1764 = vmax.f32 %v1762, 0.0
      %1765 = vst [vmem:[#allocation3 + $0x60] sm:$0xff] %v1763
      %1766 = vst [vmem:[#allocation3 + $0x68] sm:$0x3f] %v1764
      %s1767 = scalar_lea.vmem [#allocation2], 392
      %v1768 = vld [vmem:[%s1767] ss:$2 sm:$0xff]
      %s1769 = scalar_lea.vmem [#allocation2], 408
      %v1770 = vld [vmem:[%s1769] ss:$2 sm:$0x3f]
      %s1771 = scalar_lea.vmem [#allocation2], 393
      %v1772 = vld [vmem:[%s1771] ss:$2 sm:$0xff]
      %s1773 = scalar_lea.vmem [#allocation2], 409
      %v1774 = vld [vmem:[%s1773] ss:$2 sm:$0x3f]
      %s1775 = scalar_lea.vmem [#allocation2], 420
      %v1776 = vld [vmem:[%s1775] ss:$2 sm:$0xff]
      %s1777 = scalar_lea.vmem [#allocation2], 436
      %v1778 = vld [vmem:[%s1777] ss:$2 sm:$0x3f]
      %s1779 = scalar_lea.vmem [#allocation2], 421
      %v1780 = vld [vmem:[%s1779] ss:$2 sm:$0xff]
      %s1781 = scalar_lea.vmem [#allocation2], 437
      %v1782 = vld [vmem:[%s1781] ss:$2 sm:$0x3f]
      %v1783 = vmax.f32 %v1768, %v1772
      %v1784 = vmax.f32 %v1770, %v1774
      %v1785 = vmax.f32 %v1776, %v1780
      %v1786 = vmax.f32 %v1778, %v1782
      %v1787 = vmax.f32 %v1783, %v1785
      %v1788 = vmax.f32 %v1784, %v1786
      %v1789 = vadd.f32 %v1787, %v1591
      %v1790 = vadd.f32 %v1788, %v1591
      %v1791 = vmax.f32 %v1789, 0.0
      %v1792 = vmax.f32 %v1790, 0.0
      %1793 = vst [vmem:[#allocation3 + $0x70] sm:$0xff] %v1791
      %1794 = vst [vmem:[#allocation3 + $0x78] sm:$0x3f] %v1792
      %s1795 = scalar_lea.vmem [#allocation2], 448
      %v1796 = vld [vmem:[%s1795] ss:$2 sm:$0xff]
      %s1797 = scalar_lea.vmem [#allocation2], 464
      %v1798 = vld [vmem:[%s1797] ss:$2 sm:$0x3f]
      %s1799 = scalar_lea.vmem [#allocation2], 449
      %v1800 = vld [vmem:[%s1799] ss:$2 sm:$0xff]
      %s1801 = scalar_lea.vmem [#allocation2], 465
      %v1802 = vld [vmem:[%s1801] ss:$2 sm:$0x3f]
      %s1803 = scalar_lea.vmem [#allocation2], 476
      %v1804 = vld [vmem:[%s1803] ss:$2 sm:$0xff]
      %s1805 = scalar_lea.vmem [#allocation2], 492
      %v1806 = vld [vmem:[%s1805] ss:$2 sm:$0x3f]
      %s1807 = scalar_lea.vmem [#allocation2], 477
      %v1808 = vld [vmem:[%s1807] ss:$2 sm:$0xff]
      %s1809 = scalar_lea.vmem [#allocation2], 493
      %v1810 = vld [vmem:[%s1809] ss:$2 sm:$0x3f]
      %v1811 = vmax.f32 %v1796, %v1800
      %v1812 = vmax.f32 %v1798, %v1802
      %v1813 = vmax.f32 %v1804, %v1808
      %v1814 = vmax.f32 %v1806, %v1810
      %v1815 = vmax.f32 %v1811, %v1813
      %v1816 = vmax.f32 %v1812, %v1814
      %v1817 = vadd.f32 %v1815, %v1591
      %v1818 = vadd.f32 %v1816, %v1591
      %v1819 = vmax.f32 %v1817, 0.0
      %v1820 = vmax.f32 %v1818, 0.0
      %1821 = vst [vmem:[#allocation3 + $0x80] sm:$0xff] %v1819
      %1822 = vst [vmem:[#allocation3 + $0x88] sm:$0x3f] %v1820
      %s1823 = scalar_lea.vmem [#allocation2], 504
      %v1824 = vld [vmem:[%s1823] ss:$2 sm:$0xff]
      %s1825 = scalar_lea.vmem [#allocation2], 520
      %v1826 = vld [vmem:[%s1825] ss:$2 sm:$0x3f]
      %s1827 = scalar_lea.vmem [#allocation2], 505
      %v1828 = vld [vmem:[%s1827] ss:$2 sm:$0xff]
      %s1829 = scalar_lea.vmem [#allocation2], 521
      %v1830 = vld [vmem:[%s1829] ss:$2 sm:$0x3f]
      %s1831 = scalar_lea.vmem [#allocation2], 532
      %v1832 = vld [vmem:[%s1831] ss:$2 sm:$0xff]
      %s1833 = scalar_lea.vmem [#allocation2], 548
      %v1834 = vld [vmem:[%s1833] ss:$2 sm:$0x3f]
      %s1835 = scalar_lea.vmem [#allocation2], 533
      %v1836 = vld [vmem:[%s1835] ss:$2 sm:$0xff]
      %s1837 = scalar_lea.vmem [#allocation2], 549
      %v1838 = vld [vmem:[%s1837] ss:$2 sm:$0x3f]
      %v1839 = vmax.f32 %v1824, %v1828
      %v1840 = vmax.f32 %v1826, %v1830
      %v1841 = vmax.f32 %v1832, %v1836
      %v1842 = vmax.f32 %v1834, %v1838
      %v1843 = vmax.f32 %v1839, %v1841
      %v1844 = vmax.f32 %v1840, %v1842
      %v1845 = vadd.f32 %v1843, %v1591
      %v1846 = vadd.f32 %v1844, %v1591
      %v1847 = vmax.f32 %v1845, 0.0
      %v1848 = vmax.f32 %v1846, 0.0
      %1849 = vst [vmem:[#allocation3 + $0x90] sm:$0xff] %v1847
      %1850 = vst [vmem:[#allocation3 + $0x98] sm:$0x3f] %v1848
      %s1851 = scalar_lea.vmem [#allocation2], 560
      %v1852 = vld [vmem:[%s1851] ss:$2 sm:$0xff]
      %s1853 = scalar_lea.vmem [#allocation2], 576
      %v1854 = vld [vmem:[%s1853] ss:$2 sm:$0x3f]
      %s1855 = scalar_lea.vmem [#allocation2], 561
      %v1856 = vld [vmem:[%s1855] ss:$2 sm:$0xff]
      %s1857 = scalar_lea.vmem [#allocation2], 577
      %v1858 = vld [vmem:[%s1857] ss:$2 sm:$0x3f]
      %s1859 = scalar_lea.vmem [#allocation2], 588
      %v1860 = vld [vmem:[%s1859] ss:$2 sm:$0xff]
      %s1861 = scalar_lea.vmem [#allocation2], 604
      %v1862 = vld [vmem:[%s1861] ss:$2 sm:$0x3f]
      %s1863 = scalar_lea.vmem [#allocation2], 589
      %v1864 = vld [vmem:[%s1863] ss:$2 sm:$0xff]
      %s1865 = scalar_lea.vmem [#allocation2], 605
      %v1866 = vld [vmem:[%s1865] ss:$2 sm:$0x3f]
      %v1867 = vmax.f32 %v1852, %v1856
      %v1868 = vmax.f32 %v1854, %v1858
      %v1869 = vmax.f32 %v1860, %v1864
      %v1870 = vmax.f32 %v1862, %v1866
      %v1871 = vmax.f32 %v1867, %v1869
      %v1872 = vmax.f32 %v1868, %v1870
      %v1873 = vadd.f32 %v1871, %v1591
      %v1874 = vadd.f32 %v1872, %v1591
      %v1875 = vmax.f32 %v1873, 0.0
      %v1876 = vmax.f32 %v1874, 0.0
      %1877 = vst [vmem:[#allocation3 + $0xa0] sm:$0xff] %v1875
      %1878 = vst [vmem:[#allocation3 + $0xa8] sm:$0x3f] %v1876
      %s1879 = scalar_lea.vmem [#allocation2], 616
      %v1880 = vld [vmem:[%s1879] ss:$2 sm:$0xff]
      %s1881 = scalar_lea.vmem [#allocation2], 632
      %v1882 = vld [vmem:[%s1881] ss:$2 sm:$0x3f]
      %s1883 = scalar_lea.vmem [#allocation2], 617
      %v1884 = vld [vmem:[%s1883] ss:$2 sm:$0xff]
      %s1885 = scalar_lea.vmem [#allocation2], 633
      %v1886 = vld [vmem:[%s1885] ss:$2 sm:$0x3f]
      %s1887 = scalar_lea.vmem [#allocation2], 644
      %v1888 = vld [vmem:[%s1887] ss:$2 sm:$0xff]
      %s1889 = scalar_lea.vmem [#allocation2], 660
      %v1890 = vld [vmem:[%s1889] ss:$2 sm:$0x3f]
      %s1891 = scalar_lea.vmem [#allocation2], 645
      %v1892 = vld [vmem:[%s1891] ss:$2 sm:$0xff]
      %s1893 = scalar_lea.vmem [#allocation2], 661
      %v1894 = vld [vmem:[%s1893] ss:$2 sm:$0x3f]
      %v1895 = vmax.f32 %v1880, %v1884
      %v1896 = vmax.f32 %v1882, %v1886
      %v1897 = vmax.f32 %v1888, %v1892
      %v1898 = vmax.f32 %v1890, %v1894
      %v1899 = vmax.f32 %v1895, %v1897
      %v1900 = vmax.f32 %v1896, %v1898
      %v1901 = vadd.f32 %v1899, %v1591
      %v1902 = vadd.f32 %v1900, %v1591
      %v1903 = vmax.f32 %v1901, 0.0
      %v1904 = vmax.f32 %v1902, 0.0
      %1905 = vst [vmem:[#allocation3 + $0xb0] sm:$0xff] %v1903
      %1906 = vst [vmem:[#allocation3 + $0xb8] sm:$0x3f] %v1904
      %s1907 = scalar_lea.vmem [#allocation2], 672
      %v1908 = vld [vmem:[%s1907] ss:$2 sm:$0xff]
      %s1909 = scalar_lea.vmem [#allocation2], 688
      %v1910 = vld [vmem:[%s1909] ss:$2 sm:$0x3f]
      %s1911 = scalar_lea.vmem [#allocation2], 673
      %v1912 = vld [vmem:[%s1911] ss:$2 sm:$0xff]
      %s1913 = scalar_lea.vmem [#allocation2], 689
      %v1914 = vld [vmem:[%s1913] ss:$2 sm:$0x3f]
      %s1915 = scalar_lea.vmem [#allocation2], 700
      %v1916 = vld [vmem:[%s1915] ss:$2 sm:$0xff]
      %s1917 = scalar_lea.vmem [#allocation2], 716
      %v1918 = vld [vmem:[%s1917] ss:$2 sm:$0x3f]
      %s1919 = scalar_lea.vmem [#allocation2], 701
      %v1920 = vld [vmem:[%s1919] ss:$2 sm:$0xff]
      %s1921 = scalar_lea.vmem [#allocation2], 717
      %v1922 = vld [vmem:[%s1921] ss:$2 sm:$0x3f]
      %v1923 = vmax.f32 %v1908, %v1912
      %v1924 = vmax.f32 %v1910, %v1914
      %v1925 = vmax.f32 %v1916, %v1920
      %v1926 = vmax.f32 %v1918, %v1922
      %v1927 = vmax.f32 %v1923, %v1925
      %v1928 = vmax.f32 %v1924, %v1926
      %v1929 = vadd.f32 %v1927, %v1591
      %v1930 = vadd.f32 %v1928, %v1591
      %v1931 = vmax.f32 %v1929, 0.0
      %v1932 = vmax.f32 %v1930, 0.0
      %1933 = vst [vmem:[#allocation3 + $0xc0] sm:$0xff] %v1931
      %1934 = vst [vmem:[#allocation3 + $0xc8] sm:$0x3f] %v1932
      %s1935 = scalar_lea.vmem [#allocation2], 728
      %v1936 = vld [vmem:[%s1935] ss:$2 sm:$0xff]
      %s1937 = scalar_lea.vmem [#allocation2], 744
      %v1938 = vld [vmem:[%s1937] ss:$2 sm:$0x3f]
      %s1939 = scalar_lea.vmem [#allocation2], 729
      %v1940 = vld [vmem:[%s1939] ss:$2 sm:$0xff]
      %s1941 = scalar_lea.vmem [#allocation2], 745
      %v1942 = vld [vmem:[%s1941] ss:$2 sm:$0x3f]
      %s1943 = scalar_lea.vmem [#allocation2], 756
      %v1944 = vld [vmem:[%s1943] ss:$2 sm:$0xff]
      %s1945 = scalar_lea.vmem [#allocation2], 772
      %v1946 = vld [vmem:[%s1945] ss:$2 sm:$0x3f]
      %s1947 = scalar_lea.vmem [#allocation2], 757
      %v1948 = vld [vmem:[%s1947] ss:$2 sm:$0xff]
      %s1949 = scalar_lea.vmem [#allocation2], 773
      %v1950 = vld [vmem:[%s1949] ss:$2 sm:$0x3f]
      %v1951 = vmax.f32 %v1936, %v1940
      %v1952 = vmax.f32 %v1938, %v1942
      %v1953 = vmax.f32 %v1944, %v1948
      %v1954 = vmax.f32 %v1946, %v1950
      %v1955 = vmax.f32 %v1951, %v1953
      %v1956 = vmax.f32 %v1952, %v1954
      %v1957 = vadd.f32 %v1955, %v1591
      %v1958 = vadd.f32 %v1956, %v1591
      %v1959 = vmax.f32 %v1957, 0.0
      %v1960 = vmax.f32 %v1958, 0.0
      %1961 = vst [vmem:[#allocation3 + $0xd0] sm:$0xff] %v1959
      %1962 = vst [vmem:[#allocation3 + $0xd8] sm:$0x3f] %v1960
      %v1963 = vld [vmem:[#allocation3] sm:$0xff]
      %v1964 = vld [vmem:[#allocation3 + $0x8] sm:$0xff]
      %v1965 = vld [vmem:[#allocation3 + $0x10] sm:$0xff]
      %v1966 = vld [vmem:[#allocation3 + $0x18] sm:$0xff]
      %v1967 = vld [vmem:[#allocation3 + $0x20] sm:$0xff]
      %v1968 = vld [vmem:[#allocation3 + $0x28] sm:$0xff]
      %v1969 = vld [vmem:[#allocation3 + $0x30] sm:$0xff]
      %v1970 = vld [vmem:[#allocation3 + $0x38] sm:$0xff]
      %v1971 = vld [vmem:[#allocation3 + $0x40] sm:$0xff]
      %v1972 = vld [vmem:[#allocation3 + $0x48] sm:$0xff]
      %v1973 = vpack.c.bf16 %v1964, %v1963
      %v1974 = vpack.c.bf16 %v1966, %v1965
      %v1975 = vpack.c.bf16 %v1968, %v1967
      %v1976 = vpack.c.bf16 %v1970, %v1969
      %v1977 = vpack.c.bf16 %v1972, %v1971
      %v1978 = vld [vmem:[%s3] sm:$0xf]
      %v1979 = vld [vmem:[#allocation3 + $0x1] sm:$0xff]
      %v1980 = vld [vmem:[#allocation3 + $0x9] sm:$0xff]
      %v1981 = vld [vmem:[#allocation3 + $0x11] sm:$0xff]
      %v1982 = vld [vmem:[#allocation3 + $0x19] sm:$0xff]
      %v1983 = vld [vmem:[#allocation3 + $0x21] sm:$0xff]
      %v1984 = vld [vmem:[#allocation3 + $0x29] sm:$0xff]
      %v1985 = vld [vmem:[#allocation3 + $0x31] sm:$0xff]
      %v1986 = vld [vmem:[#allocation3 + $0x39] sm:$0xff]
      %v1987 = vld [vmem:[#allocation3 + $0x41] sm:$0xff]
      %v1988 = vld [vmem:[#allocation3 + $0x49] sm:$0xff]
      %v1989 = vpack.c.bf16 %v1980, %v1979
      %v1990 = vpack.c.bf16 %v1982, %v1981
      %v1991 = vpack.c.bf16 %v1984, %v1983
      %v1992 = vpack.c.bf16 %v1986, %v1985
      %v1993 = vpack.c.bf16 %v1988, %v1987
      %s1994 = scalar_lea.vmem %s3, 4
      %v1995 = vld [vmem:[%s1994] sm:$0xf]
      %vm1996 = vcmask 64512
      %v1998 = vsel %vm1996, %v1989, 0
      %v2001 = vsel %vm1996, %v1990, 0
      %v2004 = vsel %vm1996, %v1991, 0
      %v2007 = vsel %vm1996, %v1992, 0
      %v2010 = vsel %vm1996, %v1993, 0
      %vm2012 = vcmask 1043456
      %v2014 = vsel %vm2012, %v1995, 0
      %2016 = vmatprep.subr.bf16.mxu0 0
      %2017 = vmatpush1.bf16.msra.mxu0 %v2014
      %2018 = vmatprep.subr.bf16.mxu0 0
      %2019 = vmatpush1.bf16.msra.mxu0 0
      %2020 = vmatprep.subr.bf16.mxu0 0
      %2021 = vmatpush1.bf16.msra.mxu0 0
      %2022 = vmatprep.subr.bf16.mxu0 0
      %2023 = vmatpush1.bf16.msra.mxu0 0
      %2024 = vmatprep.subr.bf16.mxu0 0
      %2025 = vmatpush1.bf16.msra.mxu0 0
      %2026 = vmatprep.subr.bf16.mxu0 0
      %2027 = vmatpush1.bf16.msra.mxu0 0
      %2028 = vmatprep.subr.bf16.mxu0 0
      %2029 = vmatpush1.bf16.msra.mxu0 0
      %2030 = vmatprep.subr.bf16.mxu0 0
      %2031 = vmatpush1.bf16.msra.mxu0 0
      %2032 = vmatprep.subr.bf16.mxu0 0
      %2033 = vmatpush1.bf16.msra.mxu0 0
      %2034 = vmatprep.subr.bf16.mxu0 0
      %2035 = vmatpush1.bf16.msra.mxu0 0
      %2036 = vmatprep.subr.bf16.mxu0 0
      %2037 = vmatpush1.bf16.msra.mxu0 0
      %2038 = vmatprep.subr.bf16.mxu0 0
      %2039 = vmatpush1.bf16.msra.mxu0 0
      %2040 = vmatprep.subr.bf16.mxu0 0
      %2041 = vmatpush1.bf16.msra.mxu0 0
      %2042 = vmatprep.subr.bf16.mxu0 0
      %2043 = vmatpush1.bf16.msra.mxu0 0
      %2044 = vmatprep.subr.bf16.mxu0 0
      %2045 = vmatpush1.bf16.msra.mxu0 0
      %2046 = vmatprep.subr.bf16.mxu0 0
      %2047 = vmatpush1.bf16.msra.mxu0 0
      %2048 = vmatprep.mubr.bf16.mxu0 0
      %2049 = vmatmul.mubr.bf16.gmra.mrb[0].mxu0 %v1998
      %v2050 = vpop.f32.mrb[0].mxu0
      %v2051 = vadd.f32 0.0, %v2050
      %v2052 = vpop.f32.mrb[0].mxu0
      %v2053 = vpop.f32.mrb[0].mxu0
      %v2054 = vadd.f32 0.0, %v2053
      %v2055 = vpop.f32.mrb[0].mxu0
      %2056 = vmatprep.mubr.bf16.mxu0 0
      %2057 = vmatmul.mubr.bf16.gmra.mrb[0].mxu0 %v2001
      %v2058 = vpop.f32.mrb[0].mxu0
      %v2059 = vadd.f32 0.0, %v2058
      %v2060 = vpop.f32.mrb[0].mxu0
      %v2061 = vpop.f32.mrb[0].mxu0
      %v2062 = vadd.f32 0.0, %v2061
      %v2063 = vpop.f32.mrb[0].mxu0
      %2064 = vmatprep.mubr.bf16.mxu0 0
      %2065 = vmatmul.mubr.bf16.gmra.mrb[0].mxu0 %v2004
      %v2066 = vpop.f32.mrb[0].mxu0
      %v2067 = vadd.f32 0.0, %v2066
      %v2068 = vpop.f32.mrb[0].mxu0
      %v2069 = vpop.f32.mrb[0].mxu0
      %v2070 = vadd.f32 0.0, %v2069
      %v2071 = vpop.f32.mrb[0].mxu0
      %2072 = vmatprep.mubr.bf16.mxu0 0
      %2073 = vmatmul.mubr.bf16.gmra.mrb[0].mxu0 %v2007
      %v2074 = vpop.f32.mrb[0].mxu0
      %v2075 = vadd.f32 0.0, %v2074
      %v2076 = vpop.f32.mrb[0].mxu0
      %v2077 = vpop.f32.mrb[0].mxu0
      %v2078 = vadd.f32 0.0, %v2077
      %v2079 = vpop.f32.mrb[0].mxu0
      %2080 = vmatprep.mubr.bf16.mxu0 0
      %2081 = vmatmul.mubr.bf16.gmra.mrb[0].mxu0 %v2010
      %v2082 = vpop.f32.mrb[0].mxu0
      %v2083 = vadd.f32 0.0, %v2082
      %v2084 = vpop.f32.mrb[0].mxu0
      %v2085 = vpop.f32.mrb[0].mxu0
      %v2086 = vadd.f32 0.0, %v2085
      %v2087 = vpop.f32.mrb[0].mxu0
      %2088 = vdwg.mxu0
      %v2090 = vsel %vm1996, %v1973, 0
      %v2093 = vsel %vm1996, %v1974, 0
      %v2096 = vsel %vm1996, %v1975, 0
      %v2099 = vsel %vm1996, %v1976, 0
      %v2102 = vsel %vm1996, %v1977, 0
      %v2105 = vsel %vm2012, %v1978, 0
      %2107 = vmatprep.subr.bf16.mxu0 0
      %2108 = vmatpush1.bf16.msra.mxu0 %v2105
      %2109 = vmatprep.subr.bf16.mxu0 0
      %2110 = vmatpush1.bf16.msra.mxu0 0
      %2111 = vmatprep.subr.bf16.mxu0 0
      %2112 = vmatpush1.bf16.msra.mxu0 0
      %2113 = vmatprep.subr.bf16.mxu0 0
      %2114 = vmatpush1.bf16.msra.mxu0 0
      %2115 = vmatprep.subr.bf16.mxu0 0
      %2116 = vmatpush1.bf16.msra.mxu0 0
      %2117 = vmatprep.subr.bf16.mxu0 0
      %2118 = vmatpush1.bf16.msra.mxu0 0
      %2119 = vmatprep.subr.bf16.mxu0 0
      %2120 = vmatpush1.bf16.msra.mxu0 0
      %2121 = vmatprep.subr.bf16.mxu0 0
      %2122 = vmatpush1.bf16.msra.mxu0 0
      %2123 = vmatprep.subr.bf16.mxu0 0
      %2124 = vmatpush1.bf16.msra.mxu0 0
      %2125 = vmatprep.subr.bf16.mxu0 0
      %2126 = vmatpush1.bf16.msra.mxu0 0
      %2127 = vmatprep.subr.bf16.mxu0 0
      %2128 = vmatpush1.bf16.msra.mxu0 0
      %2129 = vmatprep.subr.bf16.mxu0 0
      %2130 = vmatpush1.bf16.msra.mxu0 0
      %2131 = vmatprep.subr.bf16.mxu0 0
      %2132 = vmatpush1.bf16.msra.mxu0 0
      %2133 = vmatprep.subr.bf16.mxu0 0
      %2134 = vmatpush1.bf16.msra.mxu0 0
      %2135 = vmatprep.subr.bf16.mxu0 0
      %2136 = vmatpush1.bf16.msra.mxu0 0
      %2137 = vmatprep.subr.bf16.mxu0 0
      %2138 = vmatpush1.bf16.msra.mxu0 0
      %2139 = vmatprep.mubr.bf16.mxu0 0
      %2140 = vmatmul.mubr.bf16.gmra.mrb[0].mxu0 %v2090
      %v2141 = vpop.f32.mrb[0].mxu0
      %v2142 = vadd.f32 %v2051, %v2141
      %v2143 = vpop.f32.mrb[0].mxu0
      %v2144 = vpop.f32.mrb[0].mxu0
      %v2145 = vadd.f32 %v2054, %v2144
      %v2146 = vpop.f32.mrb[0].mxu0
      %2147 = vmatprep.mubr.bf16.mxu0 0
      %2148 = vmatmul.mubr.bf16.gmra.mrb[0].mxu0 %v2093
      %v2149 = vpop.f32.mrb[0].mxu0
      %v2150 = vadd.f32 %v2059, %v2149
      %v2151 = vpop.f32.mrb[0].mxu0
      %v2152 = vpop.f32.mrb[0].mxu0
      %v2153 = vadd.f32 %v2062, %v2152
      %v2154 = vpop.f32.mrb[0].mxu0
      %2155 = vmatprep.mubr.bf16.mxu0 0
      %2156 = vmatmul.mubr.bf16.gmra.mrb[0].mxu0 %v2096
      %v2157 = vpop.f32.mrb[0].mxu0
      %v2158 = vadd.f32 %v2067, %v2157
      %v2159 = vpop.f32.mrb[0].mxu0
      %v2160 = vpop.f32.mrb[0].mxu0
      %v2161 = vadd.f32 %v2070, %v2160
      %v2162 = vpop.f32.mrb[0].mxu0
      %2163 = vmatprep.mubr.bf16.mxu0 0
      %2164 = vmatmul.mubr.bf16.gmra.mrb[0].mxu0 %v2099
      %v2165 = vpop.f32.mrb[0].mxu0
      %v2166 = vadd.f32 %v2075, %v2165
      %v2167 = vpop.f32.mrb[0].mxu0
      %v2168 = vpop.f32.mrb[0].mxu0
      %v2169 = vadd.f32 %v2078, %v2168
      %v2170 = vpop.f32.mrb[0].mxu0
      %2171 = vmatprep.mubr.bf16.mxu0 0
      %2172 = vmatmul.mubr.bf16.gmra.mrb[0].mxu0 %v2102
      %v2173 = vpop.f32.mrb[0].mxu0
      %v2174 = vadd.f32 %v2083, %v2173
      %v2175 = vpop.f32.mrb[0].mxu0
      %v2176 = vpop.f32.mrb[0].mxu0
      %v2177 = vadd.f32 %v2086, %v2176
      %v2178 = vpop.f32.mrb[0].mxu0
      %2179 = vdwg.mxu0
      %v2180 = vld [vmem:[#allocation3 + $0x2] sm:$0xff]
      %v2181 = vld [vmem:[#allocation3 + $0xa] sm:$0xff]
      %v2182 = vld [vmem:[#allocation3 + $0x12] sm:$0xff]
      %v2183 = vld [vmem:[#allocation3 + $0x1a] sm:$0xff]
      %v2184 = vld [vmem:[#allocation3 + $0x22] sm:$0xff]
      %v2185 = vld [vmem:[#allocation3 + $0x2a] sm:$0xff]
      %v2186 = vld [vmem:[#allocation3 + $0x32] sm:$0xff]
      %v2187 = vld [vmem:[#allocation3 + $0x3a] sm:$0xff]
      %v2188 = vld [vmem:[#allocation3 + $0x42] sm:$0xff]
      %v2189 = vld [vmem:[#allocation3 + $0x4a] sm:$0xff]
      %v2190 = vpack.c.bf16 %v2181, %v2180
      %v2191 = vpack.c.bf16 %v2183, %v2182
      %v2192 = vpack.c.bf16 %v2185, %v2184
      %v2193 = vpack.c.bf16 %v2187, %v2186
      %v2194 = vpack.c.bf16 %v2189, %v2188
      %s2195 = scalar_lea.vmem %s3, 8
      %v2196 = vld [vmem:[%s2195] sm:$0xf]
      %v2198 = vsel %vm1996, %v2190, 0
      %v2201 = vsel %vm1996, %v2191, 0
      %v2204 = vsel %vm1996, %v2192, 0
      %v2207 = vsel %vm1996, %v2193, 0
      %v2210 = vsel %vm1996, %v2194, 0
      %v2213 = vsel %vm2012, %v2196, 0
      %2215 = vmatprep.subr.bf16.mxu0 0
      %2216 = vmatpush1.bf16.msra.mxu0 %v2213
      %2217 = vmatprep.subr.bf16.mxu0 0
      %2218 = vmatpush1.bf16.msra.mxu0 0
      %2219 = vmatprep.subr.bf16.mxu0 0
      %2220 = vmatpush1.bf16.msra.mxu0 0
      %2221 = vmatprep.subr.bf16.mxu0 0
      %2222 = vmatpush1.bf16.msra.mxu0 0
      %2223 = vmatprep.subr.bf16.mxu0 0
      %2224 = vmatpush1.bf16.msra.mxu0 0
      %2225 = vmatprep.subr.bf16.mxu0 0
      %2226 = vmatpush1.bf16.msra.mxu0 0
      %2227 = vmatprep.subr.bf16.mxu0 0
      %2228 = vmatpush1.bf16.msra.mxu0 0
      %2229 = vmatprep.subr.bf16.mxu0 0
      %2230 = vmatpush1.bf16.msra.mxu0 0
      %2231 = vmatprep.subr.bf16.mxu0 0
      %2232 = vmatpush1.bf16.msra.mxu0 0
      %2233 = vmatprep.subr.bf16.mxu0 0
      %2234 = vmatpush1.bf16.msra.mxu0 0
      %2235 = vmatprep.subr.bf16.mxu0 0
      %2236 = vmatpush1.bf16.msra.mxu0 0
      %2237 = vmatprep.subr.bf16.mxu0 0
      %2238 = vmatpush1.bf16.msra.mxu0 0
      %2239 = vmatprep.subr.bf16.mxu0 0
      %2240 = vmatpush1.bf16.msra.mxu0 0
      %2241 = vmatprep.subr.bf16.mxu0 0
      %2242 = vmatpush1.bf16.msra.mxu0 0
      %2243 = vmatprep.subr.bf16.mxu0 0
      %2244 = vmatpush1.bf16.msra.mxu0 0
      %2245 = vmatprep.subr.bf16.mxu0 0
      %2246 = vmatpush1.bf16.msra.mxu0 0
      %2247 = vmatprep.mubr.bf16.mxu0 0
      %2248 = vmatmul.mubr.bf16.gmra.mrb[0].mxu0 %v2198
      %v2249 = vpop.f32.mrb[0].mxu0
      %v2250 = vadd.f32 0.0, %v2249
      %v2251 = vpop.f32.mrb[0].mxu0
      %v2252 = vpop.f32.mrb[0].mxu0
      %v2253 = vadd.f32 0.0, %v2252
      %v2254 = vpop.f32.mrb[0].mxu0
      %2255 = vmatprep.mubr.bf16.mxu0 0
      %2256 = vmatmul.mubr.bf16.gmra.mrb[0].mxu0 %v2201
      %v2257 = vpop.f32.mrb[0].mxu0
      %v2258 = vadd.f32 0.0, %v2257
      %v2259 = vpop.f32.mrb[0].mxu0
      %v2260 = vpop.f32.mrb[0].mxu0
      %v2261 = vadd.f32 0.0, %v2260
      %v2262 = vpop.f32.mrb[0].mxu0
      %2263 = vmatprep.mubr.bf16.mxu0 0
      %2264 = vmatmul.mubr.bf16.gmra.mrb[0].mxu0 %v2204
      %v2265 = vpop.f32.mrb[0].mxu0
      %v2266 = vadd.f32 0.0, %v2265
      %v2267 = vpop.f32.mrb[0].mxu0
      %v2268 = vpop.f32.mrb[0].mxu0
      %v2269 = vadd.f32 0.0, %v2268
      %v2270 = vpop.f32.mrb[0].mxu0
      %2271 = vmatprep.mubr.bf16.mxu0 0
      %2272 = vmatmul.mubr.bf16.gmra.mrb[0].mxu0 %v2207
      %v2273 = vpop.f32.mrb[0].mxu0
      %v2274 = vadd.f32 0.0, %v2273
      %v2275 = vpop.f32.mrb[0].mxu0
      %v2276 = vpop.f32.mrb[0].mxu0
      %v2277 = vadd.f32 0.0, %v2276
      %v2278 = vpop.f32.mrb[0].mxu0
      %2279 = vmatprep.mubr.bf16.mxu0 0
      %2280 = vmatmul.mubr.bf16.gmra.mrb[0].mxu0 %v2210
      %v2281 = vpop.f32.mrb[0].mxu0
      %v2282 = vadd.f32 0.0, %v2281
      %v2283 = vpop.f32.mrb[0].mxu0
      %v2284 = vpop.f32.mrb[0].mxu0
      %v2285 = vadd.f32 0.0, %v2284
      %v2286 = vpop.f32.mrb[0].mxu0
      %2287 = vdwg.mxu0
      %v2288 = vadd.f32 %v2142, %v2250
      %v2289 = vadd.f32 %v2145, %v2253
      %v2290 = vadd.f32 %v2150, %v2258
      %v2291 = vadd.f32 %v2153, %v2261
      %v2292 = vadd.f32 %v2158, %v2266
      %v2293 = vadd.f32 %v2161, %v2269
      %v2294 = vadd.f32 %v2166, %v2274
      %v2295 = vadd.f32 %v2169, %v2277
      %v2296 = vadd.f32 %v2174, %v2282
      %v2297 = vadd.f32 %v2177, %v2285
      %v2298 = vld [vmem:[#allocation3 + $0x3] sm:$0xff]
      %v2299 = vld [vmem:[#allocation3 + $0xb] sm:$0xff]
      %v2300 = vld [vmem:[#allocation3 + $0x13] sm:$0xff]
      %v2301 = vld [vmem:[#allocation3 + $0x1b] sm:$0xff]
      %v2302 = vld [vmem:[#allocation3 + $0x23] sm:$0xff]
      %v2303 = vld [vmem:[#allocation3 + $0x2b] sm:$0xff]
      %v2304 = vld [vmem:[#allocation3 + $0x33] sm:$0xff]
      %v2305 = vld [vmem:[#allocation3 + $0x3b] sm:$0xff]
      %v2306 = vld [vmem:[#allocation3 + $0x43] sm:$0xff]
      %v2307 = vld [vmem:[#allocation3 + $0x4b] sm:$0xff]
      %v2308 = vpack.c.bf16 %v2299, %v2298
      %v2309 = vpack.c.bf16 %v2301, %v2300
      %v2310 = vpack.c.bf16 %v2303, %v2302
      %v2311 = vpack.c.bf16 %v2305, %v2304
      %v2312 = vpack.c.bf16 %v2307, %v2306
      %s2313 = scalar_lea.vmem %s3, 12
      %v2314 = vld [vmem:[%s2313] sm:$0xf]
      %v2316 = vsel %vm1996, %v2308, 0
      %v2319 = vsel %vm1996, %v2309, 0
      %v2322 = vsel %vm1996, %v2310, 0
      %v2325 = vsel %vm1996, %v2311, 0
      %v2328 = vsel %vm1996, %v2312, 0
      %v2331 = vsel %vm2012, %v2314, 0
      %2333 = vmatprep.subr.bf16.mxu0 0
      %2334 = vmatpush1.bf16.msra.mxu0 %v2331
      %2335 = vmatprep.subr.bf16.mxu0 0
      %2336 = vmatpush1.bf16.msra.mxu0 0
      %2337 = vmatprep.subr.bf16.mxu0 0
      %2338 = vmatpush1.bf16.msra.mxu0 0
      %2339 = vmatprep.subr.bf16.mxu0 0
      %2340 = vmatpush1.bf16.msra.mxu0 0
      %2341 = vmatprep.subr.bf16.mxu0 0
      %2342 = vmatpush1.bf16.msra.mxu0 0
      %2343 = vmatprep.subr.bf16.mxu0 0
      %2344 = vmatpush1.bf16.msra.mxu0 0
      %2345 = vmatprep.subr.bf16.mxu0 0
      %2346 = vmatpush1.bf16.msra.mxu0 0
      %2347 = vmatprep.subr.bf16.mxu0 0
      %2348 = vmatpush1.bf16.msra.mxu0 0
      %2349 = vmatprep.subr.bf16.mxu0 0
      %2350 = vmatpush1.bf16.msra.mxu0 0
      %2351 = vmatprep.subr.bf16.mxu0 0
      %2352 = vmatpush1.bf16.msra.mxu0 0
      %2353 = vmatprep.subr.bf16.mxu0 0
      %2354 = vmatpush1.bf16.msra.mxu0 0
      %2355 = vmatprep.subr.bf16.mxu0 0
      %2356 = vmatpush1.bf16.msra.mxu0 0
      %2357 = vmatprep.subr.bf16.mxu0 0
      %2358 = vmatpush1.bf16.msra.mxu0 0
      %2359 = vmatprep.subr.bf16.mxu0 0
      %2360 = vmatpush1.bf16.msra.mxu0 0
      %2361 = vmatprep.subr.bf16.mxu0 0
      %2362 = vmatpush1.bf16.msra.mxu0 0
      %2363 = vmatprep.subr.bf16.mxu0 0
      %2364 = vmatpush1.bf16.msra.mxu0 0
      %2365 = vmatprep.mubr.bf16.mxu0 0
      %2366 = vmatmul.mubr.bf16.gmra.mrb[0].mxu0 %v2316
      %v2367 = vpop.f32.mrb[0].mxu0
      %v2368 = vadd.f32 0.0, %v2367
      %v2369 = vpop.f32.mrb[0].mxu0
      %v2370 = vpop.f32.mrb[0].mxu0
      %v2371 = vadd.f32 0.0, %v2370
      %v2372 = vpop.f32.mrb[0].mxu0
      %2373 = vmatprep.mubr.bf16.mxu0 0
      %2374 = vmatmul.mubr.bf16.gmra.mrb[0].mxu0 %v2319
      %v2375 = vpop.f32.mrb[0].mxu0
      %v2376 = vadd.f32 0.0, %v2375
      %v2377 = vpop.f32.mrb[0].mxu0
      %v2378 = vpop.f32.mrb[0].mxu0
      %v2379 = vadd.f32 0.0, %v2378
      %v2380 = vpop.f32.mrb[0].mxu0
      %2381 = vmatprep.mubr.bf16.mxu0 0
      %2382 = vmatmul.mubr.bf16.gmra.mrb[0].mxu0 %v2322
      %v2383 = vpop.f32.mrb[0].mxu0
      %v2384 = vadd.f32 0.0, %v2383
      %v2385 = vpop.f32.mrb[0].mxu0
      %v2386 = vpop.f32.mrb[0].mxu0
      %v2387 = vadd.f32 0.0, %v2386
      %v2388 = vpop.f32.mrb[0].mxu0
      %2389 = vmatprep.mubr.bf16.mxu0 0
      %2390 = vmatmul.mubr.bf16.gmra.mrb[0].mxu0 %v2325
      %v2391 = vpop.f32.mrb[0].mxu0
      %v2392 = vadd.f32 0.0, %v2391
      %v2393 = vpop.f32.mrb[0].mxu0
      %v2394 = vpop.f32.mrb[0].mxu0
      %v2395 = vadd.f32 0.0, %v2394
      %v2396 = vpop.f32.mrb[0].mxu0
      %2397 = vmatprep.mubr.bf16.mxu0 0
      %2398 = vmatmul.mubr.bf16.gmra.mrb[0].mxu0 %v2328
      %v2399 = vpop.f32.mrb[0].mxu0
      %v2400 = vadd.f32 0.0, %v2399
      %v2401 = vpop.f32.mrb[0].mxu0
      %v2402 = vpop.f32.mrb[0].mxu0
      %v2403 = vadd.f32 0.0, %v2402
      %v2404 = vpop.f32.mrb[0].mxu0
      %2405 = vdwg.mxu0
      %v2406 = vadd.f32 %v2288, %v2368
      %v2407 = vadd.f32 %v2289, %v2371
      %v2408 = vadd.f32 %v2290, %v2376
      %v2409 = vadd.f32 %v2291, %v2379
      %v2410 = vadd.f32 %v2292, %v2384
      %v2411 = vadd.f32 %v2293, %v2387
      %v2412 = vadd.f32 %v2294, %v2392
      %v2413 = vadd.f32 %v2295, %v2395
      %v2414 = vadd.f32 %v2296, %v2400
      %v2415 = vadd.f32 %v2297, %v2403
      %v2416 = vld [vmem:[#allocation3 + $0x4] sm:$0xff]
      %v2417 = vld [vmem:[#allocation3 + $0xc] sm:$0xff]
      %v2418 = vld [vmem:[#allocation3 + $0x14] sm:$0xff]
      %v2419 = vld [vmem:[#allocation3 + $0x1c] sm:$0xff]
      %v2420 = vld [vmem:[#allocation3 + $0x24] sm:$0xff]
      %v2421 = vld [vmem:[#allocation3 + $0x2c] sm:$0xff]
      %v2422 = vld [vmem:[#allocation3 + $0x34] sm:$0xff]
      %v2423 = vld [vmem:[#allocation3 + $0x3c] sm:$0xff]
      %v2424 = vld [vmem:[#allocation3 + $0x44] sm:$0xff]
      %v2425 = vld [vmem:[#allocation3 + $0x4c] sm:$0xff]
      %v2426 = vpack.c.bf16 %v2417, %v2416
      %v2427 = vpack.c.bf16 %v2419, %v2418
      %v2428 = vpack.c.bf16 %v2421, %v2420
      %v2429 = vpack.c.bf16 %v2423, %v2422
      %v2430 = vpack.c.bf16 %v2425, %v2424
      %s2431 = scalar_lea.vmem %s3, 16
      %v2432 = vld [vmem:[%s2431] sm:$0xf]
      %v2434 = vsel %vm1996, %v2426, 0
      %v2437 = vsel %vm1996, %v2427, 0
      %v2440 = vsel %vm1996, %v2428, 0
      %v2443 = vsel %vm1996, %v2429, 0
      %v2446 = vsel %vm1996, %v2430, 0
      %v2449 = vsel %vm2012, %v2432, 0
      %2451 = vmatprep.subr.bf16.mxu0 0
      %2452 = vmatpush1.bf16.msra.mxu0 %v2449
      %2453 = vmatprep.subr.bf16.mxu0 0
      %2454 = vmatpush1.bf16.msra.mxu0 0
      %2455 = vmatprep.subr.bf16.mxu0 0
      %2456 = vmatpush1.bf16.msra.mxu0 0
      %2457 = vmatprep.subr.bf16.mxu0 0
      %2458 = vmatpush1.bf16.msra.mxu0 0
      %2459 = vmatprep.subr.bf16.mxu0 0
      %2460 = vmatpush1.bf16.msra.mxu0 0
      %2461 = vmatprep.subr.bf16.mxu0 0
      %2462 = vmatpush1.bf16.msra.mxu0 0
      %2463 = vmatprep.subr.bf16.mxu0 0
      %2464 = vmatpush1.bf16.msra.mxu0 0
      %2465 = vmatprep.subr.bf16.mxu0 0
      %2466 = vmatpush1.bf16.msra.mxu0 0
      %2467 = vmatprep.subr.bf16.mxu0 0
      %2468 = vmatpush1.bf16.msra.mxu0 0
      %2469 = vmatprep.subr.bf16.mxu0 0
      %2470 = vmatpush1.bf16.msra.mxu0 0
      %2471 = vmatprep.subr.bf16.mxu0 0
      %2472 = vmatpush1.bf16.msra.mxu0 0
      %2473 = vmatprep.subr.bf16.mxu0 0
      %2474 = vmatpush1.bf16.msra.mxu0 0
      %2475 = vmatprep.subr.bf16.mxu0 0
      %2476 = vmatpush1.bf16.msra.mxu0 0
      %2477 = vmatprep.subr.bf16.mxu0 0
      %2478 = vmatpush1.bf16.msra.mxu0 0
      %2479 = vmatprep.subr.bf16.mxu0 0
      %2480 = vmatpush1.bf16.msra.mxu0 0
      %2481 = vmatprep.subr.bf16.mxu0 0
      %2482 = vmatpush1.bf16.msra.mxu0 0
      %2483 = vmatprep.mubr.bf16.mxu0 0
      %2484 = vmatmul.mubr.bf16.gmra.mrb[0].mxu0 %v2434
      %v2485 = vpop.f32.mrb[0].mxu0
      %v2486 = vadd.f32 0.0, %v2485
      %v2487 = vpop.f32.mrb[0].mxu0
      %v2488 = vpop.f32.mrb[0].mxu0
      %v2489 = vadd.f32 0.0, %v2488
      %v2490 = vpop.f32.mrb[0].mxu0
      %2491 = vmatprep.mubr.bf16.mxu0 0
      %2492 = vmatmul.mubr.bf16.gmra.mrb[0].mxu0 %v2437
      %v2493 = vpop.f32.mrb[0].mxu0
      %v2494 = vadd.f32 0.0, %v2493
      %v2495 = vpop.f32.mrb[0].mxu0
      %v2496 = vpop.f32.mrb[0].mxu0
      %v2497 = vadd.f32 0.0, %v2496
      %v2498 = vpop.f32.mrb[0].mxu0
      %2499 = vmatprep.mubr.bf16.mxu0 0
      %2500 = vmatmul.mubr.bf16.gmra.mrb[0].mxu0 %v2440
      %v2501 = vpop.f32.mrb[0].mxu0
      %v2502 = vadd.f32 0.0, %v2501
      %v2503 = vpop.f32.mrb[0].mxu0
      %v2504 = vpop.f32.mrb[0].mxu0
      %v2505 = vadd.f32 0.0, %v2504
      %v2506 = vpop.f32.mrb[0].mxu0
      %2507 = vmatprep.mubr.bf16.mxu0 0
      %2508 = vmatmul.mubr.bf16.gmra.mrb[0].mxu0 %v2443
      %v2509 = vpop.f32.mrb[0].mxu0
      %v2510 = vadd.f32 0.0, %v2509
      %v2511 = vpop.f32.mrb[0].mxu0
      %v2512 = vpop.f32.mrb[0].mxu0
      %v2513 = vadd.f32 0.0, %v2512
      %v2514 = vpop.f32.mrb[0].mxu0
      %2515 = vmatprep.mubr.bf16.mxu0 0
      %2516 = vmatmul.mubr.bf16.gmra.mrb[0].mxu0 %v2446
      %v2517 = vpop.f32.mrb[0].mxu0
      %v2518 = vadd.f32 0.0, %v2517
      %v2519 = vpop.f32.mrb[0].mxu0
      %v2520 = vpop.f32.mrb[0].mxu0
      %v2521 = vadd.f32 0.0, %v2520
      %v2522 = vpop.f32.mrb[0].mxu0
      %2523 = vdwg.mxu0
      %v2524 = vadd.f32 %v2406, %v2486
      %v2525 = vadd.f32 %v2407, %v2489
      %v2526 = vadd.f32 %v2408, %v2494
      %v2527 = vadd.f32 %v2409, %v2497
      %v2528 = vadd.f32 %v2410, %v2502
      %v2529 = vadd.f32 %v2411, %v2505
      %v2530 = vadd.f32 %v2412, %v2510
      %v2531 = vadd.f32 %v2413, %v2513
      %v2532 = vadd.f32 %v2414, %v2518
      %v2533 = vadd.f32 %v2415, %v2521
      %v2534 = vld [vmem:[#allocation3 + $0x10] sm:$0xff]
      %v2535 = vld [vmem:[#allocation3 + $0x18] sm:$0xff]
      %v2536 = vld [vmem:[#allocation3 + $0x20] sm:$0xff]
      %v2537 = vld [vmem:[#allocation3 + $0x28] sm:$0xff]
      %v2538 = vld [vmem:[#allocation3 + $0x30] sm:$0xff]
      %v2539 = vld [vmem:[#allocation3 + $0x38] sm:$0xff]
      %v2540 = vld [vmem:[#allocation3 + $0x40] sm:$0xff]
      %v2541 = vld [vmem:[#allocation3 + $0x48] sm:$0xff]
      %v2542 = vld [vmem:[#allocation3 + $0x50] sm:$0xff]
      %v2543 = vld [vmem:[#allocation3 + $0x58] sm:$0xff]
      %v2544 = vpack.c.bf16 %v2535, %v2534
      %v2545 = vpack.c.bf16 %v2537, %v2536
      %v2546 = vpack.c.bf16 %v2539, %v2538
      %v2547 = vpack.c.bf16 %v2541, %v2540
      %v2548 = vpack.c.bf16 %v2543, %v2542
      %s2549 = scalar_lea.vmem %s3, 20
      %v2550 = vld [vmem:[%s2549] sm:$0xf]
      %v2552 = vsel %vm1996, %v2544, 0
      %v2555 = vsel %vm1996, %v2545, 0
      %v2558 = vsel %vm1996, %v2546, 0
      %v2561 = vsel %vm1996, %v2547, 0
      %v2564 = vsel %vm1996, %v2548, 0
      %v2567 = vsel %vm2012, %v2550, 0
      %2569 = vmatprep.subr.bf16.mxu0 0
      %2570 = vmatpush1.bf16.msra.mxu0 %v2567
      %2571 = vmatprep.subr.bf16.mxu0 0
      %2572 = vmatpush1.bf16.msra.mxu0 0
      %2573 = vmatprep.subr.bf16.mxu0 0
      %2574 = vmatpush1.bf16.msra.mxu0 0
      %2575 = vmatprep.subr.bf16.mxu0 0
      %2576 = vmatpush1.bf16.msra.mxu0 0
      %2577 = vmatprep.subr.bf16.mxu0 0
      %2578 = vmatpush1.bf16.msra.mxu0 0
      %2579 = vmatprep.subr.bf16.mxu0 0
      %2580 = vmatpush1.bf16.msra.mxu0 0
      %2581 = vmatprep.subr.bf16.mxu0 0
      %2582 = vmatpush1.bf16.msra.mxu0 0
      %2583 = vmatprep.subr.bf16.mxu0 0
      %2584 = vmatpush1.bf16.msra.mxu0 0
      %2585 = vmatprep.subr.bf16.mxu0 0
      %2586 = vmatpush1.bf16.msra.mxu0 0
      %2587 = vmatprep.subr.bf16.mxu0 0
      %2588 = vmatpush1.bf16.msra.mxu0 0
      %2589 = vmatprep.subr.bf16.mxu0 0
      %2590 = vmatpush1.bf16.msra.mxu0 0
      %2591 = vmatprep.subr.bf16.mxu0 0
      %2592 = vmatpush1.bf16.msra.mxu0 0
      %2593 = vmatprep.subr.bf16.mxu0 0
      %2594 = vmatpush1.bf16.msra.mxu0 0
      %2595 = vmatprep.subr.bf16.mxu0 0
      %2596 = vmatpush1.bf16.msra.mxu0 0
      %2597 = vmatprep.subr.bf16.mxu0 0
      %2598 = vmatpush1.bf16.msra.mxu0 0
      %2599 = vmatprep.subr.bf16.mxu0 0
      %2600 = vmatpush1.bf16.msra.mxu0 0
      %2601 = vmatprep.mubr.bf16.mxu0 0
      %2602 = vmatmul.mubr.bf16.gmra.mrb[0].mxu0 %v2552
      %v2603 = vpop.f32.mrb[0].mxu0
      %v2604 = vadd.f32 0.0, %v2603
      %v2605 = vpop.f32.mrb[0].mxu0
      %v2606 = vpop.f32.mrb[0].mxu0
      %v2607 = vadd.f32 0.0, %v2606
      %v2608 = vpop.f32.mrb[0].mxu0
      %2609 = vmatprep.mubr.bf16.mxu0 0
      %2610 = vmatmul.mubr.bf16.gmra.mrb[0].mxu0 %v2555
      %v2611 = vpop.f32.mrb[0].mxu0
      %v2612 = vadd.f32 0.0, %v2611
      %v2613 = vpop.f32.mrb[0].mxu0
      %v2614 = vpop.f32.mrb[0].mxu0
      %v2615 = vadd.f32 0.0, %v2614
      %v2616 = vpop.f32.mrb[0].mxu0
      %2617 = vmatprep.mubr.bf16.mxu0 0
      %2618 = vmatmul.mubr.bf16.gmra.mrb[0].mxu0 %v2558
      %v2619 = vpop.f32.mrb[0].mxu0
      %v2620 = vadd.f32 0.0, %v2619
      %v2621 = vpop.f32.mrb[0].mxu0
      %v2622 = vpop.f32.mrb[0].mxu0
      %v2623 = vadd.f32 0.0, %v2622
      %v2624 = vpop.f32.mrb[0].mxu0
      %2625 = vmatprep.mubr.bf16.mxu0 0
      %2626 = vmatmul.mubr.bf16.gmra.mrb[0].mxu0 %v2561
      %v2627 = vpop.f32.mrb[0].mxu0
      %v2628 = vadd.f32 0.0, %v2627
      %v2629 = vpop.f32.mrb[0].mxu0
      %v2630 = vpop.f32.mrb[0].mxu0
      %v2631 = vadd.f32 0.0, %v2630
      %v2632 = vpop.f32.mrb[0].mxu0
      %2633 = vmatprep.mubr.bf16.mxu0 0
      %2634 = vmatmul.mubr.bf16.gmra.mrb[0].mxu0 %v2564
      %v2635 = vpop.f32.mrb[0].mxu0
      %v2636 = vadd.f32 0.0, %v2635
      %v2637 = vpop.f32.mrb[0].mxu0
      %v2638 = vpop.f32.mrb[0].mxu0
      %v2639 = vadd.f32 0.0, %v2638
      %v2640 = vpop.f32.mrb[0].mxu0
      %2641 = vdwg.mxu0
      %v2642 = vadd.f32 %v2524, %v2604
      %v2643 = vadd.f32 %v2525, %v2607
      %v2644 = vadd.f32 %v2526, %v2612
      %v2645 = vadd.f32 %v2527, %v2615
      %v2646 = vadd.f32 %v2528, %v2620
      %v2647 = vadd.f32 %v2529, %v2623
      %v2648 = vadd.f32 %v2530, %v2628
      %v2649 = vadd.f32 %v2531, %v2631
      %v2650 = vadd.f32 %v2532, %v2636
      %v2651 = vadd.f32 %v2533, %v2639
      %v2652 = vld [vmem:[#allocation3 + $0x11] sm:$0xff]
      %v2653 = vld [vmem:[#allocation3 + $0x19] sm:$0xff]
      %v2654 = vld [vmem:[#allocation3 + $0x21] sm:$0xff]
      %v2655 = vld [vmem:[#allocation3 + $0x29] sm:$0xff]
      %v2656 = vld [vmem:[#allocation3 + $0x31] sm:$0xff]
      %v2657 = vld [vmem:[#allocation3 + $0x39] sm:$0xff]
      %v2658 = vld [vmem:[#allocation3 + $0x41] sm:$0xff]
      %v2659 = vld [vmem:[#allocation3 + $0x49] sm:$0xff]
      %v2660 = vld [vmem:[#allocation3 + $0x51] sm:$0xff]
      %v2661 = vld [vmem:[#allocation3 + $0x59] sm:$0xff]
      %v2662 = vpack.c.bf16 %v2653, %v2652
      %v2663 = vpack.c.bf16 %v2655, %v2654
      %v2664 = vpack.c.bf16 %v2657, %v2656
      %v2665 = vpack.c.bf16 %v2659, %v2658
      %v2666 = vpack.c.bf16 %v2661, %v2660
      %s2667 = scalar_lea.vmem %s3, 24
      %v2668 = vld [vmem:[%s2667] sm:$0xf]
      %v2670 = vsel %vm1996, %v2662, 0
      %v2673 = vsel %vm1996, %v2663, 0
      %v2676 = vsel %vm1996, %v2664, 0
      %v2679 = vsel %vm1996, %v2665, 0
      %v2682 = vsel %vm1996, %v2666, 0
      %v2685 = vsel %vm2012, %v2668, 0
      %2687 = vmatprep.subr.bf16.mxu0 0
      %2688 = vmatpush1.bf16.msra.mxu0 %v2685
      %2689 = vmatprep.subr.bf16.mxu0 0
      %2690 = vmatpush1.bf16.msra.mxu0 0
      %2691 = vmatprep.subr.bf16.mxu0 0
      %2692 = vmatpush1.bf16.msra.mxu0 0
      %2693 = vmatprep.subr.bf16.mxu0 0
      %2694 = vmatpush1.bf16.msra.mxu0 0
      %2695 = vmatprep.subr.bf16.mxu0 0
      %2696 = vmatpush1.bf16.msra.mxu0 0
      %2697 = vmatprep.subr.bf16.mxu0 0
      %2698 = vmatpush1.bf16.msra.mxu0 0
      %2699 = vmatprep.subr.bf16.mxu0 0
      %2700 = vmatpush1.bf16.msra.mxu0 0
      %2701 = vmatprep.subr.bf16.mxu0 0
      %2702 = vmatpush1.bf16.msra.mxu0 0
      %2703 = vmatprep.subr.bf16.mxu0 0
      %2704 = vmatpush1.bf16.msra.mxu0 0
      %2705 = vmatprep.subr.bf16.mxu0 0
      %2706 = vmatpush1.bf16.msra.mxu0 0
      %2707 = vmatprep.subr.bf16.mxu0 0
      %2708 = vmatpush1.bf16.msra.mxu0 0
      %2709 = vmatprep.subr.bf16.mxu0 0
      %2710 = vmatpush1.bf16.msra.mxu0 0
      %2711 = vmatprep.subr.bf16.mxu0 0
      %2712 = vmatpush1.bf16.msra.mxu0 0
      %2713 = vmatprep.subr.bf16.mxu0 0
      %2714 = vmatpush1.bf16.msra.mxu0 0
      %2715 = vmatprep.subr.bf16.mxu0 0
      %2716 = vmatpush1.bf16.msra.mxu0 0
      %2717 = vmatprep.subr.bf16.mxu0 0
      %2718 = vmatpush1.bf16.msra.mxu0 0
      %2719 = vmatprep.mubr.bf16.mxu0 0
      %2720 = vmatmul.mubr.bf16.gmra.mrb[0].mxu0 %v2670
      %v2721 = vpop.f32.mrb[0].mxu0
      %v2722 = vadd.f32 0.0, %v2721
      %v2723 = vpop.f32.mrb[0].mxu0
      %v2724 = vpop.f32.mrb[0].mxu0
      %v2725 = vadd.f32 0.0, %v2724
      %v2726 = vpop.f32.mrb[0].mxu0
      %2727 = vmatprep.mubr.bf16.mxu0 0
      %2728 = vmatmul.mubr.bf16.gmra.mrb[0].mxu0 %v2673
      %v2729 = vpop.f32.mrb[0].mxu0
      %v2730 = vadd.f32 0.0, %v2729
      %v2731 = vpop.f32.mrb[0].mxu0
      %v2732 = vpop.f32.mrb[0].mxu0
      %v2733 = vadd.f32 0.0, %v2732
      %v2734 = vpop.f32.mrb[0].mxu0
      %2735 = vmatprep.mubr.bf16.mxu0 0
      %2736 = vmatmul.mubr.bf16.gmra.mrb[0].mxu0 %v2676
      %v2737 = vpop.f32.mrb[0].mxu0
      %v2738 = vadd.f32 0.0, %v2737
      %v2739 = vpop.f32.mrb[0].mxu0
      %v2740 = vpop.f32.mrb[0].mxu0
      %v2741 = vadd.f32 0.0, %v2740
      %v2742 = vpop.f32.mrb[0].mxu0
      %2743 = vmatprep.mubr.bf16.mxu0 0
      %2744 = vmatmul.mubr.bf16.gmra.mrb[0].mxu0 %v2679
      %v2745 = vpop.f32.mrb[0].mxu0
      %v2746 = vadd.f32 0.0, %v2745
      %v2747 = vpop.f32.mrb[0].mxu0
      %v2748 = vpop.f32.mrb[0].mxu0
      %v2749 = vadd.f32 0.0, %v2748
      %v2750 = vpop.f32.mrb[0].mxu0
      %2751 = vmatprep.mubr.bf16.mxu0 0
      %2752 = vmatmul.mubr.bf16.gmra.mrb[0].mxu0 %v2682
      %v2753 = vpop.f32.mrb[0].mxu0
      %v2754 = vadd.f32 0.0, %v2753
      %v2755 = vpop.f32.mrb[0].mxu0
      %v2756 = vpop.f32.mrb[0].mxu0
      %v2757 = vadd.f32 0.0, %v2756
      %v2758 = vpop.f32.mrb[0].mxu0
      %2759 = vdwg.mxu0
      %v2760 = vadd.f32 %v2642, %v2722
      %v2761 = vadd.f32 %v2643, %v2725
      %v2762 = vadd.f32 %v2644, %v2730
      %v2763 = vadd.f32 %v2645, %v2733
      %v2764 = vadd.f32 %v2646, %v2738
      %v2765 = vadd.f32 %v2647, %v2741
      %v2766 = vadd.f32 %v2648, %v2746
      %v2767 = vadd.f32 %v2649, %v2749
      %v2768 = vadd.f32 %v2650, %v2754
      %v2769 = vadd.f32 %v2651, %v2757
      %v2770 = vld [vmem:[#allocation3 + $0x12] sm:$0xff]
      %v2771 = vld [vmem:[#allocation3 + $0x1a] sm:$0xff]
      %v2772 = vld [vmem:[#allocation3 + $0x22] sm:$0xff]
      %v2773 = vld [vmem:[#allocation3 + $0x2a] sm:$0xff]
      %v2774 = vld [vmem:[#allocation3 + $0x32] sm:$0xff]
      %v2775 = vld [vmem:[#allocation3 + $0x3a] sm:$0xff]
      %v2776 = vld [vmem:[#allocation3 + $0x42] sm:$0xff]
      %v2777 = vld [vmem:[#allocation3 + $0x4a] sm:$0xff]
      %v2778 = vld [vmem:[#allocation3 + $0x52] sm:$0xff]
      %v2779 = vld [vmem:[#allocation3 + $0x5a] sm:$0xff]
      %v2780 = vpack.c.bf16 %v2771, %v2770
      %v2781 = vpack.c.bf16 %v2773, %v2772
      %v2782 = vpack.c.bf16 %v2775, %v2774
      %v2783 = vpack.c.bf16 %v2777, %v2776
      %v2784 = vpack.c.bf16 %v2779, %v2778
      %s2785 = scalar_lea.vmem %s3, 28
      %v2786 = vld [vmem:[%s2785] sm:$0xf]
      %v2788 = vsel %vm1996, %v2780, 0
      %v2791 = vsel %vm1996, %v2781, 0
      %v2794 = vsel %vm1996, %v2782, 0
      %v2797 = vsel %vm1996, %v2783, 0
      %v2800 = vsel %vm1996, %v2784, 0
      %v2803 = vsel %vm2012, %v2786, 0
      %2805 = vmatprep.subr.bf16.mxu0 0
      %2806 = vmatpush1.bf16.msra.mxu0 %v2803
      %2807 = vmatprep.subr.bf16.mxu0 0
      %2808 = vmatpush1.bf16.msra.mxu0 0
      %2809 = vmatprep.subr.bf16.mxu0 0
      %2810 = vmatpush1.bf16.msra.mxu0 0
      %2811 = vmatprep.subr.bf16.mxu0 0
      %2812 = vmatpush1.bf16.msra.mxu0 0
      %2813 = vmatprep.subr.bf16.mxu0 0
      %2814 = vmatpush1.bf16.msra.mxu0 0
      %2815 = vmatprep.subr.bf16.mxu0 0
      %2816 = vmatpush1.bf16.msra.mxu0 0
      %2817 = vmatprep.subr.bf16.mxu0 0
      %2818 = vmatpush1.bf16.msra.mxu0 0
      %2819 = vmatprep.subr.bf16.mxu0 0
      %2820 = vmatpush1.bf16.msra.mxu0 0
      %2821 = vmatprep.subr.bf16.mxu0 0
      %2822 = vmatpush1.bf16.msra.mxu0 0
      %2823 = vmatprep.subr.bf16.mxu0 0
      %2824 = vmatpush1.bf16.msra.mxu0 0
      %2825 = vmatprep.subr.bf16.mxu0 0
      %2826 = vmatpush1.bf16.msra.mxu0 0
      %2827 = vmatprep.subr.bf16.mxu0 0
      %2828 = vmatpush1.bf16.msra.mxu0 0
      %2829 = vmatprep.subr.bf16.mxu0 0
      %2830 = vmatpush1.bf16.msra.mxu0 0
      %2831 = vmatprep.subr.bf16.mxu0 0
      %2832 = vmatpush1.bf16.msra.mxu0 0
      %2833 = vmatprep.subr.bf16.mxu0 0
      %2834 = vmatpush1.bf16.msra.mxu0 0
      %2835 = vmatprep.subr.bf16.mxu0 0
      %2836 = vmatpush1.bf16.msra.mxu0 0
      %2837 = vmatprep.mubr.bf16.mxu0 0
      %2838 = vmatmul.mubr.bf16.gmra.mrb[0].mxu0 %v2788
      %v2839 = vpop.f32.mrb[0].mxu0
      %v2840 = vadd.f32 0.0, %v2839
      %v2841 = vpop.f32.mrb[0].mxu0
      %v2842 = vpop.f32.mrb[0].mxu0
      %v2843 = vadd.f32 0.0, %v2842
      %v2844 = vpop.f32.mrb[0].mxu0
      %2845 = vmatprep.mubr.bf16.mxu0 0
      %2846 = vmatmul.mubr.bf16.gmra.mrb[0].mxu0 %v2791
      %v2847 = vpop.f32.mrb[0].mxu0
      %v2848 = vadd.f32 0.0, %v2847
      %v2849 = vpop.f32.mrb[0].mxu0
      %v2850 = vpop.f32.mrb[0].mxu0
      %v2851 = vadd.f32 0.0, %v2850
      %v2852 = vpop.f32.mrb[0].mxu0
      %2853 = vmatprep.mubr.bf16.mxu0 0
      %2854 = vmatmul.mubr.bf16.gmra.mrb[0].mxu0 %v2794
      %v2855 = vpop.f32.mrb[0].mxu0
      %v2856 = vadd.f32 0.0, %v2855
      %v2857 = vpop.f32.mrb[0].mxu0
      %v2858 = vpop.f32.mrb[0].mxu0
      %v2859 = vadd.f32 0.0, %v2858
      %v2860 = vpop.f32.mrb[0].mxu0
      %2861 = vmatprep.mubr.bf16.mxu0 0
      %2862 = vmatmul.mubr.bf16.gmra.mrb[0].mxu0 %v2797
      %v2863 = vpop.f32.mrb[0].mxu0
      %v2864 = vadd.f32 0.0, %v2863
      %v2865 = vpop.f32.mrb[0].mxu0
      %v2866 = vpop.f32.mrb[0].mxu0
      %v2867 = vadd.f32 0.0, %v2866
      %v2868 = vpop.f32.mrb[0].mxu0
      %2869 = vmatprep.mubr.bf16.mxu0 0
      %2870 = vmatmul.mubr.bf16.gmra.mrb[0].mxu0 %v2800
      %v2871 = vpop.f32.mrb[0].mxu0
      %v2872 = vadd.f32 0.0, %v2871
      %v2873 = vpop.f32.mrb[0].mxu0
      %v2874 = vpop.f32.mrb[0].mxu0
      %v2875 = vadd.f32 0.0, %v2874
      %v2876 = vpop.f32.mrb[0].mxu0
      %2877 = vdwg.mxu0
      %v2878 = vadd.f32 %v2760, %v2840
      %v2879 = vadd.f32 %v2761, %v2843
      %v2880 = vadd.f32 %v2762, %v2848
      %v2881 = vadd.f32 %v2763, %v2851
      %v2882 = vadd.f32 %v2764, %v2856
      %v2883 = vadd.f32 %v2765, %v2859
      %v2884 = vadd.f32 %v2766, %v2864
      %v2885 = vadd.f32 %v2767, %v2867
      %v2886 = vadd.f32 %v2768, %v2872
      %v2887 = vadd.f32 %v2769, %v2875
      %v2888 = vld [vmem:[#allocation3 + $0x13] sm:$0xff]
      %v2889 = vld [vmem:[#allocation3 + $0x1b] sm:$0xff]
      %v2890 = vld [vmem:[#allocation3 + $0x23] sm:$0xff]
      %v2891 = vld [vmem:[#allocation3 + $0x2b] sm:$0xff]
      %v2892 = vld [vmem:[#allocation3 + $0x33] sm:$0xff]
      %v2893 = vld [vmem:[#allocation3 + $0x3b] sm:$0xff]
      %v2894 = vld [vmem:[#allocation3 + $0x43] sm:$0xff]
      %v2895 = vld [vmem:[#allocation3 + $0x4b] sm:$0xff]
      %v2896 = vld [vmem:[#allocation3 + $0x53] sm:$0xff]
      %v2897 = vld [vmem:[#allocation3 + $0x5b] sm:$0xff]
      %v2898 = vpack.c.bf16 %v2889, %v2888
      %v2899 = vpack.c.bf16 %v2891, %v2890
      %v2900 = vpack.c.bf16 %v2893, %v2892
      %v2901 = vpack.c.bf16 %v2895, %v2894
      %v2902 = vpack.c.bf16 %v2897, %v2896
      %s2903 = scalar_lea.vmem %s3, 32
      %v2904 = vld [vmem:[%s2903] sm:$0xf]
      %v2906 = vsel %vm1996, %v2898, 0
      %v2909 = vsel %vm1996, %v2899, 0
      %v2912 = vsel %vm1996, %v2900, 0
      %v2915 = vsel %vm1996, %v2901, 0
      %v2918 = vsel %vm1996, %v2902, 0
      %v2921 = vsel %vm2012, %v2904, 0
      %2923 = vmatprep.subr.bf16.mxu0 0
      %2924 = vmatpush1.bf16.msra.mxu0 %v2921
      %2925 = vmatprep.subr.bf16.mxu0 0
      %2926 = vmatpush1.bf16.msra.mxu0 0
      %2927 = vmatprep.subr.bf16.mxu0 0
      %2928 = vmatpush1.bf16.msra.mxu0 0
      %2929 = vmatprep.subr.bf16.mxu0 0
      %2930 = vmatpush1.bf16.msra.mxu0 0
      %2931 = vmatprep.subr.bf16.mxu0 0
      %2932 = vmatpush1.bf16.msra.mxu0 0
      %2933 = vmatprep.subr.bf16.mxu0 0
      %2934 = vmatpush1.bf16.msra.mxu0 0
      %2935 = vmatprep.subr.bf16.mxu0 0
      %2936 = vmatpush1.bf16.msra.mxu0 0
      %2937 = vmatprep.subr.bf16.mxu0 0
      %2938 = vmatpush1.bf16.msra.mxu0 0
      %2939 = vmatprep.subr.bf16.mxu0 0
      %2940 = vmatpush1.bf16.msra.mxu0 0
      %2941 = vmatprep.subr.bf16.mxu0 0
      %2942 = vmatpush1.bf16.msra.mxu0 0
      %2943 = vmatprep.subr.bf16.mxu0 0
      %2944 = vmatpush1.bf16.msra.mxu0 0
      %2945 = vmatprep.subr.bf16.mxu0 0
      %2946 = vmatpush1.bf16.msra.mxu0 0
      %2947 = vmatprep.subr.bf16.mxu0 0
      %2948 = vmatpush1.bf16.msra.mxu0 0
      %2949 = vmatprep.subr.bf16.mxu0 0
      %2950 = vmatpush1.bf16.msra.mxu0 0
      %2951 = vmatprep.subr.bf16.mxu0 0
      %2952 = vmatpush1.bf16.msra.mxu0 0
      %2953 = vmatprep.subr.bf16.mxu0 0
      %2954 = vmatpush1.bf16.msra.mxu0 0
      %2955 = vmatprep.mubr.bf16.mxu0 0
      %2956 = vmatmul.mubr.bf16.gmra.mrb[0].mxu0 %v2906
      %v2957 = vpop.f32.mrb[0].mxu0
      %v2958 = vadd.f32 0.0, %v2957
      %v2959 = vpop.f32.mrb[0].mxu0
      %v2960 = vpop.f32.mrb[0].mxu0
      %v2961 = vadd.f32 0.0, %v2960
      %v2962 = vpop.f32.mrb[0].mxu0
      %2963 = vmatprep.mubr.bf16.mxu0 0
      %2964 = vmatmul.mubr.bf16.gmra.mrb[0].mxu0 %v2909
      %v2965 = vpop.f32.mrb[0].mxu0
      %v2966 = vadd.f32 0.0, %v2965
      %v2967 = vpop.f32.mrb[0].mxu0
      %v2968 = vpop.f32.mrb[0].mxu0
      %v2969 = vadd.f32 0.0, %v2968
      %v2970 = vpop.f32.mrb[0].mxu0
      %2971 = vmatprep.mubr.bf16.mxu0 0
      %2972 = vmatmul.mubr.bf16.gmra.mrb[0].mxu0 %v2912
      %v2973 = vpop.f32.mrb[0].mxu0
      %v2974 = vadd.f32 0.0, %v2973
      %v2975 = vpop.f32.mrb[0].mxu0
      %v2976 = vpop.f32.mrb[0].mxu0
      %v2977 = vadd.f32 0.0, %v2976
      %v2978 = vpop.f32.mrb[0].mxu0
      %2979 = vmatprep.mubr.bf16.mxu0 0
      %2980 = vmatmul.mubr.bf16.gmra.mrb[0].mxu0 %v2915
      %v2981 = vpop.f32.mrb[0].mxu0
      %v2982 = vadd.f32 0.0, %v2981
      %v2983 = vpop.f32.mrb[0].mxu0
      %v2984 = vpop.f32.mrb[0].mxu0
      %v2985 = vadd.f32 0.0, %v2984
      %v2986 = vpop.f32.mrb[0].mxu0
      %2987 = vmatprep.mubr.bf16.mxu0 0
      %2988 = vmatmul.mubr.bf16.gmra.mrb[0].mxu0 %v2918
      %v2989 = vpop.f32.mrb[0].mxu0
      %v2990 = vadd.f32 0.0, %v2989
      %v2991 = vpop.f32.mrb[0].mxu0
      %v2992 = vpop.f32.mrb[0].mxu0
      %v2993 = vadd.f32 0.0, %v2992
      %v2994 = vpop.f32.mrb[0].mxu0
      %2995 = vdwg.mxu0
      %v2996 = vadd.f32 %v2878, %v2958
      %v2997 = vadd.f32 %v2879, %v2961
      %v2998 = vadd.f32 %v2880, %v2966
      %v2999 = vadd.f32 %v2881, %v2969
      %v3000 = vadd.f32 %v2882, %v2974
      %v3001 = vadd.f32 %v2883, %v2977
      %v3002 = vadd.f32 %v2884, %v2982
      %v3003 = vadd.f32 %v2885, %v2985
      %v3004 = vadd.f32 %v2886, %v2990
      %v3005 = vadd.f32 %v2887, %v2993
      %v3006 = vld [vmem:[#allocation3 + $0x14] sm:$0xff]
      %v3007 = vld [vmem:[#allocation3 + $0x1c] sm:$0xff]
      %v3008 = vld [vmem:[#allocation3 + $0x24] sm:$0xff]
      %v3009 = vld [vmem:[#allocation3 + $0x2c] sm:$0xff]
      %v3010 = vld [vmem:[#allocation3 + $0x34] sm:$0xff]
      %v3011 = vld [vmem:[#allocation3 + $0x3c] sm:$0xff]
      %v3012 = vld [vmem:[#allocation3 + $0x44] sm:$0xff]
      %v3013 = vld [vmem:[#allocation3 + $0x4c] sm:$0xff]
      %v3014 = vld [vmem:[#allocation3 + $0x54] sm:$0xff]
      %v3015 = vld [vmem:[#allocation3 + $0x5c] sm:$0xff]
      %v3016 = vpack.c.bf16 %v3007, %v3006
      %v3017 = vpack.c.bf16 %v3009, %v3008
      %v3018 = vpack.c.bf16 %v3011, %v3010
      %v3019 = vpack.c.bf16 %v3013, %v3012
      %v3020 = vpack.c.bf16 %v3015, %v3014
      %s3021 = scalar_lea.vmem %s3, 36
      %v3022 = vld [vmem:[%s3021] sm:$0xf]
      %v3024 = vsel %vm1996, %v3016, 0
      %v3027 = vsel %vm1996, %v3017, 0
      %v3030 = vsel %vm1996, %v3018, 0
      %v3033 = vsel %vm1996, %v3019, 0
      %v3036 = vsel %vm1996, %v3020, 0
      %v3039 = vsel %vm2012, %v3022, 0
      %3041 = vmatprep.subr.bf16.mxu0 0
      %3042 = vmatpush1.bf16.msra.mxu0 %v3039
      %3043 = vmatprep.subr.bf16.mxu0 0
      %3044 = vmatpush1.bf16.msra.mxu0 0
      %3045 = vmatprep.subr.bf16.mxu0 0
      %3046 = vmatpush1.bf16.msra.mxu0 0
      %3047 = vmatprep.subr.bf16.mxu0 0
      %3048 = vmatpush1.bf16.msra.mxu0 0
      %3049 = vmatprep.subr.bf16.mxu0 0
      %3050 = vmatpush1.bf16.msra.mxu0 0
      %3051 = vmatprep.subr.bf16.mxu0 0
      %3052 = vmatpush1.bf16.msra.mxu0 0
      %3053 = vmatprep.subr.bf16.mxu0 0
      %3054 = vmatpush1.bf16.msra.mxu0 0
      %3055 = vmatprep.subr.bf16.mxu0 0
      %3056 = vmatpush1.bf16.msra.mxu0 0
      %3057 = vmatprep.subr.bf16.mxu0 0
      %3058 = vmatpush1.bf16.msra.mxu0 0
      %3059 = vmatprep.subr.bf16.mxu0 0
      %3060 = vmatpush1.bf16.msra.mxu0 0
      %3061 = vmatprep.subr.bf16.mxu0 0
      %3062 = vmatpush1.bf16.msra.mxu0 0
      %3063 = vmatprep.subr.bf16.mxu0 0
      %3064 = vmatpush1.bf16.msra.mxu0 0
      %3065 = vmatprep.subr.bf16.mxu0 0
      %3066 = vmatpush1.bf16.msra.mxu0 0
      %3067 = vmatprep.subr.bf16.mxu0 0
      %3068 = vmatpush1.bf16.msra.mxu0 0
      %3069 = vmatprep.subr.bf16.mxu0 0
      %3070 = vmatpush1.bf16.msra.mxu0 0
      %3071 = vmatprep.subr.bf16.mxu0 0
      %3072 = vmatpush1.bf16.msra.mxu0 0
      %3073 = vmatprep.mubr.bf16.mxu0 0
      %3074 = vmatmul.mubr.bf16.gmra.mrb[0].mxu0 %v3024
      %v3075 = vpop.f32.mrb[0].mxu0
      %v3076 = vadd.f32 0.0, %v3075
      %v3077 = vpop.f32.mrb[0].mxu0
      %v3078 = vpop.f32.mrb[0].mxu0
      %v3079 = vadd.f32 0.0, %v3078
      %v3080 = vpop.f32.mrb[0].mxu0
      %3081 = vmatprep.mubr.bf16.mxu0 0
      %3082 = vmatmul.mubr.bf16.gmra.mrb[0].mxu0 %v3027
      %v3083 = vpop.f32.mrb[0].mxu0
      %v3084 = vadd.f32 0.0, %v3083
      %v3085 = vpop.f32.mrb[0].mxu0
      %v3086 = vpop.f32.mrb[0].mxu0
      %v3087 = vadd.f32 0.0, %v3086
      %v3088 = vpop.f32.mrb[0].mxu0
      %3089 = vmatprep.mubr.bf16.mxu0 0
      %3090 = vmatmul.mubr.bf16.gmra.mrb[0].mxu0 %v3030
      %v3091 = vpop.f32.mrb[0].mxu0
      %v3092 = vadd.f32 0.0, %v3091
      %v3093 = vpop.f32.mrb[0].mxu0
      %v3094 = vpop.f32.mrb[0].mxu0
      %v3095 = vadd.f32 0.0, %v3094
      %v3096 = vpop.f32.mrb[0].mxu0
      %3097 = vmatprep.mubr.bf16.mxu0 0
      %3098 = vmatmul.mubr.bf16.gmra.mrb[0].mxu0 %v3033
      %v3099 = vpop.f32.mrb[0].mxu0
      %v3100 = vadd.f32 0.0, %v3099
      %v3101 = vpop.f32.mrb[0].mxu0
      %v3102 = vpop.f32.mrb[0].mxu0
      %v3103 = vadd.f32 0.0, %v3102
      %v3104 = vpop.f32.mrb[0].mxu0
      %3105 = vmatprep.mubr.bf16.mxu0 0
      %3106 = vmatmul.mubr.bf16.gmra.mrb[0].mxu0 %v3036
      %v3107 = vpop.f32.mrb[0].mxu0
      %v3108 = vadd.f32 0.0, %v3107
      %v3109 = vpop.f32.mrb[0].mxu0
      %v3110 = vpop.f32.mrb[0].mxu0
      %v3111 = vadd.f32 0.0, %v3110
      %v3112 = vpop.f32.mrb[0].mxu0
      %3113 = vdwg.mxu0
      %v3114 = vadd.f32 %v2996, %v3076
      %v3115 = vadd.f32 %v2997, %v3079
      %v3116 = vadd.f32 %v2998, %v3084
      %v3117 = vadd.f32 %v2999, %v3087
      %v3118 = vadd.f32 %v3000, %v3092
      %v3119 = vadd.f32 %v3001, %v3095
      %v3120 = vadd.f32 %v3002, %v3100
      %v3121 = vadd.f32 %v3003, %v3103
      %v3122 = vadd.f32 %v3004, %v3108
      %v3123 = vadd.f32 %v3005, %v3111
      %v3124 = vld [vmem:[#allocation3 + $0x20] sm:$0xff]
      %v3125 = vld [vmem:[#allocation3 + $0x28] sm:$0xff]
      %v3126 = vld [vmem:[#allocation3 + $0x30] sm:$0xff]
      %v3127 = vld [vmem:[#allocation3 + $0x38] sm:$0xff]
      %v3128 = vld [vmem:[#allocation3 + $0x40] sm:$0xff]
      %v3129 = vld [vmem:[#allocation3 + $0x48] sm:$0xff]
      %v3130 = vld [vmem:[#allocation3 + $0x50] sm:$0xff]
      %v3131 = vld [vmem:[#allocation3 + $0x58] sm:$0xff]
      %v3132 = vld [vmem:[#allocation3 + $0x60] sm:$0xff]
      %v3133 = vld [vmem:[#allocation3 + $0x68] sm:$0xff]
      %v3134 = vpack.c.bf16 %v3125, %v3124
      %v3135 = vpack.c.bf16 %v3127, %v3126
      %v3136 = vpack.c.bf16 %v3129, %v3128
      %v3137 = vpack.c.bf16 %v3131, %v3130
      %v3138 = vpack.c.bf16 %v3133, %v3132
      %s3139 = scalar_lea.vmem %s3, 40
      %v3140 = vld [vmem:[%s3139] sm:$0xf]
      %v3142 = vsel %vm1996, %v3134, 0
      %v3145 = vsel %vm1996, %v3135, 0
      %v3148 = vsel %vm1996, %v3136, 0
      %v3151 = vsel %vm1996, %v3137, 0
      %v3154 = vsel %vm1996, %v3138, 0
      %v3157 = vsel %vm2012, %v3140, 0
      %3159 = vmatprep.subr.bf16.mxu0 0
      %3160 = vmatpush1.bf16.msra.mxu0 %v3157
      %3161 = vmatprep.subr.bf16.mxu0 0
      %3162 = vmatpush1.bf16.msra.mxu0 0
      %3163 = vmatprep.subr.bf16.mxu0 0
      %3164 = vmatpush1.bf16.msra.mxu0 0
      %3165 = vmatprep.subr.bf16.mxu0 0
      %3166 = vmatpush1.bf16.msra.mxu0 0
      %3167 = vmatprep.subr.bf16.mxu0 0
      %3168 = vmatpush1.bf16.msra.mxu0 0
      %3169 = vmatprep.subr.bf16.mxu0 0
      %3170 = vmatpush1.bf16.msra.mxu0 0
      %3171 = vmatprep.subr.bf16.mxu0 0
      %3172 = vmatpush1.bf16.msra.mxu0 0
      %3173 = vmatprep.subr.bf16.mxu0 0
      %3174 = vmatpush1.bf16.msra.mxu0 0
      %3175 = vmatprep.subr.bf16.mxu0 0
      %3176 = vmatpush1.bf16.msra.mxu0 0
      %3177 = vmatprep.subr.bf16.mxu0 0
      %3178 = vmatpush1.bf16.msra.mxu0 0
      %3179 = vmatprep.subr.bf16.mxu0 0
      %3180 = vmatpush1.bf16.msra.mxu0 0
      %3181 = vmatprep.subr.bf16.mxu0 0
      %3182 = vmatpush1.bf16.msra.mxu0 0
      %3183 = vmatprep.subr.bf16.mxu0 0
      %3184 = vmatpush1.bf16.msra.mxu0 0
      %3185 = vmatprep.subr.bf16.mxu0 0
      %3186 = vmatpush1.bf16.msra.mxu0 0
      %3187 = vmatprep.subr.bf16.mxu0 0
      %3188 = vmatpush1.bf16.msra.mxu0 0
      %3189 = vmatprep.subr.bf16.mxu0 0
      %3190 = vmatpush1.bf16.msra.mxu0 0
      %3191 = vmatprep.mubr.bf16.mxu0 0
      %3192 = vmatmul.mubr.bf16.gmra.mrb[0].mxu0 %v3142
      %v3193 = vpop.f32.mrb[0].mxu0
      %v3194 = vadd.f32 0.0, %v3193
      %v3195 = vpop.f32.mrb[0].mxu0
      %v3196 = vpop.f32.mrb[0].mxu0
      %v3197 = vadd.f32 0.0, %v3196
      %v3198 = vpop.f32.mrb[0].mxu0
      %3199 = vmatprep.mubr.bf16.mxu0 0
      %3200 = vmatmul.mubr.bf16.gmra.mrb[0].mxu0 %v3145
      %v3201 = vpop.f32.mrb[0].mxu0
      %v3202 = vadd.f32 0.0, %v3201
      %v3203 = vpop.f32.mrb[0].mxu0
      %v3204 = vpop.f32.mrb[0].mxu0
      %v3205 = vadd.f32 0.0, %v3204
      %v3206 = vpop.f32.mrb[0].mxu0
      %3207 = vmatprep.mubr.bf16.mxu0 0
      %3208 = vmatmul.mubr.bf16.gmra.mrb[0].mxu0 %v3148
      %v3209 = vpop.f32.mrb[0].mxu0
      %v3210 = vadd.f32 0.0, %v3209
      %v3211 = vpop.f32.mrb[0].mxu0
      %v3212 = vpop.f32.mrb[0].mxu0
      %v3213 = vadd.f32 0.0, %v3212
      %v3214 = vpop.f32.mrb[0].mxu0
      %3215 = vmatprep.mubr.bf16.mxu0 0
      %3216 = vmatmul.mubr.bf16.gmra.mrb[0].mxu0 %v3151
      %v3217 = vpop.f32.mrb[0].mxu0
      %v3218 = vadd.f32 0.0, %v3217
      %v3219 = vpop.f32.mrb[0].mxu0
      %v3220 = vpop.f32.mrb[0].mxu0
      %v3221 = vadd.f32 0.0, %v3220
      %v3222 = vpop.f32.mrb[0].mxu0
      %3223 = vmatprep.mubr.bf16.mxu0 0
      %3224 = vmatmul.mubr.bf16.gmra.mrb[0].mxu0 %v3154
      %v3225 = vpop.f32.mrb[0].mxu0
      %v3226 = vadd.f32 0.0, %v3225
      %v3227 = vpop.f32.mrb[0].mxu0
      %v3228 = vpop.f32.mrb[0].mxu0
      %v3229 = vadd.f32 0.0, %v3228
      %v3230 = vpop.f32.mrb[0].mxu0
      %3231 = vdwg.mxu0
      %v3232 = vadd.f32 %v3114, %v3194
      %v3233 = vadd.f32 %v3115, %v3197
      %v3234 = vadd.f32 %v3116, %v3202
      %v3235 = vadd.f32 %v3117, %v3205
      %v3236 = vadd.f32 %v3118, %v3210
      %v3237 = vadd.f32 %v3119, %v3213
      %v3238 = vadd.f32 %v3120, %v3218
      %v3239 = vadd.f32 %v3121, %v3221
      %v3240 = vadd.f32 %v3122, %v3226
      %v3241 = vadd.f32 %v3123, %v3229
      %v3242 = vld [vmem:[#allocation3 + $0x21] sm:$0xff]
      %v3243 = vld [vmem:[#allocation3 + $0x29] sm:$0xff]
      %v3244 = vld [vmem:[#allocation3 + $0x31] sm:$0xff]
      %v3245 = vld [vmem:[#allocation3 + $0x39] sm:$0xff]
      %v3246 = vld [vmem:[#allocation3 + $0x41] sm:$0xff]
      %v3247 = vld [vmem:[#allocation3 + $0x49] sm:$0xff]
      %v3248 = vld [vmem:[#allocation3 + $0x51] sm:$0xff]
      %v3249 = vld [vmem:[#allocation3 + $0x59] sm:$0xff]
      %v3250 = vld [vmem:[#allocation3 + $0x61] sm:$0xff]
      %v3251 = vld [vmem:[#allocation3 + $0x69] sm:$0xff]
      %v3252 = vpack.c.bf16 %v3243, %v3242
      %v3253 = vpack.c.bf16 %v3245, %v3244
      %v3254 = vpack.c.bf16 %v3247, %v3246
      %v3255 = vpack.c.bf16 %v3249, %v3248
      %v3256 = vpack.c.bf16 %v3251, %v3250
      %s3257 = scalar_lea.vmem %s3, 44
      %v3258 = vld [vmem:[%s3257] sm:$0xf]
      %v3260 = vsel %vm1996, %v3252, 0
      %v3263 = vsel %vm1996, %v3253, 0
      %v3266 = vsel %vm1996, %v3254, 0
      %v3269 = vsel %vm1996, %v3255, 0
      %v3272 = vsel %vm1996, %v3256, 0
      %v3275 = vsel %vm2012, %v3258, 0
      %3277 = vmatprep.subr.bf16.mxu0 0
      %3278 = vmatpush1.bf16.msra.mxu0 %v3275
      %3279 = vmatprep.subr.bf16.mxu0 0
      %3280 = vmatpush1.bf16.msra.mxu0 0
      %3281 = vmatprep.subr.bf16.mxu0 0
      %3282 = vmatpush1.bf16.msra.mxu0 0
      %3283 = vmatprep.subr.bf16.mxu0 0
      %3284 = vmatpush1.bf16.msra.mxu0 0
      %3285 = vmatprep.subr.bf16.mxu0 0
      %3286 = vmatpush1.bf16.msra.mxu0 0
      %3287 = vmatprep.subr.bf16.mxu0 0
      %3288 = vmatpush1.bf16.msra.mxu0 0
      %3289 = vmatprep.subr.bf16.mxu0 0
      %3290 = vmatpush1.bf16.msra.mxu0 0
      %3291 = vmatprep.subr.bf16.mxu0 0
      %3292 = vmatpush1.bf16.msra.mxu0 0
      %3293 = vmatprep.subr.bf16.mxu0 0
      %3294 = vmatpush1.bf16.msra.mxu0 0
      %3295 = vmatprep.subr.bf16.mxu0 0
      %3296 = vmatpush1.bf16.msra.mxu0 0
      %3297 = vmatprep.subr.bf16.mxu0 0
      %3298 = vmatpush1.bf16.msra.mxu0 0
      %3299 = vmatprep.subr.bf16.mxu0 0
      %3300 = vmatpush1.bf16.msra.mxu0 0
      %3301 = vmatprep.subr.bf16.mxu0 0
      %3302 = vmatpush1.bf16.msra.mxu0 0
      %3303 = vmatprep.subr.bf16.mxu0 0
      %3304 = vmatpush1.bf16.msra.mxu0 0
      %3305 = vmatprep.subr.bf16.mxu0 0
      %3306 = vmatpush1.bf16.msra.mxu0 0
      %3307 = vmatprep.subr.bf16.mxu0 0
      %3308 = vmatpush1.bf16.msra.mxu0 0
      %3309 = vmatprep.mubr.bf16.mxu0 0
      %3310 = vmatmul.mubr.bf16.gmra.mrb[0].mxu0 %v3260
      %v3311 = vpop.f32.mrb[0].mxu0
      %v3312 = vadd.f32 0.0, %v3311
      %v3313 = vpop.f32.mrb[0].mxu0
      %v3314 = vpop.f32.mrb[0].mxu0
      %v3315 = vadd.f32 0.0, %v3314
      %v3316 = vpop.f32.mrb[0].mxu0
      %3317 = vmatprep.mubr.bf16.mxu0 0
      %3318 = vmatmul.mubr.bf16.gmra.mrb[0].mxu0 %v3263
      %v3319 = vpop.f32.mrb[0].mxu0
      %v3320 = vadd.f32 0.0, %v3319
      %v3321 = vpop.f32.mrb[0].mxu0
      %v3322 = vpop.f32.mrb[0].mxu0
      %v3323 = vadd.f32 0.0, %v3322
      %v3324 = vpop.f32.mrb[0].mxu0
      %3325 = vmatprep.mubr.bf16.mxu0 0
      %3326 = vmatmul.mubr.bf16.gmra.mrb[0].mxu0 %v3266
      %v3327 = vpop.f32.mrb[0].mxu0
      %v3328 = vadd.f32 0.0, %v3327
      %v3329 = vpop.f32.mrb[0].mxu0
      %v3330 = vpop.f32.mrb[0].mxu0
      %v3331 = vadd.f32 0.0, %v3330
      %v3332 = vpop.f32.mrb[0].mxu0
      %3333 = vmatprep.mubr.bf16.mxu0 0
      %3334 = vmatmul.mubr.bf16.gmra.mrb[0].mxu0 %v3269
      %v3335 = vpop.f32.mrb[0].mxu0
      %v3336 = vadd.f32 0.0, %v3335
      %v3337 = vpop.f32.mrb[0].mxu0
      %v3338 = vpop.f32.mrb[0].mxu0
      %v3339 = vadd.f32 0.0, %v3338
      %v3340 = vpop.f32.mrb[0].mxu0
      %3341 = vmatprep.mubr.bf16.mxu0 0
      %3342 = vmatmul.mubr.bf16.gmra.mrb[0].mxu0 %v3272
      %v3343 = vpop.f32.mrb[0].mxu0
      %v3344 = vadd.f32 0.0, %v3343
      %v3345 = vpop.f32.mrb[0].mxu0
      %v3346 = vpop.f32.mrb[0].mxu0
      %v3347 = vadd.f32 0.0, %v3346
      %v3348 = vpop.f32.mrb[0].mxu0
      %3349 = vdwg.mxu0
      %v3350 = vadd.f32 %v3232, %v3312
      %v3351 = vadd.f32 %v3233, %v3315
      %v3352 = vadd.f32 %v3234, %v3320
      %v3353 = vadd.f32 %v3235, %v3323
      %v3354 = vadd.f32 %v3236, %v3328
      %v3355 = vadd.f32 %v3237, %v3331
      %v3356 = vadd.f32 %v3238, %v3336
      %v3357 = vadd.f32 %v3239, %v3339
      %v3358 = vadd.f32 %v3240, %v3344
      %v3359 = vadd.f32 %v3241, %v3347
      %v3360 = vld [vmem:[#allocation3 + $0x22] sm:$0xff]
      %v3361 = vld [vmem:[#allocation3 + $0x2a] sm:$0xff]
      %v3362 = vld [vmem:[#allocation3 + $0x32] sm:$0xff]
      %v3363 = vld [vmem:[#allocation3 + $0x3a] sm:$0xff]
      %v3364 = vld [vmem:[#allocation3 + $0x42] sm:$0xff]
      %v3365 = vld [vmem:[#allocation3 + $0x4a] sm:$0xff]
      %v3366 = vld [vmem:[#allocation3 + $0x52] sm:$0xff]
      %v3367 = vld [vmem:[#allocation3 + $0x5a] sm:$0xff]
      %v3368 = vld [vmem:[#allocation3 + $0x62] sm:$0xff]
      %v3369 = vld [vmem:[#allocation3 + $0x6a] sm:$0xff]
      %v3370 = vpack.c.bf16 %v3361, %v3360
      %v3371 = vpack.c.bf16 %v3363, %v3362
      %v3372 = vpack.c.bf16 %v3365, %v3364
      %v3373 = vpack.c.bf16 %v3367, %v3366
      %v3374 = vpack.c.bf16 %v3369, %v3368
      %s3375 = scalar_lea.vmem %s3, 48
      %v3376 = vld [vmem:[%s3375] sm:$0xf]
      %v3378 = vsel %vm1996, %v3370, 0
      %v3381 = vsel %vm1996, %v3371, 0
      %v3384 = vsel %vm1996, %v3372, 0
      %v3387 = vsel %vm1996, %v3373, 0
      %v3390 = vsel %vm1996, %v3374, 0
      %v3393 = vsel %vm2012, %v3376, 0
      %3395 = vmatprep.subr.bf16.mxu0 0
      %3396 = vmatpush1.bf16.msra.mxu0 %v3393
      %3397 = vmatprep.subr.bf16.mxu0 0
      %3398 = vmatpush1.bf16.msra.mxu0 0
      %3399 = vmatprep.subr.bf16.mxu0 0
      %3400 = vmatpush1.bf16.msra.mxu0 0
      %3401 = vmatprep.subr.bf16.mxu0 0
      %3402 = vmatpush1.bf16.msra.mxu0 0
      %3403 = vmatprep.subr.bf16.mxu0 0
      %3404 = vmatpush1.bf16.msra.mxu0 0
      %3405 = vmatprep.subr.bf16.mxu0 0
      %3406 = vmatpush1.bf16.msra.mxu0 0
      %3407 = vmatprep.subr.bf16.mxu0 0
      %3408 = vmatpush1.bf16.msra.mxu0 0
      %3409 = vmatprep.subr.bf16.mxu0 0
      %3410 = vmatpush1.bf16.msra.mxu0 0
      %3411 = vmatprep.subr.bf16.mxu0 0
      %3412 = vmatpush1.bf16.msra.mxu0 0
      %3413 = vmatprep.subr.bf16.mxu0 0
      %3414 = vmatpush1.bf16.msra.mxu0 0
      %3415 = vmatprep.subr.bf16.mxu0 0
      %3416 = vmatpush1.bf16.msra.mxu0 0
      %3417 = vmatprep.subr.bf16.mxu0 0
      %3418 = vmatpush1.bf16.msra.mxu0 0
      %3419 = vmatprep.subr.bf16.mxu0 0
      %3420 = vmatpush1.bf16.msra.mxu0 0
      %3421 = vmatprep.subr.bf16.mxu0 0
      %3422 = vmatpush1.bf16.msra.mxu0 0
      %3423 = vmatprep.subr.bf16.mxu0 0
      %3424 = vmatpush1.bf16.msra.mxu0 0
      %3425 = vmatprep.subr.bf16.mxu0 0
      %3426 = vmatpush1.bf16.msra.mxu0 0
      %3427 = vmatprep.mubr.bf16.mxu0 0
      %3428 = vmatmul.mubr.bf16.gmra.mrb[0].mxu0 %v3378
      %v3429 = vpop.f32.mrb[0].mxu0
      %v3430 = vadd.f32 0.0, %v3429
      %v3431 = vpop.f32.mrb[0].mxu0
      %v3432 = vpop.f32.mrb[0].mxu0
      %v3433 = vadd.f32 0.0, %v3432
      %v3434 = vpop.f32.mrb[0].mxu0
      %3435 = vmatprep.mubr.bf16.mxu0 0
      %3436 = vmatmul.mubr.bf16.gmra.mrb[0].mxu0 %v3381
      %v3437 = vpop.f32.mrb[0].mxu0
      %v3438 = vadd.f32 0.0, %v3437
      %v3439 = vpop.f32.mrb[0].mxu0
      %v3440 = vpop.f32.mrb[0].mxu0
      %v3441 = vadd.f32 0.0, %v3440
      %v3442 = vpop.f32.mrb[0].mxu0
      %3443 = vmatprep.mubr.bf16.mxu0 0
      %3444 = vmatmul.mubr.bf16.gmra.mrb[0].mxu0 %v3384
      %v3445 = vpop.f32.mrb[0].mxu0
      %v3446 = vadd.f32 0.0, %v3445
      %v3447 = vpop.f32.mrb[0].mxu0
      %v3448 = vpop.f32.mrb[0].mxu0
      %v3449 = vadd.f32 0.0, %v3448
      %v3450 = vpop.f32.mrb[0].mxu0
      %3451 = vmatprep.mubr.bf16.mxu0 0
      %3452 = vmatmul.mubr.bf16.gmra.mrb[0].mxu0 %v3387
      %v3453 = vpop.f32.mrb[0].mxu0
      %v3454 = vadd.f32 0.0, %v3453
      %v3455 = vpop.f32.mrb[0].mxu0
      %v3456 = vpop.f32.mrb[0].mxu0
      %v3457 = vadd.f32 0.0, %v3456
      %v3458 = vpop.f32.mrb[0].mxu0
      %3459 = vmatprep.mubr.bf16.mxu0 0
      %3460 = vmatmul.mubr.bf16.gmra.mrb[0].mxu0 %v3390
      %v3461 = vpop.f32.mrb[0].mxu0
      %v3462 = vadd.f32 0.0, %v3461
      %v3463 = vpop.f32.mrb[0].mxu0
      %v3464 = vpop.f32.mrb[0].mxu0
      %v3465 = vadd.f32 0.0, %v3464
      %v3466 = vpop.f32.mrb[0].mxu0
      %3467 = vdwg.mxu0
      %v3468 = vadd.f32 %v3350, %v3430
      %v3469 = vadd.f32 %v3351, %v3433
      %v3470 = vadd.f32 %v3352, %v3438
      %v3471 = vadd.f32 %v3353, %v3441
      %v3472 = vadd.f32 %v3354, %v3446
      %v3473 = vadd.f32 %v3355, %v3449
      %v3474 = vadd.f32 %v3356, %v3454
      %v3475 = vadd.f32 %v3357, %v3457
      %v3476 = vadd.f32 %v3358, %v3462
      %v3477 = vadd.f32 %v3359, %v3465
      %v3478 = vld [vmem:[#allocation3 + $0x23] sm:$0xff]
      %v3479 = vld [vmem:[#allocation3 + $0x2b] sm:$0xff]
      %v3480 = vld [vmem:[#allocation3 + $0x33] sm:$0xff]
      %v3481 = vld [vmem:[#allocation3 + $0x3b] sm:$0xff]
      %v3482 = vld [vmem:[#allocation3 + $0x43] sm:$0xff]
      %v3483 = vld [vmem:[#allocation3 + $0x4b] sm:$0xff]
      %v3484 = vld [vmem:[#allocation3 + $0x53] sm:$0xff]
      %v3485 = vld [vmem:[#allocation3 + $0x5b] sm:$0xff]
      %v3486 = vld [vmem:[#allocation3 + $0x63] sm:$0xff]
      %v3487 = vld [vmem:[#allocation3 + $0x6b] sm:$0xff]
      %v3488 = vpack.c.bf16 %v3479, %v3478
      %v3489 = vpack.c.bf16 %v3481, %v3480
      %v3490 = vpack.c.bf16 %v3483, %v3482
      %v3491 = vpack.c.bf16 %v3485, %v3484
      %v3492 = vpack.c.bf16 %v3487, %v3486
      %s3493 = scalar_lea.vmem %s3, 52
      %v3494 = vld [vmem:[%s3493] sm:$0xf]
      %v3496 = vsel %vm1996, %v3488, 0
      %v3499 = vsel %vm1996, %v3489, 0
      %v3502 = vsel %vm1996, %v3490, 0
      %v3505 = vsel %vm1996, %v3491, 0
      %v3508 = vsel %vm1996, %v3492, 0
      %v3511 = vsel %vm2012, %v3494, 0
      %3513 = vmatprep.subr.bf16.mxu0 0
      %3514 = vmatpush1.bf16.msra.mxu0 %v3511
      %3515 = vmatprep.subr.bf16.mxu0 0
      %3516 = vmatpush1.bf16.msra.mxu0 0
      %3517 = vmatprep.subr.bf16.mxu0 0
      %3518 = vmatpush1.bf16.msra.mxu0 0
      %3519 = vmatprep.subr.bf16.mxu0 0
      %3520 = vmatpush1.bf16.msra.mxu0 0
      %3521 = vmatprep.subr.bf16.mxu0 0
      %3522 = vmatpush1.bf16.msra.mxu0 0
      %3523 = vmatprep.subr.bf16.mxu0 0
      %3524 = vmatpush1.bf16.msra.mxu0 0
      %3525 = vmatprep.subr.bf16.mxu0 0
      %3526 = vmatpush1.bf16.msra.mxu0 0
      %3527 = vmatprep.subr.bf16.mxu0 0
      %3528 = vmatpush1.bf16.msra.mxu0 0
      %3529 = vmatprep.subr.bf16.mxu0 0
      %3530 = vmatpush1.bf16.msra.mxu0 0
      %3531 = vmatprep.subr.bf16.mxu0 0
      %3532 = vmatpush1.bf16.msra.mxu0 0
      %3533 = vmatprep.subr.bf16.mxu0 0
      %3534 = vmatpush1.bf16.msra.mxu0 0
      %3535 = vmatprep.subr.bf16.mxu0 0
      %3536 = vmatpush1.bf16.msra.mxu0 0
      %3537 = vmatprep.subr.bf16.mxu0 0
      %3538 = vmatpush1.bf16.msra.mxu0 0
      %3539 = vmatprep.subr.bf16.mxu0 0
      %3540 = vmatpush1.bf16.msra.mxu0 0
      %3541 = vmatprep.subr.bf16.mxu0 0
      %3542 = vmatpush1.bf16.msra.mxu0 0
      %3543 = vmatprep.subr.bf16.mxu0 0
      %3544 = vmatpush1.bf16.msra.mxu0 0
      %3545 = vmatprep.mubr.bf16.mxu0 0
      %3546 = vmatmul.mubr.bf16.gmra.mrb[0].mxu0 %v3496
      %v3547 = vpop.f32.mrb[0].mxu0
      %v3548 = vadd.f32 0.0, %v3547
      %v3549 = vpop.f32.mrb[0].mxu0
      %v3550 = vpop.f32.mrb[0].mxu0
      %v3551 = vadd.f32 0.0, %v3550
      %v3552 = vpop.f32.mrb[0].mxu0
      %3553 = vmatprep.mubr.bf16.mxu0 0
      %3554 = vmatmul.mubr.bf16.gmra.mrb[0].mxu0 %v3499
      %v3555 = vpop.f32.mrb[0].mxu0
      %v3556 = vadd.f32 0.0, %v3555
      %v3557 = vpop.f32.mrb[0].mxu0
      %v3558 = vpop.f32.mrb[0].mxu0
      %v3559 = vadd.f32 0.0, %v3558
      %v3560 = vpop.f32.mrb[0].mxu0
      %3561 = vmatprep.mubr.bf16.mxu0 0
      %3562 = vmatmul.mubr.bf16.gmra.mrb[0].mxu0 %v3502
      %v3563 = vpop.f32.mrb[0].mxu0
      %v3564 = vadd.f32 0.0, %v3563
      %v3565 = vpop.f32.mrb[0].mxu0
      %v3566 = vpop.f32.mrb[0].mxu0
      %v3567 = vadd.f32 0.0, %v3566
      %v3568 = vpop.f32.mrb[0].mxu0
      %3569 = vmatprep.mubr.bf16.mxu0 0
      %3570 = vmatmul.mubr.bf16.gmra.mrb[0].mxu0 %v3505
      %v3571 = vpop.f32.mrb[0].mxu0
      %v3572 = vadd.f32 0.0, %v3571
      %v3573 = vpop.f32.mrb[0].mxu0
      %v3574 = vpop.f32.mrb[0].mxu0
      %v3575 = vadd.f32 0.0, %v3574
      %v3576 = vpop.f32.mrb[0].mxu0
      %3577 = vmatprep.mubr.bf16.mxu0 0
      %3578 = vmatmul.mubr.bf16.gmra.mrb[0].mxu0 %v3508
      %v3579 = vpop.f32.mrb[0].mxu0
      %v3580 = vadd.f32 0.0, %v3579
      %v3581 = vpop.f32.mrb[0].mxu0
      %v3582 = vpop.f32.mrb[0].mxu0
      %v3583 = vadd.f32 0.0, %v3582
      %v3584 = vpop.f32.mrb[0].mxu0
      %3585 = vdwg.mxu0
      %v3586 = vadd.f32 %v3468, %v3548
      %v3587 = vadd.f32 %v3469, %v3551
      %v3588 = vadd.f32 %v3470, %v3556
      %v3589 = vadd.f32 %v3471, %v3559
      %v3590 = vadd.f32 %v3472, %v3564
      %v3591 = vadd.f32 %v3473, %v3567
      %v3592 = vadd.f32 %v3474, %v3572
      %v3593 = vadd.f32 %v3475, %v3575
      %v3594 = vadd.f32 %v3476, %v3580
      %v3595 = vadd.f32 %v3477, %v3583
      %v3596 = vld [vmem:[#allocation3 + $0x24] sm:$0xff]
      %v3597 = vld [vmem:[#allocation3 + $0x2c] sm:$0xff]
      %v3598 = vld [vmem:[#allocation3 + $0x34] sm:$0xff]
      %v3599 = vld [vmem:[#allocation3 + $0x3c] sm:$0xff]
      %v3600 = vld [vmem:[#allocation3 + $0x44] sm:$0xff]
      %v3601 = vld [vmem:[#allocation3 + $0x4c] sm:$0xff]
      %v3602 = vld [vmem:[#allocation3 + $0x54] sm:$0xff]
      %v3603 = vld [vmem:[#allocation3 + $0x5c] sm:$0xff]
      %v3604 = vld [vmem:[#allocation3 + $0x64] sm:$0xff]
      %v3605 = vld [vmem:[#allocation3 + $0x6c] sm:$0xff]
      %v3606 = vpack.c.bf16 %v3597, %v3596
      %v3607 = vpack.c.bf16 %v3599, %v3598
      %v3608 = vpack.c.bf16 %v3601, %v3600
      %v3609 = vpack.c.bf16 %v3603, %v3602
      %v3610 = vpack.c.bf16 %v3605, %v3604
      %s3611 = scalar_lea.vmem %s3, 56
      %v3612 = vld [vmem:[%s3611] sm:$0xf]
      %v3614 = vsel %vm1996, %v3606, 0
      %v3617 = vsel %vm1996, %v3607, 0
      %v3620 = vsel %vm1996, %v3608, 0
      %v3623 = vsel %vm1996, %v3609, 0
      %v3626 = vsel %vm1996, %v3610, 0
      %v3629 = vsel %vm2012, %v3612, 0
      %3631 = vmatprep.subr.bf16.mxu0 0
      %3632 = vmatpush1.bf16.msra.mxu0 %v3629
      %3633 = vmatprep.subr.bf16.mxu0 0
      %3634 = vmatpush1.bf16.msra.mxu0 0
      %3635 = vmatprep.subr.bf16.mxu0 0
      %3636 = vmatpush1.bf16.msra.mxu0 0
      %3637 = vmatprep.subr.bf16.mxu0 0
      %3638 = vmatpush1.bf16.msra.mxu0 0
      %3639 = vmatprep.subr.bf16.mxu0 0
      %3640 = vmatpush1.bf16.msra.mxu0 0
      %3641 = vmatprep.subr.bf16.mxu0 0
      %3642 = vmatpush1.bf16.msra.mxu0 0
      %3643 = vmatprep.subr.bf16.mxu0 0
      %3644 = vmatpush1.bf16.msra.mxu0 0
      %3645 = vmatprep.subr.bf16.mxu0 0
      %3646 = vmatpush1.bf16.msra.mxu0 0
      %3647 = vmatprep.subr.bf16.mxu0 0
      %3648 = vmatpush1.bf16.msra.mxu0 0
      %3649 = vmatprep.subr.bf16.mxu0 0
      %3650 = vmatpush1.bf16.msra.mxu0 0
      %3651 = vmatprep.subr.bf16.mxu0 0
      %3652 = vmatpush1.bf16.msra.mxu0 0
      %3653 = vmatprep.subr.bf16.mxu0 0
      %3654 = vmatpush1.bf16.msra.mxu0 0
      %3655 = vmatprep.subr.bf16.mxu0 0
      %3656 = vmatpush1.bf16.msra.mxu0 0
      %3657 = vmatprep.subr.bf16.mxu0 0
      %3658 = vmatpush1.bf16.msra.mxu0 0
      %3659 = vmatprep.subr.bf16.mxu0 0
      %3660 = vmatpush1.bf16.msra.mxu0 0
      %3661 = vmatprep.subr.bf16.mxu0 0
      %3662 = vmatpush1.bf16.msra.mxu0 0
      %3663 = vmatprep.mubr.bf16.mxu0 0
      %3664 = vmatmul.mubr.bf16.gmra.mrb[0].mxu0 %v3614
      %v3665 = vpop.f32.mrb[0].mxu0
      %v3666 = vadd.f32 0.0, %v3665
      %v3667 = vpop.f32.mrb[0].mxu0
      %v3668 = vpop.f32.mrb[0].mxu0
      %v3669 = vadd.f32 0.0, %v3668
      %v3670 = vpop.f32.mrb[0].mxu0
      %3671 = vmatprep.mubr.bf16.mxu0 0
      %3672 = vmatmul.mubr.bf16.gmra.mrb[0].mxu0 %v3617
      %v3673 = vpop.f32.mrb[0].mxu0
      %v3674 = vadd.f32 0.0, %v3673
      %v3675 = vpop.f32.mrb[0].mxu0
      %v3676 = vpop.f32.mrb[0].mxu0
      %v3677 = vadd.f32 0.0, %v3676
      %v3678 = vpop.f32.mrb[0].mxu0
      %3679 = vmatprep.mubr.bf16.mxu0 0
      %3680 = vmatmul.mubr.bf16.gmra.mrb[0].mxu0 %v3620
      %v3681 = vpop.f32.mrb[0].mxu0
      %v3682 = vadd.f32 0.0, %v3681
      %v3683 = vpop.f32.mrb[0].mxu0
      %v3684 = vpop.f32.mrb[0].mxu0
      %v3685 = vadd.f32 0.0, %v3684
      %v3686 = vpop.f32.mrb[0].mxu0
      %3687 = vmatprep.mubr.bf16.mxu0 0
      %3688 = vmatmul.mubr.bf16.gmra.mrb[0].mxu0 %v3623
      %v3689 = vpop.f32.mrb[0].mxu0
      %v3690 = vadd.f32 0.0, %v3689
      %v3691 = vpop.f32.mrb[0].mxu0
      %v3692 = vpop.f32.mrb[0].mxu0
      %v3693 = vadd.f32 0.0, %v3692
      %v3694 = vpop.f32.mrb[0].mxu0
      %3695 = vmatprep.mubr.bf16.mxu0 0
      %3696 = vmatmul.mubr.bf16.gmra.mrb[0].mxu0 %v3626
      %v3697 = vpop.f32.mrb[0].mxu0
      %v3698 = vadd.f32 0.0, %v3697
      %v3699 = vpop.f32.mrb[0].mxu0
      %v3700 = vpop.f32.mrb[0].mxu0
      %v3701 = vadd.f32 0.0, %v3700
      %v3702 = vpop.f32.mrb[0].mxu0
      %3703 = vdwg.mxu0
      %v3704 = vadd.f32 %v3586, %v3666
      %v3705 = vadd.f32 %v3587, %v3669
      %v3706 = vadd.f32 %v3588, %v3674
      %v3707 = vadd.f32 %v3589, %v3677
      %v3708 = vadd.f32 %v3590, %v3682
      %v3709 = vadd.f32 %v3591, %v3685
      %v3710 = vadd.f32 %v3592, %v3690
      %v3711 = vadd.f32 %v3593, %v3693
      %v3712 = vadd.f32 %v3594, %v3698
      %v3713 = vadd.f32 %v3595, %v3701
      %v3714 = vld [vmem:[#allocation3 + $0x30] sm:$0xff]
      %v3715 = vld [vmem:[#allocation3 + $0x38] sm:$0xff]
      %v3716 = vld [vmem:[#allocation3 + $0x40] sm:$0xff]
      %v3717 = vld [vmem:[#allocation3 + $0x48] sm:$0xff]
      %v3718 = vld [vmem:[#allocation3 + $0x50] sm:$0xff]
      %v3719 = vld [vmem:[#allocation3 + $0x58] sm:$0xff]
      %v3720 = vld [vmem:[#allocation3 + $0x60] sm:$0xff]
      %v3721 = vld [vmem:[#allocation3 + $0x68] sm:$0xff]
      %v3722 = vld [vmem:[#allocation3 + $0x70] sm:$0xff]
      %v3723 = vld [vmem:[#allocation3 + $0x78] sm:$0xff]
      %v3724 = vpack.c.bf16 %v3715, %v3714
      %v3725 = vpack.c.bf16 %v3717, %v3716
      %v3726 = vpack.c.bf16 %v3719, %v3718
      %v3727 = vpack.c.bf16 %v3721, %v3720
      %v3728 = vpack.c.bf16 %v3723, %v3722
      %s3729 = scalar_lea.vmem %s3, 60
      %v3730 = vld [vmem:[%s3729] sm:$0xf]
      %v3732 = vsel %vm1996, %v3724, 0
      %v3735 = vsel %vm1996, %v3725, 0
      %v3738 = vsel %vm1996, %v3726, 0
      %v3741 = vsel %vm1996, %v3727, 0
      %v3744 = vsel %vm1996, %v3728, 0
      %v3747 = vsel %vm2012, %v3730, 0
      %3749 = vmatprep.subr.bf16.mxu0 0
      %3750 = vmatpush1.bf16.msra.mxu0 %v3747
      %3751 = vmatprep.subr.bf16.mxu0 0
      %3752 = vmatpush1.bf16.msra.mxu0 0
      %3753 = vmatprep.subr.bf16.mxu0 0
      %3754 = vmatpush1.bf16.msra.mxu0 0
      %3755 = vmatprep.subr.bf16.mxu0 0
      %3756 = vmatpush1.bf16.msra.mxu0 0
      %3757 = vmatprep.subr.bf16.mxu0 0
      %3758 = vmatpush1.bf16.msra.mxu0 0
      %3759 = vmatprep.subr.bf16.mxu0 0
      %3760 = vmatpush1.bf16.msra.mxu0 0
      %3761 = vmatprep.subr.bf16.mxu0 0
      %3762 = vmatpush1.bf16.msra.mxu0 0
      %3763 = vmatprep.subr.bf16.mxu0 0
      %3764 = vmatpush1.bf16.msra.mxu0 0
      %3765 = vmatprep.subr.bf16.mxu0 0
      %3766 = vmatpush1.bf16.msra.mxu0 0
      %3767 = vmatprep.subr.bf16.mxu0 0
      %3768 = vmatpush1.bf16.msra.mxu0 0
      %3769 = vmatprep.subr.bf16.mxu0 0
      %3770 = vmatpush1.bf16.msra.mxu0 0
      %3771 = vmatprep.subr.bf16.mxu0 0
      %3772 = vmatpush1.bf16.msra.mxu0 0
      %3773 = vmatprep.subr.bf16.mxu0 0
      %3774 = vmatpush1.bf16.msra.mxu0 0
      %3775 = vmatprep.subr.bf16.mxu0 0
      %3776 = vmatpush1.bf16.msra.mxu0 0
      %3777 = vmatprep.subr.bf16.mxu0 0
      %3778 = vmatpush1.bf16.msra.mxu0 0
      %3779 = vmatprep.subr.bf16.mxu0 0
      %3780 = vmatpush1.bf16.msra.mxu0 0
      %3781 = vmatprep.mubr.bf16.mxu0 0
      %3782 = vmatmul.mubr.bf16.gmra.mrb[0].mxu0 %v3732
      %v3783 = vpop.f32.mrb[0].mxu0
      %v3784 = vadd.f32 0.0, %v3783
      %v3785 = vpop.f32.mrb[0].mxu0
      %v3786 = vpop.f32.mrb[0].mxu0
      %v3787 = vadd.f32 0.0, %v3786
      %v3788 = vpop.f32.mrb[0].mxu0
      %3789 = vmatprep.mubr.bf16.mxu0 0
      %3790 = vmatmul.mubr.bf16.gmra.mrb[0].mxu0 %v3735
      %v3791 = vpop.f32.mrb[0].mxu0
      %v3792 = vadd.f32 0.0, %v3791
      %v3793 = vpop.f32.mrb[0].mxu0
      %v3794 = vpop.f32.mrb[0].mxu0
      %v3795 = vadd.f32 0.0, %v3794
      %v3796 = vpop.f32.mrb[0].mxu0
      %3797 = vmatprep.mubr.bf16.mxu0 0
      %3798 = vmatmul.mubr.bf16.gmra.mrb[0].mxu0 %v3738
      %v3799 = vpop.f32.mrb[0].mxu0
      %v3800 = vadd.f32 0.0, %v3799
      %v3801 = vpop.f32.mrb[0].mxu0
      %v3802 = vpop.f32.mrb[0].mxu0
      %v3803 = vadd.f32 0.0, %v3802
      %v3804 = vpop.f32.mrb[0].mxu0
      %3805 = vmatprep.mubr.bf16.mxu0 0
      %3806 = vmatmul.mubr.bf16.gmra.mrb[0].mxu0 %v3741
      %v3807 = vpop.f32.mrb[0].mxu0
      %v3808 = vadd.f32 0.0, %v3807
      %v3809 = vpop.f32.mrb[0].mxu0
      %v3810 = vpop.f32.mrb[0].mxu0
      %v3811 = vadd.f32 0.0, %v3810
      %v3812 = vpop.f32.mrb[0].mxu0
      %3813 = vmatprep.mubr.bf16.mxu0 0
      %3814 = vmatmul.mubr.bf16.gmra.mrb[0].mxu0 %v3744
      %v3815 = vpop.f32.mrb[0].mxu0
      %v3816 = vadd.f32 0.0, %v3815
      %v3817 = vpop.f32.mrb[0].mxu0
      %v3818 = vpop.f32.mrb[0].mxu0
      %v3819 = vadd.f32 0.0, %v3818
      %v3820 = vpop.f32.mrb[0].mxu0
      %3821 = vdwg.mxu0
      %v3822 = vadd.f32 %v3704, %v3784
      %v3823 = vadd.f32 %v3705, %v3787
      %v3824 = vadd.f32 %v3706, %v3792
      %v3825 = vadd.f32 %v3707, %v3795
      %v3826 = vadd.f32 %v3708, %v3800
      %v3827 = vadd.f32 %v3709, %v3803
      %v3828 = vadd.f32 %v3710, %v3808
      %v3829 = vadd.f32 %v3711, %v3811
      %v3830 = vadd.f32 %v3712, %v3816
      %v3831 = vadd.f32 %v3713, %v3819
      %v3832 = vld [vmem:[#allocation3 + $0x31] sm:$0xff]
      %v3833 = vld [vmem:[#allocation3 + $0x39] sm:$0xff]
      %v3834 = vld [vmem:[#allocation3 + $0x41] sm:$0xff]
      %v3835 = vld [vmem:[#allocation3 + $0x49] sm:$0xff]
      %v3836 = vld [vmem:[#allocation3 + $0x51] sm:$0xff]
      %v3837 = vld [vmem:[#allocation3 + $0x59] sm:$0xff]
      %v3838 = vld [vmem:[#allocation3 + $0x61] sm:$0xff]
      %v3839 = vld [vmem:[#allocation3 + $0x69] sm:$0xff]
      %v3840 = vld [vmem:[#allocation3 + $0x71] sm:$0xff]
      %v3841 = vld [vmem:[#allocation3 + $0x79] sm:$0xff]
      %v3842 = vpack.c.bf16 %v3833, %v3832
      %v3843 = vpack.c.bf16 %v3835, %v3834
      %v3844 = vpack.c.bf16 %v3837, %v3836
      %v3845 = vpack.c.bf16 %v3839, %v3838
      %v3846 = vpack.c.bf16 %v3841, %v3840
      %s3847 = scalar_lea.vmem %s3, 64
      %v3848 = vld [vmem:[%s3847] sm:$0xf]
      %v3850 = vsel %vm1996, %v3842, 0
      %v3853 = vsel %vm1996, %v3843, 0
      %v3856 = vsel %vm1996, %v3844, 0
      %v3859 = vsel %vm1996, %v3845, 0
      %v3862 = vsel %vm1996, %v3846, 0
      %v3865 = vsel %vm2012, %v3848, 0
      %3867 = vmatprep.subr.bf16.mxu0 0
      %3868 = vmatpush1.bf16.msra.mxu0 %v3865
      %3869 = vmatprep.subr.bf16.mxu0 0
      %3870 = vmatpush1.bf16.msra.mxu0 0
      %3871 = vmatprep.subr.bf16.mxu0 0
      %3872 = vmatpush1.bf16.msra.mxu0 0
      %3873 = vmatprep.subr.bf16.mxu0 0
      %3874 = vmatpush1.bf16.msra.mxu0 0
      %3875 = vmatprep.subr.bf16.mxu0 0
      %3876 = vmatpush1.bf16.msra.mxu0 0
      %3877 = vmatprep.subr.bf16.mxu0 0
      %3878 = vmatpush1.bf16.msra.mxu0 0
      %3879 = vmatprep.subr.bf16.mxu0 0
      %3880 = vmatpush1.bf16.msra.mxu0 0
      %3881 = vmatprep.subr.bf16.mxu0 0
      %3882 = vmatpush1.bf16.msra.mxu0 0
      %3883 = vmatprep.subr.bf16.mxu0 0
      %3884 = vmatpush1.bf16.msra.mxu0 0
      %3885 = vmatprep.subr.bf16.mxu0 0
      %3886 = vmatpush1.bf16.msra.mxu0 0
      %3887 = vmatprep.subr.bf16.mxu0 0
      %3888 = vmatpush1.bf16.msra.mxu0 0
      %3889 = vmatprep.subr.bf16.mxu0 0
      %3890 = vmatpush1.bf16.msra.mxu0 0
      %3891 = vmatprep.subr.bf16.mxu0 0
      %3892 = vmatpush1.bf16.msra.mxu0 0
      %3893 = vmatprep.subr.bf16.mxu0 0
      %3894 = vmatpush1.bf16.msra.mxu0 0
      %3895 = vmatprep.subr.bf16.mxu0 0
      %3896 = vmatpush1.bf16.msra.mxu0 0
      %3897 = vmatprep.subr.bf16.mxu0 0
      %3898 = vmatpush1.bf16.msra.mxu0 0
      %3899 = vmatprep.mubr.bf16.mxu0 0
      %3900 = vmatmul.mubr.bf16.gmra.mrb[0].mxu0 %v3850
      %v3901 = vpop.f32.mrb[0].mxu0
      %v3902 = vadd.f32 0.0, %v3901
      %v3903 = vpop.f32.mrb[0].mxu0
      %v3904 = vpop.f32.mrb[0].mxu0
      %v3905 = vadd.f32 0.0, %v3904
      %v3906 = vpop.f32.mrb[0].mxu0
      %3907 = vmatprep.mubr.bf16.mxu0 0
      %3908 = vmatmul.mubr.bf16.gmra.mrb[0].mxu0 %v3853
      %v3909 = vpop.f32.mrb[0].mxu0
      %v3910 = vadd.f32 0.0, %v3909
      %v3911 = vpop.f32.mrb[0].mxu0
      %v3912 = vpop.f32.mrb[0].mxu0
      %v3913 = vadd.f32 0.0, %v3912
      %v3914 = vpop.f32.mrb[0].mxu0
      %3915 = vmatprep.mubr.bf16.mxu0 0
      %3916 = vmatmul.mubr.bf16.gmra.mrb[0].mxu0 %v3856
      %v3917 = vpop.f32.mrb[0].mxu0
      %v3918 = vadd.f32 0.0, %v3917
      %v3919 = vpop.f32.mrb[0].mxu0
      %v3920 = vpop.f32.mrb[0].mxu0
      %v3921 = vadd.f32 0.0, %v3920
      %v3922 = vpop.f32.mrb[0].mxu0
      %3923 = vmatprep.mubr.bf16.mxu0 0
      %3924 = vmatmul.mubr.bf16.gmra.mrb[0].mxu0 %v3859
      %v3925 = vpop.f32.mrb[0].mxu0
      %v3926 = vadd.f32 0.0, %v3925
      %v3927 = vpop.f32.mrb[0].mxu0
      %v3928 = vpop.f32.mrb[0].mxu0
      %v3929 = vadd.f32 0.0, %v3928
      %v3930 = vpop.f32.mrb[0].mxu0
      %3931 = vmatprep.mubr.bf16.mxu0 0
      %3932 = vmatmul.mubr.bf16.gmra.mrb[0].mxu0 %v3862
      %v3933 = vpop.f32.mrb[0].mxu0
      %v3934 = vadd.f32 0.0, %v3933
      %v3935 = vpop.f32.mrb[0].mxu0
      %v3936 = vpop.f32.mrb[0].mxu0
      %v3937 = vadd.f32 0.0, %v3936
      %v3938 = vpop.f32.mrb[0].mxu0
      %3939 = vdwg.mxu0
      %v3940 = vadd.f32 %v3822, %v3902
      %v3941 = vadd.f32 %v3823, %v3905
      %v3942 = vadd.f32 %v3824, %v3910
      %v3943 = vadd.f32 %v3825, %v3913
      %v3944 = vadd.f32 %v3826, %v3918
      %v3945 = vadd.f32 %v3827, %v3921
      %v3946 = vadd.f32 %v3828, %v3926
      %v3947 = vadd.f32 %v3829, %v3929
      %v3948 = vadd.f32 %v3830, %v3934
      %v3949 = vadd.f32 %v3831, %v3937
      %v3950 = vld [vmem:[#allocation3 + $0x32] sm:$0xff]
      %v3951 = vld [vmem:[#allocation3 + $0x3a] sm:$0xff]
      %v3952 = vld [vmem:[#allocation3 + $0x42] sm:$0xff]
      %v3953 = vld [vmem:[#allocation3 + $0x4a] sm:$0xff]
      %v3954 = vld [vmem:[#allocation3 + $0x52] sm:$0xff]
      %v3955 = vld [vmem:[#allocation3 + $0x5a] sm:$0xff]
      %v3956 = vld [vmem:[#allocation3 + $0x62] sm:$0xff]
      %v3957 = vld [vmem:[#allocation3 + $0x6a] sm:$0xff]
      %v3958 = vld [vmem:[#allocation3 + $0x72] sm:$0xff]
      %v3959 = vld [vmem:[#allocation3 + $0x7a] sm:$0xff]
      %v3960 = vpack.c.bf16 %v3951, %v3950
      %v3961 = vpack.c.bf16 %v3953, %v3952
      %v3962 = vpack.c.bf16 %v3955, %v3954
      %v3963 = vpack.c.bf16 %v3957, %v3956
      %v3964 = vpack.c.bf16 %v3959, %v3958
      %s3965 = scalar_lea.vmem %s3, 68
      %v3966 = vld [vmem:[%s3965] sm:$0xf]
      %v3968 = vsel %vm1996, %v3960, 0
      %v3971 = vsel %vm1996, %v3961, 0
      %v3974 = vsel %vm1996, %v3962, 0
      %v3977 = vsel %vm1996, %v3963, 0
      %v3980 = vsel %vm1996, %v3964, 0
      %v3983 = vsel %vm2012, %v3966, 0
      %3985 = vmatprep.subr.bf16.mxu0 0
      %3986 = vmatpush1.bf16.msra.mxu0 %v3983
      %3987 = vmatprep.subr.bf16.mxu0 0
      %3988 = vmatpush1.bf16.msra.mxu0 0
      %3989 = vmatprep.subr.bf16.mxu0 0
      %3990 = vmatpush1.bf16.msra.mxu0 0
      %3991 = vmatprep.subr.bf16.mxu0 0
      %3992 = vmatpush1.bf16.msra.mxu0 0
      %3993 = vmatprep.subr.bf16.mxu0 0
      %3994 = vmatpush1.bf16.msra.mxu0 0
      %3995 = vmatprep.subr.bf16.mxu0 0
      %3996 = vmatpush1.bf16.msra.mxu0 0
      %3997 = vmatprep.subr.bf16.mxu0 0
      %3998 = vmatpush1.bf16.msra.mxu0 0
      %3999 = vmatprep.subr.bf16.mxu0 0
      %4000 = vmatpush1.bf16.msra.mxu0 0
      %4001 = vmatprep.subr.bf16.mxu0 0
      %4002 = vmatpush1.bf16.msra.mxu0 0
      %4003 = vmatprep.subr.bf16.mxu0 0
      %4004 = vmatpush1.bf16.msra.mxu0 0
      %4005 = vmatprep.subr.bf16.mxu0 0
      %4006 = vmatpush1.bf16.msra.mxu0 0
      %4007 = vmatprep.subr.bf16.mxu0 0
      %4008 = vmatpush1.bf16.msra.mxu0 0
      %4009 = vmatprep.subr.bf16.mxu0 0
      %4010 = vmatpush1.bf16.msra.mxu0 0
      %4011 = vmatprep.subr.bf16.mxu0 0
      %4012 = vmatpush1.bf16.msra.mxu0 0
      %4013 = vmatprep.subr.bf16.mxu0 0
      %4014 = vmatpush1.bf16.msra.mxu0 0
      %4015 = vmatprep.subr.bf16.mxu0 0
      %4016 = vmatpush1.bf16.msra.mxu0 0
      %4017 = vmatprep.mubr.bf16.mxu0 0
      %4018 = vmatmul.mubr.bf16.gmra.mrb[0].mxu0 %v3968
      %v4019 = vpop.f32.mrb[0].mxu0
      %v4020 = vadd.f32 0.0, %v4019
      %v4021 = vpop.f32.mrb[0].mxu0
      %v4022 = vpop.f32.mrb[0].mxu0
      %v4023 = vadd.f32 0.0, %v4022
      %v4024 = vpop.f32.mrb[0].mxu0
      %4025 = vmatprep.mubr.bf16.mxu0 0
      %4026 = vmatmul.mubr.bf16.gmra.mrb[0].mxu0 %v3971
      %v4027 = vpop.f32.mrb[0].mxu0
      %v4028 = vadd.f32 0.0, %v4027
      %v4029 = vpop.f32.mrb[0].mxu0
      %v4030 = vpop.f32.mrb[0].mxu0
      %v4031 = vadd.f32 0.0, %v4030
      %v4032 = vpop.f32.mrb[0].mxu0
      %4033 = vmatprep.mubr.bf16.mxu0 0
      %4034 = vmatmul.mubr.bf16.gmra.mrb[0].mxu0 %v3974
      %v4035 = vpop.f32.mrb[0].mxu0
      %v4036 = vadd.f32 0.0, %v4035
      %v4037 = vpop.f32.mrb[0].mxu0
      %v4038 = vpop.f32.mrb[0].mxu0
      %v4039 = vadd.f32 0.0, %v4038
      %v4040 = vpop.f32.mrb[0].mxu0
      %4041 = vmatprep.mubr.bf16.mxu0 0
      %4042 = vmatmul.mubr.bf16.gmra.mrb[0].mxu0 %v3977
      %v4043 = vpop.f32.mrb[0].mxu0
      %v4044 = vadd.f32 0.0, %v4043
      %v4045 = vpop.f32.mrb[0].mxu0
      %v4046 = vpop.f32.mrb[0].mxu0
      %v4047 = vadd.f32 0.0, %v4046
      %v4048 = vpop.f32.mrb[0].mxu0
      %4049 = vmatprep.mubr.bf16.mxu0 0
      %4050 = vmatmul.mubr.bf16.gmra.mrb[0].mxu0 %v3980
      %v4051 = vpop.f32.mrb[0].mxu0
      %v4052 = vadd.f32 0.0, %v4051
      %v4053 = vpop.f32.mrb[0].mxu0
      %v4054 = vpop.f32.mrb[0].mxu0
      %v4055 = vadd.f32 0.0, %v4054
      %v4056 = vpop.f32.mrb[0].mxu0
      %4057 = vdwg.mxu0
      %v4058 = vadd.f32 %v3940, %v4020
      %v4059 = vadd.f32 %v3941, %v4023
      %v4060 = vadd.f32 %v3942, %v4028
      %v4061 = vadd.f32 %v3943, %v4031
      %v4062 = vadd.f32 %v3944, %v4036
      %v4063 = vadd.f32 %v3945, %v4039
      %v4064 = vadd.f32 %v3946, %v4044
      %v4065 = vadd.f32 %v3947, %v4047
      %v4066 = vadd.f32 %v3948, %v4052
      %v4067 = vadd.f32 %v3949, %v4055
      %v4068 = vld [vmem:[#allocation3 + $0x33] sm:$0xff]
      %v4069 = vld [vmem:[#allocation3 + $0x3b] sm:$0xff]
      %v4070 = vld [vmem:[#allocation3 + $0x43] sm:$0xff]
      %v4071 = vld [vmem:[#allocation3 + $0x4b] sm:$0xff]
      %v4072 = vld [vmem:[#allocation3 + $0x53] sm:$0xff]
      %v4073 = vld [vmem:[#allocation3 + $0x5b] sm:$0xff]
      %v4074 = vld [vmem:[#allocation3 + $0x63] sm:$0xff]
      %v4075 = vld [vmem:[#allocation3 + $0x6b] sm:$0xff]
      %v4076 = vld [vmem:[#allocation3 + $0x73] sm:$0xff]
      %v4077 = vld [vmem:[#allocation3 + $0x7b] sm:$0xff]
      %v4078 = vpack.c.bf16 %v4069, %v4068
      %v4079 = vpack.c.bf16 %v4071, %v4070
      %v4080 = vpack.c.bf16 %v4073, %v4072
      %v4081 = vpack.c.bf16 %v4075, %v4074
      %v4082 = vpack.c.bf16 %v4077, %v4076
      %s4083 = scalar_lea.vmem %s3, 72
      %v4084 = vld [vmem:[%s4083] sm:$0xf]
      %v4086 = vsel %vm1996, %v4078, 0
      %v4089 = vsel %vm1996, %v4079, 0
      %v4092 = vsel %vm1996, %v4080, 0
      %v4095 = vsel %vm1996, %v4081, 0
      %v4098 = vsel %vm1996, %v4082, 0
      %v4101 = vsel %vm2012, %v4084, 0
      %4103 = vmatprep.subr.bf16.mxu0 0
      %4104 = vmatpush1.bf16.msra.mxu0 %v4101
      %4105 = vmatprep.subr.bf16.mxu0 0
      %4106 = vmatpush1.bf16.msra.mxu0 0
      %4107 = vmatprep.subr.bf16.mxu0 0
      %4108 = vmatpush1.bf16.msra.mxu0 0
      %4109 = vmatprep.subr.bf16.mxu0 0
      %4110 = vmatpush1.bf16.msra.mxu0 0
      %4111 = vmatprep.subr.bf16.mxu0 0
      %4112 = vmatpush1.bf16.msra.mxu0 0
      %4113 = vmatprep.subr.bf16.mxu0 0
      %4114 = vmatpush1.bf16.msra.mxu0 0
      %4115 = vmatprep.subr.bf16.mxu0 0
      %4116 = vmatpush1.bf16.msra.mxu0 0
      %4117 = vmatprep.subr.bf16.mxu0 0
      %4118 = vmatpush1.bf16.msra.mxu0 0
      %4119 = vmatprep.subr.bf16.mxu0 0
      %4120 = vmatpush1.bf16.msra.mxu0 0
      %4121 = vmatprep.subr.bf16.mxu0 0
      %4122 = vmatpush1.bf16.msra.mxu0 0
      %4123 = vmatprep.subr.bf16.mxu0 0
      %4124 = vmatpush1.bf16.msra.mxu0 0
      %4125 = vmatprep.subr.bf16.mxu0 0
      %4126 = vmatpush1.bf16.msra.mxu0 0
      %4127 = vmatprep.subr.bf16.mxu0 0
      %4128 = vmatpush1.bf16.msra.mxu0 0
      %4129 = vmatprep.subr.bf16.mxu0 0
      %4130 = vmatpush1.bf16.msra.mxu0 0
      %4131 = vmatprep.subr.bf16.mxu0 0
      %4132 = vmatpush1.bf16.msra.mxu0 0
      %4133 = vmatprep.subr.bf16.mxu0 0
      %4134 = vmatpush1.bf16.msra.mxu0 0
      %4135 = vmatprep.mubr.bf16.mxu0 0
      %4136 = vmatmul.mubr.bf16.gmra.mrb[0].mxu0 %v4086
      %v4137 = vpop.f32.mrb[0].mxu0
      %v4138 = vadd.f32 0.0, %v4137
      %v4139 = vpop.f32.mrb[0].mxu0
      %v4140 = vpop.f32.mrb[0].mxu0
      %v4141 = vadd.f32 0.0, %v4140
      %v4142 = vpop.f32.mrb[0].mxu0
      %4143 = vmatprep.mubr.bf16.mxu0 0
      %4144 = vmatmul.mubr.bf16.gmra.mrb[0].mxu0 %v4089
      %v4145 = vpop.f32.mrb[0].mxu0
      %v4146 = vadd.f32 0.0, %v4145
      %v4147 = vpop.f32.mrb[0].mxu0
      %v4148 = vpop.f32.mrb[0].mxu0
      %v4149 = vadd.f32 0.0, %v4148
      %v4150 = vpop.f32.mrb[0].mxu0
      %4151 = vmatprep.mubr.bf16.mxu0 0
      %4152 = vmatmul.mubr.bf16.gmra.mrb[0].mxu0 %v4092
      %v4153 = vpop.f32.mrb[0].mxu0
      %v4154 = vadd.f32 0.0, %v4153
      %v4155 = vpop.f32.mrb[0].mxu0
      %v4156 = vpop.f32.mrb[0].mxu0
      %v4157 = vadd.f32 0.0, %v4156
      %v4158 = vpop.f32.mrb[0].mxu0
      %4159 = vmatprep.mubr.bf16.mxu0 0
      %4160 = vmatmul.mubr.bf16.gmra.mrb[0].mxu0 %v4095
      %v4161 = vpop.f32.mrb[0].mxu0
      %v4162 = vadd.f32 0.0, %v4161
      %v4163 = vpop.f32.mrb[0].mxu0
      %v4164 = vpop.f32.mrb[0].mxu0
      %v4165 = vadd.f32 0.0, %v4164
      %v4166 = vpop.f32.mrb[0].mxu0
      %4167 = vmatprep.mubr.bf16.mxu0 0
      %4168 = vmatmul.mubr.bf16.gmra.mrb[0].mxu0 %v4098
      %v4169 = vpop.f32.mrb[0].mxu0
      %v4170 = vadd.f32 0.0, %v4169
      %v4171 = vpop.f32.mrb[0].mxu0
      %v4172 = vpop.f32.mrb[0].mxu0
      %v4173 = vadd.f32 0.0, %v4172
      %v4174 = vpop.f32.mrb[0].mxu0
      %4175 = vdwg.mxu0
      %v4176 = vadd.f32 %v4058, %v4138
      %v4177 = vadd.f32 %v4059, %v4141
      %v4178 = vadd.f32 %v4060, %v4146
      %v4179 = vadd.f32 %v4061, %v4149
      %v4180 = vadd.f32 %v4062, %v4154
      %v4181 = vadd.f32 %v4063, %v4157
      %v4182 = vadd.f32 %v4064, %v4162
      %v4183 = vadd.f32 %v4065, %v4165
      %v4184 = vadd.f32 %v4066, %v4170
      %v4185 = vadd.f32 %v4067, %v4173
      %v4186 = vld [vmem:[#allocation3 + $0x34] sm:$0xff]
      %v4187 = vld [vmem:[#allocation3 + $0x3c] sm:$0xff]
      %v4188 = vld [vmem:[#allocation3 + $0x44] sm:$0xff]
      %v4189 = vld [vmem:[#allocation3 + $0x4c] sm:$0xff]
      %v4190 = vld [vmem:[#allocation3 + $0x54] sm:$0xff]
      %v4191 = vld [vmem:[#allocation3 + $0x5c] sm:$0xff]
      %v4192 = vld [vmem:[#allocation3 + $0x64] sm:$0xff]
      %v4193 = vld [vmem:[#allocation3 + $0x6c] sm:$0xff]
      %v4194 = vld [vmem:[#allocation3 + $0x74] sm:$0xff]
      %v4195 = vld [vmem:[#allocation3 + $0x7c] sm:$0xff]
      %v4196 = vpack.c.bf16 %v4187, %v4186
      %v4197 = vpack.c.bf16 %v4189, %v4188
      %v4198 = vpack.c.bf16 %v4191, %v4190
      %v4199 = vpack.c.bf16 %v4193, %v4192
      %v4200 = vpack.c.bf16 %v4195, %v4194
      %s4201 = scalar_lea.vmem %s3, 76
      %v4202 = vld [vmem:[%s4201] sm:$0xf]
      %v4204 = vsel %vm1996, %v4196, 0
      %v4207 = vsel %vm1996, %v4197, 0
      %v4210 = vsel %vm1996, %v4198, 0
      %v4213 = vsel %vm1996, %v4199, 0
      %v4216 = vsel %vm1996, %v4200, 0
      %v4219 = vsel %vm2012, %v4202, 0
      %4221 = vmatprep.subr.bf16.mxu0 0
      %4222 = vmatpush1.bf16.msra.mxu0 %v4219
      %4223 = vmatprep.subr.bf16.mxu0 0
      %4224 = vmatpush1.bf16.msra.mxu0 0
      %4225 = vmatprep.subr.bf16.mxu0 0
      %4226 = vmatpush1.bf16.msra.mxu0 0
      %4227 = vmatprep.subr.bf16.mxu0 0
      %4228 = vmatpush1.bf16.msra.mxu0 0
      %4229 = vmatprep.subr.bf16.mxu0 0
      %4230 = vmatpush1.bf16.msra.mxu0 0
      %4231 = vmatprep.subr.bf16.mxu0 0
      %4232 = vmatpush1.bf16.msra.mxu0 0
      %4233 = vmatprep.subr.bf16.mxu0 0
      %4234 = vmatpush1.bf16.msra.mxu0 0
      %4235 = vmatprep.subr.bf16.mxu0 0
      %4236 = vmatpush1.bf16.msra.mxu0 0
      %4237 = vmatprep.subr.bf16.mxu0 0
      %4238 = vmatpush1.bf16.msra.mxu0 0
      %4239 = vmatprep.subr.bf16.mxu0 0
      %4240 = vmatpush1.bf16.msra.mxu0 0
      %4241 = vmatprep.subr.bf16.mxu0 0
      %4242 = vmatpush1.bf16.msra.mxu0 0
      %4243 = vmatprep.subr.bf16.mxu0 0
      %4244 = vmatpush1.bf16.msra.mxu0 0
      %4245 = vmatprep.subr.bf16.mxu0 0
      %4246 = vmatpush1.bf16.msra.mxu0 0
      %4247 = vmatprep.subr.bf16.mxu0 0
      %4248 = vmatpush1.bf16.msra.mxu0 0
      %4249 = vmatprep.subr.bf16.mxu0 0
      %4250 = vmatpush1.bf16.msra.mxu0 0
      %4251 = vmatprep.subr.bf16.mxu0 0
      %4252 = vmatpush1.bf16.msra.mxu0 0
      %4253 = vmatprep.mubr.bf16.mxu0 0
      %4254 = vmatmul.mubr.bf16.gmra.mrb[0].mxu0 %v4204
      %v4255 = vpop.f32.mrb[0].mxu0
      %v4256 = vadd.f32 0.0, %v4255
      %v4257 = vpop.f32.mrb[0].mxu0
      %v4258 = vpop.f32.mrb[0].mxu0
      %v4259 = vadd.f32 0.0, %v4258
      %v4260 = vpop.f32.mrb[0].mxu0
      %4261 = vmatprep.mubr.bf16.mxu0 0
      %4262 = vmatmul.mubr.bf16.gmra.mrb[0].mxu0 %v4207
      %v4263 = vpop.f32.mrb[0].mxu0
      %v4264 = vadd.f32 0.0, %v4263
      %v4265 = vpop.f32.mrb[0].mxu0
      %v4266 = vpop.f32.mrb[0].mxu0
      %v4267 = vadd.f32 0.0, %v4266
      %v4268 = vpop.f32.mrb[0].mxu0
      %4269 = vmatprep.mubr.bf16.mxu0 0
      %4270 = vmatmul.mubr.bf16.gmra.mrb[0].mxu0 %v4210
      %v4271 = vpop.f32.mrb[0].mxu0
      %v4272 = vadd.f32 0.0, %v4271
      %v4273 = vpop.f32.mrb[0].mxu0
      %v4274 = vpop.f32.mrb[0].mxu0
      %v4275 = vadd.f32 0.0, %v4274
      %v4276 = vpop.f32.mrb[0].mxu0
      %4277 = vmatprep.mubr.bf16.mxu0 0
      %4278 = vmatmul.mubr.bf16.gmra.mrb[0].mxu0 %v4213
      %v4279 = vpop.f32.mrb[0].mxu0
      %v4280 = vadd.f32 0.0, %v4279
      %v4281 = vpop.f32.mrb[0].mxu0
      %v4282 = vpop.f32.mrb[0].mxu0
      %v4283 = vadd.f32 0.0, %v4282
      %v4284 = vpop.f32.mrb[0].mxu0
      %4285 = vmatprep.mubr.bf16.mxu0 0
      %4286 = vmatmul.mubr.bf16.gmra.mrb[0].mxu0 %v4216
      %v4287 = vpop.f32.mrb[0].mxu0
      %v4288 = vadd.f32 0.0, %v4287
      %v4289 = vpop.f32.mrb[0].mxu0
      %v4290 = vpop.f32.mrb[0].mxu0
      %v4291 = vadd.f32 0.0, %v4290
      %v4292 = vpop.f32.mrb[0].mxu0
      %4293 = vdwg.mxu0
      %v4294 = vadd.f32 %v4176, %v4256
      %v4295 = vadd.f32 %v4177, %v4259
      %v4296 = vadd.f32 %v4178, %v4264
      %v4297 = vadd.f32 %v4179, %v4267
      %v4298 = vadd.f32 %v4180, %v4272
      %v4299 = vadd.f32 %v4181, %v4275
      %v4300 = vadd.f32 %v4182, %v4280
      %v4301 = vadd.f32 %v4183, %v4283
      %v4302 = vadd.f32 %v4184, %v4288
      %v4303 = vadd.f32 %v4185, %v4291
      %v4304 = vld [vmem:[#allocation3 + $0x40] sm:$0xff]
      %v4305 = vld [vmem:[#allocation3 + $0x48] sm:$0xff]
      %v4306 = vld [vmem:[#allocation3 + $0x50] sm:$0xff]
      %v4307 = vld [vmem:[#allocation3 + $0x58] sm:$0xff]
      %v4308 = vld [vmem:[#allocation3 + $0x60] sm:$0xff]
      %v4309 = vld [vmem:[#allocation3 + $0x68] sm:$0xff]
      %v4310 = vld [vmem:[#allocation3 + $0x70] sm:$0xff]
      %v4311 = vld [vmem:[#allocation3 + $0x78] sm:$0xff]
      %v4312 = vld [vmem:[#allocation3 + $0x80] sm:$0xff]
      %v4313 = vld [vmem:[#allocation3 + $0x88] sm:$0xff]
      %v4314 = vpack.c.bf16 %v4305, %v4304
      %v4315 = vpack.c.bf16 %v4307, %v4306
      %v4316 = vpack.c.bf16 %v4309, %v4308
      %v4317 = vpack.c.bf16 %v4311, %v4310
      %v4318 = vpack.c.bf16 %v4313, %v4312
      %s4319 = scalar_lea.vmem %s3, 80
      %v4320 = vld [vmem:[%s4319] sm:$0xf]
      %v4322 = vsel %vm1996, %v4314, 0
      %v4325 = vsel %vm1996, %v4315, 0
      %v4328 = vsel %vm1996, %v4316, 0
      %v4331 = vsel %vm1996, %v4317, 0
      %v4334 = vsel %vm1996, %v4318, 0
      %v4337 = vsel %vm2012, %v4320, 0
      %4339 = vmatprep.subr.bf16.mxu0 0
      %4340 = vmatpush1.bf16.msra.mxu0 %v4337
      %4341 = vmatprep.subr.bf16.mxu0 0
      %4342 = vmatpush1.bf16.msra.mxu0 0
      %4343 = vmatprep.subr.bf16.mxu0 0
      %4344 = vmatpush1.bf16.msra.mxu0 0
      %4345 = vmatprep.subr.bf16.mxu0 0
      %4346 = vmatpush1.bf16.msra.mxu0 0
      %4347 = vmatprep.subr.bf16.mxu0 0
      %4348 = vmatpush1.bf16.msra.mxu0 0
      %4349 = vmatprep.subr.bf16.mxu0 0
      %4350 = vmatpush1.bf16.msra.mxu0 0
      %4351 = vmatprep.subr.bf16.mxu0 0
      %4352 = vmatpush1.bf16.msra.mxu0 0
      %4353 = vmatprep.subr.bf16.mxu0 0
      %4354 = vmatpush1.bf16.msra.mxu0 0
      %4355 = vmatprep.subr.bf16.mxu0 0
      %4356 = vmatpush1.bf16.msra.mxu0 0
      %4357 = vmatprep.subr.bf16.mxu0 0
      %4358 = vmatpush1.bf16.msra.mxu0 0
      %4359 = vmatprep.subr.bf16.mxu0 0
      %4360 = vmatpush1.bf16.msra.mxu0 0
      %4361 = vmatprep.subr.bf16.mxu0 0
      %4362 = vmatpush1.bf16.msra.mxu0 0
      %4363 = vmatprep.subr.bf16.mxu0 0
      %4364 = vmatpush1.bf16.msra.mxu0 0
      %4365 = vmatprep.subr.bf16.mxu0 0
      %4366 = vmatpush1.bf16.msra.mxu0 0
      %4367 = vmatprep.subr.bf16.mxu0 0
      %4368 = vmatpush1.bf16.msra.mxu0 0
      %4369 = vmatprep.subr.bf16.mxu0 0
      %4370 = vmatpush1.bf16.msra.mxu0 0
      %4371 = vmatprep.mubr.bf16.mxu0 0
      %4372 = vmatmul.mubr.bf16.gmra.mrb[0].mxu0 %v4322
      %v4373 = vpop.f32.mrb[0].mxu0
      %v4374 = vadd.f32 0.0, %v4373
      %v4375 = vpop.f32.mrb[0].mxu0
      %v4376 = vpop.f32.mrb[0].mxu0
      %v4377 = vadd.f32 0.0, %v4376
      %v4378 = vpop.f32.mrb[0].mxu0
      %4379 = vmatprep.mubr.bf16.mxu0 0
      %4380 = vmatmul.mubr.bf16.gmra.mrb[0].mxu0 %v4325
      %v4381 = vpop.f32.mrb[0].mxu0
      %v4382 = vadd.f32 0.0, %v4381
      %v4383 = vpop.f32.mrb[0].mxu0
      %v4384 = vpop.f32.mrb[0].mxu0
      %v4385 = vadd.f32 0.0, %v4384
      %v4386 = vpop.f32.mrb[0].mxu0
      %4387 = vmatprep.mubr.bf16.mxu0 0
      %4388 = vmatmul.mubr.bf16.gmra.mrb[0].mxu0 %v4328
      %v4389 = vpop.f32.mrb[0].mxu0
      %v4390 = vadd.f32 0.0, %v4389
      %v4391 = vpop.f32.mrb[0].mxu0
      %v4392 = vpop.f32.mrb[0].mxu0
      %v4393 = vadd.f32 0.0, %v4392
      %v4394 = vpop.f32.mrb[0].mxu0
      %4395 = vmatprep.mubr.bf16.mxu0 0
      %4396 = vmatmul.mubr.bf16.gmra.mrb[0].mxu0 %v4331
      %v4397 = vpop.f32.mrb[0].mxu0
      %v4398 = vadd.f32 0.0, %v4397
      %v4399 = vpop.f32.mrb[0].mxu0
      %v4400 = vpop.f32.mrb[0].mxu0
      %v4401 = vadd.f32 0.0, %v4400
      %v4402 = vpop.f32.mrb[0].mxu0
      %4403 = vmatprep.mubr.bf16.mxu0 0
      %4404 = vmatmul.mubr.bf16.gmra.mrb[0].mxu0 %v4334
      %v4405 = vpop.f32.mrb[0].mxu0
      %v4406 = vadd.f32 0.0, %v4405
      %v4407 = vpop.f32.mrb[0].mxu0
      %v4408 = vpop.f32.mrb[0].mxu0
      %v4409 = vadd.f32 0.0, %v4408
      %v4410 = vpop.f32.mrb[0].mxu0
      %4411 = vdwg.mxu0
      %v4412 = vadd.f32 %v4294, %v4374
      %v4413 = vadd.f32 %v4295, %v4377
      %v4414 = vadd.f32 %v4296, %v4382
      %v4415 = vadd.f32 %v4297, %v4385
      %v4416 = vadd.f32 %v4298, %v4390
      %v4417 = vadd.f32 %v4299, %v4393
      %v4418 = vadd.f32 %v4300, %v4398
      %v4419 = vadd.f32 %v4301, %v4401
      %v4420 = vadd.f32 %v4302, %v4406
      %v4421 = vadd.f32 %v4303, %v4409
      %v4422 = vld [vmem:[#allocation3 + $0x41] sm:$0xff]
      %v4423 = vld [vmem:[#allocation3 + $0x49] sm:$0xff]
      %v4424 = vld [vmem:[#allocation3 + $0x51] sm:$0xff]
      %v4425 = vld [vmem:[#allocation3 + $0x59] sm:$0xff]
      %v4426 = vld [vmem:[#allocation3 + $0x61] sm:$0xff]
      %v4427 = vld [vmem:[#allocation3 + $0x69] sm:$0xff]
      %v4428 = vld [vmem:[#allocation3 + $0x71] sm:$0xff]
      %v4429 = vld [vmem:[#allocation3 + $0x79] sm:$0xff]
      %v4430 = vld [vmem:[#allocation3 + $0x81] sm:$0xff]
      %v4431 = vld [vmem:[#allocation3 + $0x89] sm:$0xff]
      %v4432 = vpack.c.bf16 %v4423, %v4422
      %v4433 = vpack.c.bf16 %v4425, %v4424
      %v4434 = vpack.c.bf16 %v4427, %v4426
      %v4435 = vpack.c.bf16 %v4429, %v4428
      %v4436 = vpack.c.bf16 %v4431, %v4430
      %s4437 = scalar_lea.vmem %s3, 84
      %v4438 = vld [vmem:[%s4437] sm:$0xf]
      %v4440 = vsel %vm1996, %v4432, 0
      %v4443 = vsel %vm1996, %v4433, 0
      %v4446 = vsel %vm1996, %v4434, 0
      %v4449 = vsel %vm1996, %v4435, 0
      %v4452 = vsel %vm1996, %v4436, 0
      %v4455 = vsel %vm2012, %v4438, 0
      %4457 = vmatprep.subr.bf16.mxu0 0
      %4458 = vmatpush1.bf16.msra.mxu0 %v4455
      %4459 = vmatprep.subr.bf16.mxu0 0
      %4460 = vmatpush1.bf16.msra.mxu0 0
      %4461 = vmatprep.subr.bf16.mxu0 0
      %4462 = vmatpush1.bf16.msra.mxu0 0
      %4463 = vmatprep.subr.bf16.mxu0 0
      %4464 = vmatpush1.bf16.msra.mxu0 0
      %4465 = vmatprep.subr.bf16.mxu0 0
      %4466 = vmatpush1.bf16.msra.mxu0 0
      %4467 = vmatprep.subr.bf16.mxu0 0
      %4468 = vmatpush1.bf16.msra.mxu0 0
      %4469 = vmatprep.subr.bf16.mxu0 0
      %4470 = vmatpush1.bf16.msra.mxu0 0
      %4471 = vmatprep.subr.bf16.mxu0 0
      %4472 = vmatpush1.bf16.msra.mxu0 0
      %4473 = vmatprep.subr.bf16.mxu0 0
      %4474 = vmatpush1.bf16.msra.mxu0 0
      %4475 = vmatprep.subr.bf16.mxu0 0
      %4476 = vmatpush1.bf16.msra.mxu0 0
      %4477 = vmatprep.subr.bf16.mxu0 0
      %4478 = vmatpush1.bf16.msra.mxu0 0
      %4479 = vmatprep.subr.bf16.mxu0 0
      %4480 = vmatpush1.bf16.msra.mxu0 0
      %4481 = vmatprep.subr.bf16.mxu0 0
      %4482 = vmatpush1.bf16.msra.mxu0 0
      %4483 = vmatprep.subr.bf16.mxu0 0
      %4484 = vmatpush1.bf16.msra.mxu0 0
      %4485 = vmatprep.subr.bf16.mxu0 0
      %4486 = vmatpush1.bf16.msra.mxu0 0
      %4487 = vmatprep.subr.bf16.mxu0 0
      %4488 = vmatpush1.bf16.msra.mxu0 0
      %4489 = vmatprep.mubr.bf16.mxu0 0
      %4490 = vmatmul.mubr.bf16.gmra.mrb[0].mxu0 %v4440
      %v4491 = vpop.f32.mrb[0].mxu0
      %v4492 = vadd.f32 0.0, %v4491
      %v4493 = vpop.f32.mrb[0].mxu0
      %v4494 = vpop.f32.mrb[0].mxu0
      %v4495 = vadd.f32 0.0, %v4494
      %v4496 = vpop.f32.mrb[0].mxu0
      %4497 = vmatprep.mubr.bf16.mxu0 0
      %4498 = vmatmul.mubr.bf16.gmra.mrb[0].mxu0 %v4443
      %v4499 = vpop.f32.mrb[0].mxu0
      %v4500 = vadd.f32 0.0, %v4499
      %v4501 = vpop.f32.mrb[0].mxu0
      %v4502 = vpop.f32.mrb[0].mxu0
      %v4503 = vadd.f32 0.0, %v4502
      %v4504 = vpop.f32.mrb[0].mxu0
      %4505 = vmatprep.mubr.bf16.mxu0 0
      %4506 = vmatmul.mubr.bf16.gmra.mrb[0].mxu0 %v4446
      %v4507 = vpop.f32.mrb[0].mxu0
      %v4508 = vadd.f32 0.0, %v4507
      %v4509 = vpop.f32.mrb[0].mxu0
      %v4510 = vpop.f32.mrb[0].mxu0
      %v4511 = vadd.f32 0.0, %v4510
      %v4512 = vpop.f32.mrb[0].mxu0
      %4513 = vmatprep.mubr.bf16.mxu0 0
      %4514 = vmatmul.mubr.bf16.gmra.mrb[0].mxu0 %v4449
      %v4515 = vpop.f32.mrb[0].mxu0
      %v4516 = vadd.f32 0.0, %v4515
      %v4517 = vpop.f32.mrb[0].mxu0
      %v4518 = vpop.f32.mrb[0].mxu0
      %v4519 = vadd.f32 0.0, %v4518
      %v4520 = vpop.f32.mrb[0].mxu0
      %4521 = vmatprep.mubr.bf16.mxu0 0
      %4522 = vmatmul.mubr.bf16.gmra.mrb[0].mxu0 %v4452
      %v4523 = vpop.f32.mrb[0].mxu0
      %v4524 = vadd.f32 0.0, %v4523
      %v4525 = vpop.f32.mrb[0].mxu0
      %v4526 = vpop.f32.mrb[0].mxu0
      %v4527 = vadd.f32 0.0, %v4526
      %v4528 = vpop.f32.mrb[0].mxu0
      %4529 = vdwg.mxu0
      %v4530 = vadd.f32 %v4412, %v4492
      %v4531 = vadd.f32 %v4413, %v4495
      %v4532 = vadd.f32 %v4414, %v4500
      %v4533 = vadd.f32 %v4415, %v4503
      %v4534 = vadd.f32 %v4416, %v4508
      %v4535 = vadd.f32 %v4417, %v4511
      %v4536 = vadd.f32 %v4418, %v4516
      %v4537 = vadd.f32 %v4419, %v4519
      %v4538 = vadd.f32 %v4420, %v4524
      %v4539 = vadd.f32 %v4421, %v4527
      %v4540 = vld [vmem:[#allocation3 + $0x42] sm:$0xff]
      %v4541 = vld [vmem:[#allocation3 + $0x4a] sm:$0xff]
      %v4542 = vld [vmem:[#allocation3 + $0x52] sm:$0xff]
      %v4543 = vld [vmem:[#allocation3 + $0x5a] sm:$0xff]
      %v4544 = vld [vmem:[#allocation3 + $0x62] sm:$0xff]
      %v4545 = vld [vmem:[#allocation3 + $0x6a] sm:$0xff]
      %v4546 = vld [vmem:[#allocation3 + $0x72] sm:$0xff]
      %v4547 = vld [vmem:[#allocation3 + $0x7a] sm:$0xff]
      %v4548 = vld [vmem:[#allocation3 + $0x82] sm:$0xff]
      %v4549 = vld [vmem:[#allocation3 + $0x8a] sm:$0xff]
      %v4550 = vpack.c.bf16 %v4541, %v4540
      %v4551 = vpack.c.bf16 %v4543, %v4542
      %v4552 = vpack.c.bf16 %v4545, %v4544
      %v4553 = vpack.c.bf16 %v4547, %v4546
      %v4554 = vpack.c.bf16 %v4549, %v4548
      %s4555 = scalar_lea.vmem %s3, 88
      %v4556 = vld [vmem:[%s4555] sm:$0xf]
      %v4558 = vsel %vm1996, %v4550, 0
      %v4561 = vsel %vm1996, %v4551, 0
      %v4564 = vsel %vm1996, %v4552, 0
      %v4567 = vsel %vm1996, %v4553, 0
      %v4570 = vsel %vm1996, %v4554, 0
      %v4573 = vsel %vm2012, %v4556, 0
      %4575 = vmatprep.subr.bf16.mxu0 0
      %4576 = vmatpush1.bf16.msra.mxu0 %v4573
      %4577 = vmatprep.subr.bf16.mxu0 0
      %4578 = vmatpush1.bf16.msra.mxu0 0
      %4579 = vmatprep.subr.bf16.mxu0 0
      %4580 = vmatpush1.bf16.msra.mxu0 0
      %4581 = vmatprep.subr.bf16.mxu0 0
      %4582 = vmatpush1.bf16.msra.mxu0 0
      %4583 = vmatprep.subr.bf16.mxu0 0
      %4584 = vmatpush1.bf16.msra.mxu0 0
      %4585 = vmatprep.subr.bf16.mxu0 0
      %4586 = vmatpush1.bf16.msra.mxu0 0
      %4587 = vmatprep.subr.bf16.mxu0 0
      %4588 = vmatpush1.bf16.msra.mxu0 0
      %4589 = vmatprep.subr.bf16.mxu0 0
      %4590 = vmatpush1.bf16.msra.mxu0 0
      %4591 = vmatprep.subr.bf16.mxu0 0
      %4592 = vmatpush1.bf16.msra.mxu0 0
      %4593 = vmatprep.subr.bf16.mxu0 0
      %4594 = vmatpush1.bf16.msra.mxu0 0
      %4595 = vmatprep.subr.bf16.mxu0 0
      %4596 = vmatpush1.bf16.msra.mxu0 0
      %4597 = vmatprep.subr.bf16.mxu0 0
      %4598 = vmatpush1.bf16.msra.mxu0 0
      %4599 = vmatprep.subr.bf16.mxu0 0
      %4600 = vmatpush1.bf16.msra.mxu0 0
      %4601 = vmatprep.subr.bf16.mxu0 0
      %4602 = vmatpush1.bf16.msra.mxu0 0
      %4603 = vmatprep.subr.bf16.mxu0 0
      %4604 = vmatpush1.bf16.msra.mxu0 0
      %4605 = vmatprep.subr.bf16.mxu0 0
      %4606 = vmatpush1.bf16.msra.mxu0 0
      %4607 = vmatprep.mubr.bf16.mxu0 0
      %4608 = vmatmul.mubr.bf16.gmra.mrb[0].mxu0 %v4558
      %v4609 = vpop.f32.mrb[0].mxu0
      %v4610 = vadd.f32 0.0, %v4609
      %v4611 = vpop.f32.mrb[0].mxu0
      %v4612 = vpop.f32.mrb[0].mxu0
      %v4613 = vadd.f32 0.0, %v4612
      %v4614 = vpop.f32.mrb[0].mxu0
      %4615 = vmatprep.mubr.bf16.mxu0 0
      %4616 = vmatmul.mubr.bf16.gmra.mrb[0].mxu0 %v4561
      %v4617 = vpop.f32.mrb[0].mxu0
      %v4618 = vadd.f32 0.0, %v4617
      %v4619 = vpop.f32.mrb[0].mxu0
      %v4620 = vpop.f32.mrb[0].mxu0
      %v4621 = vadd.f32 0.0, %v4620
      %v4622 = vpop.f32.mrb[0].mxu0
      %4623 = vmatprep.mubr.bf16.mxu0 0
      %4624 = vmatmul.mubr.bf16.gmra.mrb[0].mxu0 %v4564
      %v4625 = vpop.f32.mrb[0].mxu0
      %v4626 = vadd.f32 0.0, %v4625
      %v4627 = vpop.f32.mrb[0].mxu0
      %v4628 = vpop.f32.mrb[0].mxu0
      %v4629 = vadd.f32 0.0, %v4628
      %v4630 = vpop.f32.mrb[0].mxu0
      %4631 = vmatprep.mubr.bf16.mxu0 0
      %4632 = vmatmul.mubr.bf16.gmra.mrb[0].mxu0 %v4567
      %v4633 = vpop.f32.mrb[0].mxu0
      %v4634 = vadd.f32 0.0, %v4633
      %v4635 = vpop.f32.mrb[0].mxu0
      %v4636 = vpop.f32.mrb[0].mxu0
      %v4637 = vadd.f32 0.0, %v4636
      %v4638 = vpop.f32.mrb[0].mxu0
      %4639 = vmatprep.mubr.bf16.mxu0 0
      %4640 = vmatmul.mubr.bf16.gmra.mrb[0].mxu0 %v4570
      %v4641 = vpop.f32.mrb[0].mxu0
      %v4642 = vadd.f32 0.0, %v4641
      %v4643 = vpop.f32.mrb[0].mxu0
      %v4644 = vpop.f32.mrb[0].mxu0
      %v4645 = vadd.f32 0.0, %v4644
      %v4646 = vpop.f32.mrb[0].mxu0
      %4647 = vdwg.mxu0
      %v4648 = vadd.f32 %v4530, %v4610
      %v4649 = vadd.f32 %v4531, %v4613
      %v4650 = vadd.f32 %v4532, %v4618
      %v4651 = vadd.f32 %v4533, %v4621
      %v4652 = vadd.f32 %v4534, %v4626
      %v4653 = vadd.f32 %v4535, %v4629
      %v4654 = vadd.f32 %v4536, %v4634
      %v4655 = vadd.f32 %v4537, %v4637
      %v4656 = vadd.f32 %v4538, %v4642
      %v4657 = vadd.f32 %v4539, %v4645
      %v4658 = vld [vmem:[#allocation3 + $0x43] sm:$0xff]
      %v4659 = vld [vmem:[#allocation3 + $0x4b] sm:$0xff]
      %v4660 = vld [vmem:[#allocation3 + $0x53] sm:$0xff]
      %v4661 = vld [vmem:[#allocation3 + $0x5b] sm:$0xff]
      %v4662 = vld [vmem:[#allocation3 + $0x63] sm:$0xff]
      %v4663 = vld [vmem:[#allocation3 + $0x6b] sm:$0xff]
      %v4664 = vld [vmem:[#allocation3 + $0x73] sm:$0xff]
      %v4665 = vld [vmem:[#allocation3 + $0x7b] sm:$0xff]
      %v4666 = vld [vmem:[#allocation3 + $0x83] sm:$0xff]
      %v4667 = vld [vmem:[#allocation3 + $0x8b] sm:$0xff]
      %v4668 = vpack.c.bf16 %v4659, %v4658
      %v4669 = vpack.c.bf16 %v4661, %v4660
      %v4670 = vpack.c.bf16 %v4663, %v4662
      %v4671 = vpack.c.bf16 %v4665, %v4664
      %v4672 = vpack.c.bf16 %v4667, %v4666
      %s4673 = scalar_lea.vmem %s3, 92
      %v4674 = vld [vmem:[%s4673] sm:$0xf]
      %v4676 = vsel %vm1996, %v4668, 0
      %v4679 = vsel %vm1996, %v4669, 0
      %v4682 = vsel %vm1996, %v4670, 0
      %v4685 = vsel %vm1996, %v4671, 0
      %v4688 = vsel %vm1996, %v4672, 0
      %v4691 = vsel %vm2012, %v4674, 0
      %4693 = vmatprep.subr.bf16.mxu0 0
      %4694 = vmatpush1.bf16.msra.mxu0 %v4691
      %4695 = vmatprep.subr.bf16.mxu0 0
      %4696 = vmatpush1.bf16.msra.mxu0 0
      %4697 = vmatprep.subr.bf16.mxu0 0
      %4698 = vmatpush1.bf16.msra.mxu0 0
      %4699 = vmatprep.subr.bf16.mxu0 0
      %4700 = vmatpush1.bf16.msra.mxu0 0
      %4701 = vmatprep.subr.bf16.mxu0 0
      %4702 = vmatpush1.bf16.msra.mxu0 0
      %4703 = vmatprep.subr.bf16.mxu0 0
      %4704 = vmatpush1.bf16.msra.mxu0 0
      %4705 = vmatprep.subr.bf16.mxu0 0
      %4706 = vmatpush1.bf16.msra.mxu0 0
      %4707 = vmatprep.subr.bf16.mxu0 0
      %4708 = vmatpush1.bf16.msra.mxu0 0
      %4709 = vmatprep.subr.bf16.mxu0 0
      %4710 = vmatpush1.bf16.msra.mxu0 0
      %4711 = vmatprep.subr.bf16.mxu0 0
      %4712 = vmatpush1.bf16.msra.mxu0 0
      %4713 = vmatprep.subr.bf16.mxu0 0
      %4714 = vmatpush1.bf16.msra.mxu0 0
      %4715 = vmatprep.subr.bf16.mxu0 0
      %4716 = vmatpush1.bf16.msra.mxu0 0
      %4717 = vmatprep.subr.bf16.mxu0 0
      %4718 = vmatpush1.bf16.msra.mxu0 0
      %4719 = vmatprep.subr.bf16.mxu0 0
      %4720 = vmatpush1.bf16.msra.mxu0 0
      %4721 = vmatprep.subr.bf16.mxu0 0
      %4722 = vmatpush1.bf16.msra.mxu0 0
      %4723 = vmatprep.subr.bf16.mxu0 0
      %4724 = vmatpush1.bf16.msra.mxu0 0
      %4725 = vmatprep.mubr.bf16.mxu0 0
      %4726 = vmatmul.mubr.bf16.gmra.mrb[0].mxu0 %v4676
      %v4727 = vpop.f32.mrb[0].mxu0
      %v4728 = vadd.f32 0.0, %v4727
      %v4729 = vpop.f32.mrb[0].mxu0
      %v4730 = vpop.f32.mrb[0].mxu0
      %v4731 = vadd.f32 0.0, %v4730
      %v4732 = vpop.f32.mrb[0].mxu0
      %4733 = vmatprep.mubr.bf16.mxu0 0
      %4734 = vmatmul.mubr.bf16.gmra.mrb[0].mxu0 %v4679
      %v4735 = vpop.f32.mrb[0].mxu0
      %v4736 = vadd.f32 0.0, %v4735
      %v4737 = vpop.f32.mrb[0].mxu0
      %v4738 = vpop.f32.mrb[0].mxu0
      %v4739 = vadd.f32 0.0, %v4738
      %v4740 = vpop.f32.mrb[0].mxu0
      %4741 = vmatprep.mubr.bf16.mxu0 0
      %4742 = vmatmul.mubr.bf16.gmra.mrb[0].mxu0 %v4682
      %v4743 = vpop.f32.mrb[0].mxu0
      %v4744 = vadd.f32 0.0, %v4743
      %v4745 = vpop.f32.mrb[0].mxu0
      %v4746 = vpop.f32.mrb[0].mxu0
      %v4747 = vadd.f32 0.0, %v4746
      %v4748 = vpop.f32.mrb[0].mxu0
      %4749 = vmatprep.mubr.bf16.mxu0 0
      %4750 = vmatmul.mubr.bf16.gmra.mrb[0].mxu0 %v4685
      %v4751 = vpop.f32.mrb[0].mxu0
      %v4752 = vadd.f32 0.0, %v4751
      %v4753 = vpop.f32.mrb[0].mxu0
      %v4754 = vpop.f32.mrb[0].mxu0
      %v4755 = vadd.f32 0.0, %v4754
      %v4756 = vpop.f32.mrb[0].mxu0
      %4757 = vmatprep.mubr.bf16.mxu0 0
      %4758 = vmatmul.mubr.bf16.gmra.mrb[0].mxu0 %v4688
      %v4759 = vpop.f32.mrb[0].mxu0
      %v4760 = vadd.f32 0.0, %v4759
      %v4761 = vpop.f32.mrb[0].mxu0
      %v4762 = vpop.f32.mrb[0].mxu0
      %v4763 = vadd.f32 0.0, %v4762
      %v4764 = vpop.f32.mrb[0].mxu0
      %4765 = vdwg.mxu0
      %v4766 = vadd.f32 %v4648, %v4728
      %v4767 = vadd.f32 %v4649, %v4731
      %v4768 = vadd.f32 %v4650, %v4736
      %v4769 = vadd.f32 %v4651, %v4739
      %v4770 = vadd.f32 %v4652, %v4744
      %v4771 = vadd.f32 %v4653, %v4747
      %v4772 = vadd.f32 %v4654, %v4752
      %v4773 = vadd.f32 %v4655, %v4755
      %v4774 = vadd.f32 %v4656, %v4760
      %v4775 = vadd.f32 %v4657, %v4763
      %v4776 = vld [vmem:[#allocation3 + $0x44] sm:$0xff]
      %v4777 = vld [vmem:[#allocation3 + $0x4c] sm:$0xff]
      %v4778 = vld [vmem:[#allocation3 + $0x54] sm:$0xff]
      %v4779 = vld [vmem:[#allocation3 + $0x5c] sm:$0xff]
      %v4780 = vld [vmem:[#allocation3 + $0x64] sm:$0xff]
      %v4781 = vld [vmem:[#allocation3 + $0x6c] sm:$0xff]
      %v4782 = vld [vmem:[#allocation3 + $0x74] sm:$0xff]
      %v4783 = vld [vmem:[#allocation3 + $0x7c] sm:$0xff]
      %v4784 = vld [vmem:[#allocation3 + $0x84] sm:$0xff]
      %v4785 = vld [vmem:[#allocation3 + $0x8c] sm:$0xff]
      %v4786 = vpack.c.bf16 %v4777, %v4776
      %v4787 = vpack.c.bf16 %v4779, %v4778
      %v4788 = vpack.c.bf16 %v4781, %v4780
      %v4789 = vpack.c.bf16 %v4783, %v4782
      %v4790 = vpack.c.bf16 %v4785, %v4784
      %s4791 = scalar_lea.vmem %s3, 96
      %v4792 = vld [vmem:[%s4791] sm:$0xf]
      %v4794 = vsel %vm1996, %v4786, 0
      %v4797 = vsel %vm1996, %v4787, 0
      %v4800 = vsel %vm1996, %v4788, 0
      %v4803 = vsel %vm1996, %v4789, 0
      %v4806 = vsel %vm1996, %v4790, 0
      %v4809 = vsel %vm2012, %v4792, 0
      %4811 = vmatprep.subr.bf16.mxu0 0
      %4812 = vmatpush1.bf16.msra.mxu0 %v4809
      %4813 = vmatprep.subr.bf16.mxu0 0
      %4814 = vmatpush1.bf16.msra.mxu0 0
      %4815 = vmatprep.subr.bf16.mxu0 0
      %4816 = vmatpush1.bf16.msra.mxu0 0
      %4817 = vmatprep.subr.bf16.mxu0 0
      %4818 = vmatpush1.bf16.msra.mxu0 0
      %4819 = vmatprep.subr.bf16.mxu0 0
      %4820 = vmatpush1.bf16.msra.mxu0 0
      %4821 = vmatprep.subr.bf16.mxu0 0
      %4822 = vmatpush1.bf16.msra.mxu0 0
      %4823 = vmatprep.subr.bf16.mxu0 0
      %4824 = vmatpush1.bf16.msra.mxu0 0
      %4825 = vmatprep.subr.bf16.mxu0 0
      %4826 = vmatpush1.bf16.msra.mxu0 0
      %4827 = vmatprep.subr.bf16.mxu0 0
      %4828 = vmatpush1.bf16.msra.mxu0 0
      %4829 = vmatprep.subr.bf16.mxu0 0
      %4830 = vmatpush1.bf16.msra.mxu0 0
      %4831 = vmatprep.subr.bf16.mxu0 0
      %4832 = vmatpush1.bf16.msra.mxu0 0
      %4833 = vmatprep.subr.bf16.mxu0 0
      %4834 = vmatpush1.bf16.msra.mxu0 0
      %4835 = vmatprep.subr.bf16.mxu0 0
      %4836 = vmatpush1.bf16.msra.mxu0 0
      %4837 = vmatprep.subr.bf16.mxu0 0
      %4838 = vmatpush1.bf16.msra.mxu0 0
      %4839 = vmatprep.subr.bf16.mxu0 0
      %4840 = vmatpush1.bf16.msra.mxu0 0
      %4841 = vmatprep.subr.bf16.mxu0 0
      %4842 = vmatpush1.bf16.msra.mxu0 0
      %4843 = vmatprep.mubr.bf16.mxu0 0
      %4844 = vmatmul.mubr.bf16.gmra.mrb[0].mxu0 %v4794
      %v4845 = vpop.f32.mrb[0].mxu0
      %v4846 = vadd.f32 0.0, %v4845
      %v4847 = vpop.f32.mrb[0].mxu0
      %v4848 = vpop.f32.mrb[0].mxu0
      %v4849 = vadd.f32 0.0, %v4848
      %v4850 = vpop.f32.mrb[0].mxu0
      %4851 = vmatprep.mubr.bf16.mxu0 0
      %4852 = vmatmul.mubr.bf16.gmra.mrb[0].mxu0 %v4797
      %v4853 = vpop.f32.mrb[0].mxu0
      %v4854 = vadd.f32 0.0, %v4853
      %v4855 = vpop.f32.mrb[0].mxu0
      %v4856 = vpop.f32.mrb[0].mxu0
      %v4857 = vadd.f32 0.0, %v4856
      %v4858 = vpop.f32.mrb[0].mxu0
      %4859 = vmatprep.mubr.bf16.mxu0 0
      %4860 = vmatmul.mubr.bf16.gmra.mrb[0].mxu0 %v4800
      %v4861 = vpop.f32.mrb[0].mxu0
      %v4862 = vadd.f32 0.0, %v4861
      %v4863 = vpop.f32.mrb[0].mxu0
      %v4864 = vpop.f32.mrb[0].mxu0
      %v4865 = vadd.f32 0.0, %v4864
      %v4866 = vpop.f32.mrb[0].mxu0
      %4867 = vmatprep.mubr.bf16.mxu0 0
      %4868 = vmatmul.mubr.bf16.gmra.mrb[0].mxu0 %v4803
      %v4869 = vpop.f32.mrb[0].mxu0
      %v4870 = vadd.f32 0.0, %v4869
      %v4871 = vpop.f32.mrb[0].mxu0
      %v4872 = vpop.f32.mrb[0].mxu0
      %v4873 = vadd.f32 0.0, %v4872
      %v4874 = vpop.f32.mrb[0].mxu0
      %4875 = vmatprep.mubr.bf16.mxu0 0
      %4876 = vmatmul.mubr.bf16.gmra.mrb[0].mxu0 %v4806
      %v4877 = vpop.f32.mrb[0].mxu0
      %v4878 = vadd.f32 0.0, %v4877
      %v4879 = vpop.f32.mrb[0].mxu0
      %v4880 = vpop.f32.mrb[0].mxu0
      %v4881 = vadd.f32 0.0, %v4880
      %v4882 = vpop.f32.mrb[0].mxu0
      %4883 = vdwg.mxu0
      %v4884 = vadd.f32 %v4766, %v4846
      %v4885 = vadd.f32 %v4767, %v4849
      %v4886 = vadd.f32 %v4768, %v4854
      %v4887 = vadd.f32 %v4769, %v4857
      %v4888 = vadd.f32 %v4770, %v4862
      %v4889 = vadd.f32 %v4771, %v4865
      %v4890 = vadd.f32 %v4772, %v4870
      %v4891 = vadd.f32 %v4773, %v4873
      %v4892 = vadd.f32 %v4774, %v4878
      %v4893 = vadd.f32 %v4775, %v4881
      %4894 = vst [vmem:[#allocation4] sm:$0xff] %v4884
      %4895 = vst [vmem:[#allocation4 + $0x8] sm:$0xff] %v4885
      %4896 = vst [vmem:[#allocation4 + $0x10] sm:$0xff] %v4886
      %4897 = vst [vmem:[#allocation4 + $0x18] sm:$0xff] %v4887
      %4898 = vst [vmem:[#allocation4 + $0x20] sm:$0xff] %v4888
      %4899 = vst [vmem:[#allocation4 + $0x28] sm:$0xff] %v4889
      %4900 = vst [vmem:[#allocation4 + $0x30] sm:$0xff] %v4890
      %4901 = vst [vmem:[#allocation4 + $0x38] sm:$0xff] %v4891
      %4902 = vst [vmem:[#allocation4 + $0x40] sm:$0xff] %v4892
      %4903 = vst [vmem:[#allocation4 + $0x48] sm:$0xff] %v4893
      %v4904 = vld [vmem:[#allocation3 + $0x50] sm:$0xff]
      %v4905 = vld [vmem:[#allocation3 + $0x58] sm:$0xff]
      %v4906 = vld [vmem:[#allocation3 + $0x60] sm:$0xff]
      %v4907 = vld [vmem:[#allocation3 + $0x68] sm:$0xff]
      %v4908 = vld [vmem:[#allocation3 + $0x70] sm:$0xff]
      %v4909 = vld [vmem:[#allocation3 + $0x78] sm:$0xff]
      %v4910 = vld [vmem:[#allocation3 + $0x80] sm:$0xff]
      %v4911 = vld [vmem:[#allocation3 + $0x88] sm:$0xff]
      %v4912 = vld [vmem:[#allocation3 + $0x90] sm:$0xff]
      %v4913 = vld [vmem:[#allocation3 + $0x98] sm:$0xff]
      %v4914 = vpack.c.bf16 %v4905, %v4904
      %v4915 = vpack.c.bf16 %v4907, %v4906
      %v4916 = vpack.c.bf16 %v4909, %v4908
      %v4917 = vpack.c.bf16 %v4911, %v4910
      %v4918 = vpack.c.bf16 %v4913, %v4912
      %v4919 = vld [vmem:[%s3] sm:$0xf]
      %v4920 = vld [vmem:[#allocation3 + $0x51] sm:$0xff]
      %v4921 = vld [vmem:[#allocation3 + $0x59] sm:$0xff]
      %v4922 = vld [vmem:[#allocation3 + $0x61] sm:$0xff]
      %v4923 = vld [vmem:[#allocation3 + $0x69] sm:$0xff]
      %v4924 = vld [vmem:[#allocation3 + $0x71] sm:$0xff]
      %v4925 = vld [vmem:[#allocation3 + $0x79] sm:$0xff]
      %v4926 = vld [vmem:[#allocation3 + $0x81] sm:$0xff]
      %v4927 = vld [vmem:[#allocation3 + $0x89] sm:$0xff]
      %v4928 = vld [vmem:[#allocation3 + $0x91] sm:$0xff]
      %v4929 = vld [vmem:[#allocation3 + $0x99] sm:$0xff]
      %v4930 = vpack.c.bf16 %v4921, %v4920
      %v4931 = vpack.c.bf16 %v4923, %v4922
      %v4932 = vpack.c.bf16 %v4925, %v4924
      %v4933 = vpack.c.bf16 %v4927, %v4926
      %v4934 = vpack.c.bf16 %v4929, %v4928
      %v4935 = vld [vmem:[%s1994] sm:$0xf]
      %v4937 = vsel %vm1996, %v4930, 0
      %v4940 = vsel %vm1996, %v4931, 0
      %v4943 = vsel %vm1996, %v4932, 0
      %v4946 = vsel %vm1996, %v4933, 0
      %v4949 = vsel %vm1996, %v4934, 0
      %v4952 = vsel %vm2012, %v4935, 0
      %4954 = vmatprep.subr.bf16.mxu0 0
      %4955 = vmatpush1.bf16.msra.mxu0 %v4952
      %4956 = vmatprep.subr.bf16.mxu0 0
      %4957 = vmatpush1.bf16.msra.mxu0 0
      %4958 = vmatprep.subr.bf16.mxu0 0
      %4959 = vmatpush1.bf16.msra.mxu0 0
      %4960 = vmatprep.subr.bf16.mxu0 0
      %4961 = vmatpush1.bf16.msra.mxu0 0
      %4962 = vmatprep.subr.bf16.mxu0 0
      %4963 = vmatpush1.bf16.msra.mxu0 0
      %4964 = vmatprep.subr.bf16.mxu0 0
      %4965 = vmatpush1.bf16.msra.mxu0 0
      %4966 = vmatprep.subr.bf16.mxu0 0
      %4967 = vmatpush1.bf16.msra.mxu0 0
      %4968 = vmatprep.subr.bf16.mxu0 0
      %4969 = vmatpush1.bf16.msra.mxu0 0
      %4970 = vmatprep.subr.bf16.mxu0 0
      %4971 = vmatpush1.bf16.msra.mxu0 0
      %4972 = vmatprep.subr.bf16.mxu0 0
      %4973 = vmatpush1.bf16.msra.mxu0 0
      %4974 = vmatprep.subr.bf16.mxu0 0
      %4975 = vmatpush1.bf16.msra.mxu0 0
      %4976 = vmatprep.subr.bf16.mxu0 0
      %4977 = vmatpush1.bf16.msra.mxu0 0
      %4978 = vmatprep.subr.bf16.mxu0 0
      %4979 = vmatpush1.bf16.msra.mxu0 0
      %4980 = vmatprep.subr.bf16.mxu0 0
      %4981 = vmatpush1.bf16.msra.mxu0 0
      %4982 = vmatprep.subr.bf16.mxu0 0
      %4983 = vmatpush1.bf16.msra.mxu0 0
      %4984 = vmatprep.subr.bf16.mxu0 0
      %4985 = vmatpush1.bf16.msra.mxu0 0
      %4986 = vmatprep.mubr.bf16.mxu0 0
      %4987 = vmatmul.mubr.bf16.gmra.mrb[0].mxu0 %v4937
      %v4988 = vpop.f32.mrb[0].mxu0
      %v4989 = vadd.f32 0.0, %v4988
      %v4990 = vpop.f32.mrb[0].mxu0
      %v4991 = vpop.f32.mrb[0].mxu0
      %v4992 = vadd.f32 0.0, %v4991
      %v4993 = vpop.f32.mrb[0].mxu0
      %4994 = vmatprep.mubr.bf16.mxu0 0
      %4995 = vmatmul.mubr.bf16.gmra.mrb[0].mxu0 %v4940
      %v4996 = vpop.f32.mrb[0].mxu0
      %v4997 = vadd.f32 0.0, %v4996
      %v4998 = vpop.f32.mrb[0].mxu0
      %v4999 = vpop.f32.mrb[0].mxu0
      %v5000 = vadd.f32 0.0, %v4999
      %v5001 = vpop.f32.mrb[0].mxu0
      %5002 = vmatprep.mubr.bf16.mxu0 0
      %5003 = vmatmul.mubr.bf16.gmra.mrb[0].mxu0 %v4943
      %v5004 = vpop.f32.mrb[0].mxu0
      %v5005 = vadd.f32 0.0, %v5004
      %v5006 = vpop.f32.mrb[0].mxu0
      %v5007 = vpop.f32.mrb[0].mxu0
      %v5008 = vadd.f32 0.0, %v5007
      %v5009 = vpop.f32.mrb[0].mxu0
      %5010 = vmatprep.mubr.bf16.mxu0 0
      %5011 = vmatmul.mubr.bf16.gmra.mrb[0].mxu0 %v4946
      %v5012 = vpop.f32.mrb[0].mxu0
      %v5013 = vadd.f32 0.0, %v5012
      %v5014 = vpop.f32.mrb[0].mxu0
      %v5015 = vpop.f32.mrb[0].mxu0
      %v5016 = vadd.f32 0.0, %v5015
      %v5017 = vpop.f32.mrb[0].mxu0
      %5018 = vmatprep.mubr.bf16.mxu0 0
      %5019 = vmatmul.mubr.bf16.gmra.mrb[0].mxu0 %v4949
      %v5020 = vpop.f32.mrb[0].mxu0
      %v5021 = vadd.f32 0.0, %v5020
      %v5022 = vpop.f32.mrb[0].mxu0
      %v5023 = vpop.f32.mrb[0].mxu0
      %v5024 = vadd.f32 0.0, %v5023
      %v5025 = vpop.f32.mrb[0].mxu0
      %5026 = vdwg.mxu0
      %v5028 = vsel %vm1996, %v4914, 0
      %v5031 = vsel %vm1996, %v4915, 0
      %v5034 = vsel %vm1996, %v4916, 0
      %v5037 = vsel %vm1996, %v4917, 0
      %v5040 = vsel %vm1996, %v4918, 0
      %v5043 = vsel %vm2012, %v4919, 0
      %5045 = vmatprep.subr.bf16.mxu0 0
      %5046 = vmatpush1.bf16.msra.mxu0 %v5043
      %5047 = vmatprep.subr.bf16.mxu0 0
      %5048 = vmatpush1.bf16.msra.mxu0 0
      %5049 = vmatprep.subr.bf16.mxu0 0
      %5050 = vmatpush1.bf16.msra.mxu0 0
      %5051 = vmatprep.subr.bf16.mxu0 0
      %5052 = vmatpush1.bf16.msra.mxu0 0
      %5053 = vmatprep.subr.bf16.mxu0 0
      %5054 = vmatpush1.bf16.msra.mxu0 0
      %5055 = vmatprep.subr.bf16.mxu0 0
      %5056 = vmatpush1.bf16.msra.mxu0 0
      %5057 = vmatprep.subr.bf16.mxu0 0
      %5058 = vmatpush1.bf16.msra.mxu0 0
      %5059 = vmatprep.subr.bf16.mxu0 0
      %5060 = vmatpush1.bf16.msra.mxu0 0
      %5061 = vmatprep.subr.bf16.mxu0 0
      %5062 = vmatpush1.bf16.msra.mxu0 0
      %5063 = vmatprep.subr.bf16.mxu0 0
      %5064 = vmatpush1.bf16.msra.mxu0 0
      %5065 = vmatprep.subr.bf16.mxu0 0
      %5066 = vmatpush1.bf16.msra.mxu0 0
      %5067 = vmatprep.subr.bf16.mxu0 0
      %5068 = vmatpush1.bf16.msra.mxu0 0
      %5069 = vmatprep.subr.bf16.mxu0 0
      %5070 = vmatpush1.bf16.msra.mxu0 0
      %5071 = vmatprep.subr.bf16.mxu0 0
      %5072 = vmatpush1.bf16.msra.mxu0 0
      %5073 = vmatprep.subr.bf16.mxu0 0
      %5074 = vmatpush1.bf16.msra.mxu0 0
      %5075 = vmatprep.subr.bf16.mxu0 0
      %5076 = vmatpush1.bf16.msra.mxu0 0
      %5077 = vmatprep.mubr.bf16.mxu0 0
      %5078 = vmatmul.mubr.bf16.gmra.mrb[0].mxu0 %v5028
      %v5079 = vpop.f32.mrb[0].mxu0
      %v5080 = vadd.f32 %v4989, %v5079
      %v5081 = vpop.f32.mrb[0].mxu0
      %v5082 = vpop.f32.mrb[0].mxu0
      %v5083 = vadd.f32 %v4992, %v5082
      %v5084 = vpop.f32.mrb[0].mxu0
      %5085 = vmatprep.mubr.bf16.mxu0 0
      %5086 = vmatmul.mubr.bf16.gmra.mrb[0].mxu0 %v5031
      %v5087 = vpop.f32.mrb[0].mxu0
      %v5088 = vadd.f32 %v4997, %v5087
      %v5089 = vpop.f32.mrb[0].mxu0
      %v5090 = vpop.f32.mrb[0].mxu0
      %v5091 = vadd.f32 %v5000, %v5090
      %v5092 = vpop.f32.mrb[0].mxu0
      %5093 = vmatprep.mubr.bf16.mxu0 0
      %5094 = vmatmul.mubr.bf16.gmra.mrb[0].mxu0 %v5034
      %v5095 = vpop.f32.mrb[0].mxu0
      %v5096 = vadd.f32 %v5005, %v5095
      %v5097 = vpop.f32.mrb[0].mxu0
      %v5098 = vpop.f32.mrb[0].mxu0
      %v5099 = vadd.f32 %v5008, %v5098
      %v5100 = vpop.f32.mrb[0].mxu0
      %5101 = vmatprep.mubr.bf16.mxu0 0
      %5102 = vmatmul.mubr.bf16.gmra.mrb[0].mxu0 %v5037
      %v5103 = vpop.f32.mrb[0].mxu0
      %v5104 = vadd.f32 %v5013, %v5103
      %v5105 = vpop.f32.mrb[0].mxu0
      %v5106 = vpop.f32.mrb[0].mxu0
      %v5107 = vadd.f32 %v5016, %v5106
      %v5108 = vpop.f32.mrb[0].mxu0
      %5109 = vmatprep.mubr.bf16.mxu0 0
      %5110 = vmatmul.mubr.bf16.gmra.mrb[0].mxu0 %v5040
      %v5111 = vpop.f32.mrb[0].mxu0
      %v5112 = vadd.f32 %v5021, %v5111
      %v5113 = vpop.f32.mrb[0].mxu0
      %v5114 = vpop.f32.mrb[0].mxu0
      %v5115 = vadd.f32 %v5024, %v5114
      %v5116 = vpop.f32.mrb[0].mxu0
      %5117 = vdwg.mxu0
      %v5118 = vld [vmem:[#allocation3 + $0x52] sm:$0xff]
      %v5119 = vld [vmem:[#allocation3 + $0x5a] sm:$0xff]
      %v5120 = vld [vmem:[#allocation3 + $0x62] sm:$0xff]
      %v5121 = vld [vmem:[#allocation3 + $0x6a] sm:$0xff]
      %v5122 = vld [vmem:[#allocation3 + $0x72] sm:$0xff]
      %v5123 = vld [vmem:[#allocation3 + $0x7a] sm:$0xff]
      %v5124 = vld [vmem:[#allocation3 + $0x82] sm:$0xff]
      %v5125 = vld [vmem:[#allocation3 + $0x8a] sm:$0xff]
      %v5126 = vld [vmem:[#allocation3 + $0x92] sm:$0xff]
      %v5127 = vld [vmem:[#allocation3 + $0x9a] sm:$0xff]
      %v5128 = vpack.c.bf16 %v5119, %v5118
      %v5129 = vpack.c.bf16 %v5121, %v5120
      %v5130 = vpack.c.bf16 %v5123, %v5122
      %v5131 = vpack.c.bf16 %v5125, %v5124
      %v5132 = vpack.c.bf16 %v5127, %v5126
      %v5133 = vld [vmem:[%s2195] sm:$0xf]
      %v5135 = vsel %vm1996, %v5128, 0
      %v5138 = vsel %vm1996, %v5129, 0
      %v5141 = vsel %vm1996, %v5130, 0
      %v5144 = vsel %vm1996, %v5131, 0
      %v5147 = vsel %vm1996, %v5132, 0
      %v5150 = vsel %vm2012, %v5133, 0
      %5152 = vmatprep.subr.bf16.mxu0 0
      %5153 = vmatpush1.bf16.msra.mxu0 %v5150
      %5154 = vmatprep.subr.bf16.mxu0 0
      %5155 = vmatpush1.bf16.msra.mxu0 0
      %5156 = vmatprep.subr.bf16.mxu0 0
      %5157 = vmatpush1.bf16.msra.mxu0 0
      %5158 = vmatprep.subr.bf16.mxu0 0
      %5159 = vmatpush1.bf16.msra.mxu0 0
      %5160 = vmatprep.subr.bf16.mxu0 0
      %5161 = vmatpush1.bf16.msra.mxu0 0
      %5162 = vmatprep.subr.bf16.mxu0 0
      %5163 = vmatpush1.bf16.msra.mxu0 0
      %5164 = vmatprep.subr.bf16.mxu0 0
      %5165 = vmatpush1.bf16.msra.mxu0 0
      %5166 = vmatprep.subr.bf16.mxu0 0
      %5167 = vmatpush1.bf16.msra.mxu0 0
      %5168 = vmatprep.subr.bf16.mxu0 0
      %5169 = vmatpush1.bf16.msra.mxu0 0
      %5170 = vmatprep.subr.bf16.mxu0 0
      %5171 = vmatpush1.bf16.msra.mxu0 0
      %5172 = vmatprep.subr.bf16.mxu0 0
      %5173 = vmatpush1.bf16.msra.mxu0 0
      %5174 = vmatprep.subr.bf16.mxu0 0
      %5175 = vmatpush1.bf16.msra.mxu0 0
      %5176 = vmatprep.subr.bf16.mxu0 0
      %5177 = vmatpush1.bf16.msra.mxu0 0
      %5178 = vmatprep.subr.bf16.mxu0 0
      %5179 = vmatpush1.bf16.msra.mxu0 0
      %5180 = vmatprep.subr.bf16.mxu0 0
      %5181 = vmatpush1.bf16.msra.mxu0 0
      %5182 = vmatprep.subr.bf16.mxu0 0
      %5183 = vmatpush1.bf16.msra.mxu0 0
      %5184 = vmatprep.mubr.bf16.mxu0 0
      %5185 = vmatmul.mubr.bf16.gmra.mrb[0].mxu0 %v5135
      %v5186 = vpop.f32.mrb[0].mxu0
      %v5187 = vadd.f32 0.0, %v5186
      %v5188 = vpop.f32.mrb[0].mxu0
      %v5189 = vpop.f32.mrb[0].mxu0
      %v5190 = vadd.f32 0.0, %v5189
      %v5191 = vpop.f32.mrb[0].mxu0
      %5192 = vmatprep.mubr.bf16.mxu0 0
      %5193 = vmatmul.mubr.bf16.gmra.mrb[0].mxu0 %v5138
      %v5194 = vpop.f32.mrb[0].mxu0
      %v5195 = vadd.f32 0.0, %v5194
      %v5196 = vpop.f32.mrb[0].mxu0
      %v5197 = vpop.f32.mrb[0].mxu0
      %v5198 = vadd.f32 0.0, %v5197
      %v5199 = vpop.f32.mrb[0].mxu0
      %5200 = vmatprep.mubr.bf16.mxu0 0
      %5201 = vmatmul.mubr.bf16.gmra.mrb[0].mxu0 %v5141
      %v5202 = vpop.f32.mrb[0].mxu0
      %v5203 = vadd.f32 0.0, %v5202
      %v5204 = vpop.f32.mrb[0].mxu0
      %v5205 = vpop.f32.mrb[0].mxu0
      %v5206 = vadd.f32 0.0, %v5205
      %v5207 = vpop.f32.mrb[0].mxu0
      %5208 = vmatprep.mubr.bf16.mxu0 0
      %5209 = vmatmul.mubr.bf16.gmra.mrb[0].mxu0 %v5144
      %v5210 = vpop.f32.mrb[0].mxu0
      %v5211 = vadd.f32 0.0, %v5210
      %v5212 = vpop.f32.mrb[0].mxu0
      %v5213 = vpop.f32.mrb[0].mxu0
      %v5214 = vadd.f32 0.0, %v5213
      %v5215 = vpop.f32.mrb[0].mxu0
      %5216 = vmatprep.mubr.bf16.mxu0 0
      %5217 = vmatmul.mubr.bf16.gmra.mrb[0].mxu0 %v5147
      %v5218 = vpop.f32.mrb[0].mxu0
      %v5219 = vadd.f32 0.0, %v5218
      %v5220 = vpop.f32.mrb[0].mxu0
      %v5221 = vpop.f32.mrb[0].mxu0
      %v5222 = vadd.f32 0.0, %v5221
      %v5223 = vpop.f32.mrb[0].mxu0
      %5224 = vdwg.mxu0
      %v5225 = vadd.f32 %v5080, %v5187
      %v5226 = vadd.f32 %v5083, %v5190
      %v5227 = vadd.f32 %v5088, %v5195
      %v5228 = vadd.f32 %v5091, %v5198
      %v5229 = vadd.f32 %v5096, %v5203
      %v5230 = vadd.f32 %v5099, %v5206
      %v5231 = vadd.f32 %v5104, %v5211
      %v5232 = vadd.f32 %v5107, %v5214
      %v5233 = vadd.f32 %v5112, %v5219
      %v5234 = vadd.f32 %v5115, %v5222
      %v5235 = vld [vmem:[#allocation3 + $0x53] sm:$0xff]
      %v5236 = vld [vmem:[#allocation3 + $0x5b] sm:$0xff]
      %v5237 = vld [vmem:[#allocation3 + $0x63] sm:$0xff]
      %v5238 = vld [vmem:[#allocation3 + $0x6b] sm:$0xff]
      %v5239 = vld [vmem:[#allocation3 + $0x73] sm:$0xff]
      %v5240 = vld [vmem:[#allocation3 + $0x7b] sm:$0xff]
      %v5241 = vld [vmem:[#allocation3 + $0x83] sm:$0xff]
      %v5242 = vld [vmem:[#allocation3 + $0x8b] sm:$0xff]
      %v5243 = vld [vmem:[#allocation3 + $0x93] sm:$0xff]
      %v5244 = vld [vmem:[#allocation3 + $0x9b] sm:$0xff]
      %v5245 = vpack.c.bf16 %v5236, %v5235
      %v5246 = vpack.c.bf16 %v5238, %v5237
      %v5247 = vpack.c.bf16 %v5240, %v5239
      %v5248 = vpack.c.bf16 %v5242, %v5241
      %v5249 = vpack.c.bf16 %v5244, %v5243
      %v5250 = vld [vmem:[%s2313] sm:$0xf]
      %v5252 = vsel %vm1996, %v5245, 0
      %v5255 = vsel %vm1996, %v5246, 0
      %v5258 = vsel %vm1996, %v5247, 0
      %v5261 = vsel %vm1996, %v5248, 0
      %v5264 = vsel %vm1996, %v5249, 0
      %v5267 = vsel %vm2012, %v5250, 0
      %5269 = vmatprep.subr.bf16.mxu0 0
      %5270 = vmatpush1.bf16.msra.mxu0 %v5267
      %5271 = vmatprep.subr.bf16.mxu0 0
      %5272 = vmatpush1.bf16.msra.mxu0 0
      %5273 = vmatprep.subr.bf16.mxu0 0
      %5274 = vmatpush1.bf16.msra.mxu0 0
      %5275 = vmatprep.subr.bf16.mxu0 0
      %5276 = vmatpush1.bf16.msra.mxu0 0
      %5277 = vmatprep.subr.bf16.mxu0 0
      %5278 = vmatpush1.bf16.msra.mxu0 0
      %5279 = vmatprep.subr.bf16.mxu0 0
      %5280 = vmatpush1.bf16.msra.mxu0 0
      %5281 = vmatprep.subr.bf16.mxu0 0
      %5282 = vmatpush1.bf16.msra.mxu0 0
      %5283 = vmatprep.subr.bf16.mxu0 0
      %5284 = vmatpush1.bf16.msra.mxu0 0
      %5285 = vmatprep.subr.bf16.mxu0 0
      %5286 = vmatpush1.bf16.msra.mxu0 0
      %5287 = vmatprep.subr.bf16.mxu0 0
      %5288 = vmatpush1.bf16.msra.mxu0 0
      %5289 = vmatprep.subr.bf16.mxu0 0
      %5290 = vmatpush1.bf16.msra.mxu0 0
      %5291 = vmatprep.subr.bf16.mxu0 0
      %5292 = vmatpush1.bf16.msra.mxu0 0
      %5293 = vmatprep.subr.bf16.mxu0 0
      %5294 = vmatpush1.bf16.msra.mxu0 0
      %5295 = vmatprep.subr.bf16.mxu0 0
      %5296 = vmatpush1.bf16.msra.mxu0 0
      %5297 = vmatprep.subr.bf16.mxu0 0
      %5298 = vmatpush1.bf16.msra.mxu0 0
      %5299 = vmatprep.subr.bf16.mxu0 0
      %5300 = vmatpush1.bf16.msra.mxu0 0
      %5301 = vmatprep.mubr.bf16.mxu0 0
      %5302 = vmatmul.mubr.bf16.gmra.mrb[0].mxu0 %v5252
      %v5303 = vpop.f32.mrb[0].mxu0
      %v5304 = vadd.f32 0.0, %v5303
      %v5305 = vpop.f32.mrb[0].mxu0
      %v5306 = vpop.f32.mrb[0].mxu0
      %v5307 = vadd.f32 0.0, %v5306
      %v5308 = vpop.f32.mrb[0].mxu0
      %5309 = vmatprep.mubr.bf16.mxu0 0
      %5310 = vmatmul.mubr.bf16.gmra.mrb[0].mxu0 %v5255
      %v5311 = vpop.f32.mrb[0].mxu0
      %v5312 = vadd.f32 0.0, %v5311
      %v5313 = vpop.f32.mrb[0].mxu0
      %v5314 = vpop.f32.mrb[0].mxu0
      %v5315 = vadd.f32 0.0, %v5314
      %v5316 = vpop.f32.mrb[0].mxu0
      %5317 = vmatprep.mubr.bf16.mxu0 0
      %5318 = vmatmul.mubr.bf16.gmra.mrb[0].mxu0 %v5258
      %v5319 = vpop.f32.mrb[0].mxu0
      %v5320 = vadd.f32 0.0, %v5319
      %v5321 = vpop.f32.mrb[0].mxu0
      %v5322 = vpop.f32.mrb[0].mxu0
      %v5323 = vadd.f32 0.0, %v5322
      %v5324 = vpop.f32.mrb[0].mxu0
      %5325 = vmatprep.mubr.bf16.mxu0 0
      %5326 = vmatmul.mubr.bf16.gmra.mrb[0].mxu0 %v5261
      %v5327 = vpop.f32.mrb[0].mxu0
      %v5328 = vadd.f32 0.0, %v5327
      %v5329 = vpop.f32.mrb[0].mxu0
      %v5330 = vpop.f32.mrb[0].mxu0
      %v5331 = vadd.f32 0.0, %v5330
      %v5332 = vpop.f32.mrb[0].mxu0
      %5333 = vmatprep.mubr.bf16.mxu0 0
      %5334 = vmatmul.mubr.bf16.gmra.mrb[0].mxu0 %v5264
      %v5335 = vpop.f32.mrb[0].mxu0
      %v5336 = vadd.f32 0.0, %v5335
      %v5337 = vpop.f32.mrb[0].mxu0
      %v5338 = vpop.f32.mrb[0].mxu0
      %v5339 = vadd.f32 0.0, %v5338
      %v5340 = vpop.f32.mrb[0].mxu0
      %5341 = vdwg.mxu0
      %v5342 = vadd.f32 %v5225, %v5304
      %v5343 = vadd.f32 %v5226, %v5307
      %v5344 = vadd.f32 %v5227, %v5312
      %v5345 = vadd.f32 %v5228, %v5315
      %v5346 = vadd.f32 %v5229, %v5320
      %v5347 = vadd.f32 %v5230, %v5323
      %v5348 = vadd.f32 %v5231, %v5328
      %v5349 = vadd.f32 %v5232, %v5331
      %v5350 = vadd.f32 %v5233, %v5336
      %v5351 = vadd.f32 %v5234, %v5339
      %v5352 = vld [vmem:[#allocation3 + $0x54] sm:$0xff]
      %v5353 = vld [vmem:[#allocation3 + $0x5c] sm:$0xff]
      %v5354 = vld [vmem:[#allocation3 + $0x64] sm:$0xff]
      %v5355 = vld [vmem:[#allocation3 + $0x6c] sm:$0xff]
      %v5356 = vld [vmem:[#allocation3 + $0x74] sm:$0xff]
      %v5357 = vld [vmem:[#allocation3 + $0x7c] sm:$0xff]
      %v5358 = vld [vmem:[#allocation3 + $0x84] sm:$0xff]
      %v5359 = vld [vmem:[#allocation3 + $0x8c] sm:$0xff]
      %v5360 = vld [vmem:[#allocation3 + $0x94] sm:$0xff]
      %v5361 = vld [vmem:[#allocation3 + $0x9c] sm:$0xff]
      %v5362 = vpack.c.bf16 %v5353, %v5352
      %v5363 = vpack.c.bf16 %v5355, %v5354
      %v5364 = vpack.c.bf16 %v5357, %v5356
      %v5365 = vpack.c.bf16 %v5359, %v5358
      %v5366 = vpack.c.bf16 %v5361, %v5360
      %v5367 = vld [vmem:[%s2431] sm:$0xf]
      %v5369 = vsel %vm1996, %v5362, 0
      %v5372 = vsel %vm1996, %v5363, 0
      %v5375 = vsel %vm1996, %v5364, 0
      %v5378 = vsel %vm1996, %v5365, 0
      %v5381 = vsel %vm1996, %v5366, 0
      %v5384 = vsel %vm2012, %v5367, 0
      %5386 = vmatprep.subr.bf16.mxu0 0
      %5387 = vmatpush1.bf16.msra.mxu0 %v5384
      %5388 = vmatprep.subr.bf16.mxu0 0
      %5389 = vmatpush1.bf16.msra.mxu0 0
      %5390 = vmatprep.subr.bf16.mxu0 0
      %5391 = vmatpush1.bf16.msra.mxu0 0
      %5392 = vmatprep.subr.bf16.mxu0 0
      %5393 = vmatpush1.bf16.msra.mxu0 0
      %5394 = vmatprep.subr.bf16.mxu0 0
      %5395 = vmatpush1.bf16.msra.mxu0 0
      %5396 = vmatprep.subr.bf16.mxu0 0
      %5397 = vmatpush1.bf16.msra.mxu0 0
      %5398 = vmatprep.subr.bf16.mxu0 0
      %5399 = vmatpush1.bf16.msra.mxu0 0
      %5400 = vmatprep.subr.bf16.mxu0 0
      %5401 = vmatpush1.bf16.msra.mxu0 0
      %5402 = vmatprep.subr.bf16.mxu0 0
      %5403 = vmatpush1.bf16.msra.mxu0 0
      %5404 = vmatprep.subr.bf16.mxu0 0
      %5405 = vmatpush1.bf16.msra.mxu0 0
      %5406 = vmatprep.subr.bf16.mxu0 0
      %5407 = vmatpush1.bf16.msra.mxu0 0
      %5408 = vmatprep.subr.bf16.mxu0 0
      %5409 = vmatpush1.bf16.msra.mxu0 0
      %5410 = vmatprep.subr.bf16.mxu0 0
      %5411 = vmatpush1.bf16.msra.mxu0 0
      %5412 = vmatprep.subr.bf16.mxu0 0
      %5413 = vmatpush1.bf16.msra.mxu0 0
      %5414 = vmatprep.subr.bf16.mxu0 0
      %5415 = vmatpush1.bf16.msra.mxu0 0
      %5416 = vmatprep.subr.bf16.mxu0 0
      %5417 = vmatpush1.bf16.msra.mxu0 0
      %5418 = vmatprep.mubr.bf16.mxu0 0
      %5419 = vmatmul.mubr.bf16.gmra.mrb[0].mxu0 %v5369
      %v5420 = vpop.f32.mrb[0].mxu0
      %v5421 = vadd.f32 0.0, %v5420
      %v5422 = vpop.f32.mrb[0].mxu0
      %v5423 = vpop.f32.mrb[0].mxu0
      %v5424 = vadd.f32 0.0, %v5423
      %v5425 = vpop.f32.mrb[0].mxu0
      %5426 = vmatprep.mubr.bf16.mxu0 0
      %5427 = vmatmul.mubr.bf16.gmra.mrb[0].mxu0 %v5372
      %v5428 = vpop.f32.mrb[0].mxu0
      %v5429 = vadd.f32 0.0, %v5428
      %v5430 = vpop.f32.mrb[0].mxu0
      %v5431 = vpop.f32.mrb[0].mxu0
      %v5432 = vadd.f32 0.0, %v5431
      %v5433 = vpop.f32.mrb[0].mxu0
      %5434 = vmatprep.mubr.bf16.mxu0 0
      %5435 = vmatmul.mubr.bf16.gmra.mrb[0].mxu0 %v5375
      %v5436 = vpop.f32.mrb[0].mxu0
      %v5437 = vadd.f32 0.0, %v5436
      %v5438 = vpop.f32.mrb[0].mxu0
      %v5439 = vpop.f32.mrb[0].mxu0
      %v5440 = vadd.f32 0.0, %v5439
      %v5441 = vpop.f32.mrb[0].mxu0
      %5442 = vmatprep.mubr.bf16.mxu0 0
      %5443 = vmatmul.mubr.bf16.gmra.mrb[0].mxu0 %v5378
      %v5444 = vpop.f32.mrb[0].mxu0
      %v5445 = vadd.f32 0.0, %v5444
      %v5446 = vpop.f32.mrb[0].mxu0
      %v5447 = vpop.f32.mrb[0].mxu0
      %v5448 = vadd.f32 0.0, %v5447
      %v5449 = vpop.f32.mrb[0].mxu0
      %5450 = vmatprep.mubr.bf16.mxu0 0
      %5451 = vmatmul.mubr.bf16.gmra.mrb[0].mxu0 %v5381
      %v5452 = vpop.f32.mrb[0].mxu0
      %v5453 = vadd.f32 0.0, %v5452
      %v5454 = vpop.f32.mrb[0].mxu0
      %v5455 = vpop.f32.mrb[0].mxu0
      %v5456 = vadd.f32 0.0, %v5455
      %v5457 = vpop.f32.mrb[0].mxu0
      %5458 = vdwg.mxu0
      %v5459 = vadd.f32 %v5342, %v5421
      %v5460 = vadd.f32 %v5343, %v5424
      %v5461 = vadd.f32 %v5344, %v5429
      %v5462 = vadd.f32 %v5345, %v5432
      %v5463 = vadd.f32 %v5346, %v5437
      %v5464 = vadd.f32 %v5347, %v5440
      %v5465 = vadd.f32 %v5348, %v5445
      %v5466 = vadd.f32 %v5349, %v5448
      %v5467 = vadd.f32 %v5350, %v5453
      %v5468 = vadd.f32 %v5351, %v5456
      %v5469 = vld [vmem:[#allocation3 + $0x60] sm:$0xff]
      %v5470 = vld [vmem:[#allocation3 + $0x68] sm:$0xff]
      %v5471 = vld [vmem:[#allocation3 + $0x70] sm:$0xff]
      %v5472 = vld [vmem:[#allocation3 + $0x78] sm:$0xff]
      %v5473 = vld [vmem:[#allocation3 + $0x80] sm:$0xff]
      %v5474 = vld [vmem:[#allocation3 + $0x88] sm:$0xff]
      %v5475 = vld [vmem:[#allocation3 + $0x90] sm:$0xff]
      %v5476 = vld [vmem:[#allocation3 + $0x98] sm:$0xff]
      %v5477 = vld [vmem:[#allocation3 + $0xa0] sm:$0xff]
      %v5478 = vld [vmem:[#allocation3 + $0xa8] sm:$0xff]
      %v5479 = vpack.c.bf16 %v5470, %v5469
      %v5480 = vpack.c.bf16 %v5472, %v5471
      %v5481 = vpack.c.bf16 %v5474, %v5473
      %v5482 = vpack.c.bf16 %v5476, %v5475
      %v5483 = vpack.c.bf16 %v5478, %v5477
      %v5484 = vld [vmem:[%s2549] sm:$0xf]
      %v5486 = vsel %vm1996, %v5479, 0
      %v5489 = vsel %vm1996, %v5480, 0
      %v5492 = vsel %vm1996, %v5481, 0
      %v5495 = vsel %vm1996, %v5482, 0
      %v5498 = vsel %vm1996, %v5483, 0
      %v5501 = vsel %vm2012, %v5484, 0
      %5503 = vmatprep.subr.bf16.mxu0 0
      %5504 = vmatpush1.bf16.msra.mxu0 %v5501
      %5505 = vmatprep.subr.bf16.mxu0 0
      %5506 = vmatpush1.bf16.msra.mxu0 0
      %5507 = vmatprep.subr.bf16.mxu0 0
      %5508 = vmatpush1.bf16.msra.mxu0 0
      %5509 = vmatprep.subr.bf16.mxu0 0
      %5510 = vmatpush1.bf16.msra.mxu0 0
      %5511 = vmatprep.subr.bf16.mxu0 0
      %5512 = vmatpush1.bf16.msra.mxu0 0
      %5513 = vmatprep.subr.bf16.mxu0 0
      %5514 = vmatpush1.bf16.msra.mxu0 0
      %5515 = vmatprep.subr.bf16.mxu0 0
      %5516 = vmatpush1.bf16.msra.mxu0 0
      %5517 = vmatprep.subr.bf16.mxu0 0
      %5518 = vmatpush1.bf16.msra.mxu0 0
      %5519 = vmatprep.subr.bf16.mxu0 0
      %5520 = vmatpush1.bf16.msra.mxu0 0
      %5521 = vmatprep.subr.bf16.mxu0 0
      %5522 = vmatpush1.bf16.msra.mxu0 0
      %5523 = vmatprep.subr.bf16.mxu0 0
      %5524 = vmatpush1.bf16.msra.mxu0 0
      %5525 = vmatprep.subr.bf16.mxu0 0
      %5526 = vmatpush1.bf16.msra.mxu0 0
      %5527 = vmatprep.subr.bf16.mxu0 0
      %5528 = vmatpush1.bf16.msra.mxu0 0
      %5529 = vmatprep.subr.bf16.mxu0 0
      %5530 = vmatpush1.bf16.msra.mxu0 0
      %5531 = vmatprep.subr.bf16.mxu0 0
      %5532 = vmatpush1.bf16.msra.mxu0 0
      %5533 = vmatprep.subr.bf16.mxu0 0
      %5534 = vmatpush1.bf16.msra.mxu0 0
      %5535 = vmatprep.mubr.bf16.mxu0 0
      %5536 = vmatmul.mubr.bf16.gmra.mrb[0].mxu0 %v5486
      %v5537 = vpop.f32.mrb[0].mxu0
      %v5538 = vadd.f32 0.0, %v5537
      %v5539 = vpop.f32.mrb[0].mxu0
      %v5540 = vpop.f32.mrb[0].mxu0
      %v5541 = vadd.f32 0.0, %v5540
      %v5542 = vpop.f32.mrb[0].mxu0
      %5543 = vmatprep.mubr.bf16.mxu0 0
      %5544 = vmatmul.mubr.bf16.gmra.mrb[0].mxu0 %v5489
      %v5545 = vpop.f32.mrb[0].mxu0
      %v5546 = vadd.f32 0.0, %v5545
      %v5547 = vpop.f32.mrb[0].mxu0
      %v5548 = vpop.f32.mrb[0].mxu0
      %v5549 = vadd.f32 0.0, %v5548
      %v5550 = vpop.f32.mrb[0].mxu0
      %5551 = vmatprep.mubr.bf16.mxu0 0
      %5552 = vmatmul.mubr.bf16.gmra.mrb[0].mxu0 %v5492
      %v5553 = vpop.f32.mrb[0].mxu0
      %v5554 = vadd.f32 0.0, %v5553
      %v5555 = vpop.f32.mrb[0].mxu0
      %v5556 = vpop.f32.mrb[0].mxu0
      %v5557 = vadd.f32 0.0, %v5556
      %v5558 = vpop.f32.mrb[0].mxu0
      %5559 = vmatprep.mubr.bf16.mxu0 0
      %5560 = vmatmul.mubr.bf16.gmra.mrb[0].mxu0 %v5495
      %v5561 = vpop.f32.mrb[0].mxu0
      %v5562 = vadd.f32 0.0, %v5561
      %v5563 = vpop.f32.mrb[0].mxu0
      %v5564 = vpop.f32.mrb[0].mxu0
      %v5565 = vadd.f32 0.0, %v5564
      %v5566 = vpop.f32.mrb[0].mxu0
      %5567 = vmatprep.mubr.bf16.mxu0 0
      %5568 = vmatmul.mubr.bf16.gmra.mrb[0].mxu0 %v5498
      %v5569 = vpop.f32.mrb[0].mxu0
      %v5570 = vadd.f32 0.0, %v5569
      %v5571 = vpop.f32.mrb[0].mxu0
      %v5572 = vpop.f32.mrb[0].mxu0
      %v5573 = vadd.f32 0.0, %v5572
      %v5574 = vpop.f32.mrb[0].mxu0
      %5575 = vdwg.mxu0
      %v5576 = vadd.f32 %v5459, %v5538
      %v5577 = vadd.f32 %v5460, %v5541
      %v5578 = vadd.f32 %v5461, %v5546
      %v5579 = vadd.f32 %v5462, %v5549
      %v5580 = vadd.f32 %v5463, %v5554
      %v5581 = vadd.f32 %v5464, %v5557
      %v5582 = vadd.f32 %v5465, %v5562
      %v5583 = vadd.f32 %v5466, %v5565
      %v5584 = vadd.f32 %v5467, %v5570
      %v5585 = vadd.f32 %v5468, %v5573
      %v5586 = vld [vmem:[#allocation3 + $0x61] sm:$0xff]
      %v5587 = vld [vmem:[#allocation3 + $0x69] sm:$0xff]
      %v5588 = vld [vmem:[#allocation3 + $0x71] sm:$0xff]
      %v5589 = vld [vmem:[#allocation3 + $0x79] sm:$0xff]
      %v5590 = vld [vmem:[#allocation3 + $0x81] sm:$0xff]
      %v5591 = vld [vmem:[#allocation3 + $0x89] sm:$0xff]
      %v5592 = vld [vmem:[#allocation3 + $0x91] sm:$0xff]
      %v5593 = vld [vmem:[#allocation3 + $0x99] sm:$0xff]
      %v5594 = vld [vmem:[#allocation3 + $0xa1] sm:$0xff]
      %v5595 = vld [vmem:[#allocation3 + $0xa9] sm:$0xff]
      %v5596 = vpack.c.bf16 %v5587, %v5586
      %v5597 = vpack.c.bf16 %v5589, %v5588
      %v5598 = vpack.c.bf16 %v5591, %v5590
      %v5599 = vpack.c.bf16 %v5593, %v5592
      %v5600 = vpack.c.bf16 %v5595, %v5594
      %v5601 = vld [vmem:[%s2667] sm:$0xf]
      %v5603 = vsel %vm1996, %v5596, 0
      %v5606 = vsel %vm1996, %v5597, 0
      %v5609 = vsel %vm1996, %v5598, 0
      %v5612 = vsel %vm1996, %v5599, 0
      %v5615 = vsel %vm1996, %v5600, 0
      %v5618 = vsel %vm2012, %v5601, 0
      %5620 = vmatprep.subr.bf16.mxu0 0
      %5621 = vmatpush1.bf16.msra.mxu0 %v5618
      %5622 = vmatprep.subr.bf16.mxu0 0
      %5623 = vmatpush1.bf16.msra.mxu0 0
      %5624 = vmatprep.subr.bf16.mxu0 0
      %5625 = vmatpush1.bf16.msra.mxu0 0
      %5626 = vmatprep.subr.bf16.mxu0 0
      %5627 = vmatpush1.bf16.msra.mxu0 0
      %5628 = vmatprep.subr.bf16.mxu0 0
      %5629 = vmatpush1.bf16.msra.mxu0 0
      %5630 = vmatprep.subr.bf16.mxu0 0
      %5631 = vmatpush1.bf16.msra.mxu0 0
      %5632 = vmatprep.subr.bf16.mxu0 0
      %5633 = vmatpush1.bf16.msra.mxu0 0
      %5634 = vmatprep.subr.bf16.mxu0 0
      %5635 = vmatpush1.bf16.msra.mxu0 0
      %5636 = vmatprep.subr.bf16.mxu0 0
      %5637 = vmatpush1.bf16.msra.mxu0 0
      %5638 = vmatprep.subr.bf16.mxu0 0
      %5639 = vmatpush1.bf16.msra.mxu0 0
      %5640 = vmatprep.subr.bf16.mxu0 0
      %5641 = vmatpush1.bf16.msra.mxu0 0
      %5642 = vmatprep.subr.bf16.mxu0 0
      %5643 = vmatpush1.bf16.msra.mxu0 0
      %5644 = vmatprep.subr.bf16.mxu0 0
      %5645 = vmatpush1.bf16.msra.mxu0 0
      %5646 = vmatprep.subr.bf16.mxu0 0
      %5647 = vmatpush1.bf16.msra.mxu0 0
      %5648 = vmatprep.subr.bf16.mxu0 0
      %5649 = vmatpush1.bf16.msra.mxu0 0
      %5650 = vmatprep.subr.bf16.mxu0 0
      %5651 = vmatpush1.bf16.msra.mxu0 0
      %5652 = vmatprep.mubr.bf16.mxu0 0
      %5653 = vmatmul.mubr.bf16.gmra.mrb[0].mxu0 %v5603
      %v5654 = vpop.f32.mrb[0].mxu0
      %v5655 = vadd.f32 0.0, %v5654
      %v5656 = vpop.f32.mrb[0].mxu0
      %v5657 = vpop.f32.mrb[0].mxu0
      %v5658 = vadd.f32 0.0, %v5657
      %v5659 = vpop.f32.mrb[0].mxu0
      %5660 = vmatprep.mubr.bf16.mxu0 0
      %5661 = vmatmul.mubr.bf16.gmra.mrb[0].mxu0 %v5606
      %v5662 = vpop.f32.mrb[0].mxu0
      %v5663 = vadd.f32 0.0, %v5662
      %v5664 = vpop.f32.mrb[0].mxu0
      %v5665 = vpop.f32.mrb[0].mxu0
      %v5666 = vadd.f32 0.0, %v5665
      %v5667 = vpop.f32.mrb[0].mxu0
      %5668 = vmatprep.mubr.bf16.mxu0 0
      %5669 = vmatmul.mubr.bf16.gmra.mrb[0].mxu0 %v5609
      %v5670 = vpop.f32.mrb[0].mxu0
      %v5671 = vadd.f32 0.0, %v5670
      %v5672 = vpop.f32.mrb[0].mxu0
      %v5673 = vpop.f32.mrb[0].mxu0
      %v5674 = vadd.f32 0.0, %v5673
      %v5675 = vpop.f32.mrb[0].mxu0
      %5676 = vmatprep.mubr.bf16.mxu0 0
      %5677 = vmatmul.mubr.bf16.gmra.mrb[0].mxu0 %v5612
      %v5678 = vpop.f32.mrb[0].mxu0
      %v5679 = vadd.f32 0.0, %v5678
      %v5680 = vpop.f32.mrb[0].mxu0
      %v5681 = vpop.f32.mrb[0].mxu0
      %v5682 = vadd.f32 0.0, %v5681
      %v5683 = vpop.f32.mrb[0].mxu0
      %5684 = vmatprep.mubr.bf16.mxu0 0
      %5685 = vmatmul.mubr.bf16.gmra.mrb[0].mxu0 %v5615
      %v5686 = vpop.f32.mrb[0].mxu0
      %v5687 = vadd.f32 0.0, %v5686
      %v5688 = vpop.f32.mrb[0].mxu0
      %v5689 = vpop.f32.mrb[0].mxu0
      %v5690 = vadd.f32 0.0, %v5689
      %v5691 = vpop.f32.mrb[0].mxu0
      %5692 = vdwg.mxu0
      %v5693 = vadd.f32 %v5576, %v5655
      %v5694 = vadd.f32 %v5577, %v5658
      %v5695 = vadd.f32 %v5578, %v5663
      %v5696 = vadd.f32 %v5579, %v5666
      %v5697 = vadd.f32 %v5580, %v5671
      %v5698 = vadd.f32 %v5581, %v5674
      %v5699 = vadd.f32 %v5582, %v5679
      %v5700 = vadd.f32 %v5583, %v5682
      %v5701 = vadd.f32 %v5584, %v5687
      %v5702 = vadd.f32 %v5585, %v5690
      %v5703 = vld [vmem:[#allocation3 + $0x62] sm:$0xff]
      %v5704 = vld [vmem:[#allocation3 + $0x6a] sm:$0xff]
      %v5705 = vld [vmem:[#allocation3 + $0x72] sm:$0xff]
      %v5706 = vld [vmem:[#allocation3 + $0x7a] sm:$0xff]
      %v5707 = vld [vmem:[#allocation3 + $0x82] sm:$0xff]
      %v5708 = vld [vmem:[#allocation3 + $0x8a] sm:$0xff]
      %v5709 = vld [vmem:[#allocation3 + $0x92] sm:$0xff]
      %v5710 = vld [vmem:[#allocation3 + $0x9a] sm:$0xff]
      %v5711 = vld [vmem:[#allocation3 + $0xa2] sm:$0xff]
      %v5712 = vld [vmem:[#allocation3 + $0xaa] sm:$0xff]
      %v5713 = vpack.c.bf16 %v5704, %v5703
      %v5714 = vpack.c.bf16 %v5706, %v5705
      %v5715 = vpack.c.bf16 %v5708, %v5707
      %v5716 = vpack.c.bf16 %v5710, %v5709
      %v5717 = vpack.c.bf16 %v5712, %v5711
      %v5718 = vld [vmem:[%s2785] sm:$0xf]
      %v5720 = vsel %vm1996, %v5713, 0
      %v5723 = vsel %vm1996, %v5714, 0
      %v5726 = vsel %vm1996, %v5715, 0
      %v5729 = vsel %vm1996, %v5716, 0
      %v5732 = vsel %vm1996, %v5717, 0
      %v5735 = vsel %vm2012, %v5718, 0
      %5737 = vmatprep.subr.bf16.mxu0 0
      %5738 = vmatpush1.bf16.msra.mxu0 %v5735
      %5739 = vmatprep.subr.bf16.mxu0 0
      %5740 = vmatpush1.bf16.msra.mxu0 0
      %5741 = vmatprep.subr.bf16.mxu0 0
      %5742 = vmatpush1.bf16.msra.mxu0 0
      %5743 = vmatprep.subr.bf16.mxu0 0
      %5744 = vmatpush1.bf16.msra.mxu0 0
      %5745 = vmatprep.subr.bf16.mxu0 0
      %5746 = vmatpush1.bf16.msra.mxu0 0
      %5747 = vmatprep.subr.bf16.mxu0 0
      %5748 = vmatpush1.bf16.msra.mxu0 0
      %5749 = vmatprep.subr.bf16.mxu0 0
      %5750 = vmatpush1.bf16.msra.mxu0 0
      %5751 = vmatprep.subr.bf16.mxu0 0
      %5752 = vmatpush1.bf16.msra.mxu0 0
      %5753 = vmatprep.subr.bf16.mxu0 0
      %5754 = vmatpush1.bf16.msra.mxu0 0
      %5755 = vmatprep.subr.bf16.mxu0 0
      %5756 = vmatpush1.bf16.msra.mxu0 0
      %5757 = vmatprep.subr.bf16.mxu0 0
      %5758 = vmatpush1.bf16.msra.mxu0 0
      %5759 = vmatprep.subr.bf16.mxu0 0
      %5760 = vmatpush1.bf16.msra.mxu0 0
      %5761 = vmatprep.subr.bf16.mxu0 0
      %5762 = vmatpush1.bf16.msra.mxu0 0
      %5763 = vmatprep.subr.bf16.mxu0 0
      %5764 = vmatpush1.bf16.msra.mxu0 0
      %5765 = vmatprep.subr.bf16.mxu0 0
      %5766 = vmatpush1.bf16.msra.mxu0 0
      %5767 = vmatprep.subr.bf16.mxu0 0
      %5768 = vmatpush1.bf16.msra.mxu0 0
      %5769 = vmatprep.mubr.bf16.mxu0 0
      %5770 = vmatmul.mubr.bf16.gmra.mrb[0].mxu0 %v5720
      %v5771 = vpop.f32.mrb[0].mxu0
      %v5772 = vadd.f32 0.0, %v5771
      %v5773 = vpop.f32.mrb[0].mxu0
      %v5774 = vpop.f32.mrb[0].mxu0
      %v5775 = vadd.f32 0.0, %v5774
      %v5776 = vpop.f32.mrb[0].mxu0
      %5777 = vmatprep.mubr.bf16.mxu0 0
      %5778 = vmatmul.mubr.bf16.gmra.mrb[0].mxu0 %v5723
      %v5779 = vpop.f32.mrb[0].mxu0
      %v5780 = vadd.f32 0.0, %v5779
      %v5781 = vpop.f32.mrb[0].mxu0
      %v5782 = vpop.f32.mrb[0].mxu0
      %v5783 = vadd.f32 0.0, %v5782
      %v5784 = vpop.f32.mrb[0].mxu0
      %5785 = vmatprep.mubr.bf16.mxu0 0
      %5786 = vmatmul.mubr.bf16.gmra.mrb[0].mxu0 %v5726
      %v5787 = vpop.f32.mrb[0].mxu0
      %v5788 = vadd.f32 0.0, %v5787
      %v5789 = vpop.f32.mrb[0].mxu0
      %v5790 = vpop.f32.mrb[0].mxu0
      %v5791 = vadd.f32 0.0, %v5790
      %v5792 = vpop.f32.mrb[0].mxu0
      %5793 = vmatprep.mubr.bf16.mxu0 0
      %5794 = vmatmul.mubr.bf16.gmra.mrb[0].mxu0 %v5729
      %v5795 = vpop.f32.mrb[0].mxu0
      %v5796 = vadd.f32 0.0, %v5795
      %v5797 = vpop.f32.mrb[0].mxu0
      %v5798 = vpop.f32.mrb[0].mxu0
      %v5799 = vadd.f32 0.0, %v5798
      %v5800 = vpop.f32.mrb[0].mxu0
      %5801 = vmatprep.mubr.bf16.mxu0 0
      %5802 = vmatmul.mubr.bf16.gmra.mrb[0].mxu0 %v5732
      %v5803 = vpop.f32.mrb[0].mxu0
      %v5804 = vadd.f32 0.0, %v5803
      %v5805 = vpop.f32.mrb[0].mxu0
      %v5806 = vpop.f32.mrb[0].mxu0
      %v5807 = vadd.f32 0.0, %v5806
      %v5808 = vpop.f32.mrb[0].mxu0
      %5809 = vdwg.mxu0
      %v5810 = vadd.f32 %v5693, %v5772
      %v5811 = vadd.f32 %v5694, %v5775
      %v5812 = vadd.f32 %v5695, %v5780
      %v5813 = vadd.f32 %v5696, %v5783
      %v5814 = vadd.f32 %v5697, %v5788
      %v5815 = vadd.f32 %v5698, %v5791
      %v5816 = vadd.f32 %v5699, %v5796
      %v5817 = vadd.f32 %v5700, %v5799
      %v5818 = vadd.f32 %v5701, %v5804
      %v5819 = vadd.f32 %v5702, %v5807
      %v5820 = vld [vmem:[#allocation3 + $0x63] sm:$0xff]
      %v5821 = vld [vmem:[#allocation3 + $0x6b] sm:$0xff]
      %v5822 = vld [vmem:[#allocation3 + $0x73] sm:$0xff]
      %v5823 = vld [vmem:[#allocation3 + $0x7b] sm:$0xff]
      %v5824 = vld [vmem:[#allocation3 + $0x83] sm:$0xff]
      %v5825 = vld [vmem:[#allocation3 + $0x8b] sm:$0xff]
      %v5826 = vld [vmem:[#allocation3 + $0x93] sm:$0xff]
      %v5827 = vld [vmem:[#allocation3 + $0x9b] sm:$0xff]
      %v5828 = vld [vmem:[#allocation3 + $0xa3] sm:$0xff]
      %v5829 = vld [vmem:[#allocation3 + $0xab] sm:$0xff]
      %v5830 = vpack.c.bf16 %v5821, %v5820
      %v5831 = vpack.c.bf16 %v5823, %v5822
      %v5832 = vpack.c.bf16 %v5825, %v5824
      %v5833 = vpack.c.bf16 %v5827, %v5826
      %v5834 = vpack.c.bf16 %v5829, %v5828
      %v5835 = vld [vmem:[%s2903] sm:$0xf]
      %v5837 = vsel %vm1996, %v5830, 0
      %v5840 = vsel %vm1996, %v5831, 0
      %v5843 = vsel %vm1996, %v5832, 0
      %v5846 = vsel %vm1996, %v5833, 0
      %v5849 = vsel %vm1996, %v5834, 0
      %v5852 = vsel %vm2012, %v5835, 0
      %5854 = vmatprep.subr.bf16.mxu0 0
      %5855 = vmatpush1.bf16.msra.mxu0 %v5852
      %5856 = vmatprep.subr.bf16.mxu0 0
      %5857 = vmatpush1.bf16.msra.mxu0 0
      %5858 = vmatprep.subr.bf16.mxu0 0
      %5859 = vmatpush1.bf16.msra.mxu0 0
      %5860 = vmatprep.subr.bf16.mxu0 0
      %5861 = vmatpush1.bf16.msra.mxu0 0
      %5862 = vmatprep.subr.bf16.mxu0 0
      %5863 = vmatpush1.bf16.msra.mxu0 0
      %5864 = vmatprep.subr.bf16.mxu0 0
      %5865 = vmatpush1.bf16.msra.mxu0 0
      %5866 = vmatprep.subr.bf16.mxu0 0
      %5867 = vmatpush1.bf16.msra.mxu0 0
      %5868 = vmatprep.subr.bf16.mxu0 0
      %5869 = vmatpush1.bf16.msra.mxu0 0
      %5870 = vmatprep.subr.bf16.mxu0 0
      %5871 = vmatpush1.bf16.msra.mxu0 0
      %5872 = vmatprep.subr.bf16.mxu0 0
      %5873 = vmatpush1.bf16.msra.mxu0 0
      %5874 = vmatprep.subr.bf16.mxu0 0
      %5875 = vmatpush1.bf16.msra.mxu0 0
      %5876 = vmatprep.subr.bf16.mxu0 0
      %5877 = vmatpush1.bf16.msra.mxu0 0
      %5878 = vmatprep.subr.bf16.mxu0 0
      %5879 = vmatpush1.bf16.msra.mxu0 0
      %5880 = vmatprep.subr.bf16.mxu0 0
      %5881 = vmatpush1.bf16.msra.mxu0 0
      %5882 = vmatprep.subr.bf16.mxu0 0
      %5883 = vmatpush1.bf16.msra.mxu0 0
      %5884 = vmatprep.subr.bf16.mxu0 0
      %5885 = vmatpush1.bf16.msra.mxu0 0
      %5886 = vmatprep.mubr.bf16.mxu0 0
      %5887 = vmatmul.mubr.bf16.gmra.mrb[0].mxu0 %v5837
      %v5888 = vpop.f32.mrb[0].mxu0
      %v5889 = vadd.f32 0.0, %v5888
      %v5890 = vpop.f32.mrb[0].mxu0
      %v5891 = vpop.f32.mrb[0].mxu0
      %v5892 = vadd.f32 0.0, %v5891
      %v5893 = vpop.f32.mrb[0].mxu0
      %5894 = vmatprep.mubr.bf16.mxu0 0
      %5895 = vmatmul.mubr.bf16.gmra.mrb[0].mxu0 %v5840
      %v5896 = vpop.f32.mrb[0].mxu0
      %v5897 = vadd.f32 0.0, %v5896
      %v5898 = vpop.f32.mrb[0].mxu0
      %v5899 = vpop.f32.mrb[0].mxu0
      %v5900 = vadd.f32 0.0, %v5899
      %v5901 = vpop.f32.mrb[0].mxu0
      %5902 = vmatprep.mubr.bf16.mxu0 0
      %5903 = vmatmul.mubr.bf16.gmra.mrb[0].mxu0 %v5843
      %v5904 = vpop.f32.mrb[0].mxu0
      %v5905 = vadd.f32 0.0, %v5904
      %v5906 = vpop.f32.mrb[0].mxu0
      %v5907 = vpop.f32.mrb[0].mxu0
      %v5908 = vadd.f32 0.0, %v5907
      %v5909 = vpop.f32.mrb[0].mxu0
      %5910 = vmatprep.mubr.bf16.mxu0 0
      %5911 = vmatmul.mubr.bf16.gmra.mrb[0].mxu0 %v5846
      %v5912 = vpop.f32.mrb[0].mxu0
      %v5913 = vadd.f32 0.0, %v5912
      %v5914 = vpop.f32.mrb[0].mxu0
      %v5915 = vpop.f32.mrb[0].mxu0
      %v5916 = vadd.f32 0.0, %v5915
      %v5917 = vpop.f32.mrb[0].mxu0
      %5918 = vmatprep.mubr.bf16.mxu0 0
      %5919 = vmatmul.mubr.bf16.gmra.mrb[0].mxu0 %v5849
      %v5920 = vpop.f32.mrb[0].mxu0
      %v5921 = vadd.f32 0.0, %v5920
      %v5922 = vpop.f32.mrb[0].mxu0
      %v5923 = vpop.f32.mrb[0].mxu0
      %v5924 = vadd.f32 0.0, %v5923
      %v5925 = vpop.f32.mrb[0].mxu0
      %5926 = vdwg.mxu0
      %v5927 = vadd.f32 %v5810, %v5889
      %v5928 = vadd.f32 %v5811, %v5892
      %v5929 = vadd.f32 %v5812, %v5897
      %v5930 = vadd.f32 %v5813, %v5900
      %v5931 = vadd.f32 %v5814, %v5905
      %v5932 = vadd.f32 %v5815, %v5908
      %v5933 = vadd.f32 %v5816, %v5913
      %v5934 = vadd.f32 %v5817, %v5916
      %v5935 = vadd.f32 %v5818, %v5921
      %v5936 = vadd.f32 %v5819, %v5924
      %v5937 = vld [vmem:[#allocation3 + $0x64] sm:$0xff]
      %v5938 = vld [vmem:[#allocation3 + $0x6c] sm:$0xff]
      %v5939 = vld [vmem:[#allocation3 + $0x74] sm:$0xff]
      %v5940 = vld [vmem:[#allocation3 + $0x7c] sm:$0xff]
      %v5941 = vld [vmem:[#allocation3 + $0x84] sm:$0xff]
      %v5942 = vld [vmem:[#allocation3 + $0x8c] sm:$0xff]
      %v5943 = vld [vmem:[#allocation3 + $0x94] sm:$0xff]
      %v5944 = vld [vmem:[#allocation3 + $0x9c] sm:$0xff]
      %v5945 = vld [vmem:[#allocation3 + $0xa4] sm:$0xff]
      %v5946 = vld [vmem:[#allocation3 + $0xac] sm:$0xff]
      %v5947 = vpack.c.bf16 %v5938, %v5937
      %v5948 = vpack.c.bf16 %v5940, %v5939
      %v5949 = vpack.c.bf16 %v5942, %v5941
      %v5950 = vpack.c.bf16 %v5944, %v5943
      %v5951 = vpack.c.bf16 %v5946, %v5945
      %v5952 = vld [vmem:[%s3021] sm:$0xf]
      %v5954 = vsel %vm1996, %v5947, 0
      %v5957 = vsel %vm1996, %v5948, 0
      %v5960 = vsel %vm1996, %v5949, 0
      %v5963 = vsel %vm1996, %v5950, 0
      %v5966 = vsel %vm1996, %v5951, 0
      %v5969 = vsel %vm2012, %v5952, 0
      %5971 = vmatprep.subr.bf16.mxu0 0
      %5972 = vmatpush1.bf16.msra.mxu0 %v5969
      %5973 = vmatprep.subr.bf16.mxu0 0
      %5974 = vmatpush1.bf16.msra.mxu0 0
      %5975 = vmatprep.subr.bf16.mxu0 0
      %5976 = vmatpush1.bf16.msra.mxu0 0
      %5977 = vmatprep.subr.bf16.mxu0 0
      %5978 = vmatpush1.bf16.msra.mxu0 0
      %5979 = vmatprep.subr.bf16.mxu0 0
      %5980 = vmatpush1.bf16.msra.mxu0 0
      %5981 = vmatprep.subr.bf16.mxu0 0
      %5982 = vmatpush1.bf16.msra.mxu0 0
      %5983 = vmatprep.subr.bf16.mxu0 0
      %5984 = vmatpush1.bf16.msra.mxu0 0
      %5985 = vmatprep.subr.bf16.mxu0 0
      %5986 = vmatpush1.bf16.msra.mxu0 0
      %5987 = vmatprep.subr.bf16.mxu0 0
      %5988 = vmatpush1.bf16.msra.mxu0 0
      %5989 = vmatprep.subr.bf16.mxu0 0
      %5990 = vmatpush1.bf16.msra.mxu0 0
      %5991 = vmatprep.subr.bf16.mxu0 0
      %5992 = vmatpush1.bf16.msra.mxu0 0
      %5993 = vmatprep.subr.bf16.mxu0 0
      %5994 = vmatpush1.bf16.msra.mxu0 0
      %5995 = vmatprep.subr.bf16.mxu0 0
      %5996 = vmatpush1.bf16.msra.mxu0 0
      %5997 = vmatprep.subr.bf16.mxu0 0
      %5998 = vmatpush1.bf16.msra.mxu0 0
      %5999 = vmatprep.subr.bf16.mxu0 0
      %6000 = vmatpush1.bf16.msra.mxu0 0
      %6001 = vmatprep.subr.bf16.mxu0 0
      %6002 = vmatpush1.bf16.msra.mxu0 0
      %6003 = vmatprep.mubr.bf16.mxu0 0
      %6004 = vmatmul.mubr.bf16.gmra.mrb[0].mxu0 %v5954
      %v6005 = vpop.f32.mrb[0].mxu0
      %v6006 = vadd.f32 0.0, %v6005
      %v6007 = vpop.f32.mrb[0].mxu0
      %v6008 = vpop.f32.mrb[0].mxu0
      %v6009 = vadd.f32 0.0, %v6008
      %v6010 = vpop.f32.mrb[0].mxu0
      %6011 = vmatprep.mubr.bf16.mxu0 0
      %6012 = vmatmul.mubr.bf16.gmra.mrb[0].mxu0 %v5957
      %v6013 = vpop.f32.mrb[0].mxu0
      %v6014 = vadd.f32 0.0, %v6013
      %v6015 = vpop.f32.mrb[0].mxu0
      %v6016 = vpop.f32.mrb[0].mxu0
      %v6017 = vadd.f32 0.0, %v6016
      %v6018 = vpop.f32.mrb[0].mxu0
      %6019 = vmatprep.mubr.bf16.mxu0 0
      %6020 = vmatmul.mubr.bf16.gmra.mrb[0].mxu0 %v5960
      %v6021 = vpop.f32.mrb[0].mxu0
      %v6022 = vadd.f32 0.0, %v6021
      %v6023 = vpop.f32.mrb[0].mxu0
      %v6024 = vpop.f32.mrb[0].mxu0
      %v6025 = vadd.f32 0.0, %v6024
      %v6026 = vpop.f32.mrb[0].mxu0
      %6027 = vmatprep.mubr.bf16.mxu0 0
      %6028 = vmatmul.mubr.bf16.gmra.mrb[0].mxu0 %v5963
      %v6029 = vpop.f32.mrb[0].mxu0
      %v6030 = vadd.f32 0.0, %v6029
      %v6031 = vpop.f32.mrb[0].mxu0
      %v6032 = vpop.f32.mrb[0].mxu0
      %v6033 = vadd.f32 0.0, %v6032
      %v6034 = vpop.f32.mrb[0].mxu0
      %6035 = vmatprep.mubr.bf16.mxu0 0
      %6036 = vmatmul.mubr.bf16.gmra.mrb[0].mxu0 %v5966
      %v6037 = vpop.f32.mrb[0].mxu0
      %v6038 = vadd.f32 0.0, %v6037
      %v6039 = vpop.f32.mrb[0].mxu0
      %v6040 = vpop.f32.mrb[0].mxu0
      %v6041 = vadd.f32 0.0, %v6040
      %v6042 = vpop.f32.mrb[0].mxu0
      %6043 = vdwg.mxu0
      %v6044 = vadd.f32 %v5927, %v6006
      %v6045 = vadd.f32 %v5928, %v6009
      %v6046 = vadd.f32 %v5929, %v6014
      %v6047 = vadd.f32 %v5930, %v6017
      %v6048 = vadd.f32 %v5931, %v6022
      %v6049 = vadd.f32 %v5932, %v6025
      %v6050 = vadd.f32 %v5933, %v6030
      %v6051 = vadd.f32 %v5934, %v6033
      %v6052 = vadd.f32 %v5935, %v6038
      %v6053 = vadd.f32 %v5936, %v6041
      %v6054 = vld [vmem:[#allocation3 + $0x70] sm:$0xff]
      %v6055 = vld [vmem:[#allocation3 + $0x78] sm:$0xff]
      %v6056 = vld [vmem:[#allocation3 + $0x80] sm:$0xff]
      %v6057 = vld [vmem:[#allocation3 + $0x88] sm:$0xff]
      %v6058 = vld [vmem:[#allocation3 + $0x90] sm:$0xff]
      %v6059 = vld [vmem:[#allocation3 + $0x98] sm:$0xff]
      %v6060 = vld [vmem:[#allocation3 + $0xa0] sm:$0xff]
      %v6061 = vld [vmem:[#allocation3 + $0xa8] sm:$0xff]
      %v6062 = vld [vmem:[#allocation3 + $0xb0] sm:$0xff]
      %v6063 = vld [vmem:[#allocation3 + $0xb8] sm:$0xff]
      %v6064 = vpack.c.bf16 %v6055, %v6054
      %v6065 = vpack.c.bf16 %v6057, %v6056
      %v6066 = vpack.c.bf16 %v6059, %v6058
      %v6067 = vpack.c.bf16 %v6061, %v6060
      %v6068 = vpack.c.bf16 %v6063, %v6062
      %v6069 = vld [vmem:[%s3139] sm:$0xf]
      %v6071 = vsel %vm1996, %v6064, 0
      %v6074 = vsel %vm1996, %v6065, 0
      %v6077 = vsel %vm1996, %v6066, 0
      %v6080 = vsel %vm1996, %v6067, 0
      %v6083 = vsel %vm1996, %v6068, 0
      %v6086 = vsel %vm2012, %v6069, 0
      %6088 = vmatprep.subr.bf16.mxu0 0
      %6089 = vmatpush1.bf16.msra.mxu0 %v6086
      %6090 = vmatprep.subr.bf16.mxu0 0
      %6091 = vmatpush1.bf16.msra.mxu0 0
      %6092 = vmatprep.subr.bf16.mxu0 0
      %6093 = vmatpush1.bf16.msra.mxu0 0
      %6094 = vmatprep.subr.bf16.mxu0 0
      %6095 = vmatpush1.bf16.msra.mxu0 0
      %6096 = vmatprep.subr.bf16.mxu0 0
      %6097 = vmatpush1.bf16.msra.mxu0 0
      %6098 = vmatprep.subr.bf16.mxu0 0
      %6099 = vmatpush1.bf16.msra.mxu0 0
      %6100 = vmatprep.subr.bf16.mxu0 0
      %6101 = vmatpush1.bf16.msra.mxu0 0
      %6102 = vmatprep.subr.bf16.mxu0 0
      %6103 = vmatpush1.bf16.msra.mxu0 0
      %6104 = vmatprep.subr.bf16.mxu0 0
      %6105 = vmatpush1.bf16.msra.mxu0 0
      %6106 = vmatprep.subr.bf16.mxu0 0
      %6107 = vmatpush1.bf16.msra.mxu0 0
      %6108 = vmatprep.subr.bf16.mxu0 0
      %6109 = vmatpush1.bf16.msra.mxu0 0
      %6110 = vmatprep.subr.bf16.mxu0 0
      %6111 = vmatpush1.bf16.msra.mxu0 0
      %6112 = vmatprep.subr.bf16.mxu0 0
      %6113 = vmatpush1.bf16.msra.mxu0 0
      %6114 = vmatprep.subr.bf16.mxu0 0
      %6115 = vmatpush1.bf16.msra.mxu0 0
      %6116 = vmatprep.subr.bf16.mxu0 0
      %6117 = vmatpush1.bf16.msra.mxu0 0
      %6118 = vmatprep.subr.bf16.mxu0 0
      %6119 = vmatpush1.bf16.msra.mxu0 0
      %6120 = vmatprep.mubr.bf16.mxu0 0
      %6121 = vmatmul.mubr.bf16.gmra.mrb[0].mxu0 %v6071
      %v6122 = vpop.f32.mrb[0].mxu0
      %v6123 = vadd.f32 0.0, %v6122
      %v6124 = vpop.f32.mrb[0].mxu0
      %v6125 = vpop.f32.mrb[0].mxu0
      %v6126 = vadd.f32 0.0, %v6125
      %v6127 = vpop.f32.mrb[0].mxu0
      %6128 = vmatprep.mubr.bf16.mxu0 0
      %6129 = vmatmul.mubr.bf16.gmra.mrb[0].mxu0 %v6074
      %v6130 = vpop.f32.mrb[0].mxu0
      %v6131 = vadd.f32 0.0, %v6130
      %v6132 = vpop.f32.mrb[0].mxu0
      %v6133 = vpop.f32.mrb[0].mxu0
      %v6134 = vadd.f32 0.0, %v6133
      %v6135 = vpop.f32.mrb[0].mxu0
      %6136 = vmatprep.mubr.bf16.mxu0 0
      %6137 = vmatmul.mubr.bf16.gmra.mrb[0].mxu0 %v6077
      %v6138 = vpop.f32.mrb[0].mxu0
      %v6139 = vadd.f32 0.0, %v6138
      %v6140 = vpop.f32.mrb[0].mxu0
      %v6141 = vpop.f32.mrb[0].mxu0
      %v6142 = vadd.f32 0.0, %v6141
      %v6143 = vpop.f32.mrb[0].mxu0
      %6144 = vmatprep.mubr.bf16.mxu0 0
      %6145 = vmatmul.mubr.bf16.gmra.mrb[0].mxu0 %v6080
      %v6146 = vpop.f32.mrb[0].mxu0
      %v6147 = vadd.f32 0.0, %v6146
      %v6148 = vpop.f32.mrb[0].mxu0
      %v6149 = vpop.f32.mrb[0].mxu0
      %v6150 = vadd.f32 0.0, %v6149
      %v6151 = vpop.f32.mrb[0].mxu0
      %6152 = vmatprep.mubr.bf16.mxu0 0
      %6153 = vmatmul.mubr.bf16.gmra.mrb[0].mxu0 %v6083
      %v6154 = vpop.f32.mrb[0].mxu0
      %v6155 = vadd.f32 0.0, %v6154
      %v6156 = vpop.f32.mrb[0].mxu0
      %v6157 = vpop.f32.mrb[0].mxu0
      %v6158 = vadd.f32 0.0, %v6157
      %v6159 = vpop.f32.mrb[0].mxu0
      %6160 = vdwg.mxu0
      %v6161 = vadd.f32 %v6044, %v6123
      %v6162 = vadd.f32 %v6045, %v6126
      %v6163 = vadd.f32 %v6046, %v6131
      %v6164 = vadd.f32 %v6047, %v6134
      %v6165 = vadd.f32 %v6048, %v6139
      %v6166 = vadd.f32 %v6049, %v6142
      %v6167 = vadd.f32 %v6050, %v6147
      %v6168 = vadd.f32 %v6051, %v6150
      %v6169 = vadd.f32 %v6052, %v6155
      %v6170 = vadd.f32 %v6053, %v6158
      %v6171 = vld [vmem:[#allocation3 + $0x71] sm:$0xff]
      %v6172 = vld [vmem:[#allocation3 + $0x79] sm:$0xff]
      %v6173 = vld [vmem:[#allocation3 + $0x81] sm:$0xff]
      %v6174 = vld [vmem:[#allocation3 + $0x89] sm:$0xff]
      %v6175 = vld [vmem:[#allocation3 + $0x91] sm:$0xff]
      %v6176 = vld [vmem:[#allocation3 + $0x99] sm:$0xff]
      %v6177 = vld [vmem:[#allocation3 + $0xa1] sm:$0xff]
      %v6178 = vld [vmem:[#allocation3 + $0xa9] sm:$0xff]
      %v6179 = vld [vmem:[#allocation3 + $0xb1] sm:$0xff]
      %v6180 = vld [vmem:[#allocation3 + $0xb9] sm:$0xff]
      %v6181 = vpack.c.bf16 %v6172, %v6171
      %v6182 = vpack.c.bf16 %v6174, %v6173
      %v6183 = vpack.c.bf16 %v6176, %v6175
      %v6184 = vpack.c.bf16 %v6178, %v6177
      %v6185 = vpack.c.bf16 %v6180, %v6179
      %v6186 = vld [vmem:[%s3257] sm:$0xf]
      %v6188 = vsel %vm1996, %v6181, 0
      %v6191 = vsel %vm1996, %v6182, 0
      %v6194 = vsel %vm1996, %v6183, 0
      %v6197 = vsel %vm1996, %v6184, 0
      %v6200 = vsel %vm1996, %v6185, 0
      %v6203 = vsel %vm2012, %v6186, 0
      %6205 = vmatprep.subr.bf16.mxu0 0
      %6206 = vmatpush1.bf16.msra.mxu0 %v6203
      %6207 = vmatprep.subr.bf16.mxu0 0
      %6208 = vmatpush1.bf16.msra.mxu0 0
      %6209 = vmatprep.subr.bf16.mxu0 0
      %6210 = vmatpush1.bf16.msra.mxu0 0
      %6211 = vmatprep.subr.bf16.mxu0 0
      %6212 = vmatpush1.bf16.msra.mxu0 0
      %6213 = vmatprep.subr.bf16.mxu0 0
      %6214 = vmatpush1.bf16.msra.mxu0 0
      %6215 = vmatprep.subr.bf16.mxu0 0
      %6216 = vmatpush1.bf16.msra.mxu0 0
      %6217 = vmatprep.subr.bf16.mxu0 0
      %6218 = vmatpush1.bf16.msra.mxu0 0
      %6219 = vmatprep.subr.bf16.mxu0 0
      %6220 = vmatpush1.bf16.msra.mxu0 0
      %6221 = vmatprep.subr.bf16.mxu0 0
      %6222 = vmatpush1.bf16.msra.mxu0 0
      %6223 = vmatprep.subr.bf16.mxu0 0
      %6224 = vmatpush1.bf16.msra.mxu0 0
      %6225 = vmatprep.subr.bf16.mxu0 0
      %6226 = vmatpush1.bf16.msra.mxu0 0
      %6227 = vmatprep.subr.bf16.mxu0 0
      %6228 = vmatpush1.bf16.msra.mxu0 0
      %6229 = vmatprep.subr.bf16.mxu0 0
      %6230 = vmatpush1.bf16.msra.mxu0 0
      %6231 = vmatprep.subr.bf16.mxu0 0
      %6232 = vmatpush1.bf16.msra.mxu0 0
      %6233 = vmatprep.subr.bf16.mxu0 0
      %6234 = vmatpush1.bf16.msra.mxu0 0
      %6235 = vmatprep.subr.bf16.mxu0 0
      %6236 = vmatpush1.bf16.msra.mxu0 0
      %6237 = vmatprep.mubr.bf16.mxu0 0
      %6238 = vmatmul.mubr.bf16.gmra.mrb[0].mxu0 %v6188
      %v6239 = vpop.f32.mrb[0].mxu0
      %v6240 = vadd.f32 0.0, %v6239
      %v6241 = vpop.f32.mrb[0].mxu0
      %v6242 = vpop.f32.mrb[0].mxu0
      %v6243 = vadd.f32 0.0, %v6242
      %v6244 = vpop.f32.mrb[0].mxu0
      %6245 = vmatprep.mubr.bf16.mxu0 0
      %6246 = vmatmul.mubr.bf16.gmra.mrb[0].mxu0 %v6191
      %v6247 = vpop.f32.mrb[0].mxu0
      %v6248 = vadd.f32 0.0, %v6247
      %v6249 = vpop.f32.mrb[0].mxu0
      %v6250 = vpop.f32.mrb[0].mxu0
      %v6251 = vadd.f32 0.0, %v6250
      %v6252 = vpop.f32.mrb[0].mxu0
      %6253 = vmatprep.mubr.bf16.mxu0 0
      %6254 = vmatmul.mubr.bf16.gmra.mrb[0].mxu0 %v6194
      %v6255 = vpop.f32.mrb[0].mxu0
      %v6256 = vadd.f32 0.0, %v6255
      %v6257 = vpop.f32.mrb[0].mxu0
      %v6258 = vpop.f32.mrb[0].mxu0
      %v6259 = vadd.f32 0.0, %v6258
      %v6260 = vpop.f32.mrb[0].mxu0
      %6261 = vmatprep.mubr.bf16.mxu0 0
      %6262 = vmatmul.mubr.bf16.gmra.mrb[0].mxu0 %v6197
      %v6263 = vpop.f32.mrb[0].mxu0
      %v6264 = vadd.f32 0.0, %v6263
      %v6265 = vpop.f32.mrb[0].mxu0
      %v6266 = vpop.f32.mrb[0].mxu0
      %v6267 = vadd.f32 0.0, %v6266
      %v6268 = vpop.f32.mrb[0].mxu0
      %6269 = vmatprep.mubr.bf16.mxu0 0
      %6270 = vmatmul.mubr.bf16.gmra.mrb[0].mxu0 %v6200
      %v6271 = vpop.f32.mrb[0].mxu0
      %v6272 = vadd.f32 0.0, %v6271
      %v6273 = vpop.f32.mrb[0].mxu0
      %v6274 = vpop.f32.mrb[0].mxu0
      %v6275 = vadd.f32 0.0, %v6274
      %v6276 = vpop.f32.mrb[0].mxu0
      %6277 = vdwg.mxu0
      %v6278 = vadd.f32 %v6161, %v6240
      %v6279 = vadd.f32 %v6162, %v6243
      %v6280 = vadd.f32 %v6163, %v6248
      %v6281 = vadd.f32 %v6164, %v6251
      %v6282 = vadd.f32 %v6165, %v6256
      %v6283 = vadd.f32 %v6166, %v6259
      %v6284 = vadd.f32 %v6167, %v6264
      %v6285 = vadd.f32 %v6168, %v6267
      %v6286 = vadd.f32 %v6169, %v6272
      %v6287 = vadd.f32 %v6170, %v6275
      %v6288 = vld [vmem:[#allocation3 + $0x72] sm:$0xff]
      %v6289 = vld [vmem:[#allocation3 + $0x7a] sm:$0xff]
      %v6290 = vld [vmem:[#allocation3 + $0x82] sm:$0xff]
      %v6291 = vld [vmem:[#allocation3 + $0x8a] sm:$0xff]
      %v6292 = vld [vmem:[#allocation3 + $0x92] sm:$0xff]
      %v6293 = vld [vmem:[#allocation3 + $0x9a] sm:$0xff]
      %v6294 = vld [vmem:[#allocation3 + $0xa2] sm:$0xff]
      %v6295 = vld [vmem:[#allocation3 + $0xaa] sm:$0xff]
      %v6296 = vld [vmem:[#allocation3 + $0xb2] sm:$0xff]
      %v6297 = vld [vmem:[#allocation3 + $0xba] sm:$0xff]
      %v6298 = vpack.c.bf16 %v6289, %v6288
      %v6299 = vpack.c.bf16 %v6291, %v6290
      %v6300 = vpack.c.bf16 %v6293, %v6292
      %v6301 = vpack.c.bf16 %v6295, %v6294
      %v6302 = vpack.c.bf16 %v6297, %v6296
      %v6303 = vld [vmem:[%s3375] sm:$0xf]
      %v6305 = vsel %vm1996, %v6298, 0
      %v6308 = vsel %vm1996, %v6299, 0
      %v6311 = vsel %vm1996, %v6300, 0
      %v6314 = vsel %vm1996, %v6301, 0
      %v6317 = vsel %vm1996, %v6302, 0
      %v6320 = vsel %vm2012, %v6303, 0
      %6322 = vmatprep.subr.bf16.mxu0 0
      %6323 = vmatpush1.bf16.msra.mxu0 %v6320
      %6324 = vmatprep.subr.bf16.mxu0 0
      %6325 = vmatpush1.bf16.msra.mxu0 0
      %6326 = vmatprep.subr.bf16.mxu0 0
      %6327 = vmatpush1.bf16.msra.mxu0 0
      %6328 = vmatprep.subr.bf16.mxu0 0
      %6329 = vmatpush1.bf16.msra.mxu0 0
      %6330 = vmatprep.subr.bf16.mxu0 0
      %6331 = vmatpush1.bf16.msra.mxu0 0
      %6332 = vmatprep.subr.bf16.mxu0 0
      %6333 = vmatpush1.bf16.msra.mxu0 0
      %6334 = vmatprep.subr.bf16.mxu0 0
      %6335 = vmatpush1.bf16.msra.mxu0 0
      %6336 = vmatprep.subr.bf16.mxu0 0
      %6337 = vmatpush1.bf16.msra.mxu0 0
      %6338 = vmatprep.subr.bf16.mxu0 0
      %6339 = vmatpush1.bf16.msra.mxu0 0
      %6340 = vmatprep.subr.bf16.mxu0 0
      %6341 = vmatpush1.bf16.msra.mxu0 0
      %6342 = vmatprep.subr.bf16.mxu0 0
      %6343 = vmatpush1.bf16.msra.mxu0 0
      %6344 = vmatprep.subr.bf16.mxu0 0
      %6345 = vmatpush1.bf16.msra.mxu0 0
      %6346 = vmatprep.subr.bf16.mxu0 0
      %6347 = vmatpush1.bf16.msra.mxu0 0
      %6348 = vmatprep.subr.bf16.mxu0 0
      %6349 = vmatpush1.bf16.msra.mxu0 0
      %6350 = vmatprep.subr.bf16.mxu0 0
      %6351 = vmatpush1.bf16.msra.mxu0 0
      %6352 = vmatprep.subr.bf16.mxu0 0
      %6353 = vmatpush1.bf16.msra.mxu0 0
      %6354 = vmatprep.mubr.bf16.mxu0 0
      %6355 = vmatmul.mubr.bf16.gmra.mrb[0].mxu0 %v6305
      %v6356 = vpop.f32.mrb[0].mxu0
      %v6357 = vadd.f32 0.0, %v6356
      %v6358 = vpop.f32.mrb[0].mxu0
      %v6359 = vpop.f32.mrb[0].mxu0
      %v6360 = vadd.f32 0.0, %v6359
      %v6361 = vpop.f32.mrb[0].mxu0
      %6362 = vmatprep.mubr.bf16.mxu0 0
      %6363 = vmatmul.mubr.bf16.gmra.mrb[0].mxu0 %v6308
      %v6364 = vpop.f32.mrb[0].mxu0
      %v6365 = vadd.f32 0.0, %v6364
      %v6366 = vpop.f32.mrb[0].mxu0
      %v6367 = vpop.f32.mrb[0].mxu0
      %v6368 = vadd.f32 0.0, %v6367
      %v6369 = vpop.f32.mrb[0].mxu0
      %6370 = vmatprep.mubr.bf16.mxu0 0
      %6371 = vmatmul.mubr.bf16.gmra.mrb[0].mxu0 %v6311
      %v6372 = vpop.f32.mrb[0].mxu0
      %v6373 = vadd.f32 0.0, %v6372
      %v6374 = vpop.f32.mrb[0].mxu0
      %v6375 = vpop.f32.mrb[0].mxu0
      %v6376 = vadd.f32 0.0, %v6375
      %v6377 = vpop.f32.mrb[0].mxu0
      %6378 = vmatprep.mubr.bf16.mxu0 0
      %6379 = vmatmul.mubr.bf16.gmra.mrb[0].mxu0 %v6314
      %v6380 = vpop.f32.mrb[0].mxu0
      %v6381 = vadd.f32 0.0, %v6380
      %v6382 = vpop.f32.mrb[0].mxu0
      %v6383 = vpop.f32.mrb[0].mxu0
      %v6384 = vadd.f32 0.0, %v6383
      %v6385 = vpop.f32.mrb[0].mxu0
      %6386 = vmatprep.mubr.bf16.mxu0 0
      %6387 = vmatmul.mubr.bf16.gmra.mrb[0].mxu0 %v6317
      %v6388 = vpop.f32.mrb[0].mxu0
      %v6389 = vadd.f32 0.0, %v6388
      %v6390 = vpop.f32.mrb[0].mxu0
      %v6391 = vpop.f32.mrb[0].mxu0
      %v6392 = vadd.f32 0.0, %v6391
      %v6393 = vpop.f32.mrb[0].mxu0
      %6394 = vdwg.mxu0
      %v6395 = vadd.f32 %v6278, %v6357
      %v6396 = vadd.f32 %v6279, %v6360
      %v6397 = vadd.f32 %v6280, %v6365
      %v6398 = vadd.f32 %v6281, %v6368
      %v6399 = vadd.f32 %v6282, %v6373
      %v6400 = vadd.f32 %v6283, %v6376
      %v6401 = vadd.f32 %v6284, %v6381
      %v6402 = vadd.f32 %v6285, %v6384
      %v6403 = vadd.f32 %v6286, %v6389
      %v6404 = vadd.f32 %v6287, %v6392
      %v6405 = vld [vmem:[#allocation3 + $0x73] sm:$0xff]
      %v6406 = vld [vmem:[#allocation3 + $0x7b] sm:$0xff]
      %v6407 = vld [vmem:[#allocation3 + $0x83] sm:$0xff]
      %v6408 = vld [vmem:[#allocation3 + $0x8b] sm:$0xff]
      %v6409 = vld [vmem:[#allocation3 + $0x93] sm:$0xff]
      %v6410 = vld [vmem:[#allocation3 + $0x9b] sm:$0xff]
      %v6411 = vld [vmem:[#allocation3 + $0xa3] sm:$0xff]
      %v6412 = vld [vmem:[#allocation3 + $0xab] sm:$0xff]
      %v6413 = vld [vmem:[#allocation3 + $0xb3] sm:$0xff]
      %v6414 = vld [vmem:[#allocation3 + $0xbb] sm:$0xff]
      %v6415 = vpack.c.bf16 %v6406, %v6405
      %v6416 = vpack.c.bf16 %v6408, %v6407
      %v6417 = vpack.c.bf16 %v6410, %v6409
      %v6418 = vpack.c.bf16 %v6412, %v6411
      %v6419 = vpack.c.bf16 %v6414, %v6413
      %v6420 = vld [vmem:[%s3493] sm:$0xf]
      %v6422 = vsel %vm1996, %v6415, 0
      %v6425 = vsel %vm1996, %v6416, 0
      %v6428 = vsel %vm1996, %v6417, 0
      %v6431 = vsel %vm1996, %v6418, 0
      %v6434 = vsel %vm1996, %v6419, 0
      %v6437 = vsel %vm2012, %v6420, 0
      %6439 = vmatprep.subr.bf16.mxu0 0
      %6440 = vmatpush1.bf16.msra.mxu0 %v6437
      %6441 = vmatprep.subr.bf16.mxu0 0
      %6442 = vmatpush1.bf16.msra.mxu0 0
      %6443 = vmatprep.subr.bf16.mxu0 0
      %6444 = vmatpush1.bf16.msra.mxu0 0
      %6445 = vmatprep.subr.bf16.mxu0 0
      %6446 = vmatpush1.bf16.msra.mxu0 0
      %6447 = vmatprep.subr.bf16.mxu0 0
      %6448 = vmatpush1.bf16.msra.mxu0 0
      %6449 = vmatprep.subr.bf16.mxu0 0
      %6450 = vmatpush1.bf16.msra.mxu0 0
      %6451 = vmatprep.subr.bf16.mxu0 0
      %6452 = vmatpush1.bf16.msra.mxu0 0
      %6453 = vmatprep.subr.bf16.mxu0 0
      %6454 = vmatpush1.bf16.msra.mxu0 0
      %6455 = vmatprep.subr.bf16.mxu0 0
      %6456 = vmatpush1.bf16.msra.mxu0 0
      %6457 = vmatprep.subr.bf16.mxu0 0
      %6458 = vmatpush1.bf16.msra.mxu0 0
      %6459 = vmatprep.subr.bf16.mxu0 0
      %6460 = vmatpush1.bf16.msra.mxu0 0
      %6461 = vmatprep.subr.bf16.mxu0 0
      %6462 = vmatpush1.bf16.msra.mxu0 0
      %6463 = vmatprep.subr.bf16.mxu0 0
      %6464 = vmatpush1.bf16.msra.mxu0 0
      %6465 = vmatprep.subr.bf16.mxu0 0
      %6466 = vmatpush1.bf16.msra.mxu0 0
      %6467 = vmatprep.subr.bf16.mxu0 0
      %6468 = vmatpush1.bf16.msra.mxu0 0
      %6469 = vmatprep.subr.bf16.mxu0 0
      %6470 = vmatpush1.bf16.msra.mxu0 0
      %6471 = vmatprep.mubr.bf16.mxu0 0
      %6472 = vmatmul.mubr.bf16.gmra.mrb[0].mxu0 %v6422
      %v6473 = vpop.f32.mrb[0].mxu0
      %v6474 = vadd.f32 0.0, %v6473
      %v6475 = vpop.f32.mrb[0].mxu0
      %v6476 = vpop.f32.mrb[0].mxu0
      %v6477 = vadd.f32 0.0, %v6476
      %v6478 = vpop.f32.mrb[0].mxu0
      %6479 = vmatprep.mubr.bf16.mxu0 0
      %6480 = vmatmul.mubr.bf16.gmra.mrb[0].mxu0 %v6425
      %v6481 = vpop.f32.mrb[0].mxu0
      %v6482 = vadd.f32 0.0, %v6481
      %v6483 = vpop.f32.mrb[0].mxu0
      %v6484 = vpop.f32.mrb[0].mxu0
      %v6485 = vadd.f32 0.0, %v6484
      %v6486 = vpop.f32.mrb[0].mxu0
      %6487 = vmatprep.mubr.bf16.mxu0 0
      %6488 = vmatmul.mubr.bf16.gmra.mrb[0].mxu0 %v6428
      %v6489 = vpop.f32.mrb[0].mxu0
      %v6490 = vadd.f32 0.0, %v6489
      %v6491 = vpop.f32.mrb[0].mxu0
      %v6492 = vpop.f32.mrb[0].mxu0
      %v6493 = vadd.f32 0.0, %v6492
      %v6494 = vpop.f32.mrb[0].mxu0
      %6495 = vmatprep.mubr.bf16.mxu0 0
      %6496 = vmatmul.mubr.bf16.gmra.mrb[0].mxu0 %v6431
      %v6497 = vpop.f32.mrb[0].mxu0
      %v6498 = vadd.f32 0.0, %v6497
      %v6499 = vpop.f32.mrb[0].mxu0
      %v6500 = vpop.f32.mrb[0].mxu0
      %v6501 = vadd.f32 0.0, %v6500
      %v6502 = vpop.f32.mrb[0].mxu0
      %6503 = vmatprep.mubr.bf16.mxu0 0
      %6504 = vmatmul.mubr.bf16.gmra.mrb[0].mxu0 %v6434
      %v6505 = vpop.f32.mrb[0].mxu0
      %v6506 = vadd.f32 0.0, %v6505
      %v6507 = vpop.f32.mrb[0].mxu0
      %v6508 = vpop.f32.mrb[0].mxu0
      %v6509 = vadd.f32 0.0, %v6508
      %v6510 = vpop.f32.mrb[0].mxu0
      %6511 = vdwg.mxu0
      %v6512 = vadd.f32 %v6395, %v6474
      %v6513 = vadd.f32 %v6396, %v6477
      %v6514 = vadd.f32 %v6397, %v6482
      %v6515 = vadd.f32 %v6398, %v6485
      %v6516 = vadd.f32 %v6399, %v6490
      %v6517 = vadd.f32 %v6400, %v6493
      %v6518 = vadd.f32 %v6401, %v6498
      %v6519 = vadd.f32 %v6402, %v6501
      %v6520 = vadd.f32 %v6403, %v6506
      %v6521 = vadd.f32 %v6404, %v6509
      %v6522 = vld [vmem:[#allocation3 + $0x74] sm:$0xff]
      %v6523 = vld [vmem:[#allocation3 + $0x7c] sm:$0xff]
      %v6524 = vld [vmem:[#allocation3 + $0x84] sm:$0xff]
      %v6525 = vld [vmem:[#allocation3 + $0x8c] sm:$0xff]
      %v6526 = vld [vmem:[#allocation3 + $0x94] sm:$0xff]
      %v6527 = vld [vmem:[#allocation3 + $0x9c] sm:$0xff]
      %v6528 = vld [vmem:[#allocation3 + $0xa4] sm:$0xff]
      %v6529 = vld [vmem:[#allocation3 + $0xac] sm:$0xff]
      %v6530 = vld [vmem:[#allocation3 + $0xb4] sm:$0xff]
      %v6531 = vld [vmem:[#allocation3 + $0xbc] sm:$0xff]
      %v6532 = vpack.c.bf16 %v6523, %v6522
      %v6533 = vpack.c.bf16 %v6525, %v6524
      %v6534 = vpack.c.bf16 %v6527, %v6526
      %v6535 = vpack.c.bf16 %v6529, %v6528
      %v6536 = vpack.c.bf16 %v6531, %v6530
      %v6537 = vld [vmem:[%s3611] sm:$0xf]
      %v6539 = vsel %vm1996, %v6532, 0
      %v6542 = vsel %vm1996, %v6533, 0
      %v6545 = vsel %vm1996, %v6534, 0
      %v6548 = vsel %vm1996, %v6535, 0
      %v6551 = vsel %vm1996, %v6536, 0
      %v6554 = vsel %vm2012, %v6537, 0
      %6556 = vmatprep.subr.bf16.mxu0 0
      %6557 = vmatpush1.bf16.msra.mxu0 %v6554
      %6558 = vmatprep.subr.bf16.mxu0 0
      %6559 = vmatpush1.bf16.msra.mxu0 0
      %6560 = vmatprep.subr.bf16.mxu0 0
      %6561 = vmatpush1.bf16.msra.mxu0 0
      %6562 = vmatprep.subr.bf16.mxu0 0
      %6563 = vmatpush1.bf16.msra.mxu0 0
      %6564 = vmatprep.subr.bf16.mxu0 0
      %6565 = vmatpush1.bf16.msra.mxu0 0
      %6566 = vmatprep.subr.bf16.mxu0 0
      %6567 = vmatpush1.bf16.msra.mxu0 0
      %6568 = vmatprep.subr.bf16.mxu0 0
      %6569 = vmatpush1.bf16.msra.mxu0 0
      %6570 = vmatprep.subr.bf16.mxu0 0
      %6571 = vmatpush1.bf16.msra.mxu0 0
      %6572 = vmatprep.subr.bf16.mxu0 0
      %6573 = vmatpush1.bf16.msra.mxu0 0
      %6574 = vmatprep.subr.bf16.mxu0 0
      %6575 = vmatpush1.bf16.msra.mxu0 0
      %6576 = vmatprep.subr.bf16.mxu0 0
      %6577 = vmatpush1.bf16.msra.mxu0 0
      %6578 = vmatprep.subr.bf16.mxu0 0
      %6579 = vmatpush1.bf16.msra.mxu0 0
      %6580 = vmatprep.subr.bf16.mxu0 0
      %6581 = vmatpush1.bf16.msra.mxu0 0
      %6582 = vmatprep.subr.bf16.mxu0 0
      %6583 = vmatpush1.bf16.msra.mxu0 0
      %6584 = vmatprep.subr.bf16.mxu0 0
      %6585 = vmatpush1.bf16.msra.mxu0 0
      %6586 = vmatprep.subr.bf16.mxu0 0
      %6587 = vmatpush1.bf16.msra.mxu0 0
      %6588 = vmatprep.mubr.bf16.mxu0 0
      %6589 = vmatmul.mubr.bf16.gmra.mrb[0].mxu0 %v6539
      %v6590 = vpop.f32.mrb[0].mxu0
      %v6591 = vadd.f32 0.0, %v6590
      %v6592 = vpop.f32.mrb[0].mxu0
      %v6593 = vpop.f32.mrb[0].mxu0
      %v6594 = vadd.f32 0.0, %v6593
      %v6595 = vpop.f32.mrb[0].mxu0
      %6596 = vmatprep.mubr.bf16.mxu0 0
      %6597 = vmatmul.mubr.bf16.gmra.mrb[0].mxu0 %v6542
      %v6598 = vpop.f32.mrb[0].mxu0
      %v6599 = vadd.f32 0.0, %v6598
      %v6600 = vpop.f32.mrb[0].mxu0
      %v6601 = vpop.f32.mrb[0].mxu0
      %v6602 = vadd.f32 0.0, %v6601
      %v6603 = vpop.f32.mrb[0].mxu0
      %6604 = vmatprep.mubr.bf16.mxu0 0
      %6605 = vmatmul.mubr.bf16.gmra.mrb[0].mxu0 %v6545
      %v6606 = vpop.f32.mrb[0].mxu0
      %v6607 = vadd.f32 0.0, %v6606
      %v6608 = vpop.f32.mrb[0].mxu0
      %v6609 = vpop.f32.mrb[0].mxu0
      %v6610 = vadd.f32 0.0, %v6609
      %v6611 = vpop.f32.mrb[0].mxu0
      %6612 = vmatprep.mubr.bf16.mxu0 0
      %6613 = vmatmul.mubr.bf16.gmra.mrb[0].mxu0 %v6548
      %v6614 = vpop.f32.mrb[0].mxu0
      %v6615 = vadd.f32 0.0, %v6614
      %v6616 = vpop.f32.mrb[0].mxu0
      %v6617 = vpop.f32.mrb[0].mxu0
      %v6618 = vadd.f32 0.0, %v6617
      %v6619 = vpop.f32.mrb[0].mxu0
      %6620 = vmatprep.mubr.bf16.mxu0 0
      %6621 = vmatmul.mubr.bf16.gmra.mrb[0].mxu0 %v6551
      %v6622 = vpop.f32.mrb[0].mxu0
      %v6623 = vadd.f32 0.0, %v6622
      %v6624 = vpop.f32.mrb[0].mxu0
      %v6625 = vpop.f32.mrb[0].mxu0
      %v6626 = vadd.f32 0.0, %v6625
      %v6627 = vpop.f32.mrb[0].mxu0
      %6628 = vdwg.mxu0
      %v6629 = vadd.f32 %v6512, %v6591
      %v6630 = vadd.f32 %v6513, %v6594
      %v6631 = vadd.f32 %v6514, %v6599
      %v6632 = vadd.f32 %v6515, %v6602
      %v6633 = vadd.f32 %v6516, %v6607
      %v6634 = vadd.f32 %v6517, %v6610
      %v6635 = vadd.f32 %v6518, %v6615
      %v6636 = vadd.f32 %v6519, %v6618
      %v6637 = vadd.f32 %v6520, %v6623
      %v6638 = vadd.f32 %v6521, %v6626
      %v6639 = vld [vmem:[#allocation3 + $0x80] sm:$0xff]
      %v6640 = vld [vmem:[#allocation3 + $0x88] sm:$0xff]
      %v6641 = vld [vmem:[#allocation3 + $0x90] sm:$0xff]
      %v6642 = vld [vmem:[#allocation3 + $0x98] sm:$0xff]
      %v6643 = vld [vmem:[#allocation3 + $0xa0] sm:$0xff]
      %v6644 = vld [vmem:[#allocation3 + $0xa8] sm:$0xff]
      %v6645 = vld [vmem:[#allocation3 + $0xb0] sm:$0xff]
      %v6646 = vld [vmem:[#allocation3 + $0xb8] sm:$0xff]
      %v6647 = vld [vmem:[#allocation3 + $0xc0] sm:$0xff]
      %v6648 = vld [vmem:[#allocation3 + $0xc8] sm:$0xff]
      %v6649 = vpack.c.bf16 %v6640, %v6639
      %v6650 = vpack.c.bf16 %v6642, %v6641
      %v6651 = vpack.c.bf16 %v6644, %v6643
      %v6652 = vpack.c.bf16 %v6646, %v6645
      %v6653 = vpack.c.bf16 %v6648, %v6647
      %v6654 = vld [vmem:[%s3729] sm:$0xf]
      %v6656 = vsel %vm1996, %v6649, 0
      %v6659 = vsel %vm1996, %v6650, 0
      %v6662 = vsel %vm1996, %v6651, 0
      %v6665 = vsel %vm1996, %v6652, 0
      %v6668 = vsel %vm1996, %v6653, 0
      %v6671 = vsel %vm2012, %v6654, 0
      %6673 = vmatprep.subr.bf16.mxu0 0
      %6674 = vmatpush1.bf16.msra.mxu0 %v6671
      %6675 = vmatprep.subr.bf16.mxu0 0
      %6676 = vmatpush1.bf16.msra.mxu0 0
      %6677 = vmatprep.subr.bf16.mxu0 0
      %6678 = vmatpush1.bf16.msra.mxu0 0
      %6679 = vmatprep.subr.bf16.mxu0 0
      %6680 = vmatpush1.bf16.msra.mxu0 0
      %6681 = vmatprep.subr.bf16.mxu0 0
      %6682 = vmatpush1.bf16.msra.mxu0 0
      %6683 = vmatprep.subr.bf16.mxu0 0
      %6684 = vmatpush1.bf16.msra.mxu0 0
      %6685 = vmatprep.subr.bf16.mxu0 0
      %6686 = vmatpush1.bf16.msra.mxu0 0
      %6687 = vmatprep.subr.bf16.mxu0 0
      %6688 = vmatpush1.bf16.msra.mxu0 0
      %6689 = vmatprep.subr.bf16.mxu0 0
      %6690 = vmatpush1.bf16.msra.mxu0 0
      %6691 = vmatprep.subr.bf16.mxu0 0
      %6692 = vmatpush1.bf16.msra.mxu0 0
      %6693 = vmatprep.subr.bf16.mxu0 0
      %6694 = vmatpush1.bf16.msra.mxu0 0
      %6695 = vmatprep.subr.bf16.mxu0 0
      %6696 = vmatpush1.bf16.msra.mxu0 0
      %6697 = vmatprep.subr.bf16.mxu0 0
      %6698 = vmatpush1.bf16.msra.mxu0 0
      %6699 = vmatprep.subr.bf16.mxu0 0
      %6700 = vmatpush1.bf16.msra.mxu0 0
      %6701 = vmatprep.subr.bf16.mxu0 0
      %6702 = vmatpush1.bf16.msra.mxu0 0
      %6703 = vmatprep.subr.bf16.mxu0 0
      %6704 = vmatpush1.bf16.msra.mxu0 0
      %6705 = vmatprep.mubr.bf16.mxu0 0
      %6706 = vmatmul.mubr.bf16.gmra.mrb[0].mxu0 %v6656
      %v6707 = vpop.f32.mrb[0].mxu0
      %v6708 = vadd.f32 0.0, %v6707
      %v6709 = vpop.f32.mrb[0].mxu0
      %v6710 = vpop.f32.mrb[0].mxu0
      %v6711 = vadd.f32 0.0, %v6710
      %v6712 = vpop.f32.mrb[0].mxu0
      %6713 = vmatprep.mubr.bf16.mxu0 0
      %6714 = vmatmul.mubr.bf16.gmra.mrb[0].mxu0 %v6659
      %v6715 = vpop.f32.mrb[0].mxu0
      %v6716 = vadd.f32 0.0, %v6715
      %v6717 = vpop.f32.mrb[0].mxu0
      %v6718 = vpop.f32.mrb[0].mxu0
      %v6719 = vadd.f32 0.0, %v6718
      %v6720 = vpop.f32.mrb[0].mxu0
      %6721 = vmatprep.mubr.bf16.mxu0 0
      %6722 = vmatmul.mubr.bf16.gmra.mrb[0].mxu0 %v6662
      %v6723 = vpop.f32.mrb[0].mxu0
      %v6724 = vadd.f32 0.0, %v6723
      %v6725 = vpop.f32.mrb[0].mxu0
      %v6726 = vpop.f32.mrb[0].mxu0
      %v6727 = vadd.f32 0.0, %v6726
      %v6728 = vpop.f32.mrb[0].mxu0
      %6729 = vmatprep.mubr.bf16.mxu0 0
      %6730 = vmatmul.mubr.bf16.gmra.mrb[0].mxu0 %v6665
      %v6731 = vpop.f32.mrb[0].mxu0
      %v6732 = vadd.f32 0.0, %v6731
      %v6733 = vpop.f32.mrb[0].mxu0
      %v6734 = vpop.f32.mrb[0].mxu0
      %v6735 = vadd.f32 0.0, %v6734
      %v6736 = vpop.f32.mrb[0].mxu0
      %6737 = vmatprep.mubr.bf16.mxu0 0
      %6738 = vmatmul.mubr.bf16.gmra.mrb[0].mxu0 %v6668
      %v6739 = vpop.f32.mrb[0].mxu0
      %v6740 = vadd.f32 0.0, %v6739
      %v6741 = vpop.f32.mrb[0].mxu0
      %v6742 = vpop.f32.mrb[0].mxu0
      %v6743 = vadd.f32 0.0, %v6742
      %v6744 = vpop.f32.mrb[0].mxu0
      %6745 = vdwg.mxu0
      %v6746 = vadd.f32 %v6629, %v6708
      %v6747 = vadd.f32 %v6630, %v6711
      %v6748 = vadd.f32 %v6631, %v6716
      %v6749 = vadd.f32 %v6632, %v6719
      %v6750 = vadd.f32 %v6633, %v6724
      %v6751 = vadd.f32 %v6634, %v6727
      %v6752 = vadd.f32 %v6635, %v6732
      %v6753 = vadd.f32 %v6636, %v6735
      %v6754 = vadd.f32 %v6637, %v6740
      %v6755 = vadd.f32 %v6638, %v6743
      %v6756 = vld [vmem:[#allocation3 + $0x81] sm:$0xff]
      %v6757 = vld [vmem:[#allocation3 + $0x89] sm:$0xff]
      %v6758 = vld [vmem:[#allocation3 + $0x91] sm:$0xff]
      %v6759 = vld [vmem:[#allocation3 + $0x99] sm:$0xff]
      %v6760 = vld [vmem:[#allocation3 + $0xa1] sm:$0xff]
      %v6761 = vld [vmem:[#allocation3 + $0xa9] sm:$0xff]
      %v6762 = vld [vmem:[#allocation3 + $0xb1] sm:$0xff]
      %v6763 = vld [vmem:[#allocation3 + $0xb9] sm:$0xff]
      %v6764 = vld [vmem:[#allocation3 + $0xc1] sm:$0xff]
      %v6765 = vld [vmem:[#allocation3 + $0xc9] sm:$0xff]
      %v6766 = vpack.c.bf16 %v6757, %v6756
      %v6767 = vpack.c.bf16 %v6759, %v6758
      %v6768 = vpack.c.bf16 %v6761, %v6760
      %v6769 = vpack.c.bf16 %v6763, %v6762
      %v6770 = vpack.c.bf16 %v6765, %v6764
      %v6771 = vld [vmem:[%s3847] sm:$0xf]
      %v6773 = vsel %vm1996, %v6766, 0
      %v6776 = vsel %vm1996, %v6767, 0
      %v6779 = vsel %vm1996, %v6768, 0
      %v6782 = vsel %vm1996, %v6769, 0
      %v6785 = vsel %vm1996, %v6770, 0
      %v6788 = vsel %vm2012, %v6771, 0
      %6790 = vmatprep.subr.bf16.mxu0 0
      %6791 = vmatpush1.bf16.msra.mxu0 %v6788
      %6792 = vmatprep.subr.bf16.mxu0 0
      %6793 = vmatpush1.bf16.msra.mxu0 0
      %6794 = vmatprep.subr.bf16.mxu0 0
      %6795 = vmatpush1.bf16.msra.mxu0 0
      %6796 = vmatprep.subr.bf16.mxu0 0
      %6797 = vmatpush1.bf16.msra.mxu0 0
      %6798 = vmatprep.subr.bf16.mxu0 0
      %6799 = vmatpush1.bf16.msra.mxu0 0
      %6800 = vmatprep.subr.bf16.mxu0 0
      %6801 = vmatpush1.bf16.msra.mxu0 0
      %6802 = vmatprep.subr.bf16.mxu0 0
      %6803 = vmatpush1.bf16.msra.mxu0 0
      %6804 = vmatprep.subr.bf16.mxu0 0
      %6805 = vmatpush1.bf16.msra.mxu0 0
      %6806 = vmatprep.subr.bf16.mxu0 0
      %6807 = vmatpush1.bf16.msra.mxu0 0
      %6808 = vmatprep.subr.bf16.mxu0 0
      %6809 = vmatpush1.bf16.msra.mxu0 0
      %6810 = vmatprep.subr.bf16.mxu0 0
      %6811 = vmatpush1.bf16.msra.mxu0 0
      %6812 = vmatprep.subr.bf16.mxu0 0
      %6813 = vmatpush1.bf16.msra.mxu0 0
      %6814 = vmatprep.subr.bf16.mxu0 0
      %6815 = vmatpush1.bf16.msra.mxu0 0
      %6816 = vmatprep.subr.bf16.mxu0 0
      %6817 = vmatpush1.bf16.msra.mxu0 0
      %6818 = vmatprep.subr.bf16.mxu0 0
      %6819 = vmatpush1.bf16.msra.mxu0 0
      %6820 = vmatprep.subr.bf16.mxu0 0
      %6821 = vmatpush1.bf16.msra.mxu0 0
      %6822 = vmatprep.mubr.bf16.mxu0 0
      %6823 = vmatmul.mubr.bf16.gmra.mrb[0].mxu0 %v6773
      %v6824 = vpop.f32.mrb[0].mxu0
      %v6825 = vadd.f32 0.0, %v6824
      %v6826 = vpop.f32.mrb[0].mxu0
      %v6827 = vpop.f32.mrb[0].mxu0
      %v6828 = vadd.f32 0.0, %v6827
      %v6829 = vpop.f32.mrb[0].mxu0
      %6830 = vmatprep.mubr.bf16.mxu0 0
      %6831 = vmatmul.mubr.bf16.gmra.mrb[0].mxu0 %v6776
      %v6832 = vpop.f32.mrb[0].mxu0
      %v6833 = vadd.f32 0.0, %v6832
      %v6834 = vpop.f32.mrb[0].mxu0
      %v6835 = vpop.f32.mrb[0].mxu0
      %v6836 = vadd.f32 0.0, %v6835
      %v6837 = vpop.f32.mrb[0].mxu0
      %6838 = vmatprep.mubr.bf16.mxu0 0
      %6839 = vmatmul.mubr.bf16.gmra.mrb[0].mxu0 %v6779
      %v6840 = vpop.f32.mrb[0].mxu0
      %v6841 = vadd.f32 0.0, %v6840
      %v6842 = vpop.f32.mrb[0].mxu0
      %v6843 = vpop.f32.mrb[0].mxu0
      %v6844 = vadd.f32 0.0, %v6843
      %v6845 = vpop.f32.mrb[0].mxu0
      %6846 = vmatprep.mubr.bf16.mxu0 0
      %6847 = vmatmul.mubr.bf16.gmra.mrb[0].mxu0 %v6782
      %v6848 = vpop.f32.mrb[0].mxu0
      %v6849 = vadd.f32 0.0, %v6848
      %v6850 = vpop.f32.mrb[0].mxu0
      %v6851 = vpop.f32.mrb[0].mxu0
      %v6852 = vadd.f32 0.0, %v6851
      %v6853 = vpop.f32.mrb[0].mxu0
      %6854 = vmatprep.mubr.bf16.mxu0 0
      %6855 = vmatmul.mubr.bf16.gmra.mrb[0].mxu0 %v6785
      %v6856 = vpop.f32.mrb[0].mxu0
      %v6857 = vadd.f32 0.0, %v6856
      %v6858 = vpop.f32.mrb[0].mxu0
      %v6859 = vpop.f32.mrb[0].mxu0
      %v6860 = vadd.f32 0.0, %v6859
      %v6861 = vpop.f32.mrb[0].mxu0
      %6862 = vdwg.mxu0
      %v6863 = vadd.f32 %v6746, %v6825
      %v6864 = vadd.f32 %v6747, %v6828
      %v6865 = vadd.f32 %v6748, %v6833
      %v6866 = vadd.f32 %v6749, %v6836
      %v6867 = vadd.f32 %v6750, %v6841
      %v6868 = vadd.f32 %v6751, %v6844
      %v6869 = vadd.f32 %v6752, %v6849
      %v6870 = vadd.f32 %v6753, %v6852
      %v6871 = vadd.f32 %v6754, %v6857
      %v6872 = vadd.f32 %v6755, %v6860
      %v6873 = vld [vmem:[#allocation3 + $0x82] sm:$0xff]
      %v6874 = vld [vmem:[#allocation3 + $0x8a] sm:$0xff]
      %v6875 = vld [vmem:[#allocation3 + $0x92] sm:$0xff]
      %v6876 = vld [vmem:[#allocation3 + $0x9a] sm:$0xff]
      %v6877 = vld [vmem:[#allocation3 + $0xa2] sm:$0xff]
      %v6878 = vld [vmem:[#allocation3 + $0xaa] sm:$0xff]
      %v6879 = vld [vmem:[#allocation3 + $0xb2] sm:$0xff]
      %v6880 = vld [vmem:[#allocation3 + $0xba] sm:$0xff]
      %v6881 = vld [vmem:[#allocation3 + $0xc2] sm:$0xff]
      %v6882 = vld [vmem:[#allocation3 + $0xca] sm:$0xff]
      %v6883 = vpack.c.bf16 %v6874, %v6873
      %v6884 = vpack.c.bf16 %v6876, %v6875
      %v6885 = vpack.c.bf16 %v6878, %v6877
      %v6886 = vpack.c.bf16 %v6880, %v6879
      %v6887 = vpack.c.bf16 %v6882, %v6881
      %v6888 = vld [vmem:[%s3965] sm:$0xf]
      %v6890 = vsel %vm1996, %v6883, 0
      %v6893 = vsel %vm1996, %v6884, 0
      %v6896 = vsel %vm1996, %v6885, 0
      %v6899 = vsel %vm1996, %v6886, 0
      %v6902 = vsel %vm1996, %v6887, 0
      %v6905 = vsel %vm2012, %v6888, 0
      %6907 = vmatprep.subr.bf16.mxu0 0
      %6908 = vmatpush1.bf16.msra.mxu0 %v6905
      %6909 = vmatprep.subr.bf16.mxu0 0
      %6910 = vmatpush1.bf16.msra.mxu0 0
      %6911 = vmatprep.subr.bf16.mxu0 0
      %6912 = vmatpush1.bf16.msra.mxu0 0
      %6913 = vmatprep.subr.bf16.mxu0 0
      %6914 = vmatpush1.bf16.msra.mxu0 0
      %6915 = vmatprep.subr.bf16.mxu0 0
      %6916 = vmatpush1.bf16.msra.mxu0 0
      %6917 = vmatprep.subr.bf16.mxu0 0
      %6918 = vmatpush1.bf16.msra.mxu0 0
      %6919 = vmatprep.subr.bf16.mxu0 0
      %6920 = vmatpush1.bf16.msra.mxu0 0
      %6921 = vmatprep.subr.bf16.mxu0 0
      %6922 = vmatpush1.bf16.msra.mxu0 0
      %6923 = vmatprep.subr.bf16.mxu0 0
      %6924 = vmatpush1.bf16.msra.mxu0 0
      %6925 = vmatprep.subr.bf16.mxu0 0
      %6926 = vmatpush1.bf16.msra.mxu0 0
      %6927 = vmatprep.subr.bf16.mxu0 0
      %6928 = vmatpush1.bf16.msra.mxu0 0
      %6929 = vmatprep.subr.bf16.mxu0 0
      %6930 = vmatpush1.bf16.msra.mxu0 0
      %6931 = vmatprep.subr.bf16.mxu0 0
      %6932 = vmatpush1.bf16.msra.mxu0 0
      %6933 = vmatprep.subr.bf16.mxu0 0
      %6934 = vmatpush1.bf16.msra.mxu0 0
      %6935 = vmatprep.subr.bf16.mxu0 0
      %6936 = vmatpush1.bf16.msra.mxu0 0
      %6937 = vmatprep.subr.bf16.mxu0 0
      %6938 = vmatpush1.bf16.msra.mxu0 0
      %6939 = vmatprep.mubr.bf16.mxu0 0
      %6940 = vmatmul.mubr.bf16.gmra.mrb[0].mxu0 %v6890
      %v6941 = vpop.f32.mrb[0].mxu0
      %v6942 = vadd.f32 0.0, %v6941
      %v6943 = vpop.f32.mrb[0].mxu0
      %v6944 = vpop.f32.mrb[0].mxu0
      %v6945 = vadd.f32 0.0, %v6944
      %v6946 = vpop.f32.mrb[0].mxu0
      %6947 = vmatprep.mubr.bf16.mxu0 0
      %6948 = vmatmul.mubr.bf16.gmra.mrb[0].mxu0 %v6893
      %v6949 = vpop.f32.mrb[0].mxu0
      %v6950 = vadd.f32 0.0, %v6949
      %v6951 = vpop.f32.mrb[0].mxu0
      %v6952 = vpop.f32.mrb[0].mxu0
      %v6953 = vadd.f32 0.0, %v6952
      %v6954 = vpop.f32.mrb[0].mxu0
      %6955 = vmatprep.mubr.bf16.mxu0 0
      %6956 = vmatmul.mubr.bf16.gmra.mrb[0].mxu0 %v6896
      %v6957 = vpop.f32.mrb[0].mxu0
      %v6958 = vadd.f32 0.0, %v6957
      %v6959 = vpop.f32.mrb[0].mxu0
      %v6960 = vpop.f32.mrb[0].mxu0
      %v6961 = vadd.f32 0.0, %v6960
      %v6962 = vpop.f32.mrb[0].mxu0
      %6963 = vmatprep.mubr.bf16.mxu0 0
      %6964 = vmatmul.mubr.bf16.gmra.mrb[0].mxu0 %v6899
      %v6965 = vpop.f32.mrb[0].mxu0
      %v6966 = vadd.f32 0.0, %v6965
      %v6967 = vpop.f32.mrb[0].mxu0
      %v6968 = vpop.f32.mrb[0].mxu0
      %v6969 = vadd.f32 0.0, %v6968
      %v6970 = vpop.f32.mrb[0].mxu0
      %6971 = vmatprep.mubr.bf16.mxu0 0
      %6972 = vmatmul.mubr.bf16.gmra.mrb[0].mxu0 %v6902
      %v6973 = vpop.f32.mrb[0].mxu0
      %v6974 = vadd.f32 0.0, %v6973
      %v6975 = vpop.f32.mrb[0].mxu0
      %v6976 = vpop.f32.mrb[0].mxu0
      %v6977 = vadd.f32 0.0, %v6976
      %v6978 = vpop.f32.mrb[0].mxu0
      %6979 = vdwg.mxu0
      %v6980 = vadd.f32 %v6863, %v6942
      %v6981 = vadd.f32 %v6864, %v6945
      %v6982 = vadd.f32 %v6865, %v6950
      %v6983 = vadd.f32 %v6866, %v6953
      %v6984 = vadd.f32 %v6867, %v6958
      %v6985 = vadd.f32 %v6868, %v6961
      %v6986 = vadd.f32 %v6869, %v6966
      %v6987 = vadd.f32 %v6870, %v6969
      %v6988 = vadd.f32 %v6871, %v6974
      %v6989 = vadd.f32 %v6872, %v6977
      %v6990 = vld [vmem:[#allocation3 + $0x83] sm:$0xff]
      %v6991 = vld [vmem:[#allocation3 + $0x8b] sm:$0xff]
      %v6992 = vld [vmem:[#allocation3 + $0x93] sm:$0xff]
      %v6993 = vld [vmem:[#allocation3 + $0x9b] sm:$0xff]
      %v6994 = vld [vmem:[#allocation3 + $0xa3] sm:$0xff]
      %v6995 = vld [vmem:[#allocation3 + $0xab] sm:$0xff]
      %v6996 = vld [vmem:[#allocation3 + $0xb3] sm:$0xff]
      %v6997 = vld [vmem:[#allocation3 + $0xbb] sm:$0xff]
      %v6998 = vld [vmem:[#allocation3 + $0xc3] sm:$0xff]
      %v6999 = vld [vmem:[#allocation3 + $0xcb] sm:$0xff]
      %v7000 = vpack.c.bf16 %v6991, %v6990
      %v7001 = vpack.c.bf16 %v6993, %v6992
      %v7002 = vpack.c.bf16 %v6995, %v6994
      %v7003 = vpack.c.bf16 %v6997, %v6996
      %v7004 = vpack.c.bf16 %v6999, %v6998
      %v7005 = vld [vmem:[%s4083] sm:$0xf]
      %v7007 = vsel %vm1996, %v7000, 0
      %v7010 = vsel %vm1996, %v7001, 0
      %v7013 = vsel %vm1996, %v7002, 0
      %v7016 = vsel %vm1996, %v7003, 0
      %v7019 = vsel %vm1996, %v7004, 0
      %v7022 = vsel %vm2012, %v7005, 0
      %7024 = vmatprep.subr.bf16.mxu0 0
      %7025 = vmatpush1.bf16.msra.mxu0 %v7022
      %7026 = vmatprep.subr.bf16.mxu0 0
      %7027 = vmatpush1.bf16.msra.mxu0 0
      %7028 = vmatprep.subr.bf16.mxu0 0
      %7029 = vmatpush1.bf16.msra.mxu0 0
      %7030 = vmatprep.subr.bf16.mxu0 0
      %7031 = vmatpush1.bf16.msra.mxu0 0
      %7032 = vmatprep.subr.bf16.mxu0 0
      %7033 = vmatpush1.bf16.msra.mxu0 0
      %7034 = vmatprep.subr.bf16.mxu0 0
      %7035 = vmatpush1.bf16.msra.mxu0 0
      %7036 = vmatprep.subr.bf16.mxu0 0
      %7037 = vmatpush1.bf16.msra.mxu0 0
      %7038 = vmatprep.subr.bf16.mxu0 0
      %7039 = vmatpush1.bf16.msra.mxu0 0
      %7040 = vmatprep.subr.bf16.mxu0 0
      %7041 = vmatpush1.bf16.msra.mxu0 0
      %7042 = vmatprep.subr.bf16.mxu0 0
      %7043 = vmatpush1.bf16.msra.mxu0 0
      %7044 = vmatprep.subr.bf16.mxu0 0
      %7045 = vmatpush1.bf16.msra.mxu0 0
      %7046 = vmatprep.subr.bf16.mxu0 0
      %7047 = vmatpush1.bf16.msra.mxu0 0
      %7048 = vmatprep.subr.bf16.mxu0 0
      %7049 = vmatpush1.bf16.msra.mxu0 0
      %7050 = vmatprep.subr.bf16.mxu0 0
      %7051 = vmatpush1.bf16.msra.mxu0 0
      %7052 = vmatprep.subr.bf16.mxu0 0
      %7053 = vmatpush1.bf16.msra.mxu0 0
      %7054 = vmatprep.subr.bf16.mxu0 0
      %7055 = vmatpush1.bf16.msra.mxu0 0
      %7056 = vmatprep.mubr.bf16.mxu0 0
      %7057 = vmatmul.mubr.bf16.gmra.mrb[0].mxu0 %v7007
      %v7058 = vpop.f32.mrb[0].mxu0
      %v7059 = vadd.f32 0.0, %v7058
      %v7060 = vpop.f32.mrb[0].mxu0
      %v7061 = vpop.f32.mrb[0].mxu0
      %v7062 = vadd.f32 0.0, %v7061
      %v7063 = vpop.f32.mrb[0].mxu0
      %7064 = vmatprep.mubr.bf16.mxu0 0
      %7065 = vmatmul.mubr.bf16.gmra.mrb[0].mxu0 %v7010
      %v7066 = vpop.f32.mrb[0].mxu0
      %v7067 = vadd.f32 0.0, %v7066
      %v7068 = vpop.f32.mrb[0].mxu0
      %v7069 = vpop.f32.mrb[0].mxu0
      %v7070 = vadd.f32 0.0, %v7069
      %v7071 = vpop.f32.mrb[0].mxu0
      %7072 = vmatprep.mubr.bf16.mxu0 0
      %7073 = vmatmul.mubr.bf16.gmra.mrb[0].mxu0 %v7013
      %v7074 = vpop.f32.mrb[0].mxu0
      %v7075 = vadd.f32 0.0, %v7074
      %v7076 = vpop.f32.mrb[0].mxu0
      %v7077 = vpop.f32.mrb[0].mxu0
      %v7078 = vadd.f32 0.0, %v7077
      %v7079 = vpop.f32.mrb[0].mxu0
      %7080 = vmatprep.mubr.bf16.mxu0 0
      %7081 = vmatmul.mubr.bf16.gmra.mrb[0].mxu0 %v7016
      %v7082 = vpop.f32.mrb[0].mxu0
      %v7083 = vadd.f32 0.0, %v7082
      %v7084 = vpop.f32.mrb[0].mxu0
      %v7085 = vpop.f32.mrb[0].mxu0
      %v7086 = vadd.f32 0.0, %v7085
      %v7087 = vpop.f32.mrb[0].mxu0
      %7088 = vmatprep.mubr.bf16.mxu0 0
      %7089 = vmatmul.mubr.bf16.gmra.mrb[0].mxu0 %v7019
      %v7090 = vpop.f32.mrb[0].mxu0
      %v7091 = vadd.f32 0.0, %v7090
      %v7092 = vpop.f32.mrb[0].mxu0
      %v7093 = vpop.f32.mrb[0].mxu0
      %v7094 = vadd.f32 0.0, %v7093
      %v7095 = vpop.f32.mrb[0].mxu0
      %7096 = vdwg.mxu0
      %v7097 = vadd.f32 %v6980, %v7059
      %v7098 = vadd.f32 %v6981, %v7062
      %v7099 = vadd.f32 %v6982, %v7067
      %v7100 = vadd.f32 %v6983, %v7070
      %v7101 = vadd.f32 %v6984, %v7075
      %v7102 = vadd.f32 %v6985, %v7078
      %v7103 = vadd.f32 %v6986, %v7083
      %v7104 = vadd.f32 %v6987, %v7086
      %v7105 = vadd.f32 %v6988, %v7091
      %v7106 = vadd.f32 %v6989, %v7094
      %v7107 = vld [vmem:[#allocation3 + $0x84] sm:$0xff]
      %v7108 = vld [vmem:[#allocation3 + $0x8c] sm:$0xff]
      %v7109 = vld [vmem:[#allocation3 + $0x94] sm:$0xff]
      %v7110 = vld [vmem:[#allocation3 + $0x9c] sm:$0xff]
      %v7111 = vld [vmem:[#allocation3 + $0xa4] sm:$0xff]
      %v7112 = vld [vmem:[#allocation3 + $0xac] sm:$0xff]
      %v7113 = vld [vmem:[#allocation3 + $0xb4] sm:$0xff]
      %v7114 = vld [vmem:[#allocation3 + $0xbc] sm:$0xff]
      %v7115 = vld [vmem:[#allocation3 + $0xc4] sm:$0xff]
      %v7116 = vld [vmem:[#allocation3 + $0xcc] sm:$0xff]
      %v7117 = vpack.c.bf16 %v7108, %v7107
      %v7118 = vpack.c.bf16 %v7110, %v7109
      %v7119 = vpack.c.bf16 %v7112, %v7111
      %v7120 = vpack.c.bf16 %v7114, %v7113
      %v7121 = vpack.c.bf16 %v7116, %v7115
      %v7122 = vld [vmem:[%s4201] sm:$0xf]
      %v7124 = vsel %vm1996, %v7117, 0
      %v7127 = vsel %vm1996, %v7118, 0
      %v7130 = vsel %vm1996, %v7119, 0
      %v7133 = vsel %vm1996, %v7120, 0
      %v7136 = vsel %vm1996, %v7121, 0
      %v7139 = vsel %vm2012, %v7122, 0
      %7141 = vmatprep.subr.bf16.mxu0 0
      %7142 = vmatpush1.bf16.msra.mxu0 %v7139
      %7143 = vmatprep.subr.bf16.mxu0 0
      %7144 = vmatpush1.bf16.msra.mxu0 0
      %7145 = vmatprep.subr.bf16.mxu0 0
      %7146 = vmatpush1.bf16.msra.mxu0 0
      %7147 = vmatprep.subr.bf16.mxu0 0
      %7148 = vmatpush1.bf16.msra.mxu0 0
      %7149 = vmatprep.subr.bf16.mxu0 0
      %7150 = vmatpush1.bf16.msra.mxu0 0
      %7151 = vmatprep.subr.bf16.mxu0 0
      %7152 = vmatpush1.bf16.msra.mxu0 0
      %7153 = vmatprep.subr.bf16.mxu0 0
      %7154 = vmatpush1.bf16.msra.mxu0 0
      %7155 = vmatprep.subr.bf16.mxu0 0
      %7156 = vmatpush1.bf16.msra.mxu0 0
      %7157 = vmatprep.subr.bf16.mxu0 0
      %7158 = vmatpush1.bf16.msra.mxu0 0
      %7159 = vmatprep.subr.bf16.mxu0 0
      %7160 = vmatpush1.bf16.msra.mxu0 0
      %7161 = vmatprep.subr.bf16.mxu0 0
      %7162 = vmatpush1.bf16.msra.mxu0 0
      %7163 = vmatprep.subr.bf16.mxu0 0
      %7164 = vmatpush1.bf16.msra.mxu0 0
      %7165 = vmatprep.subr.bf16.mxu0 0
      %7166 = vmatpush1.bf16.msra.mxu0 0
      %7167 = vmatprep.subr.bf16.mxu0 0
      %7168 = vmatpush1.bf16.msra.mxu0 0
      %7169 = vmatprep.subr.bf16.mxu0 0
      %7170 = vmatpush1.bf16.msra.mxu0 0
      %7171 = vmatprep.subr.bf16.mxu0 0
      %7172 = vmatpush1.bf16.msra.mxu0 0
      %7173 = vmatprep.mubr.bf16.mxu0 0
      %7174 = vmatmul.mubr.bf16.gmra.mrb[0].mxu0 %v7124
      %v7175 = vpop.f32.mrb[0].mxu0
      %v7176 = vadd.f32 0.0, %v7175
      %v7177 = vpop.f32.mrb[0].mxu0
      %v7178 = vpop.f32.mrb[0].mxu0
      %v7179 = vadd.f32 0.0, %v7178
      %v7180 = vpop.f32.mrb[0].mxu0
      %7181 = vmatprep.mubr.bf16.mxu0 0
      %7182 = vmatmul.mubr.bf16.gmra.mrb[0].mxu0 %v7127
      %v7183 = vpop.f32.mrb[0].mxu0
      %v7184 = vadd.f32 0.0, %v7183
      %v7185 = vpop.f32.mrb[0].mxu0
      %v7186 = vpop.f32.mrb[0].mxu0
      %v7187 = vadd.f32 0.0, %v7186
      %v7188 = vpop.f32.mrb[0].mxu0
      %7189 = vmatprep.mubr.bf16.mxu0 0
      %7190 = vmatmul.mubr.bf16.gmra.mrb[0].mxu0 %v7130
      %v7191 = vpop.f32.mrb[0].mxu0
      %v7192 = vadd.f32 0.0, %v7191
      %v7193 = vpop.f32.mrb[0].mxu0
      %v7194 = vpop.f32.mrb[0].mxu0
      %v7195 = vadd.f32 0.0, %v7194
      %v7196 = vpop.f32.mrb[0].mxu0
      %7197 = vmatprep.mubr.bf16.mxu0 0
      %7198 = vmatmul.mubr.bf16.gmra.mrb[0].mxu0 %v7133
      %v7199 = vpop.f32.mrb[0].mxu0
      %v7200 = vadd.f32 0.0, %v7199
      %v7201 = vpop.f32.mrb[0].mxu0
      %v7202 = vpop.f32.mrb[0].mxu0
      %v7203 = vadd.f32 0.0, %v7202
      %v7204 = vpop.f32.mrb[0].mxu0
      %7205 = vmatprep.mubr.bf16.mxu0 0
      %7206 = vmatmul.mubr.bf16.gmra.mrb[0].mxu0 %v7136
      %v7207 = vpop.f32.mrb[0].mxu0
      %v7208 = vadd.f32 0.0, %v7207
      %v7209 = vpop.f32.mrb[0].mxu0
      %v7210 = vpop.f32.mrb[0].mxu0
      %v7211 = vadd.f32 0.0, %v7210
      %v7212 = vpop.f32.mrb[0].mxu0
      %7213 = vdwg.mxu0
      %v7214 = vadd.f32 %v7097, %v7176
      %v7215 = vadd.f32 %v7098, %v7179
      %v7216 = vadd.f32 %v7099, %v7184
      %v7217 = vadd.f32 %v7100, %v7187
      %v7218 = vadd.f32 %v7101, %v7192
      %v7219 = vadd.f32 %v7102, %v7195
      %v7220 = vadd.f32 %v7103, %v7200
      %v7221 = vadd.f32 %v7104, %v7203
      %v7222 = vadd.f32 %v7105, %v7208
      %v7223 = vadd.f32 %v7106, %v7211
      %v7224 = vld [vmem:[#allocation3 + $0x90] sm:$0xff]
      %v7225 = vld [vmem:[#allocation3 + $0x98] sm:$0xff]
      %v7226 = vld [vmem:[#allocation3 + $0xa0] sm:$0xff]
      %v7227 = vld [vmem:[#allocation3 + $0xa8] sm:$0xff]
      %v7228 = vld [vmem:[#allocation3 + $0xb0] sm:$0xff]
      %v7229 = vld [vmem:[#allocation3 + $0xb8] sm:$0xff]
      %v7230 = vld [vmem:[#allocation3 + $0xc0] sm:$0xff]
      %v7231 = vld [vmem:[#allocation3 + $0xc8] sm:$0xff]
      %v7232 = vld [vmem:[#allocation3 + $0xd0] sm:$0xff]
      %v7233 = vld [vmem:[#allocation3 + $0xd8] sm:$0xff]
      %v7234 = vpack.c.bf16 %v7225, %v7224
      %v7235 = vpack.c.bf16 %v7227, %v7226
      %v7236 = vpack.c.bf16 %v7229, %v7228
      %v7237 = vpack.c.bf16 %v7231, %v7230
      %v7238 = vpack.c.bf16 %v7233, %v7232
      %v7239 = vld [vmem:[%s4319] sm:$0xf]
      %v7241 = vsel %vm1996, %v7234, 0
      %v7244 = vsel %vm1996, %v7235, 0
      %v7247 = vsel %vm1996, %v7236, 0
      %v7250 = vsel %vm1996, %v7237, 0
      %v7253 = vsel %vm1996, %v7238, 0
      %v7256 = vsel %vm2012, %v7239, 0
      %7258 = vmatprep.subr.bf16.mxu0 0
      %7259 = vmatpush1.bf16.msra.mxu0 %v7256
      %7260 = vmatprep.subr.bf16.mxu0 0
      %7261 = vmatpush1.bf16.msra.mxu0 0
      %7262 = vmatprep.subr.bf16.mxu0 0
      %7263 = vmatpush1.bf16.msra.mxu0 0
      %7264 = vmatprep.subr.bf16.mxu0 0
      %7265 = vmatpush1.bf16.msra.mxu0 0
      %7266 = vmatprep.subr.bf16.mxu0 0
      %7267 = vmatpush1.bf16.msra.mxu0 0
      %7268 = vmatprep.subr.bf16.mxu0 0
      %7269 = vmatpush1.bf16.msra.mxu0 0
      %7270 = vmatprep.subr.bf16.mxu0 0
      %7271 = vmatpush1.bf16.msra.mxu0 0
      %7272 = vmatprep.subr.bf16.mxu0 0
      %7273 = vmatpush1.bf16.msra.mxu0 0
      %7274 = vmatprep.subr.bf16.mxu0 0
      %7275 = vmatpush1.bf16.msra.mxu0 0
      %7276 = vmatprep.subr.bf16.mxu0 0
      %7277 = vmatpush1.bf16.msra.mxu0 0
      %7278 = vmatprep.subr.bf16.mxu0 0
      %7279 = vmatpush1.bf16.msra.mxu0 0
      %7280 = vmatprep.subr.bf16.mxu0 0
      %7281 = vmatpush1.bf16.msra.mxu0 0
      %7282 = vmatprep.subr.bf16.mxu0 0
      %7283 = vmatpush1.bf16.msra.mxu0 0
      %7284 = vmatprep.subr.bf16.mxu0 0
      %7285 = vmatpush1.bf16.msra.mxu0 0
      %7286 = vmatprep.subr.bf16.mxu0 0
      %7287 = vmatpush1.bf16.msra.mxu0 0
      %7288 = vmatprep.subr.bf16.mxu0 0
      %7289 = vmatpush1.bf16.msra.mxu0 0
      %7290 = vmatprep.mubr.bf16.mxu0 0
      %7291 = vmatmul.mubr.bf16.gmra.mrb[0].mxu0 %v7241
      %v7292 = vpop.f32.mrb[0].mxu0
      %v7293 = vadd.f32 0.0, %v7292
      %v7294 = vpop.f32.mrb[0].mxu0
      %v7295 = vpop.f32.mrb[0].mxu0
      %v7296 = vadd.f32 0.0, %v7295
      %v7297 = vpop.f32.mrb[0].mxu0
      %7298 = vmatprep.mubr.bf16.mxu0 0
      %7299 = vmatmul.mubr.bf16.gmra.mrb[0].mxu0 %v7244
      %v7300 = vpop.f32.mrb[0].mxu0
      %v7301 = vadd.f32 0.0, %v7300
      %v7302 = vpop.f32.mrb[0].mxu0
      %v7303 = vpop.f32.mrb[0].mxu0
      %v7304 = vadd.f32 0.0, %v7303
      %v7305 = vpop.f32.mrb[0].mxu0
      %7306 = vmatprep.mubr.bf16.mxu0 0
      %7307 = vmatmul.mubr.bf16.gmra.mrb[0].mxu0 %v7247
      %v7308 = vpop.f32.mrb[0].mxu0
      %v7309 = vadd.f32 0.0, %v7308
      %v7310 = vpop.f32.mrb[0].mxu0
      %v7311 = vpop.f32.mrb[0].mxu0
      %v7312 = vadd.f32 0.0, %v7311
      %v7313 = vpop.f32.mrb[0].mxu0
      %7314 = vmatprep.mubr.bf16.mxu0 0
      %7315 = vmatmul.mubr.bf16.gmra.mrb[0].mxu0 %v7250
      %v7316 = vpop.f32.mrb[0].mxu0
      %v7317 = vadd.f32 0.0, %v7316
      %v7318 = vpop.f32.mrb[0].mxu0
      %v7319 = vpop.f32.mrb[0].mxu0
      %v7320 = vadd.f32 0.0, %v7319
      %v7321 = vpop.f32.mrb[0].mxu0
      %7322 = vmatprep.mubr.bf16.mxu0 0
      %7323 = vmatmul.mubr.bf16.gmra.mrb[0].mxu0 %v7253
      %v7324 = vpop.f32.mrb[0].mxu0
      %v7325 = vadd.f32 0.0, %v7324
      %v7326 = vpop.f32.mrb[0].mxu0
      %v7327 = vpop.f32.mrb[0].mxu0
      %v7328 = vadd.f32 0.0, %v7327
      %v7329 = vpop.f32.mrb[0].mxu0
      %7330 = vdwg.mxu0
      %v7331 = vadd.f32 %v7214, %v7293
      %v7332 = vadd.f32 %v7215, %v7296
      %v7333 = vadd.f32 %v7216, %v7301
      %v7334 = vadd.f32 %v7217, %v7304
      %v7335 = vadd.f32 %v7218, %v7309
      %v7336 = vadd.f32 %v7219, %v7312
      %v7337 = vadd.f32 %v7220, %v7317
      %v7338 = vadd.f32 %v7221, %v7320
      %v7339 = vadd.f32 %v7222, %v7325
      %v7340 = vadd.f32 %v7223, %v7328
      %v7341 = vld [vmem:[#allocation3 + $0x91] sm:$0xff]
      %v7342 = vld [vmem:[#allocation3 + $0x99] sm:$0xff]
      %v7343 = vld [vmem:[#allocation3 + $0xa1] sm:$0xff]
      %v7344 = vld [vmem:[#allocation3 + $0xa9] sm:$0xff]
      %v7345 = vld [vmem:[#allocation3 + $0xb1] sm:$0xff]
      %v7346 = vld [vmem:[#allocation3 + $0xb9] sm:$0xff]
      %v7347 = vld [vmem:[#allocation3 + $0xc1] sm:$0xff]
      %v7348 = vld [vmem:[#allocation3 + $0xc9] sm:$0xff]
      %v7349 = vld [vmem:[#allocation3 + $0xd1] sm:$0xff]
      %v7350 = vld [vmem:[#allocation3 + $0xd9] sm:$0xff]
      %v7351 = vpack.c.bf16 %v7342, %v7341
      %v7352 = vpack.c.bf16 %v7344, %v7343
      %v7353 = vpack.c.bf16 %v7346, %v7345
      %v7354 = vpack.c.bf16 %v7348, %v7347
      %v7355 = vpack.c.bf16 %v7350, %v7349
      %v7356 = vld [vmem:[%s4437] sm:$0xf]
      %v7358 = vsel %vm1996, %v7351, 0
      %v7361 = vsel %vm1996, %v7352, 0
      %v7364 = vsel %vm1996, %v7353, 0
      %v7367 = vsel %vm1996, %v7354, 0
      %v7370 = vsel %vm1996, %v7355, 0
      %v7373 = vsel %vm2012, %v7356, 0
      %7375 = vmatprep.subr.bf16.mxu0 0
      %7376 = vmatpush1.bf16.msra.mxu0 %v7373
      %7377 = vmatprep.subr.bf16.mxu0 0
      %7378 = vmatpush1.bf16.msra.mxu0 0
      %7379 = vmatprep.subr.bf16.mxu0 0
      %7380 = vmatpush1.bf16.msra.mxu0 0
      %7381 = vmatprep.subr.bf16.mxu0 0
      %7382 = vmatpush1.bf16.msra.mxu0 0
      %7383 = vmatprep.subr.bf16.mxu0 0
      %7384 = vmatpush1.bf16.msra.mxu0 0
      %7385 = vmatprep.subr.bf16.mxu0 0
      %7386 = vmatpush1.bf16.msra.mxu0 0
      %7387 = vmatprep.subr.bf16.mxu0 0
      %7388 = vmatpush1.bf16.msra.mxu0 0
      %7389 = vmatprep.subr.bf16.mxu0 0
      %7390 = vmatpush1.bf16.msra.mxu0 0
      %7391 = vmatprep.subr.bf16.mxu0 0
      %7392 = vmatpush1.bf16.msra.mxu0 0
      %7393 = vmatprep.subr.bf16.mxu0 0
      %7394 = vmatpush1.bf16.msra.mxu0 0
      %7395 = vmatprep.subr.bf16.mxu0 0
      %7396 = vmatpush1.bf16.msra.mxu0 0
      %7397 = vmatprep.subr.bf16.mxu0 0
      %7398 = vmatpush1.bf16.msra.mxu0 0
      %7399 = vmatprep.subr.bf16.mxu0 0
      %7400 = vmatpush1.bf16.msra.mxu0 0
      %7401 = vmatprep.subr.bf16.mxu0 0
      %7402 = vmatpush1.bf16.msra.mxu0 0
      %7403 = vmatprep.subr.bf16.mxu0 0
      %7404 = vmatpush1.bf16.msra.mxu0 0
      %7405 = vmatprep.subr.bf16.mxu0 0
      %7406 = vmatpush1.bf16.msra.mxu0 0
      %7407 = vmatprep.mubr.bf16.mxu0 0
      %7408 = vmatmul.mubr.bf16.gmra.mrb[0].mxu0 %v7358
      %v7409 = vpop.f32.mrb[0].mxu0
      %v7410 = vadd.f32 0.0, %v7409
      %v7411 = vpop.f32.mrb[0].mxu0
      %v7412 = vpop.f32.mrb[0].mxu0
      %v7413 = vadd.f32 0.0, %v7412
      %v7414 = vpop.f32.mrb[0].mxu0
      %7415 = vmatprep.mubr.bf16.mxu0 0
      %7416 = vmatmul.mubr.bf16.gmra.mrb[0].mxu0 %v7361
      %v7417 = vpop.f32.mrb[0].mxu0
      %v7418 = vadd.f32 0.0, %v7417
      %v7419 = vpop.f32.mrb[0].mxu0
      %v7420 = vpop.f32.mrb[0].mxu0
      %v7421 = vadd.f32 0.0, %v7420
      %v7422 = vpop.f32.mrb[0].mxu0
      %7423 = vmatprep.mubr.bf16.mxu0 0
      %7424 = vmatmul.mubr.bf16.gmra.mrb[0].mxu0 %v7364
      %v7425 = vpop.f32.mrb[0].mxu0
      %v7426 = vadd.f32 0.0, %v7425
      %v7427 = vpop.f32.mrb[0].mxu0
      %v7428 = vpop.f32.mrb[0].mxu0
      %v7429 = vadd.f32 0.0, %v7428
      %v7430 = vpop.f32.mrb[0].mxu0
      %7431 = vmatprep.mubr.bf16.mxu0 0
      %7432 = vmatmul.mubr.bf16.gmra.mrb[0].mxu0 %v7367
      %v7433 = vpop.f32.mrb[0].mxu0
      %v7434 = vadd.f32 0.0, %v7433
      %v7435 = vpop.f32.mrb[0].mxu0
      %v7436 = vpop.f32.mrb[0].mxu0
      %v7437 = vadd.f32 0.0, %v7436
      %v7438 = vpop.f32.mrb[0].mxu0
      %7439 = vmatprep.mubr.bf16.mxu0 0
      %7440 = vmatmul.mubr.bf16.gmra.mrb[0].mxu0 %v7370
      %v7441 = vpop.f32.mrb[0].mxu0
      %v7442 = vadd.f32 0.0, %v7441
      %v7443 = vpop.f32.mrb[0].mxu0
      %v7444 = vpop.f32.mrb[0].mxu0
      %v7445 = vadd.f32 0.0, %v7444
      %v7446 = vpop.f32.mrb[0].mxu0
      %7447 = vdwg.mxu0
      %v7448 = vadd.f32 %v7331, %v7410
      %v7449 = vadd.f32 %v7332, %v7413
      %v7450 = vadd.f32 %v7333, %v7418
      %v7451 = vadd.f32 %v7334, %v7421
      %v7452 = vadd.f32 %v7335, %v7426
      %v7453 = vadd.f32 %v7336, %v7429
      %v7454 = vadd.f32 %v7337, %v7434
      %v7455 = vadd.f32 %v7338, %v7437
      %v7456 = vadd.f32 %v7339, %v7442
      %v7457 = vadd.f32 %v7340, %v7445
      %v7458 = vld [vmem:[#allocation3 + $0x92] sm:$0xff]
      %v7459 = vld [vmem:[#allocation3 + $0x9a] sm:$0xff]
      %v7460 = vld [vmem:[#allocation3 + $0xa2] sm:$0xff]
      %v7461 = vld [vmem:[#allocation3 + $0xaa] sm:$0xff]
      %v7462 = vld [vmem:[#allocation3 + $0xb2] sm:$0xff]
      %v7463 = vld [vmem:[#allocation3 + $0xba] sm:$0xff]
      %v7464 = vld [vmem:[#allocation3 + $0xc2] sm:$0xff]
      %v7465 = vld [vmem:[#allocation3 + $0xca] sm:$0xff]
      %v7466 = vld [vmem:[#allocation3 + $0xd2] sm:$0xff]
      %v7467 = vld [vmem:[#allocation3 + $0xda] sm:$0xff]
      %v7468 = vpack.c.bf16 %v7459, %v7458
      %v7469 = vpack.c.bf16 %v7461, %v7460
      %v7470 = vpack.c.bf16 %v7463, %v7462
      %v7471 = vpack.c.bf16 %v7465, %v7464
      %v7472 = vpack.c.bf16 %v7467, %v7466
      %v7473 = vld [vmem:[%s4555] sm:$0xf]
      %v7475 = vsel %vm1996, %v7468, 0
      %v7478 = vsel %vm1996, %v7469, 0
      %v7481 = vsel %vm1996, %v7470, 0
      %v7484 = vsel %vm1996, %v7471, 0
      %v7487 = vsel %vm1996, %v7472, 0
      %v7490 = vsel %vm2012, %v7473, 0
      %7492 = vmatprep.subr.bf16.mxu0 0
      %7493 = vmatpush1.bf16.msra.mxu0 %v7490
      %7494 = vmatprep.subr.bf16.mxu0 0
      %7495 = vmatpush1.bf16.msra.mxu0 0
      %7496 = vmatprep.subr.bf16.mxu0 0
      %7497 = vmatpush1.bf16.msra.mxu0 0
      %7498 = vmatprep.subr.bf16.mxu0 0
      %7499 = vmatpush1.bf16.msra.mxu0 0
      %7500 = vmatprep.subr.bf16.mxu0 0
      %7501 = vmatpush1.bf16.msra.mxu0 0
      %7502 = vmatprep.subr.bf16.mxu0 0
      %7503 = vmatpush1.bf16.msra.mxu0 0
      %7504 = vmatprep.subr.bf16.mxu0 0
      %7505 = vmatpush1.bf16.msra.mxu0 0
      %7506 = vmatprep.subr.bf16.mxu0 0
      %7507 = vmatpush1.bf16.msra.mxu0 0
      %7508 = vmatprep.subr.bf16.mxu0 0
      %7509 = vmatpush1.bf16.msra.mxu0 0
      %7510 = vmatprep.subr.bf16.mxu0 0
      %7511 = vmatpush1.bf16.msra.mxu0 0
      %7512 = vmatprep.subr.bf16.mxu0 0
      %7513 = vmatpush1.bf16.msra.mxu0 0
      %7514 = vmatprep.subr.bf16.mxu0 0
      %7515 = vmatpush1.bf16.msra.mxu0 0
      %7516 = vmatprep.subr.bf16.mxu0 0
      %7517 = vmatpush1.bf16.msra.mxu0 0
      %7518 = vmatprep.subr.bf16.mxu0 0
      %7519 = vmatpush1.bf16.msra.mxu0 0
      %7520 = vmatprep.subr.bf16.mxu0 0
      %7521 = vmatpush1.bf16.msra.mxu0 0
      %7522 = vmatprep.subr.bf16.mxu0 0
      %7523 = vmatpush1.bf16.msra.mxu0 0
      %7524 = vmatprep.mubr.bf16.mxu0 0
      %7525 = vmatmul.mubr.bf16.gmra.mrb[0].mxu0 %v7475
      %v7526 = vpop.f32.mrb[0].mxu0
      %v7527 = vadd.f32 0.0, %v7526
      %v7528 = vpop.f32.mrb[0].mxu0
      %v7529 = vpop.f32.mrb[0].mxu0
      %v7530 = vadd.f32 0.0, %v7529
      %v7531 = vpop.f32.mrb[0].mxu0
      %7532 = vmatprep.mubr.bf16.mxu0 0
      %7533 = vmatmul.mubr.bf16.gmra.mrb[0].mxu0 %v7478
      %v7534 = vpop.f32.mrb[0].mxu0
      %v7535 = vadd.f32 0.0, %v7534
      %v7536 = vpop.f32.mrb[0].mxu0
      %v7537 = vpop.f32.mrb[0].mxu0
      %v7538 = vadd.f32 0.0, %v7537
      %v7539 = vpop.f32.mrb[0].mxu0
      %7540 = vmatprep.mubr.bf16.mxu0 0
      %7541 = vmatmul.mubr.bf16.gmra.mrb[0].mxu0 %v7481
      %v7542 = vpop.f32.mrb[0].mxu0
      %v7543 = vadd.f32 0.0, %v7542
      %v7544 = vpop.f32.mrb[0].mxu0
      %v7545 = vpop.f32.mrb[0].mxu0
      %v7546 = vadd.f32 0.0, %v7545
      %v7547 = vpop.f32.mrb[0].mxu0
      %7548 = vmatprep.mubr.bf16.mxu0 0
      %7549 = vmatmul.mubr.bf16.gmra.mrb[0].mxu0 %v7484
      %v7550 = vpop.f32.mrb[0].mxu0
      %v7551 = vadd.f32 0.0, %v7550
      %v7552 = vpop.f32.mrb[0].mxu0
      %v7553 = vpop.f32.mrb[0].mxu0
      %v7554 = vadd.f32 0.0, %v7553
      %v7555 = vpop.f32.mrb[0].mxu0
      %7556 = vmatprep.mubr.bf16.mxu0 0
      %7557 = vmatmul.mubr.bf16.gmra.mrb[0].mxu0 %v7487
      %v7558 = vpop.f32.mrb[0].mxu0
      %v7559 = vadd.f32 0.0, %v7558
      %v7560 = vpop.f32.mrb[0].mxu0
      %v7561 = vpop.f32.mrb[0].mxu0
      %v7562 = vadd.f32 0.0, %v7561
      %v7563 = vpop.f32.mrb[0].mxu0
      %7564 = vdwg.mxu0
      %v7565 = vadd.f32 %v7448, %v7527
      %v7566 = vadd.f32 %v7449, %v7530
      %v7567 = vadd.f32 %v7450, %v7535
      %v7568 = vadd.f32 %v7451, %v7538
      %v7569 = vadd.f32 %v7452, %v7543
      %v7570 = vadd.f32 %v7453, %v7546
      %v7571 = vadd.f32 %v7454, %v7551
      %v7572 = vadd.f32 %v7455, %v7554
      %v7573 = vadd.f32 %v7456, %v7559
      %v7574 = vadd.f32 %v7457, %v7562
      %v7575 = vld [vmem:[#allocation3 + $0x93] sm:$0xff]
      %v7576 = vld [vmem:[#allocation3 + $0x9b] sm:$0xff]
      %v7577 = vld [vmem:[#allocation3 + $0xa3] sm:$0xff]
      %v7578 = vld [vmem:[#allocation3 + $0xab] sm:$0xff]
      %v7579 = vld [vmem:[#allocation3 + $0xb3] sm:$0xff]
      %v7580 = vld [vmem:[#allocation3 + $0xbb] sm:$0xff]
      %v7581 = vld [vmem:[#allocation3 + $0xc3] sm:$0xff]
      %v7582 = vld [vmem:[#allocation3 + $0xcb] sm:$0xff]
      %v7583 = vld [vmem:[#allocation3 + $0xd3] sm:$0xff]
      %v7584 = vld [vmem:[#allocation3 + $0xdb] sm:$0xff]
      %v7585 = vpack.c.bf16 %v7576, %v7575
      %v7586 = vpack.c.bf16 %v7578, %v7577
      %v7587 = vpack.c.bf16 %v7580, %v7579
      %v7588 = vpack.c.bf16 %v7582, %v7581
      %v7589 = vpack.c.bf16 %v7584, %v7583
      %v7590 = vld [vmem:[%s4673] sm:$0xf]
      %v7592 = vsel %vm1996, %v7585, 0
      %v7595 = vsel %vm1996, %v7586, 0
      %v7598 = vsel %vm1996, %v7587, 0
      %v7601 = vsel %vm1996, %v7588, 0
      %v7604 = vsel %vm1996, %v7589, 0
      %v7607 = vsel %vm2012, %v7590, 0
      %7609 = vmatprep.subr.bf16.mxu0 0
      %7610 = vmatpush1.bf16.msra.mxu0 %v7607
      %7611 = vmatprep.subr.bf16.mxu0 0
      %7612 = vmatpush1.bf16.msra.mxu0 0
      %7613 = vmatprep.subr.bf16.mxu0 0
      %7614 = vmatpush1.bf16.msra.mxu0 0
      %7615 = vmatprep.subr.bf16.mxu0 0
      %7616 = vmatpush1.bf16.msra.mxu0 0
      %7617 = vmatprep.subr.bf16.mxu0 0
      %7618 = vmatpush1.bf16.msra.mxu0 0
      %7619 = vmatprep.subr.bf16.mxu0 0
      %7620 = vmatpush1.bf16.msra.mxu0 0
      %7621 = vmatprep.subr.bf16.mxu0 0
      %7622 = vmatpush1.bf16.msra.mxu0 0
      %7623 = vmatprep.subr.bf16.mxu0 0
      %7624 = vmatpush1.bf16.msra.mxu0 0
      %7625 = vmatprep.subr.bf16.mxu0 0
      %7626 = vmatpush1.bf16.msra.mxu0 0
      %7627 = vmatprep.subr.bf16.mxu0 0
      %7628 = vmatpush1.bf16.msra.mxu0 0
      %7629 = vmatprep.subr.bf16.mxu0 0
      %7630 = vmatpush1.bf16.msra.mxu0 0
      %7631 = vmatprep.subr.bf16.mxu0 0
      %7632 = vmatpush1.bf16.msra.mxu0 0
      %7633 = vmatprep.subr.bf16.mxu0 0
      %7634 = vmatpush1.bf16.msra.mxu0 0
      %7635 = vmatprep.subr.bf16.mxu0 0
      %7636 = vmatpush1.bf16.msra.mxu0 0
      %7637 = vmatprep.subr.bf16.mxu0 0
      %7638 = vmatpush1.bf16.msra.mxu0 0
      %7639 = vmatprep.subr.bf16.mxu0 0
      %7640 = vmatpush1.bf16.msra.mxu0 0
      %7641 = vmatprep.mubr.bf16.mxu0 0
      %7642 = vmatmul.mubr.bf16.gmra.mrb[0].mxu0 %v7592
      %v7643 = vpop.f32.mrb[0].mxu0
      %v7644 = vadd.f32 0.0, %v7643
      %v7645 = vpop.f32.mrb[0].mxu0
      %v7646 = vpop.f32.mrb[0].mxu0
      %v7647 = vadd.f32 0.0, %v7646
      %v7648 = vpop.f32.mrb[0].mxu0
      %7649 = vmatprep.mubr.bf16.mxu0 0
      %7650 = vmatmul.mubr.bf16.gmra.mrb[0].mxu0 %v7595
      %v7651 = vpop.f32.mrb[0].mxu0
      %v7652 = vadd.f32 0.0, %v7651
      %v7653 = vpop.f32.mrb[0].mxu0
      %v7654 = vpop.f32.mrb[0].mxu0
      %v7655 = vadd.f32 0.0, %v7654
      %v7656 = vpop.f32.mrb[0].mxu0
      %7657 = vmatprep.mubr.bf16.mxu0 0
      %7658 = vmatmul.mubr.bf16.gmra.mrb[0].mxu0 %v7598
      %v7659 = vpop.f32.mrb[0].mxu0
      %v7660 = vadd.f32 0.0, %v7659
      %v7661 = vpop.f32.mrb[0].mxu0
      %v7662 = vpop.f32.mrb[0].mxu0
      %v7663 = vadd.f32 0.0, %v7662
      %v7664 = vpop.f32.mrb[0].mxu0
      %7665 = vmatprep.mubr.bf16.mxu0 0
      %7666 = vmatmul.mubr.bf16.gmra.mrb[0].mxu0 %v7601
      %v7667 = vpop.f32.mrb[0].mxu0
      %v7668 = vadd.f32 0.0, %v7667
      %v7669 = vpop.f32.mrb[0].mxu0
      %v7670 = vpop.f32.mrb[0].mxu0
      %v7671 = vadd.f32 0.0, %v7670
      %v7672 = vpop.f32.mrb[0].mxu0
      %7673 = vmatprep.mubr.bf16.mxu0 0
      %7674 = vmatmul.mubr.bf16.gmra.mrb[0].mxu0 %v7604
      %v7675 = vpop.f32.mrb[0].mxu0
      %v7676 = vadd.f32 0.0, %v7675
      %v7677 = vpop.f32.mrb[0].mxu0
      %v7678 = vpop.f32.mrb[0].mxu0
      %v7679 = vadd.f32 0.0, %v7678
      %v7680 = vpop.f32.mrb[0].mxu0
      %7681 = vdwg.mxu0
      %v7682 = vadd.f32 %v7565, %v7644
      %v7683 = vadd.f32 %v7566, %v7647
      %v7684 = vadd.f32 %v7567, %v7652
      %v7685 = vadd.f32 %v7568, %v7655
      %v7686 = vadd.f32 %v7569, %v7660
      %v7687 = vadd.f32 %v7570, %v7663
      %v7688 = vadd.f32 %v7571, %v7668
      %v7689 = vadd.f32 %v7572, %v7671
      %v7690 = vadd.f32 %v7573, %v7676
      %v7691 = vadd.f32 %v7574, %v7679
      %v7692 = vld [vmem:[#allocation3 + $0x94] sm:$0xff]
      %v7693 = vld [vmem:[#allocation3 + $0x9c] sm:$0xff]
      %v7694 = vld [vmem:[#allocation3 + $0xa4] sm:$0xff]
      %v7695 = vld [vmem:[#allocation3 + $0xac] sm:$0xff]
      %v7696 = vld [vmem:[#allocation3 + $0xb4] sm:$0xff]
      %v7697 = vld [vmem:[#allocation3 + $0xbc] sm:$0xff]
      %v7698 = vld [vmem:[#allocation3 + $0xc4] sm:$0xff]
      %v7699 = vld [vmem:[#allocation3 + $0xcc] sm:$0xff]
      %v7700 = vld [vmem:[#allocation3 + $0xd4] sm:$0xff]
      %v7701 = vld [vmem:[#allocation3 + $0xdc] sm:$0xff]
      %v7702 = vpack.c.bf16 %v7693, %v7692
      %v7703 = vpack.c.bf16 %v7695, %v7694
      %v7704 = vpack.c.bf16 %v7697, %v7696
      %v7705 = vpack.c.bf16 %v7699, %v7698
      %v7706 = vpack.c.bf16 %v7701, %v7700
      %v7707 = vld [vmem:[%s4791] sm:$0xf]
      %v7709 = vsel %vm1996, %v7702, 0
      %v7712 = vsel %vm1996, %v7703, 0
      %v7715 = vsel %vm1996, %v7704, 0
      %v7718 = vsel %vm1996, %v7705, 0
      %v7721 = vsel %vm1996, %v7706, 0
      %v7724 = vsel %vm2012, %v7707, 0
      %7726 = vmatprep.subr.bf16.mxu0 0
      %7727 = vmatpush1.bf16.msra.mxu0 %v7724
      %7728 = vmatprep.subr.bf16.mxu0 0
      %7729 = vmatpush1.bf16.msra.mxu0 0
      %7730 = vmatprep.subr.bf16.mxu0 0
      %7731 = vmatpush1.bf16.msra.mxu0 0
      %7732 = vmatprep.subr.bf16.mxu0 0
      %7733 = vmatpush1.bf16.msra.mxu0 0
      %7734 = vmatprep.subr.bf16.mxu0 0
      %7735 = vmatpush1.bf16.msra.mxu0 0
      %7736 = vmatprep.subr.bf16.mxu0 0
      %7737 = vmatpush1.bf16.msra.mxu0 0
      %7738 = vmatprep.subr.bf16.mxu0 0
      %7739 = vmatpush1.bf16.msra.mxu0 0
      %7740 = vmatprep.subr.bf16.mxu0 0
      %7741 = vmatpush1.bf16.msra.mxu0 0
      %7742 = vmatprep.subr.bf16.mxu0 0
      %7743 = vmatpush1.bf16.msra.mxu0 0
      %7744 = vmatprep.subr.bf16.mxu0 0
      %7745 = vmatpush1.bf16.msra.mxu0 0
      %7746 = vmatprep.subr.bf16.mxu0 0
      %7747 = vmatpush1.bf16.msra.mxu0 0
      %7748 = vmatprep.subr.bf16.mxu0 0
      %7749 = vmatpush1.bf16.msra.mxu0 0
      %7750 = vmatprep.subr.bf16.mxu0 0
      %7751 = vmatpush1.bf16.msra.mxu0 0
      %7752 = vmatprep.subr.bf16.mxu0 0
      %7753 = vmatpush1.bf16.msra.mxu0 0
      %7754 = vmatprep.subr.bf16.mxu0 0
      %7755 = vmatpush1.bf16.msra.mxu0 0
      %7756 = vmatprep.subr.bf16.mxu0 0
      %7757 = vmatpush1.bf16.msra.mxu0 0
      %7758 = vmatprep.mubr.bf16.mxu0 0
      %7759 = vmatmul.mubr.bf16.gmra.mrb[0].mxu0 %v7709
      %v7760 = vpop.f32.mrb[0].mxu0
      %v7761 = vadd.f32 0.0, %v7760
      %v7762 = vpop.f32.mrb[0].mxu0
      %v7763 = vpop.f32.mrb[0].mxu0
      %v7764 = vadd.f32 0.0, %v7763
      %v7765 = vpop.f32.mrb[0].mxu0
      %7766 = vmatprep.mubr.bf16.mxu0 0
      %7767 = vmatmul.mubr.bf16.gmra.mrb[0].mxu0 %v7712
      %v7768 = vpop.f32.mrb[0].mxu0
      %v7769 = vadd.f32 0.0, %v7768
      %v7770 = vpop.f32.mrb[0].mxu0
      %v7771 = vpop.f32.mrb[0].mxu0
      %v7772 = vadd.f32 0.0, %v7771
      %v7773 = vpop.f32.mrb[0].mxu0
      %7774 = vmatprep.mubr.bf16.mxu0 0
      %7775 = vmatmul.mubr.bf16.gmra.mrb[0].mxu0 %v7715
      %v7776 = vpop.f32.mrb[0].mxu0
      %v7777 = vadd.f32 0.0, %v7776
      %v7778 = vpop.f32.mrb[0].mxu0
      %v7779 = vpop.f32.mrb[0].mxu0
      %v7780 = vadd.f32 0.0, %v7779
      %v7781 = vpop.f32.mrb[0].mxu0
      %7782 = vmatprep.mubr.bf16.mxu0 0
      %7783 = vmatmul.mubr.bf16.gmra.mrb[0].mxu0 %v7718
      %v7784 = vpop.f32.mrb[0].mxu0
      %v7785 = vadd.f32 0.0, %v7784
      %v7786 = vpop.f32.mrb[0].mxu0
      %v7787 = vpop.f32.mrb[0].mxu0
      %v7788 = vadd.f32 0.0, %v7787
      %v7789 = vpop.f32.mrb[0].mxu0
      %7790 = vmatprep.mubr.bf16.mxu0 0
      %7791 = vmatmul.mubr.bf16.gmra.mrb[0].mxu0 %v7721
      %v7792 = vpop.f32.mrb[0].mxu0
      %v7793 = vadd.f32 0.0, %v7792
      %v7794 = vpop.f32.mrb[0].mxu0
      %v7795 = vpop.f32.mrb[0].mxu0
      %v7796 = vadd.f32 0.0, %v7795
      %v7797 = vpop.f32.mrb[0].mxu0
      %7798 = vdwg.mxu0
      %v7799 = vadd.f32 %v7682, %v7761
      %v7800 = vadd.f32 %v7683, %v7764
      %v7801 = vadd.f32 %v7684, %v7769
      %v7802 = vadd.f32 %v7685, %v7772
      %v7803 = vadd.f32 %v7686, %v7777
      %v7804 = vadd.f32 %v7687, %v7780
      %v7805 = vadd.f32 %v7688, %v7785
      %v7806 = vadd.f32 %v7689, %v7788
      %v7807 = vadd.f32 %v7690, %v7793
      %v7808 = vadd.f32 %v7691, %v7796
      %7809 = vst [vmem:[#allocation4 + $0x50] sm:$0xff] %v7799
      %7810 = vst [vmem:[#allocation4 + $0x58] sm:$0xff] %v7800
      %7811 = vst [vmem:[#allocation4 + $0x60] sm:$0xff] %v7801
      %7812 = vst [vmem:[#allocation4 + $0x68] sm:$0xff] %v7802
      %7813 = vst [vmem:[#allocation4 + $0x70] sm:$0xff] %v7803
      %7814 = vst [vmem:[#allocation4 + $0x78] sm:$0xff] %v7804
      %7815 = vst [vmem:[#allocation4 + $0x80] sm:$0xff] %v7805
      %7816 = vst [vmem:[#allocation4 + $0x88] sm:$0xff] %v7806
      %7817 = vst [vmem:[#allocation4 + $0x90] sm:$0xff] %v7807
      %7818 = vst [vmem:[#allocation4 + $0x98] sm:$0xff] %v7808
      %7819 = vst [vmem:[#allocation5] sm:$0xff] 0.0
      %7820 = vst [vmem:[#allocation5 + $0x8] sm:$0xff] 0.0
      %7821 = vst [vmem:[#allocation5 + $0x10] sm:$0xff] 0.0
      %7822 = vst [vmem:[#allocation5 + $0x18] sm:$0xff] 0.0
      %v7823 = vld [vmem:[%s4] sm:$0x1]
      %v7824 = vld [vmem:[#allocation4] ss:$2 sm:$0x1f]
      %s7825 = scalar_lea.vmem [#allocation4], 1
      %v7826 = vld [vmem:[%s7825] ss:$2 sm:$0x1f]
      %s7827 = scalar_lea.vmem [#allocation4], 16
      %v7828 = vld [vmem:[%s7827] ss:$2 sm:$0x1f]
      %s7829 = scalar_lea.vmem [#allocation4], 17
      %v7830 = vld [vmem:[%s7829] ss:$2 sm:$0x1f]
      %v7831 = vmax.f32 %v7824, %v7826
      %v7832 = vmax.f32 %v7828, %v7830
      %v7833 = vmax.f32 %v7831, %v7832
      %v7835 = vlaneseq
      %v7836 = vshrl.u32 %v7835, 7
      %v7837 = vsub.s32 0, %v7836
      %v7838 = vrot.slane %v7823, %v7837
      %v7840 = vadd.f32 %v7833, %v7838
      %v7841 = vmax.f32 %v7840, 0.0
      %vm7842 = vcmask 122880
      %7843 = vst.msk [vmem:[#allocation5] sm:$0x1] %vm7842, %v7841
      %v7845 = vrot.slane %v7841, 1
      %7846 = vrot.lane.b32.xlu0 %v7845, 16
      %v7847 = vpop.permute.xlu0 %7846
      %vm7849 = vcmask 254080
      %7850 = vst.msk [vmem:[#allocation5] sm:$0x1] %vm7849, %v7847
      %v7851 = vrot.slane %v7841, 2
      %7852 = vrot.lane.b32.xlu0 %v7851, 32
      %v7853 = vpop.permute.xlu0 %7852
      %vm7855 = vcmask 385280
      %7856 = vst.msk [vmem:[#allocation5] sm:$0x1] %vm7855, %v7853
      %v7857 = vrot.slane %v7841, 3
      %7858 = vrot.lane.b32.xlu0 %v7857, 48
      %v7859 = vpop.permute.xlu0 %7858
      %vm7861 = vcmask 516480
      %7862 = vst.msk [vmem:[#allocation5] sm:$0x1] %vm7861, %v7859
      %v7863 = vrot.slane %v7841, 4
      %7864 = vrot.lane.b32.xlu0 %v7863, 64
      %v7865 = vpop.permute.xlu0 %7864
      %vm7867 = vcmask 647680
      %7868 = vst.msk [vmem:[#allocation5] sm:$0x1] %vm7867, %v7865
      %s7869 = scalar_lea.vmem [#allocation4], 32
      %v7870 = vld [vmem:[%s7869] ss:$2 sm:$0x1f]
      %s7871 = scalar_lea.vmem [#allocation4], 33
      %v7872 = vld [vmem:[%s7871] ss:$2 sm:$0x1f]
      %s7873 = scalar_lea.vmem [#allocation4], 48
      %v7874 = vld [vmem:[%s7873] ss:$2 sm:$0x1f]
      %s7875 = scalar_lea.vmem [#allocation4], 49
      %v7876 = vld [vmem:[%s7875] ss:$2 sm:$0x1f]
      %v7877 = vmax.f32 %v7870, %v7872
      %v7878 = vmax.f32 %v7874, %v7876
      %v7879 = vmax.f32 %v7877, %v7878
      %v7880 = vadd.f32 %v7879, %v7838
      %v7881 = vmax.f32 %v7880, 0.0
      %7883 = vrot.lane.b32.xlu0 %v7881, 80
      %v7884 = vpop.permute.xlu0 %7883
      %vm7886 = vcmask 778880
      %7887 = vst.msk [vmem:[#allocation5] sm:$0x1] %vm7886, %v7884
      %v7888 = vrot.slane %v7881, 1
      %7889 = vrot.lane.b32.xlu0 %v7888, 96
      %v7890 = vpop.permute.xlu0 %7889
      %vm7892 = vcmask 910080
      %7893 = vst.msk [vmem:[#allocation5] sm:$0x1] %vm7892, %v7890
      %v7894 = vrot.slane %v7881, 2
      %7895 = vrot.lane.b32.xlu0 %v7894, 112
      %v7896 = vpop.permute.xlu0 %7895
      %vm7898 = vcmask 1041280
      %7899 = vst.msk [vmem:[#allocation5] sm:$0x1] %vm7898, %v7896
      %v7900 = vrot.slane %v7881, 3
      %7902 = vst.msk [vmem:[#allocation5 + $0x8] sm:$0x1] %vm7842, %v7900
      %v7903 = vrot.slane %v7881, 4
      %7904 = vrot.lane.b32.xlu0 %v7903, 16
      %v7905 = vpop.permute.xlu0 %7904
      %7907 = vst.msk [vmem:[#allocation5 + $0x8] sm:$0x1] %vm7849, %v7905
      %s7908 = scalar_lea.vmem [#allocation4], 64
      %v7909 = vld [vmem:[%s7908] ss:$2 sm:$0x1f]
      %s7910 = scalar_lea.vmem [#allocation4], 65
      %v7911 = vld [vmem:[%s7910] ss:$2 sm:$0x1f]
      %s7912 = scalar_lea.vmem [#allocation4], 80
      %v7913 = vld [vmem:[%s7912] ss:$2 sm:$0x1f]
      %s7914 = scalar_lea.vmem [#allocation4], 81
      %v7915 = vld [vmem:[%s7914] ss:$2 sm:$0x1f]
      %v7916 = vmax.f32 %v7909, %v7911
      %v7917 = vmax.f32 %v7913, %v7915
      %v7918 = vmax.f32 %v7916, %v7917
      %v7919 = vadd.f32 %v7918, %v7838
      %v7920 = vmax.f32 %v7919, 0.0
      %7922 = vrot.lane.b32.xlu0 %v7920, 32
      %v7923 = vpop.permute.xlu0 %7922
      %7925 = vst.msk [vmem:[#allocation5 + $0x8] sm:$0x1] %vm7855, %v7923
      %v7926 = vrot.slane %v7920, 1
      %7927 = vrot.lane.b32.xlu0 %v7926, 48
      %v7928 = vpop.permute.xlu0 %7927
      %7930 = vst.msk [vmem:[#allocation5 + $0x8] sm:$0x1] %vm7861, %v7928
      %v7931 = vrot.slane %v7920, 2
      %7932 = vrot.lane.b32.xlu0 %v7931, 64
      %v7933 = vpop.permute.xlu0 %7932
      %7935 = vst.msk [vmem:[#allocation5 + $0x8] sm:$0x1] %vm7867, %v7933
      %v7936 = vrot.slane %v7920, 3
      %7937 = vrot.lane.b32.xlu0 %v7936, 80
      %v7938 = vpop.permute.xlu0 %7937
      %7940 = vst.msk [vmem:[#allocation5 + $0x8] sm:$0x1] %vm7886, %v7938
      %v7941 = vrot.slane %v7920, 4
      %7942 = vrot.lane.b32.xlu0 %v7941, 96
      %v7943 = vpop.permute.xlu0 %7942
      %7945 = vst.msk [vmem:[#allocation5 + $0x8] sm:$0x1] %vm7892, %v7943
      %s7946 = scalar_lea.vmem [#allocation4], 96
      %v7947 = vld [vmem:[%s7946] ss:$2 sm:$0x1f]
      %s7948 = scalar_lea.vmem [#allocation4], 97
      %v7949 = vld [vmem:[%s7948] ss:$2 sm:$0x1f]
      %s7950 = scalar_lea.vmem [#allocation4], 112
      %v7951 = vld [vmem:[%s7950] ss:$2 sm:$0x1f]
      %s7952 = scalar_lea.vmem [#allocation4], 113
      %v7953 = vld [vmem:[%s7952] ss:$2 sm:$0x1f]
      %v7954 = vmax.f32 %v7947, %v7949
      %v7955 = vmax.f32 %v7951, %v7953
      %v7956 = vmax.f32 %v7954, %v7955
      %v7957 = vadd.f32 %v7956, %v7838
      %v7958 = vmax.f32 %v7957, 0.0
      %7960 = vrot.lane.b32.xlu0 %v7958, 112
      %v7961 = vpop.permute.xlu0 %7960
      %7963 = vst.msk [vmem:[#allocation5 + $0x8] sm:$0x1] %vm7898, %v7961
      %v7964 = vrot.slane %v7958, 1
      %7966 = vst.msk [vmem:[#allocation5 + $0x10] sm:$0x1] %vm7842, %v7964
      %v7967 = vrot.slane %v7958, 2
      %7968 = vrot.lane.b32.xlu0 %v7967, 16
      %v7969 = vpop.permute.xlu0 %7968
      %7971 = vst.msk [vmem:[#allocation5 + $0x10] sm:$0x1] %vm7849, %v7969
      %v7972 = vrot.slane %v7958, 3
      %7973 = vrot.lane.b32.xlu0 %v7972, 32
      %v7974 = vpop.permute.xlu0 %7973
      %7976 = vst.msk [vmem:[#allocation5 + $0x10] sm:$0x1] %vm7855, %v7974
      %v7977 = vrot.slane %v7958, 4
      %7978 = vrot.lane.b32.xlu0 %v7977, 48
      %v7979 = vpop.permute.xlu0 %7978
      %7981 = vst.msk [vmem:[#allocation5 + $0x10] sm:$0x1] %vm7861, %v7979
      %s7982 = scalar_lea.vmem [#allocation4], 128
      %v7983 = vld [vmem:[%s7982] ss:$2 sm:$0x1f]
      %s7984 = scalar_lea.vmem [#allocation4], 129
      %v7985 = vld [vmem:[%s7984] ss:$2 sm:$0x1f]
      %s7986 = scalar_lea.vmem [#allocation4], 144
      %v7987 = vld [vmem:[%s7986] ss:$2 sm:$0x1f]
      %s7988 = scalar_lea.vmem [#allocation4], 145
      %v7989 = vld [vmem:[%s7988] ss:$2 sm:$0x1f]
      %v7990 = vmax.f32 %v7983, %v7985
      %v7991 = vmax.f32 %v7987, %v7989
      %v7992 = vmax.f32 %v7990, %v7991
      %v7993 = vadd.f32 %v7992, %v7838
      %v7994 = vmax.f32 %v7993, 0.0
      %7996 = vrot.lane.b32.xlu0 %v7994, 64
      %v7997 = vpop.permute.xlu0 %7996
      %7999 = vst.msk [vmem:[#allocation5 + $0x10] sm:$0x1] %vm7867, %v7997
      %v8000 = vrot.slane %v7994, 1
      %8001 = vrot.lane.b32.xlu0 %v8000, 80
      %v8002 = vpop.permute.xlu0 %8001
      %8004 = vst.msk [vmem:[#allocation5 + $0x10] sm:$0x1] %vm7886, %v8002
      %v8005 = vrot.slane %v7994, 2
      %8006 = vrot.lane.b32.xlu0 %v8005, 96
      %v8007 = vpop.permute.xlu0 %8006
      %8009 = vst.msk [vmem:[#allocation5 + $0x10] sm:$0x1] %vm7892, %v8007
      %v8010 = vrot.slane %v7994, 3
      %8011 = vrot.lane.b32.xlu0 %v8010, 112
      %v8012 = vpop.permute.xlu0 %8011
      %8014 = vst.msk [vmem:[#allocation5 + $0x10] sm:$0x1] %vm7898, %v8012
      %v8015 = vrot.slane %v7994, 4
      %8017 = vst.msk [vmem:[#allocation5 + $0x18] sm:$0x1] %vm7842, %v8015
      %v8018 = vld [vmem:[#allocation5] ss:$8 sm:$0xf]
      %v8020 = vlaneseq
      %v8021 = vshrl.u32 %v8020, 7
      %v8022 = vsub.s32 0, %v8021
      %v8023 = vrot.slane %v8018, %v8022
      %v8024 = vlaneseq
      %v8025 = vshrl.u32 %v8024, 7
      %v8026 = vsub.s32 1, %v8025
      %v8027 = vrot.slane %v8018, %v8026
      %v8028 = vlaneseq
      %v8029 = vshrl.u32 %v8028, 7
      %v8030 = vsub.s32 2, %v8029
      %v8031 = vrot.slane %v8018, %v8030
      %v8032 = vlaneseq
      %v8033 = vshrl.u32 %v8032, 7
      %v8034 = vsub.s32 3, %v8033
      %v8035 = vrot.slane %v8018, %v8034
      %v8040 = vpack.c.bf16 %v8023, %v8023
      %v8041 = vpack.c.bf16 %v8027, %v8027
      %v8042 = vpack.c.bf16 %v8031, %v8031
      %v8043 = vpack.c.bf16 %v8035, %v8035
      %v8044 = vld [vmem:[%s5] sm:$0xf]
      %v8045 = vld [vmem:[%s5 + $0x4] sm:$0xf]
      %v8046 = vld [vmem:[%s5 + $0x8] sm:$0xf]
      %v8047 = vld [vmem:[%s5 + $0xc] sm:$0xf]
      %v8048 = vld [vmem:[%s5 + $0x10] sm:$0xf]
      %v8049 = vld [vmem:[%s5 + $0x14] sm:$0xf]
      %v8050 = vld [vmem:[%s5 + $0x18] sm:$0xf]
      %v8051 = vld [vmem:[%s5 + $0x1c] sm:$0xf]
      %v8052 = vld [vmem:[%s5 + $0x20] sm:$0xf]
      %v8053 = vld [vmem:[%s5 + $0x24] sm:$0xf]
      %v8054 = vld [vmem:[%s5 + $0x28] sm:$0xf]
      %v8055 = vld [vmem:[%s5 + $0x2c] sm:$0xf]
      %v8056 = vld [vmem:[%s5 + $0x30] sm:$0xf]
      %v8057 = vld [vmem:[%s5 + $0x34] sm:$0xf]
      %v8058 = vld [vmem:[%s5 + $0x38] sm:$0xf]
      %v8059 = vld [vmem:[%s5 + $0x3c] sm:$0xf]
      %v8060 = vld [vmem:[%s5 + $0x40] sm:$0xf]
      %v8061 = vld [vmem:[%s5 + $0x44] sm:$0xf]
      %v8062 = vld [vmem:[%s5 + $0x48] sm:$0xf]
      %v8063 = vld [vmem:[%s5 + $0x4c] sm:$0xf]
      %v8064 = vld [vmem:[%s5 + $0x50] sm:$0xf]
      %v8065 = vld [vmem:[%s5 + $0x54] sm:$0xf]
      %v8066 = vld [vmem:[%s5 + $0x58] sm:$0xf]
      %v8067 = vld [vmem:[%s5 + $0x5c] sm:$0xf]
      %v8068 = vld [vmem:[%s5 + $0x60] sm:$0xf]
      %v8069 = vld [vmem:[%s5 + $0x64] sm:$0xf]
      %v8070 = vld [vmem:[%s5 + $0x68] sm:$0xf]
      %v8071 = vld [vmem:[%s5 + $0x6c] sm:$0xf]
      %v8072 = vld [vmem:[%s5 + $0x70] sm:$0xf]
      %v8073 = vld [vmem:[%s5 + $0x74] sm:$0xf]
      %v8074 = vld [vmem:[%s5 + $0x78] sm:$0xf]
      %v8075 = vld [vmem:[%s5 + $0x7c] sm:$0xf]
      %v8076 = vld [vmem:[%s5 + $0x80] sm:$0xf]
      %v8077 = vld [vmem:[%s5 + $0x84] sm:$0xf]
      %v8078 = vld [vmem:[%s5 + $0x88] sm:$0xf]
      %v8079 = vld [vmem:[%s5 + $0x8c] sm:$0xf]
      %v8080 = vld [vmem:[%s5 + $0x90] sm:$0xf]
      %v8081 = vld [vmem:[%s5 + $0x94] sm:$0xf]
      %v8082 = vld [vmem:[%s5 + $0x98] sm:$0xf]
      %v8083 = vld [vmem:[%s5 + $0x9c] sm:$0xf]
      %v8084 = vld [vmem:[%s5 + $0xa0] sm:$0xf]
      %v8085 = vld [vmem:[%s5 + $0xa4] sm:$0xf]
      %v8086 = vld [vmem:[%s5 + $0xa8] sm:$0xf]
      %v8087 = vld [vmem:[%s5 + $0xac] sm:$0xf]
      %v8088 = vld [vmem:[%s5 + $0xb0] sm:$0xf]
      %v8089 = vld [vmem:[%s5 + $0xb4] sm:$0xf]
      %v8090 = vld [vmem:[%s5 + $0xb8] sm:$0xf]
      %v8091 = vld [vmem:[%s5 + $0xbc] sm:$0xf]
      %v8092 = vld [vmem:[%s5 + $0xc0] sm:$0xf]
      %v8093 = vld [vmem:[%s5 + $0xc4] sm:$0xf]
      %v8094 = vld [vmem:[%s5 + $0xc8] sm:$0xf]
      %v8095 = vld [vmem:[%s5 + $0xcc] sm:$0xf]
      %v8096 = vld [vmem:[%s5 + $0xd0] sm:$0xf]
      %v8097 = vld [vmem:[%s5 + $0xd4] sm:$0xf]
      %v8098 = vld [vmem:[%s5 + $0xd8] sm:$0xf]
      %v8099 = vld [vmem:[%s5 + $0xdc] sm:$0xf]
      %v8100 = vld [vmem:[%s5 + $0xe0] sm:$0xf]
      %v8101 = vld [vmem:[%s5 + $0xe4] sm:$0xf]
      %v8102 = vld [vmem:[%s5 + $0xe8] sm:$0xf]
      %v8103 = vld [vmem:[%s5 + $0xec] sm:$0xf]
      %v8104 = vld [vmem:[%s5 + $0xf0] sm:$0xf]
      %v8105 = vld [vmem:[%s5 + $0xf4] sm:$0xf]
      %v8106 = vld [vmem:[%s5 + $0xf8] sm:$0xf]
      %v8107 = vld [vmem:[%s5 + $0xfc] sm:$0xf]
      %v8108 = vld [vmem:[%s6] sm:$0x1]
      %v8173 = vunpack.c.l.b16 %v8044
      %v8174 = vunpack.c.l.b16 %v8045
      %v8175 = vunpack.c.l.b16 %v8046
      %v8176 = vunpack.c.l.b16 %v8047
      %v8177 = vunpack.c.l.b16 %v8048
      %v8178 = vunpack.c.l.b16 %v8049
      %v8179 = vunpack.c.l.b16 %v8050
      %v8180 = vunpack.c.l.b16 %v8051
      %v8181 = vunpack.c.l.b16 %v8052
      %v8182 = vunpack.c.l.b16 %v8053
      %v8183 = vunpack.c.l.b16 %v8054
      %v8184 = vunpack.c.l.b16 %v8055
      %v8185 = vunpack.c.l.b16 %v8056
      %v8186 = vunpack.c.l.b16 %v8057
      %v8187 = vunpack.c.l.b16 %v8058
      %v8188 = vunpack.c.l.b16 %v8059
      %v8189 = vunpack.c.l.b16 %v8060
      %v8190 = vunpack.c.l.b16 %v8061
      %v8191 = vunpack.c.l.b16 %v8062
      %v8192 = vunpack.c.l.b16 %v8063
      %v8193 = vunpack.c.l.b16 %v8064
      %v8194 = vunpack.c.l.b16 %v8065
      %v8195 = vunpack.c.l.b16 %v8066
      %v8196 = vunpack.c.l.b16 %v8067
      %v8197 = vunpack.c.l.b16 %v8068
      %v8198 = vunpack.c.l.b16 %v8069
      %v8199 = vunpack.c.l.b16 %v8070
      %v8200 = vunpack.c.l.b16 %v8071
      %v8201 = vunpack.c.l.b16 %v8072
      %v8202 = vunpack.c.l.b16 %v8073
      %v8203 = vunpack.c.l.b16 %v8074
      %v8204 = vunpack.c.l.b16 %v8075
      %v8205 = vunpack.c.l.b16 %v8076
      %v8206 = vunpack.c.l.b16 %v8077
      %v8207 = vunpack.c.l.b16 %v8078
      %v8208 = vunpack.c.l.b16 %v8079
      %v8209 = vunpack.c.l.b16 %v8080
      %v8210 = vunpack.c.l.b16 %v8081
      %v8211 = vunpack.c.l.b16 %v8082
      %v8212 = vunpack.c.l.b16 %v8083
      %v8213 = vunpack.c.l.b16 %v8084
      %v8214 = vunpack.c.l.b16 %v8085
      %v8215 = vunpack.c.l.b16 %v8086
      %v8216 = vunpack.c.l.b16 %v8087
      %v8217 = vunpack.c.l.b16 %v8088
      %v8218 = vunpack.c.l.b16 %v8089
      %v8219 = vunpack.c.l.b16 %v8090
      %v8220 = vunpack.c.l.b16 %v8091
      %v8221 = vunpack.c.l.b16 %v8092
      %v8222 = vunpack.c.l.b16 %v8093
      %v8223 = vunpack.c.l.b16 %v8094
      %v8224 = vunpack.c.l.b16 %v8095
      %v8225 = vunpack.c.l.b16 %v8096
      %v8226 = vunpack.c.l.b16 %v8097
      %v8227 = vunpack.c.l.b16 %v8098
      %v8228 = vunpack.c.l.b16 %v8099
      %v8229 = vunpack.c.l.b16 %v8100
      %v8230 = vunpack.c.l.b16 %v8101
      %v8231 = vunpack.c.l.b16 %v8102
      %v8232 = vunpack.c.l.b16 %v8103
      %v8233 = vunpack.c.l.b16 %v8104
      %v8234 = vunpack.c.l.b16 %v8105
      %v8235 = vunpack.c.l.b16 %v8106
      %v8236 = vunpack.c.l.b16 %v8107
      %v8237 = vpack.c.b16 %v8174, %v8173
      %v8238 = vpack.c.b16 %v8176, %v8175
      %v8239 = vpack.c.b16 %v8178, %v8177
      %v8240 = vpack.c.b16 %v8180, %v8179
      %v8241 = vpack.c.b16 %v8182, %v8181
      %v8242 = vpack.c.b16 %v8184, %v8183
      %v8243 = vpack.c.b16 %v8186, %v8185
      %v8244 = vpack.c.b16 %v8188, %v8187
      %v8245 = vpack.c.b16 %v8190, %v8189
      %v8246 = vpack.c.b16 %v8192, %v8191
      %v8247 = vpack.c.b16 %v8194, %v8193
      %v8248 = vpack.c.b16 %v8196, %v8195
      %v8249 = vpack.c.b16 %v8198, %v8197
      %v8250 = vpack.c.b16 %v8200, %v8199
      %v8251 = vpack.c.b16 %v8202, %v8201
      %v8252 = vpack.c.b16 %v8204, %v8203
      %v8253 = vpack.c.b16 %v8206, %v8205
      %v8254 = vpack.c.b16 %v8208, %v8207
      %v8255 = vpack.c.b16 %v8210, %v8209
      %v8256 = vpack.c.b16 %v8212, %v8211
      %v8257 = vpack.c.b16 %v8214, %v8213
      %v8258 = vpack.c.b16 %v8216, %v8215
      %v8259 = vpack.c.b16 %v8218, %v8217
      %v8260 = vpack.c.b16 %v8220, %v8219
      %v8261 = vpack.c.b16 %v8222, %v8221
      %v8262 = vpack.c.b16 %v8224, %v8223
      %v8263 = vpack.c.b16 %v8226, %v8225
      %v8264 = vpack.c.b16 %v8228, %v8227
      %v8265 = vpack.c.b16 %v8230, %v8229
      %v8266 = vpack.c.b16 %v8232, %v8231
      %v8267 = vpack.c.b16 %v8234, %v8233
      %v8268 = vpack.c.b16 %v8236, %v8235
      %8301 = vmatprep.subr.bf16.mxu0 0
      %8302 = vmatpush1.bf16.msra.mxu0 %v8237
      %8303 = vmatprep.subr.bf16.mxu0 0
      %8304 = vmatpush1.bf16.msra.mxu0 %v8238
      %8305 = vmatprep.subr.bf16.mxu0 0
      %8306 = vmatpush1.bf16.msra.mxu0 %v8239
      %8307 = vmatprep.subr.bf16.mxu0 0
      %8308 = vmatpush1.bf16.msra.mxu0 %v8240
      %8309 = vmatprep.subr.bf16.mxu0 0
      %8310 = vmatpush1.bf16.msra.mxu0 %v8241
      %8311 = vmatprep.subr.bf16.mxu0 0
      %8312 = vmatpush1.bf16.msra.mxu0 %v8242
      %8313 = vmatprep.subr.bf16.mxu0 0
      %8314 = vmatpush1.bf16.msra.mxu0 %v8243
      %8315 = vmatprep.subr.bf16.mxu0 0
      %8316 = vmatpush1.bf16.msra.mxu0 %v8244
      %8317 = vmatprep.subr.bf16.mxu0 0
      %8318 = vmatpush1.bf16.msra.mxu0 %v8245
      %8319 = vmatprep.subr.bf16.mxu0 0
      %8320 = vmatpush1.bf16.msra.mxu0 %v8246
      %8321 = vmatprep.subr.bf16.mxu0 0
      %8322 = vmatpush1.bf16.msra.mxu0 %v8247
      %8323 = vmatprep.subr.bf16.mxu0 0
      %8324 = vmatpush1.bf16.msra.mxu0 %v8248
      %8325 = vmatprep.subr.bf16.mxu0 0
      %8326 = vmatpush1.bf16.msra.mxu0 %v8249
      %8327 = vmatprep.subr.bf16.mxu0 0
      %8328 = vmatpush1.bf16.msra.mxu0 %v8250
      %8329 = vmatprep.subr.bf16.mxu0 0
      %8330 = vmatpush1.bf16.msra.mxu0 %v8251
      %8331 = vmatprep.subr.bf16.mxu0 0
      %8332 = vmatpush1.bf16.msra.mxu0 %v8252
      %8333 = vmatprep.mubr.bf16.mxu0 %v8041
      %8334 = vmatmul.mubr.bf16.gmra.mrb[0].mxu0 %v8040
      %v8335 = vpop.f32.mrb[0].mxu0
      %v8336 = vadd.f32 %v8108, %v8335
      %v8337 = vpop.f32.mrb[0].mxu0
      %v8338 = vpop.f32.mrb[0].mxu0
      %v8339 = vpop.f32.mrb[0].mxu0
      %8340 = vdwg.mxu0
      %8341 = vmatprep.subr.bf16.mxu0 0
      %8342 = vmatpush1.bf16.msra.mxu0 %v8253
      %8343 = vmatprep.subr.bf16.mxu0 0
      %8344 = vmatpush1.bf16.msra.mxu0 %v8254
      %8345 = vmatprep.subr.bf16.mxu0 0
      %8346 = vmatpush1.bf16.msra.mxu0 %v8255
      %8347 = vmatprep.subr.bf16.mxu0 0
      %8348 = vmatpush1.bf16.msra.mxu0 %v8256
      %8349 = vmatprep.subr.bf16.mxu0 0
      %8350 = vmatpush1.bf16.msra.mxu0 %v8257
      %8351 = vmatprep.subr.bf16.mxu0 0
      %8352 = vmatpush1.bf16.msra.mxu0 %v8258
      %8353 = vmatprep.subr.bf16.mxu0 0
      %8354 = vmatpush1.bf16.msra.mxu0 %v8259
      %8355 = vmatprep.subr.bf16.mxu0 0
      %8356 = vmatpush1.bf16.msra.mxu0 %v8260
      %8357 = vmatprep.subr.bf16.mxu0 0
      %8358 = vmatpush1.bf16.msra.mxu0 %v8261
      %8359 = vmatprep.subr.bf16.mxu0 0
      %8360 = vmatpush1.bf16.msra.mxu0 %v8262
      %8361 = vmatprep.subr.bf16.mxu0 0
      %8362 = vmatpush1.bf16.msra.mxu0 %v8263
      %8363 = vmatprep.subr.bf16.mxu0 0
      %8364 = vmatpush1.bf16.msra.mxu0 %v8264
      %8365 = vmatprep.subr.bf16.mxu0 0
      %8366 = vmatpush1.bf16.msra.mxu0 %v8265
      %8367 = vmatprep.subr.bf16.mxu0 0
      %8368 = vmatpush1.bf16.msra.mxu0 %v8266
      %8369 = vmatprep.subr.bf16.mxu0 0
      %8370 = vmatpush1.bf16.msra.mxu0 %v8267
      %8371 = vmatprep.subr.bf16.mxu0 0
      %8372 = vmatpush1.bf16.msra.mxu0 %v8268
      %8373 = vmatprep.mubr.bf16.mxu0 %v8043
      %8374 = vmatmul.mubr.bf16.gmra.mrb[0].mxu0 %v8042
      %v8375 = vpop.f32.mrb[0].mxu0
      %v8376 = vadd.f32 %v8336, %v8375
      %v8377 = vpop.f32.mrb[0].mxu0
      %v8378 = vpop.f32.mrb[0].mxu0
      %v8379 = vpop.f32.mrb[0].mxu0
      %8380 = vdwg.mxu0
      %v8381 = vmax.f32 %v8376, 0.0
      %v8382 = vpack.c.bf16 %v8381, %v8381
      %v8383 = vld [vmem:[%s7] sm:$0xf]
      %v8384 = vld [vmem:[%s7 + $0x4] sm:$0xf]
      %v8385 = vld [vmem:[%s7 + $0x8] sm:$0xf]
      %v8386 = vld [vmem:[%s7 + $0xc] sm:$0xf]
      %v8387 = vld [vmem:[%s7 + $0x10] sm:$0xf]
      %v8388 = vld [vmem:[%s7 + $0x14] sm:$0xf]
      %v8389 = vld [vmem:[%s7 + $0x18] sm:$0xf]
      %v8390 = vld [vmem:[%s7 + $0x1c] sm:$0xf]
      %v8391 = vld [vmem:[%s7 + $0x20] sm:$0xf]
      %v8392 = vld [vmem:[%s7 + $0x24] sm:$0xf]
      %v8393 = vld [vmem:[%s7 + $0x28] sm:$0xf]
      %v8394 = vld [vmem:[%s7 + $0x2c] sm:$0xf]
      %v8395 = vld [vmem:[%s7 + $0x30] sm:$0xf]
      %v8396 = vld [vmem:[%s7 + $0x34] sm:$0xf]
      %v8397 = vld [vmem:[%s7 + $0x38] sm:$0xf]
      %v8398 = vld [vmem:[%s7 + $0x3c] sm:$0xf]
      %v8399 = vld [vmem:[%s8] sm:$0x1]
      %v8416 = vunpack.c.l.b16 %v8383
      %v8417 = vunpack.c.l.b16 %v8384
      %v8418 = vunpack.c.l.b16 %v8385
      %v8419 = vunpack.c.l.b16 %v8386
      %v8420 = vunpack.c.l.b16 %v8387
      %v8421 = vunpack.c.l.b16 %v8388
      %v8422 = vunpack.c.l.b16 %v8389
      %v8423 = vunpack.c.l.b16 %v8390
      %v8424 = vunpack.c.l.b16 %v8391
      %v8425 = vunpack.c.l.b16 %v8392
      %v8426 = vunpack.c.l.b16 %v8393
      %v8427 = vunpack.c.l.b16 %v8394
      %v8428 = vunpack.c.l.b16 %v8395
      %v8429 = vunpack.c.l.b16 %v8396
      %v8430 = vunpack.c.l.b16 %v8397
      %v8431 = vunpack.c.l.b16 %v8398
      %v8432 = vpack.c.b16 %v8417, %v8416
      %v8433 = vpack.c.b16 %v8419, %v8418
      %v8434 = vpack.c.b16 %v8421, %v8420
      %v8435 = vpack.c.b16 %v8423, %v8422
      %v8436 = vpack.c.b16 %v8425, %v8424
      %v8437 = vpack.c.b16 %v8427, %v8426
      %v8438 = vpack.c.b16 %v8429, %v8428
      %v8439 = vpack.c.b16 %v8431, %v8430
      %8448 = vmatprep.subr.bf16.mxu0 0
      %8449 = vmatpush1.bf16.msra.mxu0 %v8432
      %8450 = vmatprep.subr.bf16.mxu0 0
      %8451 = vmatpush1.bf16.msra.mxu0 %v8433
      %8452 = vmatprep.subr.bf16.mxu0 0
      %8453 = vmatpush1.bf16.msra.mxu0 %v8434
      %8454 = vmatprep.subr.bf16.mxu0 0
      %8455 = vmatpush1.bf16.msra.mxu0 %v8435
      %8456 = vmatprep.subr.bf16.mxu0 0
      %8457 = vmatpush1.bf16.msra.mxu0 %v8436
      %8458 = vmatprep.subr.bf16.mxu0 0
      %8459 = vmatpush1.bf16.msra.mxu0 %v8437
      %8460 = vmatprep.subr.bf16.mxu0 0
      %8461 = vmatpush1.bf16.msra.mxu0 %v8438
      %8462 = vmatprep.subr.bf16.mxu0 0
      %8463 = vmatpush1.bf16.msra.mxu0 %v8439
      %8464 = vmatprep.subr.bf16.mxu0 0
      %8465 = vmatpush1.bf16.msra.mxu0 0
      %8466 = vmatprep.subr.bf16.mxu0 0
      %8467 = vmatpush1.bf16.msra.mxu0 0
      %8468 = vmatprep.subr.bf16.mxu0 0
      %8469 = vmatpush1.bf16.msra.mxu0 0
      %8470 = vmatprep.subr.bf16.mxu0 0
      %8471 = vmatpush1.bf16.msra.mxu0 0
      %8472 = vmatprep.subr.bf16.mxu0 0
      %8473 = vmatpush1.bf16.msra.mxu0 0
      %8474 = vmatprep.subr.bf16.mxu0 0
      %8475 = vmatpush1.bf16.msra.mxu0 0
      %8476 = vmatprep.subr.bf16.mxu0 0
      %8477 = vmatpush1.bf16.msra.mxu0 0
      %8478 = vmatprep.subr.bf16.mxu0 0
      %8479 = vmatpush1.bf16.msra.mxu0 0
      %8480 = vmatprep.mubr.bf16.mxu0 0
      %8481 = vmatmul.mubr.bf16.gmra.mrb[0].mxu0 %v8382
      %v8482 = vpop.f32.mrb[0].mxu0
      %v8483 = vadd.f32 %v8399, %v8482
      %v8484 = vpop.f32.mrb[0].mxu0
      %v8485 = vpop.f32.mrb[0].mxu0
      %v8486 = vpop.f32.mrb[0].mxu0
      %8487 = vdwg.mxu0
      %v8488 = vmax.f32 %v8483, 0.0
      %v8489 = vpack.c.bf16 %v8488, %v8488
      %v8490 = vld [vmem:[%s9] sm:$0xf]
      %v8491 = vld [vmem:[%s9 + $0x4] sm:$0xf]
      %v8492 = vld [vmem:[%s9 + $0x8] sm:$0xf]
      %v8493 = vld [vmem:[%s9 + $0xc] sm:$0xf]
      %v8494 = vld [vmem:[%s9 + $0x10] sm:$0xf]
      %v8495 = vld [vmem:[%s9 + $0x14] sm:$0xf]
      %v8496 = vld [vmem:[%s9 + $0x18] sm:$0xf]
      %v8497 = vld [vmem:[%s9 + $0x1c] sm:$0xf]
      %v8498 = vld [vmem:[%s9 + $0x20] sm:$0xf]
      %v8499 = vld [vmem:[%s9 + $0x24] sm:$0xf]
      %v8500 = vld [vmem:[%s9 + $0x28] sm:$0xf]
      %v8501 = vld [vmem:[%s9 + $0x2c] sm:$0xf]
      %v8502 = vld [vmem:[%s9 + $0x30] sm:$0xf]
      %v8503 = vld [vmem:[%s9 + $0x34] sm:$0xf]
      %v8504 = vld [vmem:[%s9 + $0x38] sm:$0xf]
      %v8505 = vld [vmem:[%s9 + $0x3c] sm:$0xf]
      %v8506 = vld [vmem:[%s10] sm:$0x1]
      %v8523 = vunpack.c.l.b16 %v8490
      %v8524 = vunpack.c.l.b16 %v8491
      %v8525 = vunpack.c.l.b16 %v8492
      %v8526 = vunpack.c.l.b16 %v8493
      %v8527 = vunpack.c.l.b16 %v8494
      %v8528 = vunpack.c.l.b16 %v8495
      %v8529 = vunpack.c.l.b16 %v8496
      %v8530 = vunpack.c.l.b16 %v8497
      %v8531 = vunpack.c.l.b16 %v8498
      %v8532 = vunpack.c.l.b16 %v8499
      %v8533 = vunpack.c.l.b16 %v8500
      %v8534 = vunpack.c.l.b16 %v8501
      %v8535 = vunpack.c.l.b16 %v8502
      %v8536 = vunpack.c.l.b16 %v8503
      %v8537 = vunpack.c.l.b16 %v8504
      %v8538 = vunpack.c.l.b16 %v8505
      %v8539 = vpack.c.b16 %v8524, %v8523
      %v8540 = vpack.c.b16 %v8526, %v8525
      %v8541 = vpack.c.b16 %v8528, %v8527
      %v8542 = vpack.c.b16 %v8530, %v8529
      %v8543 = vpack.c.b16 %v8532, %v8531
      %v8544 = vpack.c.b16 %v8534, %v8533
      %v8545 = vpack.c.b16 %v8536, %v8535
      %v8546 = vpack.c.b16 %v8538, %v8537
      %8555 = vmatprep.subr.bf16.mxu0 0
      %8556 = vmatpush1.bf16.msra.mxu0 %v8539
      %8557 = vmatprep.subr.bf16.mxu0 0
      %8558 = vmatpush1.bf16.msra.mxu0 %v8540
      %8559 = vmatprep.subr.bf16.mxu0 0
      %8560 = vmatpush1.bf16.msra.mxu0 %v8541
      %8561 = vmatprep.subr.bf16.mxu0 0
      %8562 = vmatpush1.bf16.msra.mxu0 %v8542
      %8563 = vmatprep.subr.bf16.mxu0 0
      %8564 = vmatpush1.bf16.msra.mxu0 %v8543
      %8565 = vmatprep.subr.bf16.mxu0 0
      %8566 = vmatpush1.bf16.msra.mxu0 %v8544
      %8567 = vmatprep.subr.bf16.mxu0 0
      %8568 = vmatpush1.bf16.msra.mxu0 %v8545
      %8569 = vmatprep.subr.bf16.mxu0 0
      %8570 = vmatpush1.bf16.msra.mxu0 %v8546
      %8571 = vmatprep.subr.bf16.mxu0 0
      %8572 = vmatpush1.bf16.msra.mxu0 0
      %8573 = vmatprep.subr.bf16.mxu0 0
      %8574 = vmatpush1.bf16.msra.mxu0 0
      %8575 = vmatprep.subr.bf16.mxu0 0
      %8576 = vmatpush1.bf16.msra.mxu0 0
      %8577 = vmatprep.subr.bf16.mxu0 0
      %8578 = vmatpush1.bf16.msra.mxu0 0
      %8579 = vmatprep.subr.bf16.mxu0 0
      %8580 = vmatpush1.bf16.msra.mxu0 0
      %8581 = vmatprep.subr.bf16.mxu0 0
      %8582 = vmatpush1.bf16.msra.mxu0 0
      %8583 = vmatprep.subr.bf16.mxu0 0
      %8584 = vmatpush1.bf16.msra.mxu0 0
      %8585 = vmatprep.subr.bf16.mxu0 0
      %8586 = vmatpush1.bf16.msra.mxu0 0
      %8587 = vmatprep.mubr.bf16.mxu0 0
      %8588 = vmatmul.mubr.bf16.gmra.mrb[0].mxu0 %v8489
      %v8589 = vpop.f32.mrb[0].mxu0
      %v8590 = vadd.f32 %v8506, %v8589
      %v8591 = vpop.f32.mrb[0].mxu0
      %v8592 = vpop.f32.mrb[0].mxu0
      %v8593 = vpop.f32.mrb[0].mxu0
      %8594 = vdwg.mxu0
      %v8595 = vlaneseq
      %v8596 = vshrl.u32 %v8595, 7
      %v8597 = vsub.s32 0, %v8596
      %v8598 = vrot.slane %v8590, %v8597
      %8599 = vst [vmem:[%s386] sm:$0xff] %v8598
      %p8600 = scmp.lt.s32.totalorder %s22, 1
      %s8601 = scalar_select %p8600, %s22, 1
      %s8602 = smul.addr %s8601, 8
      %s8603 = scalar_lea.vmem %s11, %s8602
      // Predicated region
      $region65: #{net_forward.1} parent=63 // pred_check
        %p8604 = pneg %p276
      $region66: #{net_forward.1} parent=63 // pred_check_branch
        %8606 = sbr.rel (%p8604) target = $region68
      $region67: #{net_forward.1} parent=63 // pred_region
        _
      $region68: #{net_forward.1} parent=63 // pred_fallthru
        _
    $region64: #{net_forward.1} parent=5 // pred_fallthru
      _
    %p8607 = scmp.le.s32.totalorder 2, %s17
    // Predicated region
    $region69: #{net_forward.1} parent=5 // pred_check
      %p8608 = pneg %p8607
    $region70: #{net_forward.1} parent=5 // pred_check_branch
      %8610 = sbr.rel (%p8608) target = $region72
    $region71: #{net_forward.1} parent=5 // pred_region
      %s8611 = ssub.s32 %s17, 2
      // Predicated region
      $region73: #{net_forward.1} parent=71 // pred_check
        %p8612 = pneg %p282
      $region74: #{net_forward.1} parent=71 // pred_check_branch
        %8614 = sbr.rel (%p8612) target = $region76
      $region75: #{net_forward.1} parent=71 // pred_region
        %p8615 = scmp.lt.s32.totalorder %s23, 1
        %s8616 = scalar_select %p8615, %s23, 1
        %s8617 = smul.addr %s8616, 8
        %s8618 = scalar_lea.vmem %s11, %s8617
      $region76: #{net_forward.1} parent=71 // pred_fallthru
        _
    $region72: #{net_forward.1} parent=5 // pred_fallthru
      _
  $region6: #{net_forward.1} parent=0 // loop_footer
    %s21 = sadd.s32 1, %s17
  $region7: #{net_forward.1} parent=0 // loop_footer_branch
    %16 = sbr.rel target = $region3
  $region8: #{net_forward.1} parent=0 // loop_exit
    _

</llo_original>
